<compile_context>
chip_gen: v7x
topology: tpu7x:2x2x1
jax: 0.10.0
libtpu: 0.0.40
codegen_flags: <defaults>
</compile_context>

<pallas_src>
import jax
import jax.numpy as jnp
from jax.experimental import pallas as pl
from jax.experimental.pallas import tpu as pltpu

EMB_POS = 10                   # embedding_dim_pos
EMB_DIR = 4                    # embedding_dim_direction
HIDDEN = 128                   # hidden_dim
H_HALF = HIDDEN // 2           # 64

D_EX = EMB_POS * 6 + 3         # 63
D_ED = EMB_DIR * 6 + 3         # 27
D_EX_PAD = 64                  # sublane/lane-friendly padded widths
D_ED_PAD = 32


# ----------------------------------------------------------------------------
# Positional encoding (elementwise sin/cos, done in f32 in the wrapper).
# ----------------------------------------------------------------------------
def positional_encoding(x, L):
    out = [x]
    for j in range(L):
        out.append(jnp.sin((2.0 ** j) * x))
        out.append(jnp.cos((2.0 ** j) * x))
    return jnp.concatenate(out, axis=1)


# ----------------------------------------------------------------------------
# Pallas kernel: full MLP for one row tile.
# ----------------------------------------------------------------------------
def nerf_kernel(ex_ref, ed_ref, wsq_ref, win_ref, w2d_ref, w3d_ref, w4_ref,
                b_ref, rgb_ref, sig_ref):
    f32 = jnp.float32
    bf16 = jnp.bfloat16

    ex = ex_ref[...]                    # (TN, 64)  bf16, col 63 zero-padded
    ed = ed_ref[...]                    # (TN, 32)  bf16, cols 27..31 zero-padded
    B = b_ref[...]                      # (10, 128) f32 packed biases

    def mm(x, w):                       # bf16 x bf16 -> f32 accumulate on the MXU
        return jnp.dot(x, w, preferred_element_type=f32)

    def act(acc, bias):                 # f32 bias + ReLU (v5e-safe); keep only bf16 live
        return jnp.maximum(acc + bias, 0.0).astype(bf16)

    # ---- block1: 4 x (Linear + ReLU) on emb_x ------------------------------
    h = act(mm(ex, win_ref[0]), B[0:1])
    h = act(mm(h, wsq_ref[0]), B[1:2])
    h = act(mm(h, wsq_ref[1]), B[2:3])
    h = act(mm(h, wsq_ref[2]), B[3:4])

    # ---- block2: first layer consumes cat(h, emb_x) via split dots ---------
    t = act(mm(h, wsq_ref[3]) + mm(ex, win_ref[1]), B[4:5])
    t = act(mm(t, wsq_ref[4]), B[5:6])
    t = act(mm(t, wsq_ref[5]), B[6:7])

    # last block2 layer (128 -> 129) folded into one 256-wide MXU matmul:
    #   cols 0..127 -> h2 (no activation), col 128 -> sigma pre-activation.
    u = mm(t, w2d_ref[...])                                           # (TN, 256) f32
    h2 = (u[:, :HIDDEN] + B[7:8]).astype(bf16)                        # (TN, 128) bf16
    sigma = jnp.maximum(u[:, HIDDEN:HIDDEN + 1] + B[9:10, 4:5], 0.0)  # (TN, 1) f32

    # ---- block3: cat(h2, emb_d) via split dots, padded to 128 out lanes ----
    h3 = act(mm(h2, wsq_ref[6]) + mm(ed, w3d_ref[...]), B[8:9])       # (TN, 128)

    # ---- block4: 128 -> 4 (col 3 zero-padded), sigmoid (EUP exp + recip) ---
    logits = mm(h3, w4_ref[...]) + B[9:10, 0:4]                       # (TN, 4) f32
    rgb = pl.reciprocal(1.0 + jnp.exp(-logits), approx=True)

    rgb_ref[...] = rgb.astype(rgb_ref.dtype)
    sig_ref[...] = sigma.astype(sig_ref.dtype)


# ----------------------------------------------------------------------------
# Parameter construction / repacking.
# ----------------------------------------------------------------------------
def make_params(key):
    """Deterministic synthetic parameters; weights stored as (in, out), f32."""
    dims = [
        (D_EX, HIDDEN), (HIDDEN, HIDDEN), (HIDDEN, HIDDEN), (HIDDEN, HIDDEN),        # block1
        (D_EX + HIDDEN, HIDDEN), (HIDDEN, HIDDEN), (HIDDEN, HIDDEN), (HIDDEN, HIDDEN + 1),  # block2
        (D_ED + HIDDEN, H_HALF),                                                     # block3
        (H_HALF, 3),                                                                 # block4
    ]
    params = []
    for i, (din, dout) in enumerate(dims):
        kw, kb = jax.random.split(jax.random.fold_in(key, i))
        bound = 1.0 / jnp.sqrt(jnp.float32(din))
        params.append(jax.random.uniform(kw, (din, dout), jnp.float32, -bound, bound))
        params.append(jax.random.uniform(kb, (1, dout), jnp.float32, -bound, bound))
    return params


def prepare_params(params):
    """Repack PyTorch-layout params into 6 kernel operands (bf16 weights,
    split/padded for (8,128)/(16,128) alignment, biases packed into one f32 array)."""
    (w1a, b1a, w1b, b1b, w1c, b1c, w1d, b1d,
     w2a, b2a, w2b, b2b, w2c, b2c, w2d, b2d,
     w3, b3, w4, b4) = params
    bf16 = jnp.bfloat16

    def pad_to(w, rows, cols):
        return jnp.pad(w, ((0, rows - w.shape[0]), (0, cols - w.shape[1])))

    # (7,128,128) slab: block1 b-d, block2 a(h)-c, block3(h) padded to 128 cols.
    w_sq = jnp.stack([
        w1b, w1c, w1d,
        w2a[:HIDDEN], w2b, w2c,
        pad_to(w3[:HIDDEN], HIDDEN, HIDDEN),
    ]).astype(bf16)

    # (2,64,128) slab: emb_x entry weights, rows padded 63 -> 64.
    w_in = jnp.stack([
        pad_to(w1a, D_EX_PAD, HIDDEN),
        pad_to(w2a[HIDDEN:], D_EX_PAD, HIDDEN),
    ]).astype(bf16)

    # block2 last layer (128 -> 129) packed as (128, 256):
    #   cols 0..127 = h2 weights, col 128 = sigma weights, cols 129..255 = 0.
    w2d_p = pad_to(w2d[:, :HIDDEN], HIDDEN, 2 * HIDDEN)
    w2d_p = w2d_p.at[:, HIDDEN:HIDDEN + 1].set(w2d[:, HIDDEN:]).astype(bf16)

    w3d_p = pad_to(w3[HIDDEN:], D_ED_PAD, HIDDEN).astype(bf16)   # (27,64)  -> (32,128)
    w4_p = pad_to(w4, HIDDEN, 4).astype(bf16)                    # (64,3)   -> (128,4)

    # Single (10,128) f32 bias pack.
    b = jnp.zeros((10, HIDDEN), jnp.float32)
    for r, bias in enumerate((b1a, b1b, b1c, b1d, b2a, b2b, b2c)):
        b = b.at[r, :].set(bias[0])
    b = b.at[7, :].set(b2d[0, :HIDDEN])        # h2 bias
    b = b.at[8, :H_HALF].set(b3[0])            # block3 bias (cols 64+ stay 0)
    b = b.at[9, 0:3].set(b4[0])                # block4 bias (col 3 stays 0)
    b = b.at[9, 4].set(b2d[0, HIDDEN])         # sigma bias
    return [w_sq, w_in, w2d_p, w3d_p, w4_p, b]


# ----------------------------------------------------------------------------
# Wrapper.
# ----------------------------------------------------------------------------
def _pick_tile_n(n):
    # Largest MXU-friendly row tile that still leaves >= 2 grid steps (so the
    # "parallel" axis load-balances across v7x's two TensorCores / megacore)
    # while amortizing the per-grid-step overhead.  Per-tile VMEM at 2048 rows
    # is ~10 MiB, well under the 32 MiB scoped limit requested below.
    for t in (2048, 1024, 512):
        if pl.cdiv(n, t) >= 2:
            return t
    return 512


def nerf_forward(o, d, params, *, tile_n=None):
    N = o.shape[0]
    if tile_n is None:
        tile_n = _pick_tile_n(N)
    n_pad = pl.cdiv(N, tile_n) * tile_n

    def pad_cols(a, width):
        return jnp.pad(a, ((0, 0), (0, width - a.shape[1])))

    # Positional encoding in f32 (keeps the high-frequency terms accurate),
    # then cast to bf16 for the MXU.
    emb_x = pad_cols(positional_encoding(o, EMB_POS), D_EX_PAD).astype(jnp.bfloat16)
    emb_d = pad_cols(positional_encoding(d, EMB_DIR), D_ED_PAD).astype(jnp.bfloat16)
    if n_pad != N:                      # pad-and-slice path for ragged N
        emb_x = jnp.pad(emb_x, ((0, n_pad - N), (0, 0)))
        emb_d = jnp.pad(emb_d, ((0, n_pad - N), (0, 0)))

    kernel_params = prepare_params(params)

    def row_spec(feat):
        return pl.BlockSpec((tile_n, feat), lambda i: (i, 0))

    def const_spec(arr):
        nd = arr.ndim
        return pl.BlockSpec(arr.shape, lambda i: (0,) * nd)

    in_specs = ([row_spec(D_EX_PAD), row_spec(D_ED_PAD)]
                + [const_spec(p) for p in kernel_params])

    rgb, sig = pl.pallas_call(
        nerf_kernel,
        out_shape=(jax.ShapeDtypeStruct((n_pad, 4), jnp.float32),
                   jax.ShapeDtypeStruct((n_pad, 1), jnp.float32)),
        grid_spec=pltpu.PrefetchScalarGridSpec(
            num_scalar_prefetch=0,
            grid=(n_pad // tile_n,),
            in_specs=in_specs,
            out_specs=[row_spec(4), row_spec(1)],
        ),
        compiler_params=pltpu.CompilerParams(
            dimension_semantics=("parallel",),
            vmem_limit_bytes=32 * 1024 * 1024),
    )(emb_x, emb_d, *kernel_params)

    # Slice the row padding off BEFORE anything downstream consumes the result.
    return rgb[:N, :3], sig[:N, 0]


# ----------------------------------------------------------------------------
# Pure-JAX reference (mirrors the PyTorch forward).  compute_dtype=bfloat16
# additionally mirrors the kernel's bf16-operand / f32-accumulate arithmetic.
# ----------------------------------------------------------------------------
def nerf_reference(o, d, params, compute_dtype=jnp.float32):
    (w1a, b1a, w1b, b1b, w1c, b1c, w1d, b1d,
     w2a, b2a, w2b, b2b, w2c, b2c, w2d, b2d,
     w3, b3, w4, b4) = params
    relu = jax.nn.relu

    def dot(a, b):
        return jnp.dot(a.astype(compute_dtype), b.astype(compute_dtype),
                       preferred_element_type=jnp.float32)

    ex = positional_encoding(o, EMB_POS)
    ed = positional_encoding(d, EMB_DIR)

    h = relu(dot(ex, w1a) + b1a)
    h = relu(dot(h, w1b) + b1b)
    h = relu(dot(h, w1c) + b1c)
    h = relu(dot(h, w1d) + b1d)

    # cat(h, ex) @ w2a  ==  h @ w2a[:128] + ex @ w2a[128:]
    t = relu(dot(h, w2a[:HIDDEN]) + dot(ex, w2a[HIDDEN:]) + b2a)
    t = relu(dot(t, w2b) + b2b)
    t = relu(dot(t, w2c) + b2c)

    h2 = dot(t, w2d[:, :HIDDEN]) + b2d[:, :HIDDEN]                  # no activation
    sigma = relu(dot(t, w2d[:, HIDDEN:]) + b2d[:, HIDDEN:])

    h3 = relu(dot(h2, w3[:HIDDEN]) + dot(ed, w3[HIDDEN:]) + b3)
    c = jax.nn.sigmoid(dot(h3, w4) + b4)
    return c, sigma[:, 0]


# ----------------------------------------------------------------------------
if __name__ == "__main__":
    key = jax.random.PRNGKey(0)
    k_o, k_d, k_p = jax.random.split(key, 3)

    N = 1000                     # not a multiple of tile_n: exercises pad path
    o = jax.random.normal(k_o, (N, 3), jnp.float32)   # sample positions
    d = jax.random.normal(k_d, (N, 3), jnp.float32)   # ray directions
    params = make_params(k_p)

    c, sigma = jax.jit(nerf_forward)(o, d, params)
    jax.block_until_ready((c, sigma))
    assert c.shape == (N, 3) and sigma.shape == (N,)

    # Tight check vs a reference that mirrors the kernel's bf16/f32-acc math.
    c_bf, s_bf = nerf_reference(o, d, params, compute_dtype=jnp.bfloat16)
    assert jnp.allclose(c, c_bf, atol=3e-3, rtol=3e-3), float(jnp.max(jnp.abs(c - c_bf)))
    assert jnp.allclose(sigma, s_bf, atol=3e-3, rtol=3e-3), float(jnp.max(jnp.abs(sigma - s_bf)))

    # Loose check vs the full-precision (original-module) semantics.
    assert_c, assert_s = nerf_reference(o, d, params, compute_dtype=jnp.float32)
    assert jnp.max(jnp.abs(c - assert_c)) < 5e-2
    assert jnp.max(jnp.abs(sigma - assert_s)) < 1.5e-1

    print("KERNEL_OK")
</pallas_src>

<mosaic_0001>
module attributes {stable_mosaic.version = 11 : i64} {
  func.func @nerf_kernel(%arg0: i32, %arg1: memref<512x64xbf16, #tpu.memory_space<vmem>>, %arg2: memref<512x32xbf16, #tpu.memory_space<vmem>>, %arg3: memref<7x128x128xbf16, #tpu.memory_space<vmem>>, %arg4: memref<2x64x128xbf16, #tpu.memory_space<vmem>>, %arg5: memref<128x256xbf16, #tpu.memory_space<vmem>>, %arg6: memref<32x128xbf16, #tpu.memory_space<vmem>>, %arg7: memref<128x4xbf16, #tpu.memory_space<vmem>>, %arg8: memref<10x128xf32, #tpu.memory_space<vmem>>, %arg9: memref<512x4xf32, #tpu.memory_space<vmem>>, %arg10: memref<512x1xf32, #tpu.memory_space<vmem>>) attributes {dimension_semantics = [#tpu.dimension_semantics<parallel>], iteration_bounds = array<i64: 2>, scalar_prefetch = 0 : i64, scratch_operands = 0 : i64, tpu.core_type = #tpu.core_type<tc>, window_params = [{transform_indices = @transform_0, window_bounds = array<i64: 512, 64>}, {transform_indices = @transform_1, window_bounds = array<i64: 512, 32>}, {pipeline_mode = #tpu.pipeline_mode<synchronous>, transform_indices = @transform_2, window_bounds = array<i64: 7, 128, 128>}, {pipeline_mode = #tpu.pipeline_mode<synchronous>, transform_indices = @transform_3, window_bounds = array<i64: 2, 64, 128>}, {pipeline_mode = #tpu.pipeline_mode<synchronous>, transform_indices = @transform_4, window_bounds = array<i64: 128, 256>}, {pipeline_mode = #tpu.pipeline_mode<synchronous>, transform_indices = @transform_5, window_bounds = array<i64: 32, 128>}, {pipeline_mode = #tpu.pipeline_mode<synchronous>, transform_indices = @transform_6, window_bounds = array<i64: 128, 4>}, {pipeline_mode = #tpu.pipeline_mode<synchronous>, transform_indices = @transform_7, window_bounds = array<i64: 10, 128>}, {transform_indices = @transform_8, window_bounds = array<i64: 512, 4>}, {transform_indices = @transform_9, window_bounds = array<i64: 512, 1>}]} {
    %c0 = arith.constant 0 : index
    %c0_0 = arith.constant 0 : index
    %0 = vector.load %arg1[%c0, %c0_0] : memref<512x64xbf16, #tpu.memory_space<vmem>>, vector<512x64xbf16>
    %c0_1 = arith.constant 0 : index
    %c0_2 = arith.constant 0 : index
    %1 = vector.load %arg2[%c0_1, %c0_2] : memref<512x32xbf16, #tpu.memory_space<vmem>>, vector<512x32xbf16>
    %c0_3 = arith.constant 0 : index
    %c0_4 = arith.constant 0 : index
    %2 = vector.load %arg8[%c0_3, %c0_4] : memref<10x128xf32, #tpu.memory_space<vmem>>, vector<10x128xf32>
    %c0_5 = arith.constant 0 : index
    %c0_6 = arith.constant 0 : index
    %c0_7 = arith.constant 0 : index
    %3 = vector.load %arg4[%c0_5, %c0_6, %c0_7] : memref<2x64x128xbf16, #tpu.memory_space<vmem>>, vector<1x64x128xbf16>
    %4 = vector.shape_cast %3 : vector<1x64x128xbf16> to vector<64x128xbf16>
    %cst = arith.constant dense<0.000000e+00> : vector<512x128xf32>
    %5 = tpu.matmul %0, %4, %cst {dimension_numbers = #tpu.dot_dimension_numbers<[1], [0], [0], [1], [0, 0, 1, 1], [], []>} : vector<512x64xbf16>, vector<64x128xbf16>, vector<512x128xf32> -> vector<512x128xf32>
    %6 = vector.extract_strided_slice %2 {offsets = [0, 0], sizes = [1, 128], strides = [1, 1]} : vector<10x128xf32> to vector<1x128xf32>
    %7 = vector.broadcast %6 : vector<1x128xf32> to vector<512x128xf32>
    %8 = arith.addf %5, %7 : vector<512x128xf32>
    %cst_8 = arith.constant 0.000000e+00 : f32
    %9 = vector.broadcast %cst_8 : f32 to vector<512x128xf32>
    %10 = arith.maximumf %8, %9 : vector<512x128xf32>
    %11 = arith.truncf %10 : vector<512x128xf32> to vector<512x128xbf16>
    %c0_9 = arith.constant 0 : index
    %c0_10 = arith.constant 0 : index
    %c0_11 = arith.constant 0 : index
    %12 = vector.load %arg3[%c0_9, %c0_10, %c0_11] : memref<7x128x128xbf16, #tpu.memory_space<vmem>>, vector<1x128x128xbf16>
    %13 = vector.shape_cast %12 : vector<1x128x128xbf16> to vector<128x128xbf16>
    %cst_12 = arith.constant dense<0.000000e+00> : vector<512x128xf32>
    %14 = tpu.matmul %11, %13, %cst_12 {dimension_numbers = #tpu.dot_dimension_numbers<[1], [0], [0], [1], [0, 0, 1, 1], [], []>} : vector<512x128xbf16>, vector<128x128xbf16>, vector<512x128xf32> -> vector<512x128xf32>
    %15 = vector.extract_strided_slice %2 {offsets = [1, 0], sizes = [1, 128], strides = [1, 1]} : vector<10x128xf32> to vector<1x128xf32>
    %16 = vector.broadcast %15 : vector<1x128xf32> to vector<512x128xf32>
    %17 = arith.addf %14, %16 : vector<512x128xf32>
    %cst_13 = arith.constant 0.000000e+00 : f32
    %18 = vector.broadcast %cst_13 : f32 to vector<512x128xf32>
    %19 = arith.maximumf %17, %18 : vector<512x128xf32>
    %20 = arith.truncf %19 : vector<512x128xf32> to vector<512x128xbf16>
    %c1 = arith.constant 1 : index
    %c0_14 = arith.constant 0 : index
    %c0_15 = arith.constant 0 : index
    %21 = vector.load %arg3[%c1, %c0_14, %c0_15] : memref<7x128x128xbf16, #tpu.memory_space<vmem>>, vector<1x128x128xbf16>
    %22 = vector.shape_cast %21 : vector<1x128x128xbf16> to vector<128x128xbf16>
    %cst_16 = arith.constant dense<0.000000e+00> : vector<512x128xf32>
    %23 = tpu.matmul %20, %22, %cst_16 {dimension_numbers = #tpu.dot_dimension_numbers<[1], [0], [0], [1], [0, 0, 1, 1], [], []>} : vector<512x128xbf16>, vector<128x128xbf16>, vector<512x128xf32> -> vector<512x128xf32>
    %24 = vector.extract_strided_slice %2 {offsets = [2, 0], sizes = [1, 128], strides = [1, 1]} : vector<10x128xf32> to vector<1x128xf32>
    %25 = vector.broadcast %24 : vector<1x128xf32> to vector<512x128xf32>
    %26 = arith.addf %23, %25 : vector<512x128xf32>
    %cst_17 = arith.constant 0.000000e+00 : f32
    %27 = vector.broadcast %cst_17 : f32 to vector<512x128xf32>
    %28 = arith.maximumf %26, %27 : vector<512x128xf32>
    %29 = arith.truncf %28 : vector<512x128xf32> to vector<512x128xbf16>
    %c2 = arith.constant 2 : index
    %c0_18 = arith.constant 0 : index
    %c0_19 = arith.constant 0 : index
    %30 = vector.load %arg3[%c2, %c0_18, %c0_19] : memref<7x128x128xbf16, #tpu.memory_space<vmem>>, vector<1x128x128xbf16>
    %31 = vector.shape_cast %30 : vector<1x128x128xbf16> to vector<128x128xbf16>
    %cst_20 = arith.constant dense<0.000000e+00> : vector<512x128xf32>
    %32 = tpu.matmul %29, %31, %cst_20 {dimension_numbers = #tpu.dot_dimension_numbers<[1], [0], [0], [1], [0, 0, 1, 1], [], []>} : vector<512x128xbf16>, vector<128x128xbf16>, vector<512x128xf32> -> vector<512x128xf32>
    %33 = vector.extract_strided_slice %2 {offsets = [3, 0], sizes = [1, 128], strides = [1, 1]} : vector<10x128xf32> to vector<1x128xf32>
    %34 = vector.broadcast %33 : vector<1x128xf32> to vector<512x128xf32>
    %35 = arith.addf %32, %34 : vector<512x128xf32>
    %cst_21 = arith.constant 0.000000e+00 : f32
    %36 = vector.broadcast %cst_21 : f32 to vector<512x128xf32>
    %37 = arith.maximumf %35, %36 : vector<512x128xf32>
    %38 = arith.truncf %37 : vector<512x128xf32> to vector<512x128xbf16>
    %c3 = arith.constant 3 : index
    %c0_22 = arith.constant 0 : index
    %c0_23 = arith.constant 0 : index
    %39 = vector.load %arg3[%c3, %c0_22, %c0_23] : memref<7x128x128xbf16, #tpu.memory_space<vmem>>, vector<1x128x128xbf16>
    %40 = vector.shape_cast %39 : vector<1x128x128xbf16> to vector<128x128xbf16>
    %cst_24 = arith.constant dense<0.000000e+00> : vector<512x128xf32>
    %41 = tpu.matmul %38, %40, %cst_24 {dimension_numbers = #tpu.dot_dimension_numbers<[1], [0], [0], [1], [0, 0, 1, 1], [], []>} : vector<512x128xbf16>, vector<128x128xbf16>, vector<512x128xf32> -> vector<512x128xf32>
    %c1_25 = arith.constant 1 : index
    %c0_26 = arith.constant 0 : index
    %c0_27 = arith.constant 0 : index
    %42 = vector.load %arg4[%c1_25, %c0_26, %c0_27] : memref<2x64x128xbf16, #tpu.memory_space<vmem>>, vector<1x64x128xbf16>
    %43 = vector.shape_cast %42 : vector<1x64x128xbf16> to vector<64x128xbf16>
    %cst_28 = arith.constant dense<0.000000e+00> : vector<512x128xf32>
    %44 = tpu.matmul %0, %43, %cst_28 {dimension_numbers = #tpu.dot_dimension_numbers<[1], [0], [0], [1], [0, 0, 1, 1], [], []>} : vector<512x64xbf16>, vector<64x128xbf16>, vector<512x128xf32> -> vector<512x128xf32>
    %45 = arith.addf %41, %44 : vector<512x128xf32>
    %46 = vector.extract_strided_slice %2 {offsets = [4, 0], sizes = [1, 128], strides = [1, 1]} : vector<10x128xf32> to vector<1x128xf32>
    %47 = vector.broadcast %46 : vector<1x128xf32> to vector<512x128xf32>
    %48 = arith.addf %45, %47 : vector<512x128xf32>
    %cst_29 = arith.constant 0.000000e+00 : f32
    %49 = vector.broadcast %cst_29 : f32 to vector<512x128xf32>
    %50 = arith.maximumf %48, %49 : vector<512x128xf32>
    %51 = arith.truncf %50 : vector<512x128xf32> to vector<512x128xbf16>
    %c4 = arith.constant 4 : index
    %c0_30 = arith.constant 0 : index
    %c0_31 = arith.constant 0 : index
    %52 = vector.load %arg3[%c4, %c0_30, %c0_31] : memref<7x128x128xbf16, #tpu.memory_space<vmem>>, vector<1x128x128xbf16>
    %53 = vector.shape_cast %52 : vector<1x128x128xbf16> to vector<128x128xbf16>
    %cst_32 = arith.constant dense<0.000000e+00> : vector<512x128xf32>
    %54 = tpu.matmul %51, %53, %cst_32 {dimension_numbers = #tpu.dot_dimension_numbers<[1], [0], [0], [1], [0, 0, 1, 1], [], []>} : vector<512x128xbf16>, vector<128x128xbf16>, vector<512x128xf32> -> vector<512x128xf32>
    %55 = vector.extract_strided_slice %2 {offsets = [5, 0], sizes = [1, 128], strides = [1, 1]} : vector<10x128xf32> to vector<1x128xf32>
    %56 = vector.broadcast %55 : vector<1x128xf32> to vector<512x128xf32>
    %57 = arith.addf %54, %56 : vector<512x128xf32>
    %cst_33 = arith.constant 0.000000e+00 : f32
    %58 = vector.broadcast %cst_33 : f32 to vector<512x128xf32>
    %59 = arith.maximumf %57, %58 : vector<512x128xf32>
    %60 = arith.truncf %59 : vector<512x128xf32> to vector<512x128xbf16>
    %c5 = arith.constant 5 : index
    %c0_34 = arith.constant 0 : index
    %c0_35 = arith.constant 0 : index
    %61 = vector.load %arg3[%c5, %c0_34, %c0_35] : memref<7x128x128xbf16, #tpu.memory_space<vmem>>, vector<1x128x128xbf16>
    %62 = vector.shape_cast %61 : vector<1x128x128xbf16> to vector<128x128xbf16>
    %cst_36 = arith.constant dense<0.000000e+00> : vector<512x128xf32>
    %63 = tpu.matmul %60, %62, %cst_36 {dimension_numbers = #tpu.dot_dimension_numbers<[1], [0], [0], [1], [0, 0, 1, 1], [], []>} : vector<512x128xbf16>, vector<128x128xbf16>, vector<512x128xf32> -> vector<512x128xf32>
    %64 = vector.extract_strided_slice %2 {offsets = [6, 0], sizes = [1, 128], strides = [1, 1]} : vector<10x128xf32> to vector<1x128xf32>
    %65 = vector.broadcast %64 : vector<1x128xf32> to vector<512x128xf32>
    %66 = arith.addf %63, %65 : vector<512x128xf32>
    %cst_37 = arith.constant 0.000000e+00 : f32
    %67 = vector.broadcast %cst_37 : f32 to vector<512x128xf32>
    %68 = arith.maximumf %66, %67 : vector<512x128xf32>
    %69 = arith.truncf %68 : vector<512x128xf32> to vector<512x128xbf16>
    %c0_38 = arith.constant 0 : index
    %c0_39 = arith.constant 0 : index
    %70 = vector.load %arg5[%c0_38, %c0_39] : memref<128x256xbf16, #tpu.memory_space<vmem>>, vector<128x256xbf16>
    %cst_40 = arith.constant dense<0.000000e+00> : vector<512x256xf32>
    %71 = tpu.matmul %69, %70, %cst_40 {dimension_numbers = #tpu.dot_dimension_numbers<[1], [0], [0], [1], [0, 0, 1, 1], [], []>} : vector<512x128xbf16>, vector<128x256xbf16>, vector<512x256xf32> -> vector<512x256xf32>
    %72 = vector.extract_strided_slice %71 {offsets = [0, 0], sizes = [512, 128], strides = [1, 1]} : vector<512x256xf32> to vector<512x128xf32>
    %73 = vector.extract_strided_slice %2 {offsets = [7, 0], sizes = [1, 128], strides = [1, 1]} : vector<10x128xf32> to vector<1x128xf32>
    %74 = vector.broadcast %73 : vector<1x128xf32> to vector<512x128xf32>
    %75 = arith.addf %72, %74 : vector<512x128xf32>
    %76 = arith.truncf %75 : vector<512x128xf32> to vector<512x128xbf16>
    %77 = vector.extract_strided_slice %71 {offsets = [0, 128], sizes = [512, 1], strides = [1, 1]} : vector<512x256xf32> to vector<512x1xf32>
    %78 = vector.extract_strided_slice %2 {offsets = [9, 4], sizes = [1, 1], strides = [1, 1]} : vector<10x128xf32> to vector<1x1xf32>
    %79 = vector.broadcast %78 : vector<1x1xf32> to vector<512x1xf32>
    %80 = arith.addf %77, %79 : vector<512x1xf32>
    %cst_41 = arith.constant 0.000000e+00 : f32
    %81 = vector.broadcast %cst_41 : f32 to vector<512x1xf32>
    %82 = arith.maximumf %80, %81 : vector<512x1xf32>
    %c6 = arith.constant 6 : index
    %c0_42 = arith.constant 0 : index
    %c0_43 = arith.constant 0 : index
    %83 = vector.load %arg3[%c6, %c0_42, %c0_43] : memref<7x128x128xbf16, #tpu.memory_space<vmem>>, vector<1x128x128xbf16>
    %84 = vector.shape_cast %83 : vector<1x128x128xbf16> to vector<128x128xbf16>
    %cst_44 = arith.constant dense<0.000000e+00> : vector<512x128xf32>
    %85 = tpu.matmul %76, %84, %cst_44 {dimension_numbers = #tpu.dot_dimension_numbers<[1], [0], [0], [1], [0, 0, 1, 1], [], []>} : vector<512x128xbf16>, vector<128x128xbf16>, vector<512x128xf32> -> vector<512x128xf32>
    %c0_45 = arith.constant 0 : index
    %c0_46 = arith.constant 0 : index
    %86 = vector.load %arg6[%c0_45, %c0_46] : memref<32x128xbf16, #tpu.memory_space<vmem>>, vector<32x128xbf16>
    %cst_47 = arith.constant dense<0.000000e+00> : vector<512x128xf32>
    %87 = tpu.matmul %1, %86, %cst_47 {dimension_numbers = #tpu.dot_dimension_numbers<[1], [0], [0], [1], [0, 0, 1, 1], [], []>} : vector<512x32xbf16>, vector<32x128xbf16>, vector<512x128xf32> -> vector<512x128xf32>
    %88 = arith.addf %85, %87 : vector<512x128xf32>
    %89 = vector.extract_strided_slice %2 {offsets = [8, 0], sizes = [1, 128], strides = [1, 1]} : vector<10x128xf32> to vector<1x128xf32>
    %90 = vector.broadcast %89 : vector<1x128xf32> to vector<512x128xf32>
    %91 = arith.addf %88, %90 : vector<512x128xf32>
    %cst_48 = arith.constant 0.000000e+00 : f32
    %92 = vector.broadcast %cst_48 : f32 to vector<512x128xf32>
    %93 = arith.maximumf %91, %92 : vector<512x128xf32>
    %94 = arith.truncf %93 : vector<512x128xf32> to vector<512x128xbf16>
    %c0_49 = arith.constant 0 : index
    %c0_50 = arith.constant 0 : index
    %95 = vector.load %arg7[%c0_49, %c0_50] : memref<128x4xbf16, #tpu.memory_space<vmem>>, vector<128x4xbf16>
    %cst_51 = arith.constant dense<0.000000e+00> : vector<512x4xf32>
    %96 = tpu.matmul %94, %95, %cst_51 {dimension_numbers = #tpu.dot_dimension_numbers<[1], [0], [0], [1], [0, 0, 1, 1], [], []>} : vector<512x128xbf16>, vector<128x4xbf16>, vector<512x4xf32> -> vector<512x4xf32>
    %97 = vector.extract_strided_slice %2 {offsets = [9, 0], sizes = [1, 4], strides = [1, 1]} : vector<10x128xf32> to vector<1x4xf32>
    %98 = vector.broadcast %97 : vector<1x4xf32> to vector<512x4xf32>
    %99 = arith.addf %96, %98 : vector<512x4xf32>
    %cst_52 = arith.constant 0.000000e+00 : f32
    %100 = vector.broadcast %cst_52 : f32 to vector<512x4xf32>
    %101 = arith.subf %100, %99 : vector<512x4xf32>
    %102 = math.exp %101 : vector<512x4xf32>
    %cst_53 = arith.constant 1.000000e+00 : f32
    %103 = vector.broadcast %cst_53 : f32 to vector<512x4xf32>
    %104 = arith.addf %103, %102 : vector<512x4xf32>
    %105 = tpu.reciprocal %104 {approx = true} : vector<512x4xf32> -> vector<512x4xf32>
    %c0_54 = arith.constant 0 : index
    %c0_55 = arith.constant 0 : index
    %106 = vector.load %arg9[%c0_54, %c0_55] : memref<512x4xf32, #tpu.memory_space<vmem>>, vector<512x4xf32>
    tpu.vector_store %arg9[%c0_54, %c0_55], %105 {strides = array<i32>} : memref<512x4xf32, #tpu.memory_space<vmem>>, vector<512x4xf32>,
    %c0_56 = arith.constant 0 : index
    %c0_57 = arith.constant 0 : index
    %107 = vector.load %arg10[%c0_56, %c0_57] : memref<512x1xf32, #tpu.memory_space<vmem>>, vector<512x1xf32>
    tpu.vector_store %arg10[%c0_56, %c0_57], %82 {strides = array<i32>} : memref<512x1xf32, #tpu.memory_space<vmem>>, vector<512x1xf32>,
    return
  }
  func.func @transform_0(%arg0: i32) -> (i32, i32) {
    %c0_i32 = arith.constant 0 : i32
    %c0_i32_0 = arith.constant 0 : i32
    return %arg0, %c0_i32 : i32, i32
  }
  func.func @transform_1(%arg0: i32) -> (i32, i32) {
    %c0_i32 = arith.constant 0 : i32
    %c0_i32_0 = arith.constant 0 : i32
    return %arg0, %c0_i32 : i32, i32
  }
  func.func @transform_2(%arg0: i32) -> (i32, i32, i32) {
    %c0_i32 = arith.constant 0 : i32
    %c0_i32_0 = arith.constant 0 : i32
    %c0_i32_1 = arith.constant 0 : i32
    %c0_i32_2 = arith.constant 0 : i32
    return %c0_i32, %c0_i32_0, %c0_i32_1 : i32, i32, i32
  }
  func.func @transform_3(%arg0: i32) -> (i32, i32, i32) {
    %c0_i32 = arith.constant 0 : i32
    %c0_i32_0 = arith.constant 0 : i32
    %c0_i32_1 = arith.constant 0 : i32
    %c0_i32_2 = arith.constant 0 : i32
    return %c0_i32, %c0_i32_0, %c0_i32_1 : i32, i32, i32
  }
  func.func @transform_4(%arg0: i32) -> (i32, i32) {
    %c0_i32 = arith.constant 0 : i32
    %c0_i32_0 = arith.constant 0 : i32
    %c0_i32_1 = arith.constant 0 : i32
    return %c0_i32, %c0_i32_0 : i32, i32
  }
  func.func @transform_5(%arg0: i32) -> (i32, i32) {
    %c0_i32 = arith.constant 0 : i32
    %c0_i32_0 = arith.constant 0 : i32
    %c0_i32_1 = arith.constant 0 : i32
    return %c0_i32, %c0_i32_0 : i32, i32
  }
  func.func @transform_6(%arg0: i32) -> (i32, i32) {
    %c0_i32 = arith.constant 0 : i32
    %c0_i32_0 = arith.constant 0 : i32
    %c0_i32_1 = arith.constant 0 : i32
    return %c0_i32, %c0_i32_0 : i32, i32
  }
  func.func @transform_7(%arg0: i32) -> (i32, i32) {
    %c0_i32 = arith.constant 0 : i32
    %c0_i32_0 = arith.constant 0 : i32
    %c0_i32_1 = arith.constant 0 : i32
    return %c0_i32, %c0_i32_0 : i32, i32
  }
  func.func @transform_8(%arg0: i32) -> (i32, i32) {
    %c0_i32 = arith.constant 0 : i32
    %c0_i32_0 = arith.constant 0 : i32
    return %arg0, %c0_i32 : i32, i32
  }
  func.func @transform_9(%arg0: i32) -> (i32, i32) {
    %c0_i32 = arith.constant 0 : i32
    %c0_i32_0 = arith.constant 0 : i32
    return %arg0, %c0_i32 : i32, i32
  }
}

</mosaic_0001>

<llo_original>
// kernel: nerf_forward.1
$region0: #{nerf_forward.1}
  #allocation0 [shape = 'u32[]', space=smem, size = 0x4, offset = 0x4, fixed_abs, tag = 'smem constant byte address 0x4 - core index']
  #allocation1 [shape = 'u32[144,128]{1,0:T(1,128)}', space=vmem, size = 0x12000, scoped, tag = 'internal scratch']
  %s0 = inlined_call_operand.vmem [shape: bf16[1024,64], index: 0, kind: input, shape index: {}]
  %s1 = inlined_call_operand.vmem [shape: bf16[1024,32], index: 1, kind: input, shape index: {}]
  %s2 = inlined_call_operand.vmem [shape: bf16[7,128,128], index: 2, kind: input, shape index: {}]
  %s3 = inlined_call_operand.vmem [shape: bf16[2,64,128], index: 3, kind: input, shape index: {}]
  %s4 = inlined_call_operand.vmem [shape: bf16[128,256], index: 4, kind: input, shape index: {}]
  %s5 = inlined_call_operand.vmem [shape: bf16[32,128], index: 5, kind: input, shape index: {}]
  %s6 = inlined_call_operand.vmem [shape: bf16[128,4], index: 6, kind: input, shape index: {}]
  %s7 = inlined_call_operand.vmem [shape: f32[10,128], index: 7, kind: input, shape index: {}]
  %s8 = inlined_call_operand.vmem [shape: f32[1024,4], index: 8, kind: output, shape index: {0}]
  %s9 = inlined_call_operand.vmem [shape: f32[1024,1], index: 9, kind: output, shape index: {1}]
  %10 = xla_tuple %s8, %s9
  %s11 = sld [smem:[#allocation0]]
  $region73: #{nerf_forward.1} parent=0
    _
  %s13 = ssub.s32 1, %s11
  %s14 = scalar_select 0, %s13, %s11
  loop: start=0, step=1, limit=4
  $region2: #{nerf_forward.1} parent=0 // loop_pre_header
    _
  $region3: #{nerf_forward.1} parent=0 // loop_header
    %s16 = sphi 0, %s20
    %p17 = scmp.ge.s32.totalorder %s16, 4
    %s26 = sphi 0, %s28
    %s29 = sphi 0, %s26
    %s30 = sphi 0, %s29
    %s46 = sphi 0, %s30
    %s52 = sphi 0, %s54
    %s55 = sphi 0, %s52
    %s56 = sphi 0, %s55
    %s72 = sphi 0, %s56
    %s76 = sphi 0, %s76
    %s78 = sphi 0, %s76
    %s79 = sphi 0, %s78
    %s93 = sphi 0, %s79
    %s97 = sphi 0, %s97
    %s99 = sphi 0, %s97
    %s100 = sphi 0, %s99
    %s114 = sphi 0, %s100
    %s118 = sphi 0, %s118
    %s120 = sphi 0, %s118
    %s121 = sphi 0, %s120
    %s135 = sphi 0, %s121
    %s139 = sphi 0, %s139
    %s141 = sphi 0, %s139
    %s142 = sphi 0, %s141
    %s156 = sphi 0, %s142
    %s160 = sphi 0, %s160
    %s162 = sphi 0, %s160
    %s163 = sphi 0, %s162
    %s177 = sphi 0, %s163
    %s181 = sphi 0, %s181
    %s183 = sphi 0, %s181
    %s184 = sphi 0, %s183
    %s198 = sphi 0, %s184
    %s204 = sphi 0, %s206
    %s207 = sphi 0, %s204
    %s208 = sphi 0, %s207
    %s224 = sphi 0, %s208
    %s230 = sphi 0, %s232
    %s233 = sphi 0, %s230
    %s234 = sphi 0, %s233
    %s250 = sphi 0, %s234
  $region4: #{nerf_forward.1} parent=0 // loop_header_branch
    %19 = sbr.rel (%p17) target = $region8
  $region5: #{nerf_forward.1} parent=0 // loop_body
    %s21 = ssub.s32 %s16, 1
    %s22 = ssub.s32 %s16, 2
    %s23 = sadd.s32 %s16, 1
    %s24 = ssub.s32 %s16, %s23
    %p25 = scmp.eq.s32.totalorder %s24, 0
    %s27 = sadd.s32 %s26, 1
    %s28 = scalar_select %p25, %s26, %s27
    %p31 = pneg %p25
    %p32 = scmp.eq.s32.totalorder %s16, 1
    %p33 = por %p31, %p32
    %p34 = scmp.ne.s32.totalorder %s26, %s29
    %p35 = scmp.eq.s32.totalorder %s16, 0
    %p36 = por %p34, %p35
    %p37 = scmp.ne.s32.totalorder %s26, %s29
    %p38 = scmp.eq.s32.totalorder %s21, 1
    %p39 = por %p37, %p38
    %p40 = scmp.ne.s32.totalorder %s29, %s30
    %p41 = scmp.eq.s32.totalorder %s21, 0
    %p42 = por %p40, %p41
    %p43 = scmp.ne.s32.totalorder %s29, %s30
    %p44 = scmp.eq.s32.totalorder %s22, 1
    %p45 = por %p43, %p44
    %p47 = scmp.ne.s32.totalorder %s30, %s46
    %p48 = scmp.eq.s32.totalorder %s22, 0
    %p49 = por %p47, %p48
    %s50 = ssub.s32 %s16, %s23
    %p51 = scmp.eq.s32.totalorder %s50, 0
    %s53 = sadd.s32 %s52, 1
    %s54 = scalar_select %p51, %s52, %s53
    %p57 = pneg %p51
    %p58 = scmp.eq.s32.totalorder %s16, 1
    %p59 = por %p57, %p58
    %p60 = scmp.ne.s32.totalorder %s52, %s55
    %p61 = scmp.eq.s32.totalorder %s16, 0
    %p62 = por %p60, %p61
    %p63 = scmp.ne.s32.totalorder %s52, %s55
    %p64 = scmp.eq.s32.totalorder %s21, 1
    %p65 = por %p63, %p64
    %p66 = scmp.ne.s32.totalorder %s55, %s56
    %p67 = scmp.eq.s32.totalorder %s21, 0
    %p68 = por %p66, %p67
    %p69 = scmp.ne.s32.totalorder %s55, %s56
    %p70 = scmp.eq.s32.totalorder %s22, 1
    %p71 = por %p69, %p70
    %p73 = scmp.ne.s32.totalorder %s56, %s72
    %p74 = scmp.eq.s32.totalorder %s22, 0
    %p75 = por %p73, %p74
    %s77 = sadd.s32 %s76, 1
    %p80 = scmp.eq.s32.totalorder %s16, 1
    %p81 = scmp.ne.s32.totalorder %s76, %s78
    %p82 = scmp.eq.s32.totalorder %s16, 0
    %p83 = por %p81, %p82
    %p84 = scmp.ne.s32.totalorder %s76, %s78
    %p85 = scmp.eq.s32.totalorder %s21, 1
    %p86 = por %p84, %p85
    %p87 = scmp.ne.s32.totalorder %s78, %s79
    %p88 = scmp.eq.s32.totalorder %s21, 0
    %p89 = por %p87, %p88
    %p90 = scmp.ne.s32.totalorder %s78, %s79
    %p91 = scmp.eq.s32.totalorder %s22, 1
    %p92 = por %p90, %p91
    %p94 = scmp.ne.s32.totalorder %s79, %s93
    %p95 = scmp.eq.s32.totalorder %s22, 0
    %p96 = por %p94, %p95
    %s98 = sadd.s32 %s97, 1
    %p101 = scmp.eq.s32.totalorder %s16, 1
    %p102 = scmp.ne.s32.totalorder %s97, %s99
    %p103 = scmp.eq.s32.totalorder %s16, 0
    %p104 = por %p102, %p103
    %p105 = scmp.ne.s32.totalorder %s97, %s99
    %p106 = scmp.eq.s32.totalorder %s21, 1
    %p107 = por %p105, %p106
    %p108 = scmp.ne.s32.totalorder %s99, %s100
    %p109 = scmp.eq.s32.totalorder %s21, 0
    %p110 = por %p108, %p109
    %p111 = scmp.ne.s32.totalorder %s99, %s100
    %p112 = scmp.eq.s32.totalorder %s22, 1
    %p113 = por %p111, %p112
    %p115 = scmp.ne.s32.totalorder %s100, %s114
    %p116 = scmp.eq.s32.totalorder %s22, 0
    %p117 = por %p115, %p116
    %s119 = sadd.s32 %s118, 1
    %p122 = scmp.eq.s32.totalorder %s16, 1
    %p123 = scmp.ne.s32.totalorder %s118, %s120
    %p124 = scmp.eq.s32.totalorder %s16, 0
    %p125 = por %p123, %p124
    %p126 = scmp.ne.s32.totalorder %s118, %s120
    %p127 = scmp.eq.s32.totalorder %s21, 1
    %p128 = por %p126, %p127
    %p129 = scmp.ne.s32.totalorder %s120, %s121
    %p130 = scmp.eq.s32.totalorder %s21, 0
    %p131 = por %p129, %p130
    %p132 = scmp.ne.s32.totalorder %s120, %s121
    %p133 = scmp.eq.s32.totalorder %s22, 1
    %p134 = por %p132, %p133
    %p136 = scmp.ne.s32.totalorder %s121, %s135
    %p137 = scmp.eq.s32.totalorder %s22, 0
    %p138 = por %p136, %p137
    %s140 = sadd.s32 %s139, 1
    %p143 = scmp.eq.s32.totalorder %s16, 1
    %p144 = scmp.ne.s32.totalorder %s139, %s141
    %p145 = scmp.eq.s32.totalorder %s16, 0
    %p146 = por %p144, %p145
    %p147 = scmp.ne.s32.totalorder %s139, %s141
    %p148 = scmp.eq.s32.totalorder %s21, 1
    %p149 = por %p147, %p148
    %p150 = scmp.ne.s32.totalorder %s141, %s142
    %p151 = scmp.eq.s32.totalorder %s21, 0
    %p152 = por %p150, %p151
    %p153 = scmp.ne.s32.totalorder %s141, %s142
    %p154 = scmp.eq.s32.totalorder %s22, 1
    %p155 = por %p153, %p154
    %p157 = scmp.ne.s32.totalorder %s142, %s156
    %p158 = scmp.eq.s32.totalorder %s22, 0
    %p159 = por %p157, %p158
    %s161 = sadd.s32 %s160, 1
    %p164 = scmp.eq.s32.totalorder %s16, 1
    %p165 = scmp.ne.s32.totalorder %s160, %s162
    %p166 = scmp.eq.s32.totalorder %s16, 0
    %p167 = por %p165, %p166
    %p168 = scmp.ne.s32.totalorder %s160, %s162
    %p169 = scmp.eq.s32.totalorder %s21, 1
    %p170 = por %p168, %p169
    %p171 = scmp.ne.s32.totalorder %s162, %s163
    %p172 = scmp.eq.s32.totalorder %s21, 0
    %p173 = por %p171, %p172
    %p174 = scmp.ne.s32.totalorder %s162, %s163
    %p175 = scmp.eq.s32.totalorder %s22, 1
    %p176 = por %p174, %p175
    %p178 = scmp.ne.s32.totalorder %s163, %s177
    %p179 = scmp.eq.s32.totalorder %s22, 0
    %p180 = por %p178, %p179
    %s182 = sadd.s32 %s181, 1
    %p185 = scmp.eq.s32.totalorder %s16, 1
    %p186 = scmp.ne.s32.totalorder %s181, %s183
    %p187 = scmp.eq.s32.totalorder %s16, 0
    %p188 = por %p186, %p187
    %p189 = scmp.ne.s32.totalorder %s181, %s183
    %p190 = scmp.eq.s32.totalorder %s21, 1
    %p191 = por %p189, %p190
    %p192 = scmp.ne.s32.totalorder %s183, %s184
    %p193 = scmp.eq.s32.totalorder %s21, 0
    %p194 = por %p192, %p193
    %p195 = scmp.ne.s32.totalorder %s183, %s184
    %p196 = scmp.eq.s32.totalorder %s22, 1
    %p197 = por %p195, %p196
    %p199 = scmp.ne.s32.totalorder %s184, %s198
    %p200 = scmp.eq.s32.totalorder %s22, 0
    %p201 = por %p199, %p200
    %s202 = ssub.s32 %s16, %s23
    %p203 = scmp.eq.s32.totalorder %s202, 0
    %s205 = sadd.s32 %s204, 1
    %s206 = scalar_select %p203, %s204, %s205
    %p209 = pneg %p203
    %p210 = scmp.eq.s32.totalorder %s16, 1
    %p211 = por %p209, %p210
    %p212 = scmp.ne.s32.totalorder %s204, %s207
    %p213 = scmp.eq.s32.totalorder %s16, 0
    %p214 = por %p212, %p213
    %p215 = scmp.ne.s32.totalorder %s204, %s207
    %p216 = scmp.eq.s32.totalorder %s21, 1
    %p217 = por %p215, %p216
    %p218 = scmp.ne.s32.totalorder %s207, %s208
    %p219 = scmp.eq.s32.totalorder %s21, 0
    %p220 = por %p218, %p219
    %p221 = scmp.ne.s32.totalorder %s207, %s208
    %p222 = scmp.eq.s32.totalorder %s22, 1
    %p223 = por %p221, %p222
    %p225 = scmp.ne.s32.totalorder %s208, %s224
    %p226 = scmp.eq.s32.totalorder %s22, 0
    %p227 = por %p225, %p226
    %s228 = ssub.s32 %s16, %s23
    %p229 = scmp.eq.s32.totalorder %s228, 0
    %s231 = sadd.s32 %s230, 1
    %s232 = scalar_select %p229, %s230, %s231
    %p235 = pneg %p229
    %p236 = scmp.eq.s32.totalorder %s16, 1
    %p237 = por %p235, %p236
    %p238 = scmp.ne.s32.totalorder %s230, %s233
    %p239 = scmp.eq.s32.totalorder %s16, 0
    %p240 = por %p238, %p239
    %p241 = scmp.ne.s32.totalorder %s230, %s233
    %p242 = scmp.eq.s32.totalorder %s21, 1
    %p243 = por %p241, %p242
    %p244 = scmp.ne.s32.totalorder %s233, %s234
    %p245 = scmp.eq.s32.totalorder %s21, 0
    %p246 = por %p244, %p245
    %p247 = scmp.ne.s32.totalorder %s233, %s234
    %p248 = scmp.eq.s32.totalorder %s22, 1
    %p249 = por %p247, %p248
    %p251 = scmp.ne.s32.totalorder %s234, %s250
    %p252 = scmp.eq.s32.totalorder %s22, 0
    %p253 = por %p251, %p252
    %p254 = scmp.le.s32.totalorder 1, %s16
    %p255 = scmp.lt.s32.totalorder %s16, 3
    %p256 = pnand %p254, %p255
    %p257 = pneg %p256
    // Predicated region
    $region9: #{nerf_forward.1} parent=5 // pred_check
      _
    $region10: #{nerf_forward.1} parent=5 // pred_check_branch
      %259 = sbr.rel (%p256) target = $region12
    $region11: #{nerf_forward.1} parent=5 // pred_region
      %s260 = ssub.s32 %s16, 1
      // Predicated region
      $region13: #{nerf_forward.1} parent=11 // pred_check
        %p261 = pneg %p89
      $region14: #{nerf_forward.1} parent=11 // pred_check_branch
        %263 = sbr.rel (%p261) target = $region16
      $region15: #{nerf_forward.1} parent=11 // pred_region
        _
      $region16: #{nerf_forward.1} parent=11 // pred_fallthru
        _
      // Predicated region
      $region17: #{nerf_forward.1} parent=11 // pred_check
        %p264 = pneg %p110
      $region18: #{nerf_forward.1} parent=11 // pred_check_branch
        %266 = sbr.rel (%p264) target = $region20
      $region19: #{nerf_forward.1} parent=11 // pred_region
        _
      $region20: #{nerf_forward.1} parent=11 // pred_fallthru
        _
      // Predicated region
      $region21: #{nerf_forward.1} parent=11 // pred_check
        %p267 = pneg %p131
      $region22: #{nerf_forward.1} parent=11 // pred_check_branch
        %269 = sbr.rel (%p267) target = $region24
      $region23: #{nerf_forward.1} parent=11 // pred_region
        _
      $region24: #{nerf_forward.1} parent=11 // pred_fallthru
        _
      // Predicated region
      $region25: #{nerf_forward.1} parent=11 // pred_check
        %p270 = pneg %p152
      $region26: #{nerf_forward.1} parent=11 // pred_check_branch
        %272 = sbr.rel (%p270) target = $region28
      $region27: #{nerf_forward.1} parent=11 // pred_region
        _
      $region28: #{nerf_forward.1} parent=11 // pred_fallthru
        _
      // Predicated region
      $region29: #{nerf_forward.1} parent=11 // pred_check
        %p273 = pneg %p173
      $region30: #{nerf_forward.1} parent=11 // pred_check_branch
        %275 = sbr.rel (%p273) target = $region32
      $region31: #{nerf_forward.1} parent=11 // pred_region
        _
      $region32: #{nerf_forward.1} parent=11 // pred_fallthru
        _
      // Predicated region
      $region33: #{nerf_forward.1} parent=11 // pred_check
        %p276 = pneg %p194
      $region34: #{nerf_forward.1} parent=11 // pred_check_branch
        %278 = sbr.rel (%p276) target = $region36
      $region35: #{nerf_forward.1} parent=11 // pred_region
        _
      $region36: #{nerf_forward.1} parent=11 // pred_fallthru
        _
    $region12: #{nerf_forward.1} parent=5 // pred_fallthru
      _
    %p279 = scmp.lt.s32.totalorder %s16, 2
    // Predicated region
    $region37: #{nerf_forward.1} parent=5 // pred_check
      %p280 = pneg %p279
    $region38: #{nerf_forward.1} parent=5 // pred_check_branch
      %282 = sbr.rel (%p280) target = $region40
    $region39: #{nerf_forward.1} parent=5 // pred_region
      // Predicated region
      $region41: #{nerf_forward.1} parent=39 // pred_check
        %p283 = pneg %p36
      $region42: #{nerf_forward.1} parent=39 // pred_check_branch
        %285 = sbr.rel (%p283) target = $region44
      $region43: #{nerf_forward.1} parent=39 // pred_region
        %s286 = smul.u32 64, %s16
        %p287 = scmp.lt.s32.totalorder %s286, 127
        %s288 = scalar_select %p287, %s286, 127
        %s289 = smul.addr %s288, 4
        %s290 = scalar_lea.vmem %s0, %s289
        %s291 = smul.u32 64, %s16
      $region44: #{nerf_forward.1} parent=39 // pred_fallthru
        _
      // Predicated region
      $region45: #{nerf_forward.1} parent=39 // pred_check
        %p292 = pneg %p62
      $region46: #{nerf_forward.1} parent=39 // pred_check_branch
        %294 = sbr.rel (%p292) target = $region48
      $region47: #{nerf_forward.1} parent=39 // pred_region
        %s295 = smul.u32 64, %s16
        %p296 = scmp.lt.s32.totalorder %s295, 127
        %s297 = scalar_select %p296, %s295, 127
        %s298 = smul.addr %s297, 4
        %s299 = scalar_lea.vmem %s1, %s298
        %s300 = smul.u32 64, %s16
      $region48: #{nerf_forward.1} parent=39 // pred_fallthru
        _
    $region40: #{nerf_forward.1} parent=5 // pred_fallthru
      _
    %p301 = scmp.le.s32.totalorder 1, %s16
    %p302 = scmp.lt.s32.totalorder %s16, 3
    %p303 = pnand %p301, %p302
    %p304 = pneg %p303
    // Predicated region
    $region49: #{nerf_forward.1} parent=5 // pred_check
      _
    $region50: #{nerf_forward.1} parent=5 // pred_check_branch
      %306 = sbr.rel (%p303) target = $region52
    $region51: #{nerf_forward.1} parent=5 // pred_region
      %s307 = ssub.s32 %s16, 1
      %s308 = smul.u32 64, %s21
      %p309 = scmp.lt.s32.totalorder %s308, 127
      %s310 = scalar_select %p309, %s308, 127
      %s311 = smul.addr %s310, 4
      %s312 = scalar_lea.vmem %s0, %s311
      %p313 = pneg %p42
      %p314 = pneg %p39
      %s315 = smul.u32 64, %s21
      %p316 = scmp.lt.s32.totalorder %s315, 127
      %s317 = scalar_select %p316, %s315, 127
      %s318 = smul.addr %s317, 4
      %s319 = scalar_lea.vmem %s1, %s318
      %p320 = pneg %p68
      %p321 = pneg %p65
      %p322 = pneg %p89
      %p323 = pneg %p86
      %p324 = pneg %p110
      %p325 = pneg %p107
      %p326 = pneg %p131
      %p327 = pneg %p128
      %p328 = pneg %p152
      %p329 = pneg %p149
      %p330 = pneg %p173
      %p331 = pneg %p170
      %p332 = pneg %p194
      %p333 = pneg %p191
      %p334 = pneg %p220
      %p335 = pneg %p217
      %s336 = smul.u32 64, %s21
      %p337 = scmp.lt.s32.totalorder %s336, 127
      %s338 = scalar_select %p337, %s336, 127
      %s339 = smul.addr %s338, 8
      %s340 = scalar_lea.vmem %s8, %s339
      %p341 = pneg %p246
      %p342 = pneg %p243
      %s343 = smul.u32 64, %s21
      %p344 = scmp.lt.s32.totalorder %s343, 127
      %s345 = scalar_select %p344, %s343, 127
      %s346 = smul.addr %s345, 8
      %s347 = scalar_lea.vmem %s9, %s346
      %s348 = smul.u32 64, %s21
      %p349 = scmp.lt.s32.totalorder %s348, 127
      %s350 = scalar_select %p349, %s348, 127
      %s351 = smul.addr %s350, 4
      %s352 = scalar_lea.vmem %s0, %s351
      %s353 = smul.u32 64, %s21
      %s354 = smul.u32 64, %s21
      %p355 = scmp.lt.s32.totalorder %s354, 127
      %s356 = scalar_select %p355, %s354, 127
      %s357 = smul.addr %s356, 4
      %s358 = scalar_lea.vmem %s1, %s357
      %s359 = smul.u32 64, %s21
      %s360 = smul.u32 64, %s21
      %p361 = scmp.lt.s32.totalorder %s360, 127
      %s362 = scalar_select %p361, %s360, 127
      %s363 = smul.addr %s362, 8
      %s364 = scalar_lea.vmem %s8, %s363
      %s365 = smul.u32 64, %s21
      %s366 = smul.u32 64, %s21
      %p367 = scmp.lt.s32.totalorder %s366, 127
      %s368 = scalar_select %p367, %s366, 127
      %s369 = smul.addr %s368, 8
      %s370 = scalar_lea.vmem %s9, %s369
      %s371 = smul.u32 64, %s21
      %v373 = vld [vmem:[%s352] sm:$0xf]
      %v374 = vld [vmem:[%s352 + $0x4] sm:$0xf]
      %v375 = vld [vmem:[%s352 + $0x8] sm:$0xf]
      %v376 = vld [vmem:[%s352 + $0xc] sm:$0xf]
      %v377 = vld [vmem:[%s352 + $0x10] sm:$0xf]
      %v378 = vld [vmem:[%s352 + $0x14] sm:$0xf]
      %v379 = vld [vmem:[%s352 + $0x18] sm:$0xf]
      %v380 = vld [vmem:[%s352 + $0x1c] sm:$0xf]
      %v381 = vld [vmem:[%s352 + $0x20] sm:$0xf]
      %v382 = vld [vmem:[%s352 + $0x24] sm:$0xf]
      %v383 = vld [vmem:[%s352 + $0x28] sm:$0xf]
      %v384 = vld [vmem:[%s352 + $0x2c] sm:$0xf]
      %v385 = vld [vmem:[%s352 + $0x30] sm:$0xf]
      %v386 = vld [vmem:[%s352 + $0x34] sm:$0xf]
      %v387 = vld [vmem:[%s352 + $0x38] sm:$0xf]
      %v388 = vld [vmem:[%s352 + $0x3c] sm:$0xf]
      %v389 = vld [vmem:[%s352 + $0x40] sm:$0xf]
      %v390 = vld [vmem:[%s352 + $0x44] sm:$0xf]
      %v391 = vld [vmem:[%s352 + $0x48] sm:$0xf]
      %v392 = vld [vmem:[%s352 + $0x4c] sm:$0xf]
      %v393 = vld [vmem:[%s352 + $0x50] sm:$0xf]
      %v394 = vld [vmem:[%s352 + $0x54] sm:$0xf]
      %v395 = vld [vmem:[%s352 + $0x58] sm:$0xf]
      %v396 = vld [vmem:[%s352 + $0x5c] sm:$0xf]
      %v397 = vld [vmem:[%s352 + $0x60] sm:$0xf]
      %v398 = vld [vmem:[%s352 + $0x64] sm:$0xf]
      %v399 = vld [vmem:[%s352 + $0x68] sm:$0xf]
      %v400 = vld [vmem:[%s352 + $0x6c] sm:$0xf]
      %v401 = vld [vmem:[%s352 + $0x70] sm:$0xf]
      %v402 = vld [vmem:[%s352 + $0x74] sm:$0xf]
      %v403 = vld [vmem:[%s352 + $0x78] sm:$0xf]
      %v404 = vld [vmem:[%s352 + $0x7c] sm:$0xf]
      %v405 = vld [vmem:[%s352 + $0x80] sm:$0xf]
      %v406 = vld [vmem:[%s352 + $0x84] sm:$0xf]
      %v407 = vld [vmem:[%s352 + $0x88] sm:$0xf]
      %v408 = vld [vmem:[%s352 + $0x8c] sm:$0xf]
      %v409 = vld [vmem:[%s352 + $0x90] sm:$0xf]
      %v410 = vld [vmem:[%s352 + $0x94] sm:$0xf]
      %v411 = vld [vmem:[%s352 + $0x98] sm:$0xf]
      %v412 = vld [vmem:[%s352 + $0x9c] sm:$0xf]
      %v413 = vld [vmem:[%s352 + $0xa0] sm:$0xf]
      %v414 = vld [vmem:[%s352 + $0xa4] sm:$0xf]
      %v415 = vld [vmem:[%s352 + $0xa8] sm:$0xf]
      %v416 = vld [vmem:[%s352 + $0xac] sm:$0xf]
      %v417 = vld [vmem:[%s352 + $0xb0] sm:$0xf]
      %v418 = vld [vmem:[%s352 + $0xb4] sm:$0xf]
      %v419 = vld [vmem:[%s352 + $0xb8] sm:$0xf]
      %v420 = vld [vmem:[%s352 + $0xbc] sm:$0xf]
      %v421 = vld [vmem:[%s352 + $0xc0] sm:$0xf]
      %v422 = vld [vmem:[%s352 + $0xc4] sm:$0xf]
      %v423 = vld [vmem:[%s352 + $0xc8] sm:$0xf]
      %v424 = vld [vmem:[%s352 + $0xcc] sm:$0xf]
      %v425 = vld [vmem:[%s352 + $0xd0] sm:$0xf]
      %v426 = vld [vmem:[%s352 + $0xd4] sm:$0xf]
      %v427 = vld [vmem:[%s352 + $0xd8] sm:$0xf]
      %v428 = vld [vmem:[%s352 + $0xdc] sm:$0xf]
      %v429 = vld [vmem:[%s352 + $0xe0] sm:$0xf]
      %v430 = vld [vmem:[%s352 + $0xe4] sm:$0xf]
      %v431 = vld [vmem:[%s352 + $0xe8] sm:$0xf]
      %v432 = vld [vmem:[%s352 + $0xec] sm:$0xf]
      %v433 = vld [vmem:[%s352 + $0xf0] sm:$0xf]
      %v434 = vld [vmem:[%s352 + $0xf4] sm:$0xf]
      %v435 = vld [vmem:[%s352 + $0xf8] sm:$0xf]
      %v436 = vld [vmem:[%s352 + $0xfc] sm:$0xf]
      %v437 = vld [vmem:[%s358] sm:$0xf]
      %v438 = vld [vmem:[%s358 + $0x4] sm:$0xf]
      %v439 = vld [vmem:[%s358 + $0x8] sm:$0xf]
      %v440 = vld [vmem:[%s358 + $0xc] sm:$0xf]
      %v441 = vld [vmem:[%s358 + $0x10] sm:$0xf]
      %v442 = vld [vmem:[%s358 + $0x14] sm:$0xf]
      %v443 = vld [vmem:[%s358 + $0x18] sm:$0xf]
      %v444 = vld [vmem:[%s358 + $0x1c] sm:$0xf]
      %v445 = vld [vmem:[%s358 + $0x20] sm:$0xf]
      %v446 = vld [vmem:[%s358 + $0x24] sm:$0xf]
      %v447 = vld [vmem:[%s358 + $0x28] sm:$0xf]
      %v448 = vld [vmem:[%s358 + $0x2c] sm:$0xf]
      %v449 = vld [vmem:[%s358 + $0x30] sm:$0xf]
      %v450 = vld [vmem:[%s358 + $0x34] sm:$0xf]
      %v451 = vld [vmem:[%s358 + $0x38] sm:$0xf]
      %v452 = vld [vmem:[%s358 + $0x3c] sm:$0xf]
      %v453 = vld [vmem:[%s358 + $0x40] sm:$0xf]
      %v454 = vld [vmem:[%s358 + $0x44] sm:$0xf]
      %v455 = vld [vmem:[%s358 + $0x48] sm:$0xf]
      %v456 = vld [vmem:[%s358 + $0x4c] sm:$0xf]
      %v457 = vld [vmem:[%s358 + $0x50] sm:$0xf]
      %v458 = vld [vmem:[%s358 + $0x54] sm:$0xf]
      %v459 = vld [vmem:[%s358 + $0x58] sm:$0xf]
      %v460 = vld [vmem:[%s358 + $0x5c] sm:$0xf]
      %v461 = vld [vmem:[%s358 + $0x60] sm:$0xf]
      %v462 = vld [vmem:[%s358 + $0x64] sm:$0xf]
      %v463 = vld [vmem:[%s358 + $0x68] sm:$0xf]
      %v464 = vld [vmem:[%s358 + $0x6c] sm:$0xf]
      %v465 = vld [vmem:[%s358 + $0x70] sm:$0xf]
      %v466 = vld [vmem:[%s358 + $0x74] sm:$0xf]
      %v467 = vld [vmem:[%s358 + $0x78] sm:$0xf]
      %v468 = vld [vmem:[%s358 + $0x7c] sm:$0xf]
      %v469 = vld [vmem:[%s358 + $0x80] sm:$0xf]
      %v470 = vld [vmem:[%s358 + $0x84] sm:$0xf]
      %v471 = vld [vmem:[%s358 + $0x88] sm:$0xf]
      %v472 = vld [vmem:[%s358 + $0x8c] sm:$0xf]
      %v473 = vld [vmem:[%s358 + $0x90] sm:$0xf]
      %v474 = vld [vmem:[%s358 + $0x94] sm:$0xf]
      %v475 = vld [vmem:[%s358 + $0x98] sm:$0xf]
      %v476 = vld [vmem:[%s358 + $0x9c] sm:$0xf]
      %v477 = vld [vmem:[%s358 + $0xa0] sm:$0xf]
      %v478 = vld [vmem:[%s358 + $0xa4] sm:$0xf]
      %v479 = vld [vmem:[%s358 + $0xa8] sm:$0xf]
      %v480 = vld [vmem:[%s358 + $0xac] sm:$0xf]
      %v481 = vld [vmem:[%s358 + $0xb0] sm:$0xf]
      %v482 = vld [vmem:[%s358 + $0xb4] sm:$0xf]
      %v483 = vld [vmem:[%s358 + $0xb8] sm:$0xf]
      %v484 = vld [vmem:[%s358 + $0xbc] sm:$0xf]
      %v485 = vld [vmem:[%s358 + $0xc0] sm:$0xf]
      %v486 = vld [vmem:[%s358 + $0xc4] sm:$0xf]
      %v487 = vld [vmem:[%s358 + $0xc8] sm:$0xf]
      %v488 = vld [vmem:[%s358 + $0xcc] sm:$0xf]
      %v489 = vld [vmem:[%s358 + $0xd0] sm:$0xf]
      %v490 = vld [vmem:[%s358 + $0xd4] sm:$0xf]
      %v491 = vld [vmem:[%s358 + $0xd8] sm:$0xf]
      %v492 = vld [vmem:[%s358 + $0xdc] sm:$0xf]
      %v493 = vld [vmem:[%s358 + $0xe0] sm:$0xf]
      %v494 = vld [vmem:[%s358 + $0xe4] sm:$0xf]
      %v495 = vld [vmem:[%s358 + $0xe8] sm:$0xf]
      %v496 = vld [vmem:[%s358 + $0xec] sm:$0xf]
      %v497 = vld [vmem:[%s358 + $0xf0] sm:$0xf]
      %v498 = vld [vmem:[%s358 + $0xf4] sm:$0xf]
      %v499 = vld [vmem:[%s358 + $0xf8] sm:$0xf]
      %v500 = vld [vmem:[%s358 + $0xfc] sm:$0xf]
      %v501 = vld [vmem:[%s7] sm:$0xff]
      %v502 = vld [vmem:[%s7 + $0x8] sm:$0x3]
      %v503 = vld [vmem:[%s3] sm:$0xf]
      %v504 = vld [vmem:[%s3 + $0x4] sm:$0xf]
      %v505 = vld [vmem:[%s3 + $0x8] sm:$0xf]
      %v506 = vld [vmem:[%s3 + $0xc] sm:$0xf]
      %v507 = vld [vmem:[%s3 + $0x10] sm:$0xf]
      %v508 = vld [vmem:[%s3 + $0x14] sm:$0xf]
      %v509 = vld [vmem:[%s3 + $0x18] sm:$0xf]
      %v510 = vld [vmem:[%s3 + $0x1c] sm:$0xf]
      %v511 = vlaneseq
      %v512 = vshrl.u32 %v511, 7
      %v513 = vsub.s32 0, %v512
      %v514 = vrot.slane %v501, %v513
      %v579 = vunpack.c.l.b16 %v373
      %v580 = vunpack.c.l.b16 %v374
      %v581 = vunpack.c.l.b16 %v375
      %v582 = vunpack.c.l.b16 %v376
      %v583 = vunpack.c.l.b16 %v377
      %v584 = vunpack.c.l.b16 %v378
      %v585 = vunpack.c.l.b16 %v379
      %v586 = vunpack.c.l.b16 %v380
      %v587 = vunpack.c.l.b16 %v381
      %v588 = vunpack.c.l.b16 %v382
      %v589 = vunpack.c.l.b16 %v383
      %v590 = vunpack.c.l.b16 %v384
      %v591 = vunpack.c.l.b16 %v385
      %v592 = vunpack.c.l.b16 %v386
      %v593 = vunpack.c.l.b16 %v387
      %v594 = vunpack.c.l.b16 %v388
      %v595 = vunpack.c.l.b16 %v389
      %v596 = vunpack.c.l.b16 %v390
      %v597 = vunpack.c.l.b16 %v391
      %v598 = vunpack.c.l.b16 %v392
      %v599 = vunpack.c.l.b16 %v393
      %v600 = vunpack.c.l.b16 %v394
      %v601 = vunpack.c.l.b16 %v395
      %v602 = vunpack.c.l.b16 %v396
      %v603 = vunpack.c.l.b16 %v397
      %v604 = vunpack.c.l.b16 %v398
      %v605 = vunpack.c.l.b16 %v399
      %v606 = vunpack.c.l.b16 %v400
      %v607 = vunpack.c.l.b16 %v401
      %v608 = vunpack.c.l.b16 %v402
      %v609 = vunpack.c.l.b16 %v403
      %v610 = vunpack.c.l.b16 %v404
      %v611 = vunpack.c.l.b16 %v405
      %v612 = vunpack.c.l.b16 %v406
      %v613 = vunpack.c.l.b16 %v407
      %v614 = vunpack.c.l.b16 %v408
      %v615 = vunpack.c.l.b16 %v409
      %v616 = vunpack.c.l.b16 %v410
      %v617 = vunpack.c.l.b16 %v411
      %v618 = vunpack.c.l.b16 %v412
      %v619 = vunpack.c.l.b16 %v413
      %v620 = vunpack.c.l.b16 %v414
      %v621 = vunpack.c.l.b16 %v415
      %v622 = vunpack.c.l.b16 %v416
      %v623 = vunpack.c.l.b16 %v417
      %v624 = vunpack.c.l.b16 %v418
      %v625 = vunpack.c.l.b16 %v419
      %v626 = vunpack.c.l.b16 %v420
      %v627 = vunpack.c.l.b16 %v421
      %v628 = vunpack.c.l.b16 %v422
      %v629 = vunpack.c.l.b16 %v423
      %v630 = vunpack.c.l.b16 %v424
      %v631 = vunpack.c.l.b16 %v425
      %v632 = vunpack.c.l.b16 %v426
      %v633 = vunpack.c.l.b16 %v427
      %v634 = vunpack.c.l.b16 %v428
      %v635 = vunpack.c.l.b16 %v429
      %v636 = vunpack.c.l.b16 %v430
      %v637 = vunpack.c.l.b16 %v431
      %v638 = vunpack.c.l.b16 %v432
      %v639 = vunpack.c.l.b16 %v433
      %v640 = vunpack.c.l.b16 %v434
      %v641 = vunpack.c.l.b16 %v435
      %v642 = vunpack.c.l.b16 %v436
      %v643 = vpack.c.b16 %v580, %v579
      %v644 = vpack.c.b16 %v582, %v581
      %v645 = vpack.c.b16 %v584, %v583
      %v646 = vpack.c.b16 %v586, %v585
      %v647 = vpack.c.b16 %v588, %v587
      %v648 = vpack.c.b16 %v590, %v589
      %v649 = vpack.c.b16 %v592, %v591
      %v650 = vpack.c.b16 %v594, %v593
      %v651 = vpack.c.b16 %v596, %v595
      %v652 = vpack.c.b16 %v598, %v597
      %v653 = vpack.c.b16 %v600, %v599
      %v654 = vpack.c.b16 %v602, %v601
      %v655 = vpack.c.b16 %v604, %v603
      %v656 = vpack.c.b16 %v606, %v605
      %v657 = vpack.c.b16 %v608, %v607
      %v658 = vpack.c.b16 %v610, %v609
      %v659 = vpack.c.b16 %v612, %v611
      %v660 = vpack.c.b16 %v614, %v613
      %v661 = vpack.c.b16 %v616, %v615
      %v662 = vpack.c.b16 %v618, %v617
      %v663 = vpack.c.b16 %v620, %v619
      %v664 = vpack.c.b16 %v622, %v621
      %v665 = vpack.c.b16 %v624, %v623
      %v666 = vpack.c.b16 %v626, %v625
      %v667 = vpack.c.b16 %v628, %v627
      %v668 = vpack.c.b16 %v630, %v629
      %v669 = vpack.c.b16 %v632, %v631
      %v670 = vpack.c.b16 %v634, %v633
      %v671 = vpack.c.b16 %v636, %v635
      %v672 = vpack.c.b16 %v638, %v637
      %v673 = vpack.c.b16 %v640, %v639
      %v674 = vpack.c.b16 %v642, %v641
      %v683 = vunpack.c.l.b16 %v503
      %v684 = vunpack.c.l.b16 %v504
      %v685 = vunpack.c.l.b16 %v505
      %v686 = vunpack.c.l.b16 %v506
      %v687 = vunpack.c.l.b16 %v507
      %v688 = vunpack.c.l.b16 %v508
      %v689 = vunpack.c.l.b16 %v509
      %v690 = vunpack.c.l.b16 %v510
      %v691 = vpack.c.b16 %v684, %v683
      %v692 = vpack.c.b16 %v686, %v685
      %v693 = vpack.c.b16 %v688, %v687
      %v694 = vpack.c.b16 %v690, %v689
      %vm699 = vcmask 523264
      %v701 = vsel %vm699, %v643, 0
      %v704 = vsel %vm699, %v644, 0
      %v707 = vsel %vm699, %v645, 0
      %v710 = vsel %vm699, %v646, 0
      %v713 = vsel %vm699, %v647, 0
      %v716 = vsel %vm699, %v648, 0
      %v719 = vsel %vm699, %v649, 0
      %v722 = vsel %vm699, %v650, 0
      %v725 = vsel %vm699, %v651, 0
      %v728 = vsel %vm699, %v652, 0
      %v731 = vsel %vm699, %v653, 0
      %v734 = vsel %vm699, %v654, 0
      %v737 = vsel %vm699, %v655, 0
      %v740 = vsel %vm699, %v656, 0
      %v743 = vsel %vm699, %v657, 0
      %v746 = vsel %vm699, %v658, 0
      %v749 = vsel %vm699, %v659, 0
      %v752 = vsel %vm699, %v660, 0
      %v755 = vsel %vm699, %v661, 0
      %v758 = vsel %vm699, %v662, 0
      %v761 = vsel %vm699, %v663, 0
      %v764 = vsel %vm699, %v664, 0
      %v767 = vsel %vm699, %v665, 0
      %v770 = vsel %vm699, %v666, 0
      %v773 = vsel %vm699, %v667, 0
      %v776 = vsel %vm699, %v668, 0
      %v779 = vsel %vm699, %v669, 0
      %v782 = vsel %vm699, %v670, 0
      %v785 = vsel %vm699, %v671, 0
      %v788 = vsel %vm699, %v672, 0
      %v791 = vsel %vm699, %v673, 0
      %v794 = vsel %vm699, %v674, 0
      %796 = vmatprep.subr.bf16.mxu0 0
      %797 = vmatpush1.bf16.msra.mxu0 %v691
      %798 = vmatprep.subr.bf16.mxu0 0
      %799 = vmatpush1.bf16.msra.mxu0 %v692
      %800 = vmatprep.subr.bf16.mxu0 0
      %801 = vmatpush1.bf16.msra.mxu0 %v693
      %802 = vmatprep.subr.bf16.mxu0 0
      %803 = vmatpush1.bf16.msra.mxu0 %v694
      %804 = vmatprep.subr.bf16.mxu0 0
      %805 = vmatpush1.bf16.msra.mxu0 0
      %806 = vmatprep.subr.bf16.mxu0 0
      %807 = vmatpush1.bf16.msra.mxu0 0
      %808 = vmatprep.subr.bf16.mxu0 0
      %809 = vmatpush1.bf16.msra.mxu0 0
      %810 = vmatprep.subr.bf16.mxu0 0
      %811 = vmatpush1.bf16.msra.mxu0 0
      %812 = vmatprep.subr.bf16.mxu0 0
      %813 = vmatpush1.bf16.msra.mxu0 0
      %814 = vmatprep.subr.bf16.mxu0 0
      %815 = vmatpush1.bf16.msra.mxu0 0
      %816 = vmatprep.subr.bf16.mxu0 0
      %817 = vmatpush1.bf16.msra.mxu0 0
      %818 = vmatprep.subr.bf16.mxu0 0
      %819 = vmatpush1.bf16.msra.mxu0 0
      %820 = vmatprep.subr.bf16.mxu0 0
      %821 = vmatpush1.bf16.msra.mxu0 0
      %822 = vmatprep.subr.bf16.mxu0 0
      %823 = vmatpush1.bf16.msra.mxu0 0
      %824 = vmatprep.subr.bf16.mxu0 0
      %825 = vmatpush1.bf16.msra.mxu0 0
      %826 = vmatprep.subr.bf16.mxu0 0
      %827 = vmatpush1.bf16.msra.mxu0 0
      %828 = vmatprep.mubr.bf16.mxu0 0
      %829 = vmatmul.mubr.bf16.gmra.mrb[0].mxu0 %v701
      %v830 = vpop.f32.mrb[0].mxu0
      %v831 = vadd.f32 %v514, %v830
      %v832 = vpop.f32.mrb[0].mxu0
      %v833 = vpop.f32.mrb[0].mxu0
      %v834 = vadd.f32 %v514, %v833
      %v835 = vpop.f32.mrb[0].mxu0
      %836 = vmatprep.mubr.bf16.mxu0 0
      %837 = vmatmul.mubr.bf16.gmra.mrb[0].mxu0 %v704
      %v838 = vpop.f32.mrb[0].mxu0
      %v839 = vadd.f32 %v514, %v838
      %v840 = vpop.f32.mrb[0].mxu0
      %v841 = vpop.f32.mrb[0].mxu0
      %v842 = vadd.f32 %v514, %v841
      %v843 = vpop.f32.mrb[0].mxu0
      %844 = vmatprep.mubr.bf16.mxu0 0
      %845 = vmatmul.mubr.bf16.gmra.mrb[0].mxu0 %v707
      %v846 = vpop.f32.mrb[0].mxu0
      %v847 = vadd.f32 %v514, %v846
      %v848 = vpop.f32.mrb[0].mxu0
      %v849 = vpop.f32.mrb[0].mxu0
      %v850 = vadd.f32 %v514, %v849
      %v851 = vpop.f32.mrb[0].mxu0
      %852 = vmatprep.mubr.bf16.mxu0 0
      %853 = vmatmul.mubr.bf16.gmra.mrb[0].mxu0 %v710
      %v854 = vpop.f32.mrb[0].mxu0
      %v855 = vadd.f32 %v514, %v854
      %v856 = vpop.f32.mrb[0].mxu0
      %v857 = vpop.f32.mrb[0].mxu0
      %v858 = vadd.f32 %v514, %v857
      %v859 = vpop.f32.mrb[0].mxu0
      %860 = vmatprep.mubr.bf16.mxu0 0
      %861 = vmatmul.mubr.bf16.gmra.mrb[0].mxu0 %v713
      %v862 = vpop.f32.mrb[0].mxu0
      %v863 = vadd.f32 %v514, %v862
      %v864 = vpop.f32.mrb[0].mxu0
      %v865 = vpop.f32.mrb[0].mxu0
      %v866 = vadd.f32 %v514, %v865
      %v867 = vpop.f32.mrb[0].mxu0
      %868 = vmatprep.mubr.bf16.mxu0 0
      %869 = vmatmul.mubr.bf16.gmra.mrb[0].mxu0 %v716
      %v870 = vpop.f32.mrb[0].mxu0
      %v871 = vadd.f32 %v514, %v870
      %v872 = vpop.f32.mrb[0].mxu0
      %v873 = vpop.f32.mrb[0].mxu0
      %v874 = vadd.f32 %v514, %v873
      %v875 = vpop.f32.mrb[0].mxu0
      %876 = vmatprep.mubr.bf16.mxu0 0
      %877 = vmatmul.mubr.bf16.gmra.mrb[0].mxu0 %v719
      %v878 = vpop.f32.mrb[0].mxu0
      %v879 = vadd.f32 %v514, %v878
      %v880 = vpop.f32.mrb[0].mxu0
      %v881 = vpop.f32.mrb[0].mxu0
      %v882 = vadd.f32 %v514, %v881
      %v883 = vpop.f32.mrb[0].mxu0
      %884 = vmatprep.mubr.bf16.mxu0 0
      %885 = vmatmul.mubr.bf16.gmra.mrb[0].mxu0 %v722
      %v886 = vpop.f32.mrb[0].mxu0
      %v887 = vadd.f32 %v514, %v886
      %v888 = vpop.f32.mrb[0].mxu0
      %v889 = vpop.f32.mrb[0].mxu0
      %v890 = vadd.f32 %v514, %v889
      %v891 = vpop.f32.mrb[0].mxu0
      %892 = vmatprep.mubr.bf16.mxu0 0
      %893 = vmatmul.mubr.bf16.gmra.mrb[0].mxu0 %v725
      %v894 = vpop.f32.mrb[0].mxu0
      %v895 = vadd.f32 %v514, %v894
      %v896 = vpop.f32.mrb[0].mxu0
      %v897 = vpop.f32.mrb[0].mxu0
      %v898 = vadd.f32 %v514, %v897
      %v899 = vpop.f32.mrb[0].mxu0
      %900 = vmatprep.mubr.bf16.mxu0 0
      %901 = vmatmul.mubr.bf16.gmra.mrb[0].mxu0 %v728
      %v902 = vpop.f32.mrb[0].mxu0
      %v903 = vadd.f32 %v514, %v902
      %v904 = vpop.f32.mrb[0].mxu0
      %v905 = vpop.f32.mrb[0].mxu0
      %v906 = vadd.f32 %v514, %v905
      %v907 = vpop.f32.mrb[0].mxu0
      %908 = vmatprep.mubr.bf16.mxu0 0
      %909 = vmatmul.mubr.bf16.gmra.mrb[0].mxu0 %v731
      %v910 = vpop.f32.mrb[0].mxu0
      %v911 = vadd.f32 %v514, %v910
      %v912 = vpop.f32.mrb[0].mxu0
      %v913 = vpop.f32.mrb[0].mxu0
      %v914 = vadd.f32 %v514, %v913
      %v915 = vpop.f32.mrb[0].mxu0
      %916 = vmatprep.mubr.bf16.mxu0 0
      %917 = vmatmul.mubr.bf16.gmra.mrb[0].mxu0 %v734
      %v918 = vpop.f32.mrb[0].mxu0
      %v919 = vadd.f32 %v514, %v918
      %v920 = vpop.f32.mrb[0].mxu0
      %v921 = vpop.f32.mrb[0].mxu0
      %v922 = vadd.f32 %v514, %v921
      %v923 = vpop.f32.mrb[0].mxu0
      %924 = vmatprep.mubr.bf16.mxu0 0
      %925 = vmatmul.mubr.bf16.gmra.mrb[0].mxu0 %v737
      %v926 = vpop.f32.mrb[0].mxu0
      %v927 = vadd.f32 %v514, %v926
      %v928 = vpop.f32.mrb[0].mxu0
      %v929 = vpop.f32.mrb[0].mxu0
      %v930 = vadd.f32 %v514, %v929
      %v931 = vpop.f32.mrb[0].mxu0
      %932 = vmatprep.mubr.bf16.mxu0 0
      %933 = vmatmul.mubr.bf16.gmra.mrb[0].mxu0 %v740
      %v934 = vpop.f32.mrb[0].mxu0
      %v935 = vadd.f32 %v514, %v934
      %v936 = vpop.f32.mrb[0].mxu0
      %v937 = vpop.f32.mrb[0].mxu0
      %v938 = vadd.f32 %v514, %v937
      %v939 = vpop.f32.mrb[0].mxu0
      %940 = vmatprep.mubr.bf16.mxu0 0
      %941 = vmatmul.mubr.bf16.gmra.mrb[0].mxu0 %v743
      %v942 = vpop.f32.mrb[0].mxu0
      %v943 = vadd.f32 %v514, %v942
      %v944 = vpop.f32.mrb[0].mxu0
      %v945 = vpop.f32.mrb[0].mxu0
      %v946 = vadd.f32 %v514, %v945
      %v947 = vpop.f32.mrb[0].mxu0
      %948 = vmatprep.mubr.bf16.mxu0 0
      %949 = vmatmul.mubr.bf16.gmra.mrb[0].mxu0 %v746
      %v950 = vpop.f32.mrb[0].mxu0
      %v951 = vadd.f32 %v514, %v950
      %v952 = vpop.f32.mrb[0].mxu0
      %v953 = vpop.f32.mrb[0].mxu0
      %v954 = vadd.f32 %v514, %v953
      %v955 = vpop.f32.mrb[0].mxu0
      %956 = vmatprep.mubr.bf16.mxu0 0
      %957 = vmatmul.mubr.bf16.gmra.mrb[0].mxu0 %v749
      %v958 = vpop.f32.mrb[0].mxu0
      %v959 = vadd.f32 %v514, %v958
      %v960 = vpop.f32.mrb[0].mxu0
      %v961 = vpop.f32.mrb[0].mxu0
      %v962 = vadd.f32 %v514, %v961
      %v963 = vpop.f32.mrb[0].mxu0
      %964 = vmatprep.mubr.bf16.mxu0 0
      %965 = vmatmul.mubr.bf16.gmra.mrb[0].mxu0 %v752
      %v966 = vpop.f32.mrb[0].mxu0
      %v967 = vadd.f32 %v514, %v966
      %v968 = vpop.f32.mrb[0].mxu0
      %v969 = vpop.f32.mrb[0].mxu0
      %v970 = vadd.f32 %v514, %v969
      %v971 = vpop.f32.mrb[0].mxu0
      %972 = vmatprep.mubr.bf16.mxu0 0
      %973 = vmatmul.mubr.bf16.gmra.mrb[0].mxu0 %v755
      %v974 = vpop.f32.mrb[0].mxu0
      %v975 = vadd.f32 %v514, %v974
      %v976 = vpop.f32.mrb[0].mxu0
      %v977 = vpop.f32.mrb[0].mxu0
      %v978 = vadd.f32 %v514, %v977
      %v979 = vpop.f32.mrb[0].mxu0
      %980 = vmatprep.mubr.bf16.mxu0 0
      %981 = vmatmul.mubr.bf16.gmra.mrb[0].mxu0 %v758
      %v982 = vpop.f32.mrb[0].mxu0
      %v983 = vadd.f32 %v514, %v982
      %v984 = vpop.f32.mrb[0].mxu0
      %v985 = vpop.f32.mrb[0].mxu0
      %v986 = vadd.f32 %v514, %v985
      %v987 = vpop.f32.mrb[0].mxu0
      %988 = vmatprep.mubr.bf16.mxu0 0
      %989 = vmatmul.mubr.bf16.gmra.mrb[0].mxu0 %v761
      %v990 = vpop.f32.mrb[0].mxu0
      %v991 = vadd.f32 %v514, %v990
      %v992 = vpop.f32.mrb[0].mxu0
      %v993 = vpop.f32.mrb[0].mxu0
      %v994 = vadd.f32 %v514, %v993
      %v995 = vpop.f32.mrb[0].mxu0
      %996 = vmatprep.mubr.bf16.mxu0 0
      %997 = vmatmul.mubr.bf16.gmra.mrb[0].mxu0 %v764
      %v998 = vpop.f32.mrb[0].mxu0
      %v999 = vadd.f32 %v514, %v998
      %v1000 = vpop.f32.mrb[0].mxu0
      %v1001 = vpop.f32.mrb[0].mxu0
      %v1002 = vadd.f32 %v514, %v1001
      %v1003 = vpop.f32.mrb[0].mxu0
      %1004 = vmatprep.mubr.bf16.mxu0 0
      %1005 = vmatmul.mubr.bf16.gmra.mrb[0].mxu0 %v767
      %v1006 = vpop.f32.mrb[0].mxu0
      %v1007 = vadd.f32 %v514, %v1006
      %v1008 = vpop.f32.mrb[0].mxu0
      %v1009 = vpop.f32.mrb[0].mxu0
      %v1010 = vadd.f32 %v514, %v1009
      %v1011 = vpop.f32.mrb[0].mxu0
      %1012 = vmatprep.mubr.bf16.mxu0 0
      %1013 = vmatmul.mubr.bf16.gmra.mrb[0].mxu0 %v770
      %v1014 = vpop.f32.mrb[0].mxu0
      %v1015 = vadd.f32 %v514, %v1014
      %v1016 = vpop.f32.mrb[0].mxu0
      %v1017 = vpop.f32.mrb[0].mxu0
      %v1018 = vadd.f32 %v514, %v1017
      %v1019 = vpop.f32.mrb[0].mxu0
      %1020 = vmatprep.mubr.bf16.mxu0 0
      %1021 = vmatmul.mubr.bf16.gmra.mrb[0].mxu0 %v773
      %v1022 = vpop.f32.mrb[0].mxu0
      %v1023 = vadd.f32 %v514, %v1022
      %v1024 = vpop.f32.mrb[0].mxu0
      %v1025 = vpop.f32.mrb[0].mxu0
      %v1026 = vadd.f32 %v514, %v1025
      %v1027 = vpop.f32.mrb[0].mxu0
      %1028 = vmatprep.mubr.bf16.mxu0 0
      %1029 = vmatmul.mubr.bf16.gmra.mrb[0].mxu0 %v776
      %v1030 = vpop.f32.mrb[0].mxu0
      %v1031 = vadd.f32 %v514, %v1030
      %v1032 = vpop.f32.mrb[0].mxu0
      %v1033 = vpop.f32.mrb[0].mxu0
      %v1034 = vadd.f32 %v514, %v1033
      %v1035 = vpop.f32.mrb[0].mxu0
      %1036 = vmatprep.mubr.bf16.mxu0 0
      %1037 = vmatmul.mubr.bf16.gmra.mrb[0].mxu0 %v779
      %v1038 = vpop.f32.mrb[0].mxu0
      %v1039 = vadd.f32 %v514, %v1038
      %v1040 = vpop.f32.mrb[0].mxu0
      %v1041 = vpop.f32.mrb[0].mxu0
      %v1042 = vadd.f32 %v514, %v1041
      %v1043 = vpop.f32.mrb[0].mxu0
      %1044 = vmatprep.mubr.bf16.mxu0 0
      %1045 = vmatmul.mubr.bf16.gmra.mrb[0].mxu0 %v782
      %v1046 = vpop.f32.mrb[0].mxu0
      %v1047 = vadd.f32 %v514, %v1046
      %v1048 = vpop.f32.mrb[0].mxu0
      %v1049 = vpop.f32.mrb[0].mxu0
      %v1050 = vadd.f32 %v514, %v1049
      %v1051 = vpop.f32.mrb[0].mxu0
      %1052 = vmatprep.mubr.bf16.mxu0 0
      %1053 = vmatmul.mubr.bf16.gmra.mrb[0].mxu0 %v785
      %v1054 = vpop.f32.mrb[0].mxu0
      %v1055 = vadd.f32 %v514, %v1054
      %v1056 = vpop.f32.mrb[0].mxu0
      %v1057 = vpop.f32.mrb[0].mxu0
      %v1058 = vadd.f32 %v514, %v1057
      %v1059 = vpop.f32.mrb[0].mxu0
      %1060 = vmatprep.mubr.bf16.mxu0 0
      %1061 = vmatmul.mubr.bf16.gmra.mrb[0].mxu0 %v788
      %v1062 = vpop.f32.mrb[0].mxu0
      %v1063 = vadd.f32 %v514, %v1062
      %v1064 = vpop.f32.mrb[0].mxu0
      %v1065 = vpop.f32.mrb[0].mxu0
      %v1066 = vadd.f32 %v514, %v1065
      %v1067 = vpop.f32.mrb[0].mxu0
      %1068 = vmatprep.mubr.bf16.mxu0 0
      %1069 = vmatmul.mubr.bf16.gmra.mrb[0].mxu0 %v791
      %v1070 = vpop.f32.mrb[0].mxu0
      %v1071 = vadd.f32 %v514, %v1070
      %v1072 = vpop.f32.mrb[0].mxu0
      %v1073 = vpop.f32.mrb[0].mxu0
      %v1074 = vadd.f32 %v514, %v1073
      %v1075 = vpop.f32.mrb[0].mxu0
      %1076 = vmatprep.mubr.bf16.mxu0 0
      %1077 = vmatmul.mubr.bf16.gmra.mrb[0].mxu0 %v794
      %v1078 = vpop.f32.mrb[0].mxu0
      %v1079 = vadd.f32 %v514, %v1078
      %v1080 = vpop.f32.mrb[0].mxu0
      %v1081 = vpop.f32.mrb[0].mxu0
      %v1082 = vadd.f32 %v514, %v1081
      %v1083 = vpop.f32.mrb[0].mxu0
      %1084 = vdwg.mxu0
      %v1085 = vmax.f32 %v831, 0.0
      %v1086 = vmax.f32 %v834, 0.0
      %v1087 = vmax.f32 %v839, 0.0
      %v1088 = vmax.f32 %v842, 0.0
      %v1089 = vmax.f32 %v847, 0.0
      %v1090 = vmax.f32 %v850, 0.0
      %v1091 = vmax.f32 %v855, 0.0
      %v1092 = vmax.f32 %v858, 0.0
      %v1093 = vmax.f32 %v863, 0.0
      %v1094 = vmax.f32 %v866, 0.0
      %v1095 = vmax.f32 %v871, 0.0
      %v1096 = vmax.f32 %v874, 0.0
      %v1097 = vmax.f32 %v879, 0.0
      %v1098 = vmax.f32 %v882, 0.0
      %v1099 = vmax.f32 %v887, 0.0
      %v1100 = vmax.f32 %v890, 0.0
      %v1101 = vmax.f32 %v895, 0.0
      %v1102 = vmax.f32 %v898, 0.0
      %v1103 = vmax.f32 %v903, 0.0
      %v1104 = vmax.f32 %v906, 0.0
      %v1105 = vmax.f32 %v911, 0.0
      %v1106 = vmax.f32 %v914, 0.0
      %v1107 = vmax.f32 %v919, 0.0
      %v1108 = vmax.f32 %v922, 0.0
      %v1109 = vmax.f32 %v927, 0.0
      %v1110 = vmax.f32 %v930, 0.0
      %v1111 = vmax.f32 %v935, 0.0
      %v1112 = vmax.f32 %v938, 0.0
      %v1113 = vmax.f32 %v943, 0.0
      %v1114 = vmax.f32 %v946, 0.0
      %v1115 = vmax.f32 %v951, 0.0
      %v1116 = vmax.f32 %v954, 0.0
      %v1117 = vmax.f32 %v959, 0.0
      %v1118 = vmax.f32 %v962, 0.0
      %v1119 = vmax.f32 %v967, 0.0
      %v1120 = vmax.f32 %v970, 0.0
      %v1121 = vmax.f32 %v975, 0.0
      %v1122 = vmax.f32 %v978, 0.0
      %v1123 = vmax.f32 %v983, 0.0
      %v1124 = vmax.f32 %v986, 0.0
      %v1125 = vmax.f32 %v991, 0.0
      %v1126 = vmax.f32 %v994, 0.0
      %v1127 = vmax.f32 %v999, 0.0
      %v1128 = vmax.f32 %v1002, 0.0
      %v1129 = vmax.f32 %v1007, 0.0
      %v1130 = vmax.f32 %v1010, 0.0
      %v1131 = vmax.f32 %v1015, 0.0
      %v1132 = vmax.f32 %v1018, 0.0
      %v1133 = vmax.f32 %v1023, 0.0
      %v1134 = vmax.f32 %v1026, 0.0
      %v1135 = vmax.f32 %v1031, 0.0
      %v1136 = vmax.f32 %v1034, 0.0
      %v1137 = vmax.f32 %v1039, 0.0
      %v1138 = vmax.f32 %v1042, 0.0
      %v1139 = vmax.f32 %v1047, 0.0
      %v1140 = vmax.f32 %v1050, 0.0
      %v1141 = vmax.f32 %v1055, 0.0
      %v1142 = vmax.f32 %v1058, 0.0
      %v1143 = vmax.f32 %v1063, 0.0
      %v1144 = vmax.f32 %v1066, 0.0
      %v1145 = vmax.f32 %v1071, 0.0
      %v1146 = vmax.f32 %v1074, 0.0
      %v1147 = vmax.f32 %v1079, 0.0
      %v1148 = vmax.f32 %v1082, 0.0
      %v1149 = vpack.c.bf16 %v1086, %v1085
      %v1150 = vpack.c.bf16 %v1088, %v1087
      %v1151 = vpack.c.bf16 %v1090, %v1089
      %v1152 = vpack.c.bf16 %v1092, %v1091
      %v1153 = vpack.c.bf16 %v1094, %v1093
      %v1154 = vpack.c.bf16 %v1096, %v1095
      %v1155 = vpack.c.bf16 %v1098, %v1097
      %v1156 = vpack.c.bf16 %v1100, %v1099
      %v1157 = vpack.c.bf16 %v1102, %v1101
      %v1158 = vpack.c.bf16 %v1104, %v1103
      %v1159 = vpack.c.bf16 %v1106, %v1105
      %v1160 = vpack.c.bf16 %v1108, %v1107
      %v1161 = vpack.c.bf16 %v1110, %v1109
      %v1162 = vpack.c.bf16 %v1112, %v1111
      %v1163 = vpack.c.bf16 %v1114, %v1113
      %v1164 = vpack.c.bf16 %v1116, %v1115
      %v1165 = vpack.c.bf16 %v1118, %v1117
      %v1166 = vpack.c.bf16 %v1120, %v1119
      %v1167 = vpack.c.bf16 %v1122, %v1121
      %v1168 = vpack.c.bf16 %v1124, %v1123
      %v1169 = vpack.c.bf16 %v1126, %v1125
      %v1170 = vpack.c.bf16 %v1128, %v1127
      %v1171 = vpack.c.bf16 %v1130, %v1129
      %v1172 = vpack.c.bf16 %v1132, %v1131
      %v1173 = vpack.c.bf16 %v1134, %v1133
      %v1174 = vpack.c.bf16 %v1136, %v1135
      %v1175 = vpack.c.bf16 %v1138, %v1137
      %v1176 = vpack.c.bf16 %v1140, %v1139
      %v1177 = vpack.c.bf16 %v1142, %v1141
      %v1178 = vpack.c.bf16 %v1144, %v1143
      %v1179 = vpack.c.bf16 %v1146, %v1145
      %v1180 = vpack.c.bf16 %v1148, %v1147
      %v1181 = vld [vmem:[%s2] sm:$0xf]
      %v1182 = vld [vmem:[%s2 + $0x4] sm:$0xf]
      %v1183 = vld [vmem:[%s2 + $0x8] sm:$0xf]
      %v1184 = vld [vmem:[%s2 + $0xc] sm:$0xf]
      %v1185 = vld [vmem:[%s2 + $0x10] sm:$0xf]
      %v1186 = vld [vmem:[%s2 + $0x14] sm:$0xf]
      %v1187 = vld [vmem:[%s2 + $0x18] sm:$0xf]
      %v1188 = vld [vmem:[%s2 + $0x1c] sm:$0xf]
      %v1189 = vld [vmem:[%s2 + $0x20] sm:$0xf]
      %v1190 = vld [vmem:[%s2 + $0x24] sm:$0xf]
      %v1191 = vld [vmem:[%s2 + $0x28] sm:$0xf]
      %v1192 = vld [vmem:[%s2 + $0x2c] sm:$0xf]
      %v1193 = vld [vmem:[%s2 + $0x30] sm:$0xf]
      %v1194 = vld [vmem:[%s2 + $0x34] sm:$0xf]
      %v1195 = vld [vmem:[%s2 + $0x38] sm:$0xf]
      %v1196 = vld [vmem:[%s2 + $0x3c] sm:$0xf]
      %v1197 = vlaneseq
      %v1198 = vshrl.u32 %v1197, 7
      %v1199 = vsub.s32 1, %v1198
      %v1200 = vrot.slane %v501, %v1199
      %v1217 = vunpack.c.l.b16 %v1181
      %v1218 = vunpack.c.l.b16 %v1182
      %v1219 = vunpack.c.l.b16 %v1183
      %v1220 = vunpack.c.l.b16 %v1184
      %v1221 = vunpack.c.l.b16 %v1185
      %v1222 = vunpack.c.l.b16 %v1186
      %v1223 = vunpack.c.l.b16 %v1187
      %v1224 = vunpack.c.l.b16 %v1188
      %v1225 = vunpack.c.l.b16 %v1189
      %v1226 = vunpack.c.l.b16 %v1190
      %v1227 = vunpack.c.l.b16 %v1191
      %v1228 = vunpack.c.l.b16 %v1192
      %v1229 = vunpack.c.l.b16 %v1193
      %v1230 = vunpack.c.l.b16 %v1194
      %v1231 = vunpack.c.l.b16 %v1195
      %v1232 = vunpack.c.l.b16 %v1196
      %v1233 = vpack.c.b16 %v1218, %v1217
      %v1234 = vpack.c.b16 %v1220, %v1219
      %v1235 = vpack.c.b16 %v1222, %v1221
      %v1236 = vpack.c.b16 %v1224, %v1223
      %v1237 = vpack.c.b16 %v1226, %v1225
      %v1238 = vpack.c.b16 %v1228, %v1227
      %v1239 = vpack.c.b16 %v1230, %v1229
      %v1240 = vpack.c.b16 %v1232, %v1231
      %1249 = vmatprep.subr.bf16.mxu0 0
      %1250 = vmatpush1.bf16.msra.mxu0 %v1233
      %1251 = vmatprep.subr.bf16.mxu0 0
      %1252 = vmatpush1.bf16.msra.mxu0 %v1234
      %1253 = vmatprep.subr.bf16.mxu0 0
      %1254 = vmatpush1.bf16.msra.mxu0 %v1235
      %1255 = vmatprep.subr.bf16.mxu0 0
      %1256 = vmatpush1.bf16.msra.mxu0 %v1236
      %1257 = vmatprep.subr.bf16.mxu0 0
      %1258 = vmatpush1.bf16.msra.mxu0 %v1237
      %1259 = vmatprep.subr.bf16.mxu0 0
      %1260 = vmatpush1.bf16.msra.mxu0 %v1238
      %1261 = vmatprep.subr.bf16.mxu0 0
      %1262 = vmatpush1.bf16.msra.mxu0 %v1239
      %1263 = vmatprep.subr.bf16.mxu0 0
      %1264 = vmatpush1.bf16.msra.mxu0 %v1240
      %1265 = vmatprep.subr.bf16.mxu0 0
      %1266 = vmatpush1.bf16.msra.mxu0 0
      %1267 = vmatprep.subr.bf16.mxu0 0
      %1268 = vmatpush1.bf16.msra.mxu0 0
      %1269 = vmatprep.subr.bf16.mxu0 0
      %1270 = vmatpush1.bf16.msra.mxu0 0
      %1271 = vmatprep.subr.bf16.mxu0 0
      %1272 = vmatpush1.bf16.msra.mxu0 0
      %1273 = vmatprep.subr.bf16.mxu0 0
      %1274 = vmatpush1.bf16.msra.mxu0 0
      %1275 = vmatprep.subr.bf16.mxu0 0
      %1276 = vmatpush1.bf16.msra.mxu0 0
      %1277 = vmatprep.subr.bf16.mxu0 0
      %1278 = vmatpush1.bf16.msra.mxu0 0
      %1279 = vmatprep.subr.bf16.mxu0 0
      %1280 = vmatpush1.bf16.msra.mxu0 0
      %1281 = vmatprep.mubr.bf16.mxu0 0
      %1282 = vmatmul.mubr.bf16.gmra.mrb[0].mxu0 %v1149
      %v1283 = vpop.f32.mrb[0].mxu0
      %v1284 = vadd.f32 %v1200, %v1283
      %v1285 = vpop.f32.mrb[0].mxu0
      %v1286 = vpop.f32.mrb[0].mxu0
      %v1287 = vadd.f32 %v1200, %v1286
      %v1288 = vpop.f32.mrb[0].mxu0
      %1289 = vmatprep.mubr.bf16.mxu0 0
      %1290 = vmatmul.mubr.bf16.gmra.mrb[0].mxu0 %v1150
      %v1291 = vpop.f32.mrb[0].mxu0
      %v1292 = vadd.f32 %v1200, %v1291
      %v1293 = vpop.f32.mrb[0].mxu0
      %v1294 = vpop.f32.mrb[0].mxu0
      %v1295 = vadd.f32 %v1200, %v1294
      %v1296 = vpop.f32.mrb[0].mxu0
      %1297 = vmatprep.mubr.bf16.mxu0 0
      %1298 = vmatmul.mubr.bf16.gmra.mrb[0].mxu0 %v1151
      %v1299 = vpop.f32.mrb[0].mxu0
      %v1300 = vadd.f32 %v1200, %v1299
      %v1301 = vpop.f32.mrb[0].mxu0
      %v1302 = vpop.f32.mrb[0].mxu0
      %v1303 = vadd.f32 %v1200, %v1302
      %v1304 = vpop.f32.mrb[0].mxu0
      %1305 = vmatprep.mubr.bf16.mxu0 0
      %1306 = vmatmul.mubr.bf16.gmra.mrb[0].mxu0 %v1152
      %v1307 = vpop.f32.mrb[0].mxu0
      %v1308 = vadd.f32 %v1200, %v1307
      %v1309 = vpop.f32.mrb[0].mxu0
      %v1310 = vpop.f32.mrb[0].mxu0
      %v1311 = vadd.f32 %v1200, %v1310
      %v1312 = vpop.f32.mrb[0].mxu0
      %1313 = vmatprep.mubr.bf16.mxu0 0
      %1314 = vmatmul.mubr.bf16.gmra.mrb[0].mxu0 %v1153
      %v1315 = vpop.f32.mrb[0].mxu0
      %v1316 = vadd.f32 %v1200, %v1315
      %v1317 = vpop.f32.mrb[0].mxu0
      %v1318 = vpop.f32.mrb[0].mxu0
      %v1319 = vadd.f32 %v1200, %v1318
      %v1320 = vpop.f32.mrb[0].mxu0
      %1321 = vmatprep.mubr.bf16.mxu0 0
      %1322 = vmatmul.mubr.bf16.gmra.mrb[0].mxu0 %v1154
      %v1323 = vpop.f32.mrb[0].mxu0
      %v1324 = vadd.f32 %v1200, %v1323
      %v1325 = vpop.f32.mrb[0].mxu0
      %v1326 = vpop.f32.mrb[0].mxu0
      %v1327 = vadd.f32 %v1200, %v1326
      %v1328 = vpop.f32.mrb[0].mxu0
      %1329 = vmatprep.mubr.bf16.mxu0 0
      %1330 = vmatmul.mubr.bf16.gmra.mrb[0].mxu0 %v1155
      %v1331 = vpop.f32.mrb[0].mxu0
      %v1332 = vadd.f32 %v1200, %v1331
      %v1333 = vpop.f32.mrb[0].mxu0
      %v1334 = vpop.f32.mrb[0].mxu0
      %v1335 = vadd.f32 %v1200, %v1334
      %v1336 = vpop.f32.mrb[0].mxu0
      %1337 = vmatprep.mubr.bf16.mxu0 0
      %1338 = vmatmul.mubr.bf16.gmra.mrb[0].mxu0 %v1156
      %v1339 = vpop.f32.mrb[0].mxu0
      %v1340 = vadd.f32 %v1200, %v1339
      %v1341 = vpop.f32.mrb[0].mxu0
      %v1342 = vpop.f32.mrb[0].mxu0
      %v1343 = vadd.f32 %v1200, %v1342
      %v1344 = vpop.f32.mrb[0].mxu0
      %1345 = vmatprep.mubr.bf16.mxu0 0
      %1346 = vmatmul.mubr.bf16.gmra.mrb[0].mxu0 %v1157
      %v1347 = vpop.f32.mrb[0].mxu0
      %v1348 = vadd.f32 %v1200, %v1347
      %v1349 = vpop.f32.mrb[0].mxu0
      %v1350 = vpop.f32.mrb[0].mxu0
      %v1351 = vadd.f32 %v1200, %v1350
      %v1352 = vpop.f32.mrb[0].mxu0
      %1353 = vmatprep.mubr.bf16.mxu0 0
      %1354 = vmatmul.mubr.bf16.gmra.mrb[0].mxu0 %v1158
      %v1355 = vpop.f32.mrb[0].mxu0
      %v1356 = vadd.f32 %v1200, %v1355
      %v1357 = vpop.f32.mrb[0].mxu0
      %v1358 = vpop.f32.mrb[0].mxu0
      %v1359 = vadd.f32 %v1200, %v1358
      %v1360 = vpop.f32.mrb[0].mxu0
      %1361 = vmatprep.mubr.bf16.mxu0 0
      %1362 = vmatmul.mubr.bf16.gmra.mrb[0].mxu0 %v1159
      %v1363 = vpop.f32.mrb[0].mxu0
      %v1364 = vadd.f32 %v1200, %v1363
      %v1365 = vpop.f32.mrb[0].mxu0
      %v1366 = vpop.f32.mrb[0].mxu0
      %v1367 = vadd.f32 %v1200, %v1366
      %v1368 = vpop.f32.mrb[0].mxu0
      %1369 = vmatprep.mubr.bf16.mxu0 0
      %1370 = vmatmul.mubr.bf16.gmra.mrb[0].mxu0 %v1160
      %v1371 = vpop.f32.mrb[0].mxu0
      %v1372 = vadd.f32 %v1200, %v1371
      %v1373 = vpop.f32.mrb[0].mxu0
      %v1374 = vpop.f32.mrb[0].mxu0
      %v1375 = vadd.f32 %v1200, %v1374
      %v1376 = vpop.f32.mrb[0].mxu0
      %1377 = vmatprep.mubr.bf16.mxu0 0
      %1378 = vmatmul.mubr.bf16.gmra.mrb[0].mxu0 %v1161
      %v1379 = vpop.f32.mrb[0].mxu0
      %v1380 = vadd.f32 %v1200, %v1379
      %v1381 = vpop.f32.mrb[0].mxu0
      %v1382 = vpop.f32.mrb[0].mxu0
      %v1383 = vadd.f32 %v1200, %v1382
      %v1384 = vpop.f32.mrb[0].mxu0
      %1385 = vmatprep.mubr.bf16.mxu0 0
      %1386 = vmatmul.mubr.bf16.gmra.mrb[0].mxu0 %v1162
      %v1387 = vpop.f32.mrb[0].mxu0
      %v1388 = vadd.f32 %v1200, %v1387
      %v1389 = vpop.f32.mrb[0].mxu0
      %v1390 = vpop.f32.mrb[0].mxu0
      %v1391 = vadd.f32 %v1200, %v1390
      %v1392 = vpop.f32.mrb[0].mxu0
      %1393 = vmatprep.mubr.bf16.mxu0 0
      %1394 = vmatmul.mubr.bf16.gmra.mrb[0].mxu0 %v1163
      %v1395 = vpop.f32.mrb[0].mxu0
      %v1396 = vadd.f32 %v1200, %v1395
      %v1397 = vpop.f32.mrb[0].mxu0
      %v1398 = vpop.f32.mrb[0].mxu0
      %v1399 = vadd.f32 %v1200, %v1398
      %v1400 = vpop.f32.mrb[0].mxu0
      %1401 = vmatprep.mubr.bf16.mxu0 0
      %1402 = vmatmul.mubr.bf16.gmra.mrb[0].mxu0 %v1164
      %v1403 = vpop.f32.mrb[0].mxu0
      %v1404 = vadd.f32 %v1200, %v1403
      %v1405 = vpop.f32.mrb[0].mxu0
      %v1406 = vpop.f32.mrb[0].mxu0
      %v1407 = vadd.f32 %v1200, %v1406
      %v1408 = vpop.f32.mrb[0].mxu0
      %1409 = vmatprep.mubr.bf16.mxu0 0
      %1410 = vmatmul.mubr.bf16.gmra.mrb[0].mxu0 %v1165
      %v1411 = vpop.f32.mrb[0].mxu0
      %v1412 = vadd.f32 %v1200, %v1411
      %v1413 = vpop.f32.mrb[0].mxu0
      %v1414 = vpop.f32.mrb[0].mxu0
      %v1415 = vadd.f32 %v1200, %v1414
      %v1416 = vpop.f32.mrb[0].mxu0
      %1417 = vmatprep.mubr.bf16.mxu0 0
      %1418 = vmatmul.mubr.bf16.gmra.mrb[0].mxu0 %v1166
      %v1419 = vpop.f32.mrb[0].mxu0
      %v1420 = vadd.f32 %v1200, %v1419
      %v1421 = vpop.f32.mrb[0].mxu0
      %v1422 = vpop.f32.mrb[0].mxu0
      %v1423 = vadd.f32 %v1200, %v1422
      %v1424 = vpop.f32.mrb[0].mxu0
      %1425 = vmatprep.mubr.bf16.mxu0 0
      %1426 = vmatmul.mubr.bf16.gmra.mrb[0].mxu0 %v1167
      %v1427 = vpop.f32.mrb[0].mxu0
      %v1428 = vadd.f32 %v1200, %v1427
      %v1429 = vpop.f32.mrb[0].mxu0
      %v1430 = vpop.f32.mrb[0].mxu0
      %v1431 = vadd.f32 %v1200, %v1430
      %v1432 = vpop.f32.mrb[0].mxu0
      %1433 = vmatprep.mubr.bf16.mxu0 0
      %1434 = vmatmul.mubr.bf16.gmra.mrb[0].mxu0 %v1168
      %v1435 = vpop.f32.mrb[0].mxu0
      %v1436 = vadd.f32 %v1200, %v1435
      %v1437 = vpop.f32.mrb[0].mxu0
      %v1438 = vpop.f32.mrb[0].mxu0
      %v1439 = vadd.f32 %v1200, %v1438
      %v1440 = vpop.f32.mrb[0].mxu0
      %1441 = vmatprep.mubr.bf16.mxu0 0
      %1442 = vmatmul.mubr.bf16.gmra.mrb[0].mxu0 %v1169
      %v1443 = vpop.f32.mrb[0].mxu0
      %v1444 = vadd.f32 %v1200, %v1443
      %v1445 = vpop.f32.mrb[0].mxu0
      %v1446 = vpop.f32.mrb[0].mxu0
      %v1447 = vadd.f32 %v1200, %v1446
      %v1448 = vpop.f32.mrb[0].mxu0
      %1449 = vmatprep.mubr.bf16.mxu0 0
      %1450 = vmatmul.mubr.bf16.gmra.mrb[0].mxu0 %v1170
      %v1451 = vpop.f32.mrb[0].mxu0
      %v1452 = vadd.f32 %v1200, %v1451
      %v1453 = vpop.f32.mrb[0].mxu0
      %v1454 = vpop.f32.mrb[0].mxu0
      %v1455 = vadd.f32 %v1200, %v1454
      %v1456 = vpop.f32.mrb[0].mxu0
      %1457 = vmatprep.mubr.bf16.mxu0 0
      %1458 = vmatmul.mubr.bf16.gmra.mrb[0].mxu0 %v1171
      %v1459 = vpop.f32.mrb[0].mxu0
      %v1460 = vadd.f32 %v1200, %v1459
      %v1461 = vpop.f32.mrb[0].mxu0
      %v1462 = vpop.f32.mrb[0].mxu0
      %v1463 = vadd.f32 %v1200, %v1462
      %v1464 = vpop.f32.mrb[0].mxu0
      %1465 = vmatprep.mubr.bf16.mxu0 0
      %1466 = vmatmul.mubr.bf16.gmra.mrb[0].mxu0 %v1172
      %v1467 = vpop.f32.mrb[0].mxu0
      %v1468 = vadd.f32 %v1200, %v1467
      %v1469 = vpop.f32.mrb[0].mxu0
      %v1470 = vpop.f32.mrb[0].mxu0
      %v1471 = vadd.f32 %v1200, %v1470
      %v1472 = vpop.f32.mrb[0].mxu0
      %1473 = vmatprep.mubr.bf16.mxu0 0
      %1474 = vmatmul.mubr.bf16.gmra.mrb[0].mxu0 %v1173
      %v1475 = vpop.f32.mrb[0].mxu0
      %v1476 = vadd.f32 %v1200, %v1475
      %v1477 = vpop.f32.mrb[0].mxu0
      %v1478 = vpop.f32.mrb[0].mxu0
      %v1479 = vadd.f32 %v1200, %v1478
      %v1480 = vpop.f32.mrb[0].mxu0
      %1481 = vmatprep.mubr.bf16.mxu0 0
      %1482 = vmatmul.mubr.bf16.gmra.mrb[0].mxu0 %v1174
      %v1483 = vpop.f32.mrb[0].mxu0
      %v1484 = vadd.f32 %v1200, %v1483
      %v1485 = vpop.f32.mrb[0].mxu0
      %v1486 = vpop.f32.mrb[0].mxu0
      %v1487 = vadd.f32 %v1200, %v1486
      %v1488 = vpop.f32.mrb[0].mxu0
      %1489 = vmatprep.mubr.bf16.mxu0 0
      %1490 = vmatmul.mubr.bf16.gmra.mrb[0].mxu0 %v1175
      %v1491 = vpop.f32.mrb[0].mxu0
      %v1492 = vadd.f32 %v1200, %v1491
      %v1493 = vpop.f32.mrb[0].mxu0
      %v1494 = vpop.f32.mrb[0].mxu0
      %v1495 = vadd.f32 %v1200, %v1494
      %v1496 = vpop.f32.mrb[0].mxu0
      %1497 = vmatprep.mubr.bf16.mxu0 0
      %1498 = vmatmul.mubr.bf16.gmra.mrb[0].mxu0 %v1176
      %v1499 = vpop.f32.mrb[0].mxu0
      %v1500 = vadd.f32 %v1200, %v1499
      %v1501 = vpop.f32.mrb[0].mxu0
      %v1502 = vpop.f32.mrb[0].mxu0
      %v1503 = vadd.f32 %v1200, %v1502
      %v1504 = vpop.f32.mrb[0].mxu0
      %1505 = vmatprep.mubr.bf16.mxu0 0
      %1506 = vmatmul.mubr.bf16.gmra.mrb[0].mxu0 %v1177
      %v1507 = vpop.f32.mrb[0].mxu0
      %v1508 = vadd.f32 %v1200, %v1507
      %v1509 = vpop.f32.mrb[0].mxu0
      %v1510 = vpop.f32.mrb[0].mxu0
      %v1511 = vadd.f32 %v1200, %v1510
      %v1512 = vpop.f32.mrb[0].mxu0
      %1513 = vmatprep.mubr.bf16.mxu0 0
      %1514 = vmatmul.mubr.bf16.gmra.mrb[0].mxu0 %v1178
      %v1515 = vpop.f32.mrb[0].mxu0
      %v1516 = vadd.f32 %v1200, %v1515
      %v1517 = vpop.f32.mrb[0].mxu0
      %v1518 = vpop.f32.mrb[0].mxu0
      %v1519 = vadd.f32 %v1200, %v1518
      %v1520 = vpop.f32.mrb[0].mxu0
      %1521 = vmatprep.mubr.bf16.mxu0 0
      %1522 = vmatmul.mubr.bf16.gmra.mrb[0].mxu0 %v1179
      %v1523 = vpop.f32.mrb[0].mxu0
      %v1524 = vadd.f32 %v1200, %v1523
      %v1525 = vpop.f32.mrb[0].mxu0
      %v1526 = vpop.f32.mrb[0].mxu0
      %v1527 = vadd.f32 %v1200, %v1526
      %v1528 = vpop.f32.mrb[0].mxu0
      %1529 = vmatprep.mubr.bf16.mxu0 0
      %1530 = vmatmul.mubr.bf16.gmra.mrb[0].mxu0 %v1180
      %v1531 = vpop.f32.mrb[0].mxu0
      %v1532 = vadd.f32 %v1200, %v1531
      %v1533 = vpop.f32.mrb[0].mxu0
      %v1534 = vpop.f32.mrb[0].mxu0
      %v1535 = vadd.f32 %v1200, %v1534
      %v1536 = vpop.f32.mrb[0].mxu0
      %1537 = vdwg.mxu0
      %v1538 = vmax.f32 %v1284, 0.0
      %v1539 = vmax.f32 %v1287, 0.0
      %v1540 = vmax.f32 %v1292, 0.0
      %v1541 = vmax.f32 %v1295, 0.0
      %v1542 = vmax.f32 %v1300, 0.0
      %v1543 = vmax.f32 %v1303, 0.0
      %v1544 = vmax.f32 %v1308, 0.0
      %v1545 = vmax.f32 %v1311, 0.0
      %v1546 = vmax.f32 %v1316, 0.0
      %v1547 = vmax.f32 %v1319, 0.0
      %v1548 = vmax.f32 %v1324, 0.0
      %v1549 = vmax.f32 %v1327, 0.0
      %v1550 = vmax.f32 %v1332, 0.0
      %v1551 = vmax.f32 %v1335, 0.0
      %v1552 = vmax.f32 %v1340, 0.0
      %v1553 = vmax.f32 %v1343, 0.0
      %v1554 = vmax.f32 %v1348, 0.0
      %v1555 = vmax.f32 %v1351, 0.0
      %v1556 = vmax.f32 %v1356, 0.0
      %v1557 = vmax.f32 %v1359, 0.0
      %v1558 = vmax.f32 %v1364, 0.0
      %v1559 = vmax.f32 %v1367, 0.0
      %v1560 = vmax.f32 %v1372, 0.0
      %v1561 = vmax.f32 %v1375, 0.0
      %v1562 = vmax.f32 %v1380, 0.0
      %v1563 = vmax.f32 %v1383, 0.0
      %v1564 = vmax.f32 %v1388, 0.0
      %v1565 = vmax.f32 %v1391, 0.0
      %v1566 = vmax.f32 %v1396, 0.0
      %v1567 = vmax.f32 %v1399, 0.0
      %v1568 = vmax.f32 %v1404, 0.0
      %v1569 = vmax.f32 %v1407, 0.0
      %v1570 = vmax.f32 %v1412, 0.0
      %v1571 = vmax.f32 %v1415, 0.0
      %v1572 = vmax.f32 %v1420, 0.0
      %v1573 = vmax.f32 %v1423, 0.0
      %v1574 = vmax.f32 %v1428, 0.0
      %v1575 = vmax.f32 %v1431, 0.0
      %v1576 = vmax.f32 %v1436, 0.0
      %v1577 = vmax.f32 %v1439, 0.0
      %v1578 = vmax.f32 %v1444, 0.0
      %v1579 = vmax.f32 %v1447, 0.0
      %v1580 = vmax.f32 %v1452, 0.0
      %v1581 = vmax.f32 %v1455, 0.0
      %v1582 = vmax.f32 %v1460, 0.0
      %v1583 = vmax.f32 %v1463, 0.0
      %v1584 = vmax.f32 %v1468, 0.0
      %v1585 = vmax.f32 %v1471, 0.0
      %v1586 = vmax.f32 %v1476, 0.0
      %v1587 = vmax.f32 %v1479, 0.0
      %v1588 = vmax.f32 %v1484, 0.0
      %v1589 = vmax.f32 %v1487, 0.0
      %v1590 = vmax.f32 %v1492, 0.0
      %v1591 = vmax.f32 %v1495, 0.0
      %v1592 = vmax.f32 %v1500, 0.0
      %v1593 = vmax.f32 %v1503, 0.0
      %v1594 = vmax.f32 %v1508, 0.0
      %v1595 = vmax.f32 %v1511, 0.0
      %v1596 = vmax.f32 %v1516, 0.0
      %v1597 = vmax.f32 %v1519, 0.0
      %v1598 = vmax.f32 %v1524, 0.0
      %v1599 = vmax.f32 %v1527, 0.0
      %v1600 = vmax.f32 %v1532, 0.0
      %v1601 = vmax.f32 %v1535, 0.0
      %v1602 = vpack.c.bf16 %v1539, %v1538
      %v1603 = vpack.c.bf16 %v1541, %v1540
      %v1604 = vpack.c.bf16 %v1543, %v1542
      %v1605 = vpack.c.bf16 %v1545, %v1544
      %v1606 = vpack.c.bf16 %v1547, %v1546
      %v1607 = vpack.c.bf16 %v1549, %v1548
      %v1608 = vpack.c.bf16 %v1551, %v1550
      %v1609 = vpack.c.bf16 %v1553, %v1552
      %v1610 = vpack.c.bf16 %v1555, %v1554
      %v1611 = vpack.c.bf16 %v1557, %v1556
      %v1612 = vpack.c.bf16 %v1559, %v1558
      %v1613 = vpack.c.bf16 %v1561, %v1560
      %v1614 = vpack.c.bf16 %v1563, %v1562
      %v1615 = vpack.c.bf16 %v1565, %v1564
      %v1616 = vpack.c.bf16 %v1567, %v1566
      %v1617 = vpack.c.bf16 %v1569, %v1568
      %v1618 = vpack.c.bf16 %v1571, %v1570
      %v1619 = vpack.c.bf16 %v1573, %v1572
      %v1620 = vpack.c.bf16 %v1575, %v1574
      %v1621 = vpack.c.bf16 %v1577, %v1576
      %v1622 = vpack.c.bf16 %v1579, %v1578
      %v1623 = vpack.c.bf16 %v1581, %v1580
      %v1624 = vpack.c.bf16 %v1583, %v1582
      %v1625 = vpack.c.bf16 %v1585, %v1584
      %v1626 = vpack.c.bf16 %v1587, %v1586
      %v1627 = vpack.c.bf16 %v1589, %v1588
      %v1628 = vpack.c.bf16 %v1591, %v1590
      %v1629 = vpack.c.bf16 %v1593, %v1592
      %v1630 = vpack.c.bf16 %v1595, %v1594
      %v1631 = vpack.c.bf16 %v1597, %v1596
      %v1632 = vpack.c.bf16 %v1599, %v1598
      %v1633 = vpack.c.bf16 %v1601, %v1600
      %s1634 = scalar_lea.vmem %s2, 64
      %v1635 = vld [vmem:[%s1634] sm:$0xf]
      %v1636 = vld [vmem:[%s1634 + $0x4] sm:$0xf]
      %v1637 = vld [vmem:[%s1634 + $0x8] sm:$0xf]
      %v1638 = vld [vmem:[%s1634 + $0xc] sm:$0xf]
      %v1639 = vld [vmem:[%s1634 + $0x10] sm:$0xf]
      %v1640 = vld [vmem:[%s1634 + $0x14] sm:$0xf]
      %v1641 = vld [vmem:[%s1634 + $0x18] sm:$0xf]
      %v1642 = vld [vmem:[%s1634 + $0x1c] sm:$0xf]
      %v1643 = vld [vmem:[%s1634 + $0x20] sm:$0xf]
      %v1644 = vld [vmem:[%s1634 + $0x24] sm:$0xf]
      %v1645 = vld [vmem:[%s1634 + $0x28] sm:$0xf]
      %v1646 = vld [vmem:[%s1634 + $0x2c] sm:$0xf]
      %v1647 = vld [vmem:[%s1634 + $0x30] sm:$0xf]
      %v1648 = vld [vmem:[%s1634 + $0x34] sm:$0xf]
      %v1649 = vld [vmem:[%s1634 + $0x38] sm:$0xf]
      %v1650 = vld [vmem:[%s1634 + $0x3c] sm:$0xf]
      %v1651 = vlaneseq
      %v1652 = vshrl.u32 %v1651, 7
      %v1653 = vsub.s32 2, %v1652
      %v1654 = vrot.slane %v501, %v1653
      %v1671 = vunpack.c.l.b16 %v1635
      %v1672 = vunpack.c.l.b16 %v1636
      %v1673 = vunpack.c.l.b16 %v1637
      %v1674 = vunpack.c.l.b16 %v1638
      %v1675 = vunpack.c.l.b16 %v1639
      %v1676 = vunpack.c.l.b16 %v1640
      %v1677 = vunpack.c.l.b16 %v1641
      %v1678 = vunpack.c.l.b16 %v1642
      %v1679 = vunpack.c.l.b16 %v1643
      %v1680 = vunpack.c.l.b16 %v1644
      %v1681 = vunpack.c.l.b16 %v1645
      %v1682 = vunpack.c.l.b16 %v1646
      %v1683 = vunpack.c.l.b16 %v1647
      %v1684 = vunpack.c.l.b16 %v1648
      %v1685 = vunpack.c.l.b16 %v1649
      %v1686 = vunpack.c.l.b16 %v1650
      %v1687 = vpack.c.b16 %v1672, %v1671
      %v1688 = vpack.c.b16 %v1674, %v1673
      %v1689 = vpack.c.b16 %v1676, %v1675
      %v1690 = vpack.c.b16 %v1678, %v1677
      %v1691 = vpack.c.b16 %v1680, %v1679
      %v1692 = vpack.c.b16 %v1682, %v1681
      %v1693 = vpack.c.b16 %v1684, %v1683
      %v1694 = vpack.c.b16 %v1686, %v1685
      %1703 = vmatprep.subr.bf16.mxu0 0
      %1704 = vmatpush1.bf16.msra.mxu0 %v1687
      %1705 = vmatprep.subr.bf16.mxu0 0
      %1706 = vmatpush1.bf16.msra.mxu0 %v1688
      %1707 = vmatprep.subr.bf16.mxu0 0
      %1708 = vmatpush1.bf16.msra.mxu0 %v1689
      %1709 = vmatprep.subr.bf16.mxu0 0
      %1710 = vmatpush1.bf16.msra.mxu0 %v1690
      %1711 = vmatprep.subr.bf16.mxu0 0
      %1712 = vmatpush1.bf16.msra.mxu0 %v1691
      %1713 = vmatprep.subr.bf16.mxu0 0
      %1714 = vmatpush1.bf16.msra.mxu0 %v1692
      %1715 = vmatprep.subr.bf16.mxu0 0
      %1716 = vmatpush1.bf16.msra.mxu0 %v1693
      %1717 = vmatprep.subr.bf16.mxu0 0
      %1718 = vmatpush1.bf16.msra.mxu0 %v1694
      %1719 = vmatprep.subr.bf16.mxu0 0
      %1720 = vmatpush1.bf16.msra.mxu0 0
      %1721 = vmatprep.subr.bf16.mxu0 0
      %1722 = vmatpush1.bf16.msra.mxu0 0
      %1723 = vmatprep.subr.bf16.mxu0 0
      %1724 = vmatpush1.bf16.msra.mxu0 0
      %1725 = vmatprep.subr.bf16.mxu0 0
      %1726 = vmatpush1.bf16.msra.mxu0 0
      %1727 = vmatprep.subr.bf16.mxu0 0
      %1728 = vmatpush1.bf16.msra.mxu0 0
      %1729 = vmatprep.subr.bf16.mxu0 0
      %1730 = vmatpush1.bf16.msra.mxu0 0
      %1731 = vmatprep.subr.bf16.mxu0 0
      %1732 = vmatpush1.bf16.msra.mxu0 0
      %1733 = vmatprep.subr.bf16.mxu0 0
      %1734 = vmatpush1.bf16.msra.mxu0 0
      %1735 = vmatprep.mubr.bf16.mxu0 0
      %1736 = vmatmul.mubr.bf16.gmra.mrb[0].mxu0 %v1602
      %v1737 = vpop.f32.mrb[0].mxu0
      %v1738 = vadd.f32 %v1654, %v1737
      %v1739 = vpop.f32.mrb[0].mxu0
      %v1740 = vpop.f32.mrb[0].mxu0
      %v1741 = vadd.f32 %v1654, %v1740
      %v1742 = vpop.f32.mrb[0].mxu0
      %1743 = vmatprep.mubr.bf16.mxu0 0
      %1744 = vmatmul.mubr.bf16.gmra.mrb[0].mxu0 %v1603
      %v1745 = vpop.f32.mrb[0].mxu0
      %v1746 = vadd.f32 %v1654, %v1745
      %v1747 = vpop.f32.mrb[0].mxu0
      %v1748 = vpop.f32.mrb[0].mxu0
      %v1749 = vadd.f32 %v1654, %v1748
      %v1750 = vpop.f32.mrb[0].mxu0
      %1751 = vmatprep.mubr.bf16.mxu0 0
      %1752 = vmatmul.mubr.bf16.gmra.mrb[0].mxu0 %v1604
      %v1753 = vpop.f32.mrb[0].mxu0
      %v1754 = vadd.f32 %v1654, %v1753
      %v1755 = vpop.f32.mrb[0].mxu0
      %v1756 = vpop.f32.mrb[0].mxu0
      %v1757 = vadd.f32 %v1654, %v1756
      %v1758 = vpop.f32.mrb[0].mxu0
      %1759 = vmatprep.mubr.bf16.mxu0 0
      %1760 = vmatmul.mubr.bf16.gmra.mrb[0].mxu0 %v1605
      %v1761 = vpop.f32.mrb[0].mxu0
      %v1762 = vadd.f32 %v1654, %v1761
      %v1763 = vpop.f32.mrb[0].mxu0
      %v1764 = vpop.f32.mrb[0].mxu0
      %v1765 = vadd.f32 %v1654, %v1764
      %v1766 = vpop.f32.mrb[0].mxu0
      %1767 = vmatprep.mubr.bf16.mxu0 0
      %1768 = vmatmul.mubr.bf16.gmra.mrb[0].mxu0 %v1606
      %v1769 = vpop.f32.mrb[0].mxu0
      %v1770 = vadd.f32 %v1654, %v1769
      %v1771 = vpop.f32.mrb[0].mxu0
      %v1772 = vpop.f32.mrb[0].mxu0
      %v1773 = vadd.f32 %v1654, %v1772
      %v1774 = vpop.f32.mrb[0].mxu0
      %1775 = vmatprep.mubr.bf16.mxu0 0
      %1776 = vmatmul.mubr.bf16.gmra.mrb[0].mxu0 %v1607
      %v1777 = vpop.f32.mrb[0].mxu0
      %v1778 = vadd.f32 %v1654, %v1777
      %v1779 = vpop.f32.mrb[0].mxu0
      %v1780 = vpop.f32.mrb[0].mxu0
      %v1781 = vadd.f32 %v1654, %v1780
      %v1782 = vpop.f32.mrb[0].mxu0
      %1783 = vmatprep.mubr.bf16.mxu0 0
      %1784 = vmatmul.mubr.bf16.gmra.mrb[0].mxu0 %v1608
      %v1785 = vpop.f32.mrb[0].mxu0
      %v1786 = vadd.f32 %v1654, %v1785
      %v1787 = vpop.f32.mrb[0].mxu0
      %v1788 = vpop.f32.mrb[0].mxu0
      %v1789 = vadd.f32 %v1654, %v1788
      %v1790 = vpop.f32.mrb[0].mxu0
      %1791 = vmatprep.mubr.bf16.mxu0 0
      %1792 = vmatmul.mubr.bf16.gmra.mrb[0].mxu0 %v1609
      %v1793 = vpop.f32.mrb[0].mxu0
      %v1794 = vadd.f32 %v1654, %v1793
      %v1795 = vpop.f32.mrb[0].mxu0
      %v1796 = vpop.f32.mrb[0].mxu0
      %v1797 = vadd.f32 %v1654, %v1796
      %v1798 = vpop.f32.mrb[0].mxu0
      %1799 = vmatprep.mubr.bf16.mxu0 0
      %1800 = vmatmul.mubr.bf16.gmra.mrb[0].mxu0 %v1610
      %v1801 = vpop.f32.mrb[0].mxu0
      %v1802 = vadd.f32 %v1654, %v1801
      %v1803 = vpop.f32.mrb[0].mxu0
      %v1804 = vpop.f32.mrb[0].mxu0
      %v1805 = vadd.f32 %v1654, %v1804
      %v1806 = vpop.f32.mrb[0].mxu0
      %1807 = vmatprep.mubr.bf16.mxu0 0
      %1808 = vmatmul.mubr.bf16.gmra.mrb[0].mxu0 %v1611
      %v1809 = vpop.f32.mrb[0].mxu0
      %v1810 = vadd.f32 %v1654, %v1809
      %v1811 = vpop.f32.mrb[0].mxu0
      %v1812 = vpop.f32.mrb[0].mxu0
      %v1813 = vadd.f32 %v1654, %v1812
      %v1814 = vpop.f32.mrb[0].mxu0
      %1815 = vmatprep.mubr.bf16.mxu0 0
      %1816 = vmatmul.mubr.bf16.gmra.mrb[0].mxu0 %v1612
      %v1817 = vpop.f32.mrb[0].mxu0
      %v1818 = vadd.f32 %v1654, %v1817
      %v1819 = vpop.f32.mrb[0].mxu0
      %v1820 = vpop.f32.mrb[0].mxu0
      %v1821 = vadd.f32 %v1654, %v1820
      %v1822 = vpop.f32.mrb[0].mxu0
      %1823 = vmatprep.mubr.bf16.mxu0 0
      %1824 = vmatmul.mubr.bf16.gmra.mrb[0].mxu0 %v1613
      %v1825 = vpop.f32.mrb[0].mxu0
      %v1826 = vadd.f32 %v1654, %v1825
      %v1827 = vpop.f32.mrb[0].mxu0
      %v1828 = vpop.f32.mrb[0].mxu0
      %v1829 = vadd.f32 %v1654, %v1828
      %v1830 = vpop.f32.mrb[0].mxu0
      %1831 = vmatprep.mubr.bf16.mxu0 0
      %1832 = vmatmul.mubr.bf16.gmra.mrb[0].mxu0 %v1614
      %v1833 = vpop.f32.mrb[0].mxu0
      %v1834 = vadd.f32 %v1654, %v1833
      %v1835 = vpop.f32.mrb[0].mxu0
      %v1836 = vpop.f32.mrb[0].mxu0
      %v1837 = vadd.f32 %v1654, %v1836
      %v1838 = vpop.f32.mrb[0].mxu0
      %1839 = vmatprep.mubr.bf16.mxu0 0
      %1840 = vmatmul.mubr.bf16.gmra.mrb[0].mxu0 %v1615
      %v1841 = vpop.f32.mrb[0].mxu0
      %v1842 = vadd.f32 %v1654, %v1841
      %v1843 = vpop.f32.mrb[0].mxu0
      %v1844 = vpop.f32.mrb[0].mxu0
      %v1845 = vadd.f32 %v1654, %v1844
      %v1846 = vpop.f32.mrb[0].mxu0
      %1847 = vmatprep.mubr.bf16.mxu0 0
      %1848 = vmatmul.mubr.bf16.gmra.mrb[0].mxu0 %v1616
      %v1849 = vpop.f32.mrb[0].mxu0
      %v1850 = vadd.f32 %v1654, %v1849
      %v1851 = vpop.f32.mrb[0].mxu0
      %v1852 = vpop.f32.mrb[0].mxu0
      %v1853 = vadd.f32 %v1654, %v1852
      %v1854 = vpop.f32.mrb[0].mxu0
      %1855 = vmatprep.mubr.bf16.mxu0 0
      %1856 = vmatmul.mubr.bf16.gmra.mrb[0].mxu0 %v1617
      %v1857 = vpop.f32.mrb[0].mxu0
      %v1858 = vadd.f32 %v1654, %v1857
      %v1859 = vpop.f32.mrb[0].mxu0
      %v1860 = vpop.f32.mrb[0].mxu0
      %v1861 = vadd.f32 %v1654, %v1860
      %v1862 = vpop.f32.mrb[0].mxu0
      %1863 = vmatprep.mubr.bf16.mxu0 0
      %1864 = vmatmul.mubr.bf16.gmra.mrb[0].mxu0 %v1618
      %v1865 = vpop.f32.mrb[0].mxu0
      %v1866 = vadd.f32 %v1654, %v1865
      %v1867 = vpop.f32.mrb[0].mxu0
      %v1868 = vpop.f32.mrb[0].mxu0
      %v1869 = vadd.f32 %v1654, %v1868
      %v1870 = vpop.f32.mrb[0].mxu0
      %1871 = vmatprep.mubr.bf16.mxu0 0
      %1872 = vmatmul.mubr.bf16.gmra.mrb[0].mxu0 %v1619
      %v1873 = vpop.f32.mrb[0].mxu0
      %v1874 = vadd.f32 %v1654, %v1873
      %v1875 = vpop.f32.mrb[0].mxu0
      %v1876 = vpop.f32.mrb[0].mxu0
      %v1877 = vadd.f32 %v1654, %v1876
      %v1878 = vpop.f32.mrb[0].mxu0
      %1879 = vmatprep.mubr.bf16.mxu0 0
      %1880 = vmatmul.mubr.bf16.gmra.mrb[0].mxu0 %v1620
      %v1881 = vpop.f32.mrb[0].mxu0
      %v1882 = vadd.f32 %v1654, %v1881
      %v1883 = vpop.f32.mrb[0].mxu0
      %v1884 = vpop.f32.mrb[0].mxu0
      %v1885 = vadd.f32 %v1654, %v1884
      %v1886 = vpop.f32.mrb[0].mxu0
      %1887 = vmatprep.mubr.bf16.mxu0 0
      %1888 = vmatmul.mubr.bf16.gmra.mrb[0].mxu0 %v1621
      %v1889 = vpop.f32.mrb[0].mxu0
      %v1890 = vadd.f32 %v1654, %v1889
      %v1891 = vpop.f32.mrb[0].mxu0
      %v1892 = vpop.f32.mrb[0].mxu0
      %v1893 = vadd.f32 %v1654, %v1892
      %v1894 = vpop.f32.mrb[0].mxu0
      %1895 = vmatprep.mubr.bf16.mxu0 0
      %1896 = vmatmul.mubr.bf16.gmra.mrb[0].mxu0 %v1622
      %v1897 = vpop.f32.mrb[0].mxu0
      %v1898 = vadd.f32 %v1654, %v1897
      %v1899 = vpop.f32.mrb[0].mxu0
      %v1900 = vpop.f32.mrb[0].mxu0
      %v1901 = vadd.f32 %v1654, %v1900
      %v1902 = vpop.f32.mrb[0].mxu0
      %1903 = vmatprep.mubr.bf16.mxu0 0
      %1904 = vmatmul.mubr.bf16.gmra.mrb[0].mxu0 %v1623
      %v1905 = vpop.f32.mrb[0].mxu0
      %v1906 = vadd.f32 %v1654, %v1905
      %v1907 = vpop.f32.mrb[0].mxu0
      %v1908 = vpop.f32.mrb[0].mxu0
      %v1909 = vadd.f32 %v1654, %v1908
      %v1910 = vpop.f32.mrb[0].mxu0
      %1911 = vmatprep.mubr.bf16.mxu0 0
      %1912 = vmatmul.mubr.bf16.gmra.mrb[0].mxu0 %v1624
      %v1913 = vpop.f32.mrb[0].mxu0
      %v1914 = vadd.f32 %v1654, %v1913
      %v1915 = vpop.f32.mrb[0].mxu0
      %v1916 = vpop.f32.mrb[0].mxu0
      %v1917 = vadd.f32 %v1654, %v1916
      %v1918 = vpop.f32.mrb[0].mxu0
      %1919 = vmatprep.mubr.bf16.mxu0 0
      %1920 = vmatmul.mubr.bf16.gmra.mrb[0].mxu0 %v1625
      %v1921 = vpop.f32.mrb[0].mxu0
      %v1922 = vadd.f32 %v1654, %v1921
      %v1923 = vpop.f32.mrb[0].mxu0
      %v1924 = vpop.f32.mrb[0].mxu0
      %v1925 = vadd.f32 %v1654, %v1924
      %v1926 = vpop.f32.mrb[0].mxu0
      %1927 = vmatprep.mubr.bf16.mxu0 0
      %1928 = vmatmul.mubr.bf16.gmra.mrb[0].mxu0 %v1626
      %v1929 = vpop.f32.mrb[0].mxu0
      %v1930 = vadd.f32 %v1654, %v1929
      %v1931 = vpop.f32.mrb[0].mxu0
      %v1932 = vpop.f32.mrb[0].mxu0
      %v1933 = vadd.f32 %v1654, %v1932
      %v1934 = vpop.f32.mrb[0].mxu0
      %1935 = vmatprep.mubr.bf16.mxu0 0
      %1936 = vmatmul.mubr.bf16.gmra.mrb[0].mxu0 %v1627
      %v1937 = vpop.f32.mrb[0].mxu0
      %v1938 = vadd.f32 %v1654, %v1937
      %v1939 = vpop.f32.mrb[0].mxu0
      %v1940 = vpop.f32.mrb[0].mxu0
      %v1941 = vadd.f32 %v1654, %v1940
      %v1942 = vpop.f32.mrb[0].mxu0
      %1943 = vmatprep.mubr.bf16.mxu0 0
      %1944 = vmatmul.mubr.bf16.gmra.mrb[0].mxu0 %v1628
      %v1945 = vpop.f32.mrb[0].mxu0
      %v1946 = vadd.f32 %v1654, %v1945
      %v1947 = vpop.f32.mrb[0].mxu0
      %v1948 = vpop.f32.mrb[0].mxu0
      %v1949 = vadd.f32 %v1654, %v1948
      %v1950 = vpop.f32.mrb[0].mxu0
      %1951 = vmatprep.mubr.bf16.mxu0 0
      %1952 = vmatmul.mubr.bf16.gmra.mrb[0].mxu0 %v1629
      %v1953 = vpop.f32.mrb[0].mxu0
      %v1954 = vadd.f32 %v1654, %v1953
      %v1955 = vpop.f32.mrb[0].mxu0
      %v1956 = vpop.f32.mrb[0].mxu0
      %v1957 = vadd.f32 %v1654, %v1956
      %v1958 = vpop.f32.mrb[0].mxu0
      %1959 = vmatprep.mubr.bf16.mxu0 0
      %1960 = vmatmul.mubr.bf16.gmra.mrb[0].mxu0 %v1630
      %v1961 = vpop.f32.mrb[0].mxu0
      %v1962 = vadd.f32 %v1654, %v1961
      %v1963 = vpop.f32.mrb[0].mxu0
      %v1964 = vpop.f32.mrb[0].mxu0
      %v1965 = vadd.f32 %v1654, %v1964
      %v1966 = vpop.f32.mrb[0].mxu0
      %1967 = vmatprep.mubr.bf16.mxu0 0
      %1968 = vmatmul.mubr.bf16.gmra.mrb[0].mxu0 %v1631
      %v1969 = vpop.f32.mrb[0].mxu0
      %v1970 = vadd.f32 %v1654, %v1969
      %v1971 = vpop.f32.mrb[0].mxu0
      %v1972 = vpop.f32.mrb[0].mxu0
      %v1973 = vadd.f32 %v1654, %v1972
      %v1974 = vpop.f32.mrb[0].mxu0
      %1975 = vmatprep.mubr.bf16.mxu0 0
      %1976 = vmatmul.mubr.bf16.gmra.mrb[0].mxu0 %v1632
      %v1977 = vpop.f32.mrb[0].mxu0
      %v1978 = vadd.f32 %v1654, %v1977
      %v1979 = vpop.f32.mrb[0].mxu0
      %v1980 = vpop.f32.mrb[0].mxu0
      %v1981 = vadd.f32 %v1654, %v1980
      %v1982 = vpop.f32.mrb[0].mxu0
      %1983 = vmatprep.mubr.bf16.mxu0 0
      %1984 = vmatmul.mubr.bf16.gmra.mrb[0].mxu0 %v1633
      %v1985 = vpop.f32.mrb[0].mxu0
      %v1986 = vadd.f32 %v1654, %v1985
      %v1987 = vpop.f32.mrb[0].mxu0
      %v1988 = vpop.f32.mrb[0].mxu0
      %v1989 = vadd.f32 %v1654, %v1988
      %v1990 = vpop.f32.mrb[0].mxu0
      %1991 = vdwg.mxu0
      %v1992 = vmax.f32 %v1738, 0.0
      %v1993 = vmax.f32 %v1741, 0.0
      %v1994 = vmax.f32 %v1746, 0.0
      %v1995 = vmax.f32 %v1749, 0.0
      %v1996 = vmax.f32 %v1754, 0.0
      %v1997 = vmax.f32 %v1757, 0.0
      %v1998 = vmax.f32 %v1762, 0.0
      %v1999 = vmax.f32 %v1765, 0.0
      %v2000 = vmax.f32 %v1770, 0.0
      %v2001 = vmax.f32 %v1773, 0.0
      %v2002 = vmax.f32 %v1778, 0.0
      %v2003 = vmax.f32 %v1781, 0.0
      %v2004 = vmax.f32 %v1786, 0.0
      %v2005 = vmax.f32 %v1789, 0.0
      %v2006 = vmax.f32 %v1794, 0.0
      %v2007 = vmax.f32 %v1797, 0.0
      %v2008 = vmax.f32 %v1802, 0.0
      %v2009 = vmax.f32 %v1805, 0.0
      %v2010 = vmax.f32 %v1810, 0.0
      %v2011 = vmax.f32 %v1813, 0.0
      %v2012 = vmax.f32 %v1818, 0.0
      %v2013 = vmax.f32 %v1821, 0.0
      %v2014 = vmax.f32 %v1826, 0.0
      %v2015 = vmax.f32 %v1829, 0.0
      %v2016 = vmax.f32 %v1834, 0.0
      %v2017 = vmax.f32 %v1837, 0.0
      %v2018 = vmax.f32 %v1842, 0.0
      %v2019 = vmax.f32 %v1845, 0.0
      %v2020 = vmax.f32 %v1850, 0.0
      %v2021 = vmax.f32 %v1853, 0.0
      %v2022 = vmax.f32 %v1858, 0.0
      %v2023 = vmax.f32 %v1861, 0.0
      %v2024 = vmax.f32 %v1866, 0.0
      %v2025 = vmax.f32 %v1869, 0.0
      %v2026 = vmax.f32 %v1874, 0.0
      %v2027 = vmax.f32 %v1877, 0.0
      %v2028 = vmax.f32 %v1882, 0.0
      %v2029 = vmax.f32 %v1885, 0.0
      %v2030 = vmax.f32 %v1890, 0.0
      %v2031 = vmax.f32 %v1893, 0.0
      %v2032 = vmax.f32 %v1898, 0.0
      %v2033 = vmax.f32 %v1901, 0.0
      %v2034 = vmax.f32 %v1906, 0.0
      %v2035 = vmax.f32 %v1909, 0.0
      %v2036 = vmax.f32 %v1914, 0.0
      %v2037 = vmax.f32 %v1917, 0.0
      %v2038 = vmax.f32 %v1922, 0.0
      %v2039 = vmax.f32 %v1925, 0.0
      %v2040 = vmax.f32 %v1930, 0.0
      %v2041 = vmax.f32 %v1933, 0.0
      %v2042 = vmax.f32 %v1938, 0.0
      %v2043 = vmax.f32 %v1941, 0.0
      %v2044 = vmax.f32 %v1946, 0.0
      %v2045 = vmax.f32 %v1949, 0.0
      %v2046 = vmax.f32 %v1954, 0.0
      %v2047 = vmax.f32 %v1957, 0.0
      %v2048 = vmax.f32 %v1962, 0.0
      %v2049 = vmax.f32 %v1965, 0.0
      %v2050 = vmax.f32 %v1970, 0.0
      %v2051 = vmax.f32 %v1973, 0.0
      %v2052 = vmax.f32 %v1978, 0.0
      %v2053 = vmax.f32 %v1981, 0.0
      %v2054 = vmax.f32 %v1986, 0.0
      %v2055 = vmax.f32 %v1989, 0.0
      %v2056 = vpack.c.bf16 %v1993, %v1992
      %v2057 = vpack.c.bf16 %v1995, %v1994
      %v2058 = vpack.c.bf16 %v1997, %v1996
      %v2059 = vpack.c.bf16 %v1999, %v1998
      %v2060 = vpack.c.bf16 %v2001, %v2000
      %v2061 = vpack.c.bf16 %v2003, %v2002
      %v2062 = vpack.c.bf16 %v2005, %v2004
      %v2063 = vpack.c.bf16 %v2007, %v2006
      %v2064 = vpack.c.bf16 %v2009, %v2008
      %v2065 = vpack.c.bf16 %v2011, %v2010
      %v2066 = vpack.c.bf16 %v2013, %v2012
      %v2067 = vpack.c.bf16 %v2015, %v2014
      %v2068 = vpack.c.bf16 %v2017, %v2016
      %v2069 = vpack.c.bf16 %v2019, %v2018
      %v2070 = vpack.c.bf16 %v2021, %v2020
      %v2071 = vpack.c.bf16 %v2023, %v2022
      %v2072 = vpack.c.bf16 %v2025, %v2024
      %v2073 = vpack.c.bf16 %v2027, %v2026
      %v2074 = vpack.c.bf16 %v2029, %v2028
      %v2075 = vpack.c.bf16 %v2031, %v2030
      %v2076 = vpack.c.bf16 %v2033, %v2032
      %v2077 = vpack.c.bf16 %v2035, %v2034
      %v2078 = vpack.c.bf16 %v2037, %v2036
      %v2079 = vpack.c.bf16 %v2039, %v2038
      %v2080 = vpack.c.bf16 %v2041, %v2040
      %v2081 = vpack.c.bf16 %v2043, %v2042
      %v2082 = vpack.c.bf16 %v2045, %v2044
      %v2083 = vpack.c.bf16 %v2047, %v2046
      %v2084 = vpack.c.bf16 %v2049, %v2048
      %v2085 = vpack.c.bf16 %v2051, %v2050
      %v2086 = vpack.c.bf16 %v2053, %v2052
      %v2087 = vpack.c.bf16 %v2055, %v2054
      %s2088 = scalar_lea.vmem %s2, 128
      %v2089 = vld [vmem:[%s2088] sm:$0xf]
      %v2090 = vld [vmem:[%s2088 + $0x4] sm:$0xf]
      %v2091 = vld [vmem:[%s2088 + $0x8] sm:$0xf]
      %v2092 = vld [vmem:[%s2088 + $0xc] sm:$0xf]
      %v2093 = vld [vmem:[%s2088 + $0x10] sm:$0xf]
      %v2094 = vld [vmem:[%s2088 + $0x14] sm:$0xf]
      %v2095 = vld [vmem:[%s2088 + $0x18] sm:$0xf]
      %v2096 = vld [vmem:[%s2088 + $0x1c] sm:$0xf]
      %v2097 = vld [vmem:[%s2088 + $0x20] sm:$0xf]
      %v2098 = vld [vmem:[%s2088 + $0x24] sm:$0xf]
      %v2099 = vld [vmem:[%s2088 + $0x28] sm:$0xf]
      %v2100 = vld [vmem:[%s2088 + $0x2c] sm:$0xf]
      %v2101 = vld [vmem:[%s2088 + $0x30] sm:$0xf]
      %v2102 = vld [vmem:[%s2088 + $0x34] sm:$0xf]
      %v2103 = vld [vmem:[%s2088 + $0x38] sm:$0xf]
      %v2104 = vld [vmem:[%s2088 + $0x3c] sm:$0xf]
      %v2105 = vlaneseq
      %v2106 = vshrl.u32 %v2105, 7
      %v2107 = vsub.s32 3, %v2106
      %v2108 = vrot.slane %v501, %v2107
      %v2125 = vunpack.c.l.b16 %v2089
      %v2126 = vunpack.c.l.b16 %v2090
      %v2127 = vunpack.c.l.b16 %v2091
      %v2128 = vunpack.c.l.b16 %v2092
      %v2129 = vunpack.c.l.b16 %v2093
      %v2130 = vunpack.c.l.b16 %v2094
      %v2131 = vunpack.c.l.b16 %v2095
      %v2132 = vunpack.c.l.b16 %v2096
      %v2133 = vunpack.c.l.b16 %v2097
      %v2134 = vunpack.c.l.b16 %v2098
      %v2135 = vunpack.c.l.b16 %v2099
      %v2136 = vunpack.c.l.b16 %v2100
      %v2137 = vunpack.c.l.b16 %v2101
      %v2138 = vunpack.c.l.b16 %v2102
      %v2139 = vunpack.c.l.b16 %v2103
      %v2140 = vunpack.c.l.b16 %v2104
      %v2141 = vpack.c.b16 %v2126, %v2125
      %v2142 = vpack.c.b16 %v2128, %v2127
      %v2143 = vpack.c.b16 %v2130, %v2129
      %v2144 = vpack.c.b16 %v2132, %v2131
      %v2145 = vpack.c.b16 %v2134, %v2133
      %v2146 = vpack.c.b16 %v2136, %v2135
      %v2147 = vpack.c.b16 %v2138, %v2137
      %v2148 = vpack.c.b16 %v2140, %v2139
      %2157 = vmatprep.subr.bf16.mxu0 0
      %2158 = vmatpush1.bf16.msra.mxu0 %v2141
      %2159 = vmatprep.subr.bf16.mxu0 0
      %2160 = vmatpush1.bf16.msra.mxu0 %v2142
      %2161 = vmatprep.subr.bf16.mxu0 0
      %2162 = vmatpush1.bf16.msra.mxu0 %v2143
      %2163 = vmatprep.subr.bf16.mxu0 0
      %2164 = vmatpush1.bf16.msra.mxu0 %v2144
      %2165 = vmatprep.subr.bf16.mxu0 0
      %2166 = vmatpush1.bf16.msra.mxu0 %v2145
      %2167 = vmatprep.subr.bf16.mxu0 0
      %2168 = vmatpush1.bf16.msra.mxu0 %v2146
      %2169 = vmatprep.subr.bf16.mxu0 0
      %2170 = vmatpush1.bf16.msra.mxu0 %v2147
      %2171 = vmatprep.subr.bf16.mxu0 0
      %2172 = vmatpush1.bf16.msra.mxu0 %v2148
      %2173 = vmatprep.subr.bf16.mxu0 0
      %2174 = vmatpush1.bf16.msra.mxu0 0
      %2175 = vmatprep.subr.bf16.mxu0 0
      %2176 = vmatpush1.bf16.msra.mxu0 0
      %2177 = vmatprep.subr.bf16.mxu0 0
      %2178 = vmatpush1.bf16.msra.mxu0 0
      %2179 = vmatprep.subr.bf16.mxu0 0
      %2180 = vmatpush1.bf16.msra.mxu0 0
      %2181 = vmatprep.subr.bf16.mxu0 0
      %2182 = vmatpush1.bf16.msra.mxu0 0
      %2183 = vmatprep.subr.bf16.mxu0 0
      %2184 = vmatpush1.bf16.msra.mxu0 0
      %2185 = vmatprep.subr.bf16.mxu0 0
      %2186 = vmatpush1.bf16.msra.mxu0 0
      %2187 = vmatprep.subr.bf16.mxu0 0
      %2188 = vmatpush1.bf16.msra.mxu0 0
      %2189 = vmatprep.mubr.bf16.mxu0 0
      %2190 = vmatmul.mubr.bf16.gmra.mrb[0].mxu0 %v2056
      %v2191 = vpop.f32.mrb[0].mxu0
      %v2192 = vadd.f32 %v2108, %v2191
      %v2193 = vpop.f32.mrb[0].mxu0
      %v2194 = vpop.f32.mrb[0].mxu0
      %v2195 = vadd.f32 %v2108, %v2194
      %v2196 = vpop.f32.mrb[0].mxu0
      %2197 = vmatprep.mubr.bf16.mxu0 0
      %2198 = vmatmul.mubr.bf16.gmra.mrb[0].mxu0 %v2057
      %v2199 = vpop.f32.mrb[0].mxu0
      %v2200 = vadd.f32 %v2108, %v2199
      %v2201 = vpop.f32.mrb[0].mxu0
      %v2202 = vpop.f32.mrb[0].mxu0
      %v2203 = vadd.f32 %v2108, %v2202
      %v2204 = vpop.f32.mrb[0].mxu0
      %2205 = vmatprep.mubr.bf16.mxu0 0
      %2206 = vmatmul.mubr.bf16.gmra.mrb[0].mxu0 %v2058
      %v2207 = vpop.f32.mrb[0].mxu0
      %v2208 = vadd.f32 %v2108, %v2207
      %v2209 = vpop.f32.mrb[0].mxu0
      %v2210 = vpop.f32.mrb[0].mxu0
      %v2211 = vadd.f32 %v2108, %v2210
      %v2212 = vpop.f32.mrb[0].mxu0
      %2213 = vmatprep.mubr.bf16.mxu0 0
      %2214 = vmatmul.mubr.bf16.gmra.mrb[0].mxu0 %v2059
      %v2215 = vpop.f32.mrb[0].mxu0
      %v2216 = vadd.f32 %v2108, %v2215
      %v2217 = vpop.f32.mrb[0].mxu0
      %v2218 = vpop.f32.mrb[0].mxu0
      %v2219 = vadd.f32 %v2108, %v2218
      %v2220 = vpop.f32.mrb[0].mxu0
      %2221 = vmatprep.mubr.bf16.mxu0 0
      %2222 = vmatmul.mubr.bf16.gmra.mrb[0].mxu0 %v2060
      %v2223 = vpop.f32.mrb[0].mxu0
      %v2224 = vadd.f32 %v2108, %v2223
      %v2225 = vpop.f32.mrb[0].mxu0
      %v2226 = vpop.f32.mrb[0].mxu0
      %v2227 = vadd.f32 %v2108, %v2226
      %v2228 = vpop.f32.mrb[0].mxu0
      %2229 = vmatprep.mubr.bf16.mxu0 0
      %2230 = vmatmul.mubr.bf16.gmra.mrb[0].mxu0 %v2061
      %v2231 = vpop.f32.mrb[0].mxu0
      %v2232 = vadd.f32 %v2108, %v2231
      %v2233 = vpop.f32.mrb[0].mxu0
      %v2234 = vpop.f32.mrb[0].mxu0
      %v2235 = vadd.f32 %v2108, %v2234
      %v2236 = vpop.f32.mrb[0].mxu0
      %2237 = vmatprep.mubr.bf16.mxu0 0
      %2238 = vmatmul.mubr.bf16.gmra.mrb[0].mxu0 %v2062
      %v2239 = vpop.f32.mrb[0].mxu0
      %v2240 = vadd.f32 %v2108, %v2239
      %v2241 = vpop.f32.mrb[0].mxu0
      %v2242 = vpop.f32.mrb[0].mxu0
      %v2243 = vadd.f32 %v2108, %v2242
      %v2244 = vpop.f32.mrb[0].mxu0
      %2245 = vmatprep.mubr.bf16.mxu0 0
      %2246 = vmatmul.mubr.bf16.gmra.mrb[0].mxu0 %v2063
      %v2247 = vpop.f32.mrb[0].mxu0
      %v2248 = vadd.f32 %v2108, %v2247
      %v2249 = vpop.f32.mrb[0].mxu0
      %v2250 = vpop.f32.mrb[0].mxu0
      %v2251 = vadd.f32 %v2108, %v2250
      %v2252 = vpop.f32.mrb[0].mxu0
      %2253 = vmatprep.mubr.bf16.mxu0 0
      %2254 = vmatmul.mubr.bf16.gmra.mrb[0].mxu0 %v2064
      %v2255 = vpop.f32.mrb[0].mxu0
      %v2256 = vadd.f32 %v2108, %v2255
      %v2257 = vpop.f32.mrb[0].mxu0
      %v2258 = vpop.f32.mrb[0].mxu0
      %v2259 = vadd.f32 %v2108, %v2258
      %v2260 = vpop.f32.mrb[0].mxu0
      %2261 = vmatprep.mubr.bf16.mxu0 0
      %2262 = vmatmul.mubr.bf16.gmra.mrb[0].mxu0 %v2065
      %v2263 = vpop.f32.mrb[0].mxu0
      %v2264 = vadd.f32 %v2108, %v2263
      %v2265 = vpop.f32.mrb[0].mxu0
      %v2266 = vpop.f32.mrb[0].mxu0
      %v2267 = vadd.f32 %v2108, %v2266
      %v2268 = vpop.f32.mrb[0].mxu0
      %2269 = vmatprep.mubr.bf16.mxu0 0
      %2270 = vmatmul.mubr.bf16.gmra.mrb[0].mxu0 %v2066
      %v2271 = vpop.f32.mrb[0].mxu0
      %v2272 = vadd.f32 %v2108, %v2271
      %v2273 = vpop.f32.mrb[0].mxu0
      %v2274 = vpop.f32.mrb[0].mxu0
      %v2275 = vadd.f32 %v2108, %v2274
      %v2276 = vpop.f32.mrb[0].mxu0
      %2277 = vmatprep.mubr.bf16.mxu0 0
      %2278 = vmatmul.mubr.bf16.gmra.mrb[0].mxu0 %v2067
      %v2279 = vpop.f32.mrb[0].mxu0
      %v2280 = vadd.f32 %v2108, %v2279
      %v2281 = vpop.f32.mrb[0].mxu0
      %v2282 = vpop.f32.mrb[0].mxu0
      %v2283 = vadd.f32 %v2108, %v2282
      %v2284 = vpop.f32.mrb[0].mxu0
      %2285 = vmatprep.mubr.bf16.mxu0 0
      %2286 = vmatmul.mubr.bf16.gmra.mrb[0].mxu0 %v2068
      %v2287 = vpop.f32.mrb[0].mxu0
      %v2288 = vadd.f32 %v2108, %v2287
      %v2289 = vpop.f32.mrb[0].mxu0
      %v2290 = vpop.f32.mrb[0].mxu0
      %v2291 = vadd.f32 %v2108, %v2290
      %v2292 = vpop.f32.mrb[0].mxu0
      %2293 = vmatprep.mubr.bf16.mxu0 0
      %2294 = vmatmul.mubr.bf16.gmra.mrb[0].mxu0 %v2069
      %v2295 = vpop.f32.mrb[0].mxu0
      %v2296 = vadd.f32 %v2108, %v2295
      %v2297 = vpop.f32.mrb[0].mxu0
      %v2298 = vpop.f32.mrb[0].mxu0
      %v2299 = vadd.f32 %v2108, %v2298
      %v2300 = vpop.f32.mrb[0].mxu0
      %2301 = vmatprep.mubr.bf16.mxu0 0
      %2302 = vmatmul.mubr.bf16.gmra.mrb[0].mxu0 %v2070
      %v2303 = vpop.f32.mrb[0].mxu0
      %v2304 = vadd.f32 %v2108, %v2303
      %v2305 = vpop.f32.mrb[0].mxu0
      %v2306 = vpop.f32.mrb[0].mxu0
      %v2307 = vadd.f32 %v2108, %v2306
      %v2308 = vpop.f32.mrb[0].mxu0
      %2309 = vmatprep.mubr.bf16.mxu0 0
      %2310 = vmatmul.mubr.bf16.gmra.mrb[0].mxu0 %v2071
      %v2311 = vpop.f32.mrb[0].mxu0
      %v2312 = vadd.f32 %v2108, %v2311
      %v2313 = vpop.f32.mrb[0].mxu0
      %v2314 = vpop.f32.mrb[0].mxu0
      %v2315 = vadd.f32 %v2108, %v2314
      %v2316 = vpop.f32.mrb[0].mxu0
      %2317 = vmatprep.mubr.bf16.mxu0 0
      %2318 = vmatmul.mubr.bf16.gmra.mrb[0].mxu0 %v2072
      %v2319 = vpop.f32.mrb[0].mxu0
      %v2320 = vadd.f32 %v2108, %v2319
      %v2321 = vpop.f32.mrb[0].mxu0
      %v2322 = vpop.f32.mrb[0].mxu0
      %v2323 = vadd.f32 %v2108, %v2322
      %v2324 = vpop.f32.mrb[0].mxu0
      %2325 = vmatprep.mubr.bf16.mxu0 0
      %2326 = vmatmul.mubr.bf16.gmra.mrb[0].mxu0 %v2073
      %v2327 = vpop.f32.mrb[0].mxu0
      %v2328 = vadd.f32 %v2108, %v2327
      %v2329 = vpop.f32.mrb[0].mxu0
      %v2330 = vpop.f32.mrb[0].mxu0
      %v2331 = vadd.f32 %v2108, %v2330
      %v2332 = vpop.f32.mrb[0].mxu0
      %2333 = vmatprep.mubr.bf16.mxu0 0
      %2334 = vmatmul.mubr.bf16.gmra.mrb[0].mxu0 %v2074
      %v2335 = vpop.f32.mrb[0].mxu0
      %v2336 = vadd.f32 %v2108, %v2335
      %v2337 = vpop.f32.mrb[0].mxu0
      %v2338 = vpop.f32.mrb[0].mxu0
      %v2339 = vadd.f32 %v2108, %v2338
      %v2340 = vpop.f32.mrb[0].mxu0
      %2341 = vmatprep.mubr.bf16.mxu0 0
      %2342 = vmatmul.mubr.bf16.gmra.mrb[0].mxu0 %v2075
      %v2343 = vpop.f32.mrb[0].mxu0
      %v2344 = vadd.f32 %v2108, %v2343
      %v2345 = vpop.f32.mrb[0].mxu0
      %v2346 = vpop.f32.mrb[0].mxu0
      %v2347 = vadd.f32 %v2108, %v2346
      %v2348 = vpop.f32.mrb[0].mxu0
      %2349 = vmatprep.mubr.bf16.mxu0 0
      %2350 = vmatmul.mubr.bf16.gmra.mrb[0].mxu0 %v2076
      %v2351 = vpop.f32.mrb[0].mxu0
      %v2352 = vadd.f32 %v2108, %v2351
      %v2353 = vpop.f32.mrb[0].mxu0
      %v2354 = vpop.f32.mrb[0].mxu0
      %v2355 = vadd.f32 %v2108, %v2354
      %v2356 = vpop.f32.mrb[0].mxu0
      %2357 = vmatprep.mubr.bf16.mxu0 0
      %2358 = vmatmul.mubr.bf16.gmra.mrb[0].mxu0 %v2077
      %v2359 = vpop.f32.mrb[0].mxu0
      %v2360 = vadd.f32 %v2108, %v2359
      %v2361 = vpop.f32.mrb[0].mxu0
      %v2362 = vpop.f32.mrb[0].mxu0
      %v2363 = vadd.f32 %v2108, %v2362
      %v2364 = vpop.f32.mrb[0].mxu0
      %2365 = vmatprep.mubr.bf16.mxu0 0
      %2366 = vmatmul.mubr.bf16.gmra.mrb[0].mxu0 %v2078
      %v2367 = vpop.f32.mrb[0].mxu0
      %v2368 = vadd.f32 %v2108, %v2367
      %v2369 = vpop.f32.mrb[0].mxu0
      %v2370 = vpop.f32.mrb[0].mxu0
      %v2371 = vadd.f32 %v2108, %v2370
      %v2372 = vpop.f32.mrb[0].mxu0
      %2373 = vmatprep.mubr.bf16.mxu0 0
      %2374 = vmatmul.mubr.bf16.gmra.mrb[0].mxu0 %v2079
      %v2375 = vpop.f32.mrb[0].mxu0
      %v2376 = vadd.f32 %v2108, %v2375
      %v2377 = vpop.f32.mrb[0].mxu0
      %v2378 = vpop.f32.mrb[0].mxu0
      %v2379 = vadd.f32 %v2108, %v2378
      %v2380 = vpop.f32.mrb[0].mxu0
      %2381 = vmatprep.mubr.bf16.mxu0 0
      %2382 = vmatmul.mubr.bf16.gmra.mrb[0].mxu0 %v2080
      %v2383 = vpop.f32.mrb[0].mxu0
      %v2384 = vadd.f32 %v2108, %v2383
      %v2385 = vpop.f32.mrb[0].mxu0
      %v2386 = vpop.f32.mrb[0].mxu0
      %v2387 = vadd.f32 %v2108, %v2386
      %v2388 = vpop.f32.mrb[0].mxu0
      %2389 = vmatprep.mubr.bf16.mxu0 0
      %2390 = vmatmul.mubr.bf16.gmra.mrb[0].mxu0 %v2081
      %v2391 = vpop.f32.mrb[0].mxu0
      %v2392 = vadd.f32 %v2108, %v2391
      %v2393 = vpop.f32.mrb[0].mxu0
      %v2394 = vpop.f32.mrb[0].mxu0
      %v2395 = vadd.f32 %v2108, %v2394
      %v2396 = vpop.f32.mrb[0].mxu0
      %2397 = vmatprep.mubr.bf16.mxu0 0
      %2398 = vmatmul.mubr.bf16.gmra.mrb[0].mxu0 %v2082
      %v2399 = vpop.f32.mrb[0].mxu0
      %v2400 = vadd.f32 %v2108, %v2399
      %v2401 = vpop.f32.mrb[0].mxu0
      %v2402 = vpop.f32.mrb[0].mxu0
      %v2403 = vadd.f32 %v2108, %v2402
      %v2404 = vpop.f32.mrb[0].mxu0
      %2405 = vmatprep.mubr.bf16.mxu0 0
      %2406 = vmatmul.mubr.bf16.gmra.mrb[0].mxu0 %v2083
      %v2407 = vpop.f32.mrb[0].mxu0
      %v2408 = vadd.f32 %v2108, %v2407
      %v2409 = vpop.f32.mrb[0].mxu0
      %v2410 = vpop.f32.mrb[0].mxu0
      %v2411 = vadd.f32 %v2108, %v2410
      %v2412 = vpop.f32.mrb[0].mxu0
      %2413 = vmatprep.mubr.bf16.mxu0 0
      %2414 = vmatmul.mubr.bf16.gmra.mrb[0].mxu0 %v2084
      %v2415 = vpop.f32.mrb[0].mxu0
      %v2416 = vadd.f32 %v2108, %v2415
      %v2417 = vpop.f32.mrb[0].mxu0
      %v2418 = vpop.f32.mrb[0].mxu0
      %v2419 = vadd.f32 %v2108, %v2418
      %v2420 = vpop.f32.mrb[0].mxu0
      %2421 = vmatprep.mubr.bf16.mxu0 0
      %2422 = vmatmul.mubr.bf16.gmra.mrb[0].mxu0 %v2085
      %v2423 = vpop.f32.mrb[0].mxu0
      %v2424 = vadd.f32 %v2108, %v2423
      %v2425 = vpop.f32.mrb[0].mxu0
      %v2426 = vpop.f32.mrb[0].mxu0
      %v2427 = vadd.f32 %v2108, %v2426
      %v2428 = vpop.f32.mrb[0].mxu0
      %2429 = vmatprep.mubr.bf16.mxu0 0
      %2430 = vmatmul.mubr.bf16.gmra.mrb[0].mxu0 %v2086
      %v2431 = vpop.f32.mrb[0].mxu0
      %v2432 = vadd.f32 %v2108, %v2431
      %v2433 = vpop.f32.mrb[0].mxu0
      %v2434 = vpop.f32.mrb[0].mxu0
      %v2435 = vadd.f32 %v2108, %v2434
      %v2436 = vpop.f32.mrb[0].mxu0
      %2437 = vmatprep.mubr.bf16.mxu0 0
      %2438 = vmatmul.mubr.bf16.gmra.mrb[0].mxu0 %v2087
      %v2439 = vpop.f32.mrb[0].mxu0
      %v2440 = vadd.f32 %v2108, %v2439
      %v2441 = vpop.f32.mrb[0].mxu0
      %v2442 = vpop.f32.mrb[0].mxu0
      %v2443 = vadd.f32 %v2108, %v2442
      %v2444 = vpop.f32.mrb[0].mxu0
      %2445 = vdwg.mxu0
      %v2446 = vmax.f32 %v2192, 0.0
      %v2447 = vmax.f32 %v2195, 0.0
      %v2448 = vmax.f32 %v2200, 0.0
      %v2449 = vmax.f32 %v2203, 0.0
      %v2450 = vmax.f32 %v2208, 0.0
      %v2451 = vmax.f32 %v2211, 0.0
      %v2452 = vmax.f32 %v2216, 0.0
      %v2453 = vmax.f32 %v2219, 0.0
      %v2454 = vmax.f32 %v2224, 0.0
      %v2455 = vmax.f32 %v2227, 0.0
      %v2456 = vmax.f32 %v2232, 0.0
      %v2457 = vmax.f32 %v2235, 0.0
      %v2458 = vmax.f32 %v2240, 0.0
      %v2459 = vmax.f32 %v2243, 0.0
      %v2460 = vmax.f32 %v2248, 0.0
      %v2461 = vmax.f32 %v2251, 0.0
      %v2462 = vmax.f32 %v2256, 0.0
      %v2463 = vmax.f32 %v2259, 0.0
      %v2464 = vmax.f32 %v2264, 0.0
      %v2465 = vmax.f32 %v2267, 0.0
      %v2466 = vmax.f32 %v2272, 0.0
      %v2467 = vmax.f32 %v2275, 0.0
      %v2468 = vmax.f32 %v2280, 0.0
      %v2469 = vmax.f32 %v2283, 0.0
      %v2470 = vmax.f32 %v2288, 0.0
      %v2471 = vmax.f32 %v2291, 0.0
      %v2472 = vmax.f32 %v2296, 0.0
      %v2473 = vmax.f32 %v2299, 0.0
      %v2474 = vmax.f32 %v2304, 0.0
      %v2475 = vmax.f32 %v2307, 0.0
      %v2476 = vmax.f32 %v2312, 0.0
      %v2477 = vmax.f32 %v2315, 0.0
      %v2478 = vmax.f32 %v2320, 0.0
      %v2479 = vmax.f32 %v2323, 0.0
      %v2480 = vmax.f32 %v2328, 0.0
      %v2481 = vmax.f32 %v2331, 0.0
      %v2482 = vmax.f32 %v2336, 0.0
      %v2483 = vmax.f32 %v2339, 0.0
      %v2484 = vmax.f32 %v2344, 0.0
      %v2485 = vmax.f32 %v2347, 0.0
      %v2486 = vmax.f32 %v2352, 0.0
      %v2487 = vmax.f32 %v2355, 0.0
      %v2488 = vmax.f32 %v2360, 0.0
      %v2489 = vmax.f32 %v2363, 0.0
      %v2490 = vmax.f32 %v2368, 0.0
      %v2491 = vmax.f32 %v2371, 0.0
      %v2492 = vmax.f32 %v2376, 0.0
      %v2493 = vmax.f32 %v2379, 0.0
      %v2494 = vmax.f32 %v2384, 0.0
      %v2495 = vmax.f32 %v2387, 0.0
      %v2496 = vmax.f32 %v2392, 0.0
      %v2497 = vmax.f32 %v2395, 0.0
      %v2498 = vmax.f32 %v2400, 0.0
      %v2499 = vmax.f32 %v2403, 0.0
      %v2500 = vmax.f32 %v2408, 0.0
      %v2501 = vmax.f32 %v2411, 0.0
      %v2502 = vmax.f32 %v2416, 0.0
      %v2503 = vmax.f32 %v2419, 0.0
      %v2504 = vmax.f32 %v2424, 0.0
      %v2505 = vmax.f32 %v2427, 0.0
      %v2506 = vmax.f32 %v2432, 0.0
      %v2507 = vmax.f32 %v2435, 0.0
      %v2508 = vmax.f32 %v2440, 0.0
      %v2509 = vmax.f32 %v2443, 0.0
      %v2510 = vpack.c.bf16 %v2447, %v2446
      %v2511 = vpack.c.bf16 %v2449, %v2448
      %v2512 = vpack.c.bf16 %v2451, %v2450
      %v2513 = vpack.c.bf16 %v2453, %v2452
      %v2514 = vpack.c.bf16 %v2455, %v2454
      %v2515 = vpack.c.bf16 %v2457, %v2456
      %v2516 = vpack.c.bf16 %v2459, %v2458
      %v2517 = vpack.c.bf16 %v2461, %v2460
      %v2518 = vpack.c.bf16 %v2463, %v2462
      %v2519 = vpack.c.bf16 %v2465, %v2464
      %v2520 = vpack.c.bf16 %v2467, %v2466
      %v2521 = vpack.c.bf16 %v2469, %v2468
      %v2522 = vpack.c.bf16 %v2471, %v2470
      %v2523 = vpack.c.bf16 %v2473, %v2472
      %v2524 = vpack.c.bf16 %v2475, %v2474
      %v2525 = vpack.c.bf16 %v2477, %v2476
      %v2526 = vpack.c.bf16 %v2479, %v2478
      %v2527 = vpack.c.bf16 %v2481, %v2480
      %v2528 = vpack.c.bf16 %v2483, %v2482
      %v2529 = vpack.c.bf16 %v2485, %v2484
      %v2530 = vpack.c.bf16 %v2487, %v2486
      %v2531 = vpack.c.bf16 %v2489, %v2488
      %v2532 = vpack.c.bf16 %v2491, %v2490
      %v2533 = vpack.c.bf16 %v2493, %v2492
      %v2534 = vpack.c.bf16 %v2495, %v2494
      %v2535 = vpack.c.bf16 %v2497, %v2496
      %v2536 = vpack.c.bf16 %v2499, %v2498
      %v2537 = vpack.c.bf16 %v2501, %v2500
      %v2538 = vpack.c.bf16 %v2503, %v2502
      %v2539 = vpack.c.bf16 %v2505, %v2504
      %v2540 = vpack.c.bf16 %v2507, %v2506
      %v2541 = vpack.c.bf16 %v2509, %v2508
      %s2542 = scalar_lea.vmem %s2, 192
      %v2543 = vld [vmem:[%s2542] sm:$0xf]
      %v2544 = vld [vmem:[%s2542 + $0x4] sm:$0xf]
      %v2545 = vld [vmem:[%s2542 + $0x8] sm:$0xf]
      %v2546 = vld [vmem:[%s2542 + $0xc] sm:$0xf]
      %v2547 = vld [vmem:[%s2542 + $0x10] sm:$0xf]
      %v2548 = vld [vmem:[%s2542 + $0x14] sm:$0xf]
      %v2549 = vld [vmem:[%s2542 + $0x18] sm:$0xf]
      %v2550 = vld [vmem:[%s2542 + $0x1c] sm:$0xf]
      %v2551 = vld [vmem:[%s2542 + $0x20] sm:$0xf]
      %v2552 = vld [vmem:[%s2542 + $0x24] sm:$0xf]
      %v2553 = vld [vmem:[%s2542 + $0x28] sm:$0xf]
      %v2554 = vld [vmem:[%s2542 + $0x2c] sm:$0xf]
      %v2555 = vld [vmem:[%s2542 + $0x30] sm:$0xf]
      %v2556 = vld [vmem:[%s2542 + $0x34] sm:$0xf]
      %v2557 = vld [vmem:[%s2542 + $0x38] sm:$0xf]
      %v2558 = vld [vmem:[%s2542 + $0x3c] sm:$0xf]
      %s2559 = scalar_lea.vmem %s3, 32
      %v2560 = vld [vmem:[%s2559] sm:$0xf]
      %v2561 = vld [vmem:[%s2559 + $0x4] sm:$0xf]
      %v2562 = vld [vmem:[%s2559 + $0x8] sm:$0xf]
      %v2563 = vld [vmem:[%s2559 + $0xc] sm:$0xf]
      %v2564 = vld [vmem:[%s2559 + $0x10] sm:$0xf]
      %v2565 = vld [vmem:[%s2559 + $0x14] sm:$0xf]
      %v2566 = vld [vmem:[%s2559 + $0x18] sm:$0xf]
      %v2567 = vld [vmem:[%s2559 + $0x1c] sm:$0xf]
      %v2576 = vunpack.c.l.b16 %v2560
      %v2577 = vunpack.c.l.b16 %v2561
      %v2578 = vunpack.c.l.b16 %v2562
      %v2579 = vunpack.c.l.b16 %v2563
      %v2580 = vunpack.c.l.b16 %v2564
      %v2581 = vunpack.c.l.b16 %v2565
      %v2582 = vunpack.c.l.b16 %v2566
      %v2583 = vunpack.c.l.b16 %v2567
      %v2584 = vpack.c.b16 %v2577, %v2576
      %v2585 = vpack.c.b16 %v2579, %v2578
      %v2586 = vpack.c.b16 %v2581, %v2580
      %v2587 = vpack.c.b16 %v2583, %v2582
      %2592 = vmatprep.subr.bf16.mxu0 0
      %2593 = vmatpush1.bf16.msra.mxu0 %v2584
      %2594 = vmatprep.subr.bf16.mxu0 0
      %2595 = vmatpush1.bf16.msra.mxu0 %v2585
      %2596 = vmatprep.subr.bf16.mxu0 0
      %2597 = vmatpush1.bf16.msra.mxu0 %v2586
      %2598 = vmatprep.subr.bf16.mxu0 0
      %2599 = vmatpush1.bf16.msra.mxu0 %v2587
      %2600 = vmatprep.subr.bf16.mxu0 0
      %2601 = vmatpush1.bf16.msra.mxu0 0
      %2602 = vmatprep.subr.bf16.mxu0 0
      %2603 = vmatpush1.bf16.msra.mxu0 0
      %2604 = vmatprep.subr.bf16.mxu0 0
      %2605 = vmatpush1.bf16.msra.mxu0 0
      %2606 = vmatprep.subr.bf16.mxu0 0
      %2607 = vmatpush1.bf16.msra.mxu0 0
      %2608 = vmatprep.subr.bf16.mxu0 0
      %2609 = vmatpush1.bf16.msra.mxu0 0
      %2610 = vmatprep.subr.bf16.mxu0 0
      %2611 = vmatpush1.bf16.msra.mxu0 0
      %2612 = vmatprep.subr.bf16.mxu0 0
      %2613 = vmatpush1.bf16.msra.mxu0 0
      %2614 = vmatprep.subr.bf16.mxu0 0
      %2615 = vmatpush1.bf16.msra.mxu0 0
      %2616 = vmatprep.subr.bf16.mxu0 0
      %2617 = vmatpush1.bf16.msra.mxu0 0
      %2618 = vmatprep.subr.bf16.mxu0 0
      %2619 = vmatpush1.bf16.msra.mxu0 0
      %2620 = vmatprep.subr.bf16.mxu0 0
      %2621 = vmatpush1.bf16.msra.mxu0 0
      %2622 = vmatprep.subr.bf16.mxu0 0
      %2623 = vmatpush1.bf16.msra.mxu0 0
      %2624 = vmatprep.mubr.bf16.mxu0 0
      %2625 = vmatmul.mubr.bf16.gmra.mrb[0].mxu0 %v701
      %v2626 = vpop.f32.mrb[0].mxu0
      %v2627 = vadd.f32 0.0, %v2626
      %v2628 = vpop.f32.mrb[0].mxu0
      %v2629 = vpop.f32.mrb[0].mxu0
      %v2630 = vadd.f32 0.0, %v2629
      %v2631 = vpop.f32.mrb[0].mxu0
      %2632 = vmatprep.mubr.bf16.mxu0 0
      %2633 = vmatmul.mubr.bf16.gmra.mrb[0].mxu0 %v704
      %v2634 = vpop.f32.mrb[0].mxu0
      %v2635 = vadd.f32 0.0, %v2634
      %v2636 = vpop.f32.mrb[0].mxu0
      %v2637 = vpop.f32.mrb[0].mxu0
      %v2638 = vadd.f32 0.0, %v2637
      %v2639 = vpop.f32.mrb[0].mxu0
      %2640 = vmatprep.mubr.bf16.mxu0 0
      %2641 = vmatmul.mubr.bf16.gmra.mrb[0].mxu0 %v707
      %v2642 = vpop.f32.mrb[0].mxu0
      %v2643 = vadd.f32 0.0, %v2642
      %v2644 = vpop.f32.mrb[0].mxu0
      %v2645 = vpop.f32.mrb[0].mxu0
      %v2646 = vadd.f32 0.0, %v2645
      %v2647 = vpop.f32.mrb[0].mxu0
      %2648 = vmatprep.mubr.bf16.mxu0 0
      %2649 = vmatmul.mubr.bf16.gmra.mrb[0].mxu0 %v710
      %v2650 = vpop.f32.mrb[0].mxu0
      %v2651 = vadd.f32 0.0, %v2650
      %v2652 = vpop.f32.mrb[0].mxu0
      %v2653 = vpop.f32.mrb[0].mxu0
      %v2654 = vadd.f32 0.0, %v2653
      %v2655 = vpop.f32.mrb[0].mxu0
      %2656 = vmatprep.mubr.bf16.mxu0 0
      %2657 = vmatmul.mubr.bf16.gmra.mrb[0].mxu0 %v713
      %v2658 = vpop.f32.mrb[0].mxu0
      %v2659 = vadd.f32 0.0, %v2658
      %v2660 = vpop.f32.mrb[0].mxu0
      %v2661 = vpop.f32.mrb[0].mxu0
      %v2662 = vadd.f32 0.0, %v2661
      %v2663 = vpop.f32.mrb[0].mxu0
      %2664 = vmatprep.mubr.bf16.mxu0 0
      %2665 = vmatmul.mubr.bf16.gmra.mrb[0].mxu0 %v716
      %v2666 = vpop.f32.mrb[0].mxu0
      %v2667 = vadd.f32 0.0, %v2666
      %v2668 = vpop.f32.mrb[0].mxu0
      %v2669 = vpop.f32.mrb[0].mxu0
      %v2670 = vadd.f32 0.0, %v2669
      %v2671 = vpop.f32.mrb[0].mxu0
      %2672 = vmatprep.mubr.bf16.mxu0 0
      %2673 = vmatmul.mubr.bf16.gmra.mrb[0].mxu0 %v719
      %v2674 = vpop.f32.mrb[0].mxu0
      %v2675 = vadd.f32 0.0, %v2674
      %v2676 = vpop.f32.mrb[0].mxu0
      %v2677 = vpop.f32.mrb[0].mxu0
      %v2678 = vadd.f32 0.0, %v2677
      %v2679 = vpop.f32.mrb[0].mxu0
      %2680 = vmatprep.mubr.bf16.mxu0 0
      %2681 = vmatmul.mubr.bf16.gmra.mrb[0].mxu0 %v722
      %v2682 = vpop.f32.mrb[0].mxu0
      %v2683 = vadd.f32 0.0, %v2682
      %v2684 = vpop.f32.mrb[0].mxu0
      %v2685 = vpop.f32.mrb[0].mxu0
      %v2686 = vadd.f32 0.0, %v2685
      %v2687 = vpop.f32.mrb[0].mxu0
      %2688 = vmatprep.mubr.bf16.mxu0 0
      %2689 = vmatmul.mubr.bf16.gmra.mrb[0].mxu0 %v725
      %v2690 = vpop.f32.mrb[0].mxu0
      %v2691 = vadd.f32 0.0, %v2690
      %v2692 = vpop.f32.mrb[0].mxu0
      %v2693 = vpop.f32.mrb[0].mxu0
      %v2694 = vadd.f32 0.0, %v2693
      %v2695 = vpop.f32.mrb[0].mxu0
      %2696 = vmatprep.mubr.bf16.mxu0 0
      %2697 = vmatmul.mubr.bf16.gmra.mrb[0].mxu0 %v728
      %v2698 = vpop.f32.mrb[0].mxu0
      %v2699 = vadd.f32 0.0, %v2698
      %v2700 = vpop.f32.mrb[0].mxu0
      %v2701 = vpop.f32.mrb[0].mxu0
      %v2702 = vadd.f32 0.0, %v2701
      %v2703 = vpop.f32.mrb[0].mxu0
      %2704 = vmatprep.mubr.bf16.mxu0 0
      %2705 = vmatmul.mubr.bf16.gmra.mrb[0].mxu0 %v731
      %v2706 = vpop.f32.mrb[0].mxu0
      %v2707 = vadd.f32 0.0, %v2706
      %v2708 = vpop.f32.mrb[0].mxu0
      %v2709 = vpop.f32.mrb[0].mxu0
      %v2710 = vadd.f32 0.0, %v2709
      %v2711 = vpop.f32.mrb[0].mxu0
      %2712 = vmatprep.mubr.bf16.mxu0 0
      %2713 = vmatmul.mubr.bf16.gmra.mrb[0].mxu0 %v734
      %v2714 = vpop.f32.mrb[0].mxu0
      %v2715 = vadd.f32 0.0, %v2714
      %v2716 = vpop.f32.mrb[0].mxu0
      %v2717 = vpop.f32.mrb[0].mxu0
      %v2718 = vadd.f32 0.0, %v2717
      %v2719 = vpop.f32.mrb[0].mxu0
      %2720 = vmatprep.mubr.bf16.mxu0 0
      %2721 = vmatmul.mubr.bf16.gmra.mrb[0].mxu0 %v737
      %v2722 = vpop.f32.mrb[0].mxu0
      %v2723 = vadd.f32 0.0, %v2722
      %v2724 = vpop.f32.mrb[0].mxu0
      %v2725 = vpop.f32.mrb[0].mxu0
      %v2726 = vadd.f32 0.0, %v2725
      %v2727 = vpop.f32.mrb[0].mxu0
      %2728 = vmatprep.mubr.bf16.mxu0 0
      %2729 = vmatmul.mubr.bf16.gmra.mrb[0].mxu0 %v740
      %v2730 = vpop.f32.mrb[0].mxu0
      %v2731 = vadd.f32 0.0, %v2730
      %v2732 = vpop.f32.mrb[0].mxu0
      %v2733 = vpop.f32.mrb[0].mxu0
      %v2734 = vadd.f32 0.0, %v2733
      %v2735 = vpop.f32.mrb[0].mxu0
      %2736 = vmatprep.mubr.bf16.mxu0 0
      %2737 = vmatmul.mubr.bf16.gmra.mrb[0].mxu0 %v743
      %v2738 = vpop.f32.mrb[0].mxu0
      %v2739 = vadd.f32 0.0, %v2738
      %v2740 = vpop.f32.mrb[0].mxu0
      %v2741 = vpop.f32.mrb[0].mxu0
      %v2742 = vadd.f32 0.0, %v2741
      %v2743 = vpop.f32.mrb[0].mxu0
      %2744 = vmatprep.mubr.bf16.mxu0 0
      %2745 = vmatmul.mubr.bf16.gmra.mrb[0].mxu0 %v746
      %v2746 = vpop.f32.mrb[0].mxu0
      %v2747 = vadd.f32 0.0, %v2746
      %v2748 = vpop.f32.mrb[0].mxu0
      %v2749 = vpop.f32.mrb[0].mxu0
      %v2750 = vadd.f32 0.0, %v2749
      %v2751 = vpop.f32.mrb[0].mxu0
      %2752 = vmatprep.mubr.bf16.mxu0 0
      %2753 = vmatmul.mubr.bf16.gmra.mrb[0].mxu0 %v749
      %v2754 = vpop.f32.mrb[0].mxu0
      %v2755 = vadd.f32 0.0, %v2754
      %v2756 = vpop.f32.mrb[0].mxu0
      %v2757 = vpop.f32.mrb[0].mxu0
      %v2758 = vadd.f32 0.0, %v2757
      %v2759 = vpop.f32.mrb[0].mxu0
      %2760 = vmatprep.mubr.bf16.mxu0 0
      %2761 = vmatmul.mubr.bf16.gmra.mrb[0].mxu0 %v752
      %v2762 = vpop.f32.mrb[0].mxu0
      %v2763 = vadd.f32 0.0, %v2762
      %v2764 = vpop.f32.mrb[0].mxu0
      %v2765 = vpop.f32.mrb[0].mxu0
      %v2766 = vadd.f32 0.0, %v2765
      %v2767 = vpop.f32.mrb[0].mxu0
      %2768 = vmatprep.mubr.bf16.mxu0 0
      %2769 = vmatmul.mubr.bf16.gmra.mrb[0].mxu0 %v755
      %v2770 = vpop.f32.mrb[0].mxu0
      %v2771 = vadd.f32 0.0, %v2770
      %v2772 = vpop.f32.mrb[0].mxu0
      %v2773 = vpop.f32.mrb[0].mxu0
      %v2774 = vadd.f32 0.0, %v2773
      %v2775 = vpop.f32.mrb[0].mxu0
      %2776 = vmatprep.mubr.bf16.mxu0 0
      %2777 = vmatmul.mubr.bf16.gmra.mrb[0].mxu0 %v758
      %v2778 = vpop.f32.mrb[0].mxu0
      %v2779 = vadd.f32 0.0, %v2778
      %v2780 = vpop.f32.mrb[0].mxu0
      %v2781 = vpop.f32.mrb[0].mxu0
      %v2782 = vadd.f32 0.0, %v2781
      %v2783 = vpop.f32.mrb[0].mxu0
      %2784 = vmatprep.mubr.bf16.mxu0 0
      %2785 = vmatmul.mubr.bf16.gmra.mrb[0].mxu0 %v761
      %v2786 = vpop.f32.mrb[0].mxu0
      %v2787 = vadd.f32 0.0, %v2786
      %v2788 = vpop.f32.mrb[0].mxu0
      %v2789 = vpop.f32.mrb[0].mxu0
      %v2790 = vadd.f32 0.0, %v2789
      %v2791 = vpop.f32.mrb[0].mxu0
      %2792 = vmatprep.mubr.bf16.mxu0 0
      %2793 = vmatmul.mubr.bf16.gmra.mrb[0].mxu0 %v764
      %v2794 = vpop.f32.mrb[0].mxu0
      %v2795 = vadd.f32 0.0, %v2794
      %v2796 = vpop.f32.mrb[0].mxu0
      %v2797 = vpop.f32.mrb[0].mxu0
      %v2798 = vadd.f32 0.0, %v2797
      %v2799 = vpop.f32.mrb[0].mxu0
      %2800 = vmatprep.mubr.bf16.mxu0 0
      %2801 = vmatmul.mubr.bf16.gmra.mrb[0].mxu0 %v767
      %v2802 = vpop.f32.mrb[0].mxu0
      %v2803 = vadd.f32 0.0, %v2802
      %v2804 = vpop.f32.mrb[0].mxu0
      %v2805 = vpop.f32.mrb[0].mxu0
      %v2806 = vadd.f32 0.0, %v2805
      %v2807 = vpop.f32.mrb[0].mxu0
      %2808 = vmatprep.mubr.bf16.mxu0 0
      %2809 = vmatmul.mubr.bf16.gmra.mrb[0].mxu0 %v770
      %v2810 = vpop.f32.mrb[0].mxu0
      %v2811 = vadd.f32 0.0, %v2810
      %v2812 = vpop.f32.mrb[0].mxu0
      %v2813 = vpop.f32.mrb[0].mxu0
      %v2814 = vadd.f32 0.0, %v2813
      %v2815 = vpop.f32.mrb[0].mxu0
      %2816 = vmatprep.mubr.bf16.mxu0 0
      %2817 = vmatmul.mubr.bf16.gmra.mrb[0].mxu0 %v773
      %v2818 = vpop.f32.mrb[0].mxu0
      %v2819 = vadd.f32 0.0, %v2818
      %v2820 = vpop.f32.mrb[0].mxu0
      %v2821 = vpop.f32.mrb[0].mxu0
      %v2822 = vadd.f32 0.0, %v2821
      %v2823 = vpop.f32.mrb[0].mxu0
      %2824 = vmatprep.mubr.bf16.mxu0 0
      %2825 = vmatmul.mubr.bf16.gmra.mrb[0].mxu0 %v776
      %v2826 = vpop.f32.mrb[0].mxu0
      %v2827 = vadd.f32 0.0, %v2826
      %v2828 = vpop.f32.mrb[0].mxu0
      %v2829 = vpop.f32.mrb[0].mxu0
      %v2830 = vadd.f32 0.0, %v2829
      %v2831 = vpop.f32.mrb[0].mxu0
      %2832 = vmatprep.mubr.bf16.mxu0 0
      %2833 = vmatmul.mubr.bf16.gmra.mrb[0].mxu0 %v779
      %v2834 = vpop.f32.mrb[0].mxu0
      %v2835 = vadd.f32 0.0, %v2834
      %v2836 = vpop.f32.mrb[0].mxu0
      %v2837 = vpop.f32.mrb[0].mxu0
      %v2838 = vadd.f32 0.0, %v2837
      %v2839 = vpop.f32.mrb[0].mxu0
      %2840 = vmatprep.mubr.bf16.mxu0 0
      %2841 = vmatmul.mubr.bf16.gmra.mrb[0].mxu0 %v782
      %v2842 = vpop.f32.mrb[0].mxu0
      %v2843 = vadd.f32 0.0, %v2842
      %v2844 = vpop.f32.mrb[0].mxu0
      %v2845 = vpop.f32.mrb[0].mxu0
      %v2846 = vadd.f32 0.0, %v2845
      %v2847 = vpop.f32.mrb[0].mxu0
      %2848 = vmatprep.mubr.bf16.mxu0 0
      %2849 = vmatmul.mubr.bf16.gmra.mrb[0].mxu0 %v785
      %v2850 = vpop.f32.mrb[0].mxu0
      %v2851 = vadd.f32 0.0, %v2850
      %v2852 = vpop.f32.mrb[0].mxu0
      %v2853 = vpop.f32.mrb[0].mxu0
      %v2854 = vadd.f32 0.0, %v2853
      %v2855 = vpop.f32.mrb[0].mxu0
      %2856 = vmatprep.mubr.bf16.mxu0 0
      %2857 = vmatmul.mubr.bf16.gmra.mrb[0].mxu0 %v788
      %v2858 = vpop.f32.mrb[0].mxu0
      %v2859 = vadd.f32 0.0, %v2858
      %v2860 = vpop.f32.mrb[0].mxu0
      %v2861 = vpop.f32.mrb[0].mxu0
      %v2862 = vadd.f32 0.0, %v2861
      %v2863 = vpop.f32.mrb[0].mxu0
      %2864 = vmatprep.mubr.bf16.mxu0 0
      %2865 = vmatmul.mubr.bf16.gmra.mrb[0].mxu0 %v791
      %v2866 = vpop.f32.mrb[0].mxu0
      %v2867 = vadd.f32 0.0, %v2866
      %v2868 = vpop.f32.mrb[0].mxu0
      %v2869 = vpop.f32.mrb[0].mxu0
      %v2870 = vadd.f32 0.0, %v2869
      %v2871 = vpop.f32.mrb[0].mxu0
      %2872 = vmatprep.mubr.bf16.mxu0 0
      %2873 = vmatmul.mubr.bf16.gmra.mrb[0].mxu0 %v794
      %v2874 = vpop.f32.mrb[0].mxu0
      %v2875 = vadd.f32 0.0, %v2874
      %v2876 = vpop.f32.mrb[0].mxu0
      %v2877 = vpop.f32.mrb[0].mxu0
      %v2878 = vadd.f32 0.0, %v2877
      %v2879 = vpop.f32.mrb[0].mxu0
      %2880 = vdwg.mxu0
      %v2897 = vunpack.c.l.b16 %v2543
      %v2898 = vunpack.c.l.b16 %v2544
      %v2899 = vunpack.c.l.b16 %v2545
      %v2900 = vunpack.c.l.b16 %v2546
      %v2901 = vunpack.c.l.b16 %v2547
      %v2902 = vunpack.c.l.b16 %v2548
      %v2903 = vunpack.c.l.b16 %v2549
      %v2904 = vunpack.c.l.b16 %v2550
      %v2905 = vunpack.c.l.b16 %v2551
      %v2906 = vunpack.c.l.b16 %v2552
      %v2907 = vunpack.c.l.b16 %v2553
      %v2908 = vunpack.c.l.b16 %v2554
      %v2909 = vunpack.c.l.b16 %v2555
      %v2910 = vunpack.c.l.b16 %v2556
      %v2911 = vunpack.c.l.b16 %v2557
      %v2912 = vunpack.c.l.b16 %v2558
      %v2913 = vpack.c.b16 %v2898, %v2897
      %v2914 = vpack.c.b16 %v2900, %v2899
      %v2915 = vpack.c.b16 %v2902, %v2901
      %v2916 = vpack.c.b16 %v2904, %v2903
      %v2917 = vpack.c.b16 %v2906, %v2905
      %v2918 = vpack.c.b16 %v2908, %v2907
      %v2919 = vpack.c.b16 %v2910, %v2909
      %v2920 = vpack.c.b16 %v2912, %v2911
      %2929 = vmatprep.subr.bf16.mxu0 0
      %2930 = vmatpush1.bf16.msra.mxu0 %v2913
      %2931 = vmatprep.subr.bf16.mxu0 0
      %2932 = vmatpush1.bf16.msra.mxu0 %v2914
      %2933 = vmatprep.subr.bf16.mxu0 0
      %2934 = vmatpush1.bf16.msra.mxu0 %v2915
      %2935 = vmatprep.subr.bf16.mxu0 0
      %2936 = vmatpush1.bf16.msra.mxu0 %v2916
      %2937 = vmatprep.subr.bf16.mxu0 0
      %2938 = vmatpush1.bf16.msra.mxu0 %v2917
      %2939 = vmatprep.subr.bf16.mxu0 0
      %2940 = vmatpush1.bf16.msra.mxu0 %v2918
      %2941 = vmatprep.subr.bf16.mxu0 0
      %2942 = vmatpush1.bf16.msra.mxu0 %v2919
      %2943 = vmatprep.subr.bf16.mxu0 0
      %2944 = vmatpush1.bf16.msra.mxu0 %v2920
      %2945 = vmatprep.subr.bf16.mxu0 0
      %2946 = vmatpush1.bf16.msra.mxu0 0
      %2947 = vmatprep.subr.bf16.mxu0 0
      %2948 = vmatpush1.bf16.msra.mxu0 0
      %2949 = vmatprep.subr.bf16.mxu0 0
      %2950 = vmatpush1.bf16.msra.mxu0 0
      %2951 = vmatprep.subr.bf16.mxu0 0
      %2952 = vmatpush1.bf16.msra.mxu0 0
      %2953 = vmatprep.subr.bf16.mxu0 0
      %2954 = vmatpush1.bf16.msra.mxu0 0
      %2955 = vmatprep.subr.bf16.mxu0 0
      %2956 = vmatpush1.bf16.msra.mxu0 0
      %2957 = vmatprep.subr.bf16.mxu0 0
      %2958 = vmatpush1.bf16.msra.mxu0 0
      %2959 = vmatprep.subr.bf16.mxu0 0
      %2960 = vmatpush1.bf16.msra.mxu0 0
      %2961 = vmatprep.mubr.bf16.mxu0 0
      %2962 = vmatmul.mubr.bf16.gmra.mrb[0].mxu0 %v2510
      %v2963 = vpop.f32.mrb[0].mxu0
      %v2964 = vadd.f32 %v2627, %v2963
      %v2965 = vpop.f32.mrb[0].mxu0
      %v2966 = vpop.f32.mrb[0].mxu0
      %v2967 = vadd.f32 %v2630, %v2966
      %v2968 = vpop.f32.mrb[0].mxu0
      %2969 = vmatprep.mubr.bf16.mxu0 0
      %2970 = vmatmul.mubr.bf16.gmra.mrb[0].mxu0 %v2511
      %v2971 = vpop.f32.mrb[0].mxu0
      %v2972 = vadd.f32 %v2635, %v2971
      %v2973 = vpop.f32.mrb[0].mxu0
      %v2974 = vpop.f32.mrb[0].mxu0
      %v2975 = vadd.f32 %v2638, %v2974
      %v2976 = vpop.f32.mrb[0].mxu0
      %2977 = vmatprep.mubr.bf16.mxu0 0
      %2978 = vmatmul.mubr.bf16.gmra.mrb[0].mxu0 %v2512
      %v2979 = vpop.f32.mrb[0].mxu0
      %v2980 = vadd.f32 %v2643, %v2979
      %v2981 = vpop.f32.mrb[0].mxu0
      %v2982 = vpop.f32.mrb[0].mxu0
      %v2983 = vadd.f32 %v2646, %v2982
      %v2984 = vpop.f32.mrb[0].mxu0
      %2985 = vmatprep.mubr.bf16.mxu0 0
      %2986 = vmatmul.mubr.bf16.gmra.mrb[0].mxu0 %v2513
      %v2987 = vpop.f32.mrb[0].mxu0
      %v2988 = vadd.f32 %v2651, %v2987
      %v2989 = vpop.f32.mrb[0].mxu0
      %v2990 = vpop.f32.mrb[0].mxu0
      %v2991 = vadd.f32 %v2654, %v2990
      %v2992 = vpop.f32.mrb[0].mxu0
      %2993 = vmatprep.mubr.bf16.mxu0 0
      %2994 = vmatmul.mubr.bf16.gmra.mrb[0].mxu0 %v2514
      %v2995 = vpop.f32.mrb[0].mxu0
      %v2996 = vadd.f32 %v2659, %v2995
      %v2997 = vpop.f32.mrb[0].mxu0
      %v2998 = vpop.f32.mrb[0].mxu0
      %v2999 = vadd.f32 %v2662, %v2998
      %v3000 = vpop.f32.mrb[0].mxu0
      %3001 = vmatprep.mubr.bf16.mxu0 0
      %3002 = vmatmul.mubr.bf16.gmra.mrb[0].mxu0 %v2515
      %v3003 = vpop.f32.mrb[0].mxu0
      %v3004 = vadd.f32 %v2667, %v3003
      %v3005 = vpop.f32.mrb[0].mxu0
      %v3006 = vpop.f32.mrb[0].mxu0
      %v3007 = vadd.f32 %v2670, %v3006
      %v3008 = vpop.f32.mrb[0].mxu0
      %3009 = vmatprep.mubr.bf16.mxu0 0
      %3010 = vmatmul.mubr.bf16.gmra.mrb[0].mxu0 %v2516
      %v3011 = vpop.f32.mrb[0].mxu0
      %v3012 = vadd.f32 %v2675, %v3011
      %v3013 = vpop.f32.mrb[0].mxu0
      %v3014 = vpop.f32.mrb[0].mxu0
      %v3015 = vadd.f32 %v2678, %v3014
      %v3016 = vpop.f32.mrb[0].mxu0
      %3017 = vmatprep.mubr.bf16.mxu0 0
      %3018 = vmatmul.mubr.bf16.gmra.mrb[0].mxu0 %v2517
      %v3019 = vpop.f32.mrb[0].mxu0
      %v3020 = vadd.f32 %v2683, %v3019
      %v3021 = vpop.f32.mrb[0].mxu0
      %v3022 = vpop.f32.mrb[0].mxu0
      %v3023 = vadd.f32 %v2686, %v3022
      %v3024 = vpop.f32.mrb[0].mxu0
      %3025 = vmatprep.mubr.bf16.mxu0 0
      %3026 = vmatmul.mubr.bf16.gmra.mrb[0].mxu0 %v2518
      %v3027 = vpop.f32.mrb[0].mxu0
      %v3028 = vadd.f32 %v2691, %v3027
      %v3029 = vpop.f32.mrb[0].mxu0
      %v3030 = vpop.f32.mrb[0].mxu0
      %v3031 = vadd.f32 %v2694, %v3030
      %v3032 = vpop.f32.mrb[0].mxu0
      %3033 = vmatprep.mubr.bf16.mxu0 0
      %3034 = vmatmul.mubr.bf16.gmra.mrb[0].mxu0 %v2519
      %v3035 = vpop.f32.mrb[0].mxu0
      %v3036 = vadd.f32 %v2699, %v3035
      %v3037 = vpop.f32.mrb[0].mxu0
      %v3038 = vpop.f32.mrb[0].mxu0
      %v3039 = vadd.f32 %v2702, %v3038
      %v3040 = vpop.f32.mrb[0].mxu0
      %3041 = vmatprep.mubr.bf16.mxu0 0
      %3042 = vmatmul.mubr.bf16.gmra.mrb[0].mxu0 %v2520
      %v3043 = vpop.f32.mrb[0].mxu0
      %v3044 = vadd.f32 %v2707, %v3043
      %v3045 = vpop.f32.mrb[0].mxu0
      %v3046 = vpop.f32.mrb[0].mxu0
      %v3047 = vadd.f32 %v2710, %v3046
      %v3048 = vpop.f32.mrb[0].mxu0
      %3049 = vmatprep.mubr.bf16.mxu0 0
      %3050 = vmatmul.mubr.bf16.gmra.mrb[0].mxu0 %v2521
      %v3051 = vpop.f32.mrb[0].mxu0
      %v3052 = vadd.f32 %v2715, %v3051
      %v3053 = vpop.f32.mrb[0].mxu0
      %v3054 = vpop.f32.mrb[0].mxu0
      %v3055 = vadd.f32 %v2718, %v3054
      %v3056 = vpop.f32.mrb[0].mxu0
      %3057 = vmatprep.mubr.bf16.mxu0 0
      %3058 = vmatmul.mubr.bf16.gmra.mrb[0].mxu0 %v2522
      %v3059 = vpop.f32.mrb[0].mxu0
      %v3060 = vadd.f32 %v2723, %v3059
      %v3061 = vpop.f32.mrb[0].mxu0
      %v3062 = vpop.f32.mrb[0].mxu0
      %v3063 = vadd.f32 %v2726, %v3062
      %v3064 = vpop.f32.mrb[0].mxu0
      %3065 = vmatprep.mubr.bf16.mxu0 0
      %3066 = vmatmul.mubr.bf16.gmra.mrb[0].mxu0 %v2523
      %v3067 = vpop.f32.mrb[0].mxu0
      %v3068 = vadd.f32 %v2731, %v3067
      %v3069 = vpop.f32.mrb[0].mxu0
      %v3070 = vpop.f32.mrb[0].mxu0
      %v3071 = vadd.f32 %v2734, %v3070
      %v3072 = vpop.f32.mrb[0].mxu0
      %3073 = vmatprep.mubr.bf16.mxu0 0
      %3074 = vmatmul.mubr.bf16.gmra.mrb[0].mxu0 %v2524
      %v3075 = vpop.f32.mrb[0].mxu0
      %v3076 = vadd.f32 %v2739, %v3075
      %v3077 = vpop.f32.mrb[0].mxu0
      %v3078 = vpop.f32.mrb[0].mxu0
      %v3079 = vadd.f32 %v2742, %v3078
      %v3080 = vpop.f32.mrb[0].mxu0
      %3081 = vmatprep.mubr.bf16.mxu0 0
      %3082 = vmatmul.mubr.bf16.gmra.mrb[0].mxu0 %v2525
      %v3083 = vpop.f32.mrb[0].mxu0
      %v3084 = vadd.f32 %v2747, %v3083
      %v3085 = vpop.f32.mrb[0].mxu0
      %v3086 = vpop.f32.mrb[0].mxu0
      %v3087 = vadd.f32 %v2750, %v3086
      %v3088 = vpop.f32.mrb[0].mxu0
      %3089 = vmatprep.mubr.bf16.mxu0 0
      %3090 = vmatmul.mubr.bf16.gmra.mrb[0].mxu0 %v2526
      %v3091 = vpop.f32.mrb[0].mxu0
      %v3092 = vadd.f32 %v2755, %v3091
      %v3093 = vpop.f32.mrb[0].mxu0
      %v3094 = vpop.f32.mrb[0].mxu0
      %v3095 = vadd.f32 %v2758, %v3094
      %v3096 = vpop.f32.mrb[0].mxu0
      %3097 = vmatprep.mubr.bf16.mxu0 0
      %3098 = vmatmul.mubr.bf16.gmra.mrb[0].mxu0 %v2527
      %v3099 = vpop.f32.mrb[0].mxu0
      %v3100 = vadd.f32 %v2763, %v3099
      %v3101 = vpop.f32.mrb[0].mxu0
      %v3102 = vpop.f32.mrb[0].mxu0
      %v3103 = vadd.f32 %v2766, %v3102
      %v3104 = vpop.f32.mrb[0].mxu0
      %3105 = vmatprep.mubr.bf16.mxu0 0
      %3106 = vmatmul.mubr.bf16.gmra.mrb[0].mxu0 %v2528
      %v3107 = vpop.f32.mrb[0].mxu0
      %v3108 = vadd.f32 %v2771, %v3107
      %v3109 = vpop.f32.mrb[0].mxu0
      %v3110 = vpop.f32.mrb[0].mxu0
      %v3111 = vadd.f32 %v2774, %v3110
      %v3112 = vpop.f32.mrb[0].mxu0
      %3113 = vmatprep.mubr.bf16.mxu0 0
      %3114 = vmatmul.mubr.bf16.gmra.mrb[0].mxu0 %v2529
      %v3115 = vpop.f32.mrb[0].mxu0
      %v3116 = vadd.f32 %v2779, %v3115
      %v3117 = vpop.f32.mrb[0].mxu0
      %v3118 = vpop.f32.mrb[0].mxu0
      %v3119 = vadd.f32 %v2782, %v3118
      %v3120 = vpop.f32.mrb[0].mxu0
      %3121 = vmatprep.mubr.bf16.mxu0 0
      %3122 = vmatmul.mubr.bf16.gmra.mrb[0].mxu0 %v2530
      %v3123 = vpop.f32.mrb[0].mxu0
      %v3124 = vadd.f32 %v2787, %v3123
      %v3125 = vpop.f32.mrb[0].mxu0
      %v3126 = vpop.f32.mrb[0].mxu0
      %v3127 = vadd.f32 %v2790, %v3126
      %v3128 = vpop.f32.mrb[0].mxu0
      %3129 = vmatprep.mubr.bf16.mxu0 0
      %3130 = vmatmul.mubr.bf16.gmra.mrb[0].mxu0 %v2531
      %v3131 = vpop.f32.mrb[0].mxu0
      %v3132 = vadd.f32 %v2795, %v3131
      %v3133 = vpop.f32.mrb[0].mxu0
      %v3134 = vpop.f32.mrb[0].mxu0
      %v3135 = vadd.f32 %v2798, %v3134
      %v3136 = vpop.f32.mrb[0].mxu0
      %3137 = vmatprep.mubr.bf16.mxu0 0
      %3138 = vmatmul.mubr.bf16.gmra.mrb[0].mxu0 %v2532
      %v3139 = vpop.f32.mrb[0].mxu0
      %v3140 = vadd.f32 %v2803, %v3139
      %v3141 = vpop.f32.mrb[0].mxu0
      %v3142 = vpop.f32.mrb[0].mxu0
      %v3143 = vadd.f32 %v2806, %v3142
      %v3144 = vpop.f32.mrb[0].mxu0
      %3145 = vmatprep.mubr.bf16.mxu0 0
      %3146 = vmatmul.mubr.bf16.gmra.mrb[0].mxu0 %v2533
      %v3147 = vpop.f32.mrb[0].mxu0
      %v3148 = vadd.f32 %v2811, %v3147
      %v3149 = vpop.f32.mrb[0].mxu0
      %v3150 = vpop.f32.mrb[0].mxu0
      %v3151 = vadd.f32 %v2814, %v3150
      %v3152 = vpop.f32.mrb[0].mxu0
      %3153 = vmatprep.mubr.bf16.mxu0 0
      %3154 = vmatmul.mubr.bf16.gmra.mrb[0].mxu0 %v2534
      %v3155 = vpop.f32.mrb[0].mxu0
      %v3156 = vadd.f32 %v2819, %v3155
      %v3157 = vpop.f32.mrb[0].mxu0
      %v3158 = vpop.f32.mrb[0].mxu0
      %v3159 = vadd.f32 %v2822, %v3158
      %v3160 = vpop.f32.mrb[0].mxu0
      %3161 = vmatprep.mubr.bf16.mxu0 0
      %3162 = vmatmul.mubr.bf16.gmra.mrb[0].mxu0 %v2535
      %v3163 = vpop.f32.mrb[0].mxu0
      %v3164 = vadd.f32 %v2827, %v3163
      %v3165 = vpop.f32.mrb[0].mxu0
      %v3166 = vpop.f32.mrb[0].mxu0
      %v3167 = vadd.f32 %v2830, %v3166
      %v3168 = vpop.f32.mrb[0].mxu0
      %3169 = vmatprep.mubr.bf16.mxu0 0
      %3170 = vmatmul.mubr.bf16.gmra.mrb[0].mxu0 %v2536
      %v3171 = vpop.f32.mrb[0].mxu0
      %v3172 = vadd.f32 %v2835, %v3171
      %v3173 = vpop.f32.mrb[0].mxu0
      %v3174 = vpop.f32.mrb[0].mxu0
      %v3175 = vadd.f32 %v2838, %v3174
      %v3176 = vpop.f32.mrb[0].mxu0
      %3177 = vmatprep.mubr.bf16.mxu0 0
      %3178 = vmatmul.mubr.bf16.gmra.mrb[0].mxu0 %v2537
      %v3179 = vpop.f32.mrb[0].mxu0
      %v3180 = vadd.f32 %v2843, %v3179
      %v3181 = vpop.f32.mrb[0].mxu0
      %v3182 = vpop.f32.mrb[0].mxu0
      %v3183 = vadd.f32 %v2846, %v3182
      %v3184 = vpop.f32.mrb[0].mxu0
      %3185 = vmatprep.mubr.bf16.mxu0 0
      %3186 = vmatmul.mubr.bf16.gmra.mrb[0].mxu0 %v2538
      %v3187 = vpop.f32.mrb[0].mxu0
      %v3188 = vadd.f32 %v2851, %v3187
      %v3189 = vpop.f32.mrb[0].mxu0
      %v3190 = vpop.f32.mrb[0].mxu0
      %v3191 = vadd.f32 %v2854, %v3190
      %v3192 = vpop.f32.mrb[0].mxu0
      %3193 = vmatprep.mubr.bf16.mxu0 0
      %3194 = vmatmul.mubr.bf16.gmra.mrb[0].mxu0 %v2539
      %v3195 = vpop.f32.mrb[0].mxu0
      %v3196 = vadd.f32 %v2859, %v3195
      %v3197 = vpop.f32.mrb[0].mxu0
      %v3198 = vpop.f32.mrb[0].mxu0
      %v3199 = vadd.f32 %v2862, %v3198
      %v3200 = vpop.f32.mrb[0].mxu0
      %3201 = vmatprep.mubr.bf16.mxu0 0
      %3202 = vmatmul.mubr.bf16.gmra.mrb[0].mxu0 %v2540
      %v3203 = vpop.f32.mrb[0].mxu0
      %v3204 = vadd.f32 %v2867, %v3203
      %v3205 = vpop.f32.mrb[0].mxu0
      %v3206 = vpop.f32.mrb[0].mxu0
      %v3207 = vadd.f32 %v2870, %v3206
      %v3208 = vpop.f32.mrb[0].mxu0
      %3209 = vmatprep.mubr.bf16.mxu0 0
      %3210 = vmatmul.mubr.bf16.gmra.mrb[0].mxu0 %v2541
      %v3211 = vpop.f32.mrb[0].mxu0
      %v3212 = vadd.f32 %v2875, %v3211
      %v3213 = vpop.f32.mrb[0].mxu0
      %v3214 = vpop.f32.mrb[0].mxu0
      %v3215 = vadd.f32 %v2878, %v3214
      %v3216 = vpop.f32.mrb[0].mxu0
      %3217 = vdwg.mxu0
      %v3218 = vlaneseq
      %v3219 = vshrl.u32 %v3218, 7
      %v3220 = vsub.s32 4, %v3219
      %v3221 = vrot.slane %v501, %v3220
      %v3222 = vadd.f32 %v2964, %v3221
      %v3223 = vadd.f32 %v2967, %v3221
      %v3224 = vadd.f32 %v2972, %v3221
      %v3225 = vadd.f32 %v2975, %v3221
      %v3226 = vadd.f32 %v2980, %v3221
      %v3227 = vadd.f32 %v2983, %v3221
      %v3228 = vadd.f32 %v2988, %v3221
      %v3229 = vadd.f32 %v2991, %v3221
      %v3230 = vadd.f32 %v2996, %v3221
      %v3231 = vadd.f32 %v2999, %v3221
      %v3232 = vadd.f32 %v3004, %v3221
      %v3233 = vadd.f32 %v3007, %v3221
      %v3234 = vadd.f32 %v3012, %v3221
      %v3235 = vadd.f32 %v3015, %v3221
      %v3236 = vadd.f32 %v3020, %v3221
      %v3237 = vadd.f32 %v3023, %v3221
      %v3238 = vadd.f32 %v3028, %v3221
      %v3239 = vadd.f32 %v3031, %v3221
      %v3240 = vadd.f32 %v3036, %v3221
      %v3241 = vadd.f32 %v3039, %v3221
      %v3242 = vadd.f32 %v3044, %v3221
      %v3243 = vadd.f32 %v3047, %v3221
      %v3244 = vadd.f32 %v3052, %v3221
      %v3245 = vadd.f32 %v3055, %v3221
      %v3246 = vadd.f32 %v3060, %v3221
      %v3247 = vadd.f32 %v3063, %v3221
      %v3248 = vadd.f32 %v3068, %v3221
      %v3249 = vadd.f32 %v3071, %v3221
      %v3250 = vadd.f32 %v3076, %v3221
      %v3251 = vadd.f32 %v3079, %v3221
      %v3252 = vadd.f32 %v3084, %v3221
      %v3253 = vadd.f32 %v3087, %v3221
      %v3254 = vadd.f32 %v3092, %v3221
      %v3255 = vadd.f32 %v3095, %v3221
      %v3256 = vadd.f32 %v3100, %v3221
      %v3257 = vadd.f32 %v3103, %v3221
      %v3258 = vadd.f32 %v3108, %v3221
      %v3259 = vadd.f32 %v3111, %v3221
      %v3260 = vadd.f32 %v3116, %v3221
      %v3261 = vadd.f32 %v3119, %v3221
      %v3262 = vadd.f32 %v3124, %v3221
      %v3263 = vadd.f32 %v3127, %v3221
      %v3264 = vadd.f32 %v3132, %v3221
      %v3265 = vadd.f32 %v3135, %v3221
      %v3266 = vadd.f32 %v3140, %v3221
      %v3267 = vadd.f32 %v3143, %v3221
      %v3268 = vadd.f32 %v3148, %v3221
      %v3269 = vadd.f32 %v3151, %v3221
      %v3270 = vadd.f32 %v3156, %v3221
      %v3271 = vadd.f32 %v3159, %v3221
      %v3272 = vadd.f32 %v3164, %v3221
      %v3273 = vadd.f32 %v3167, %v3221
      %v3274 = vadd.f32 %v3172, %v3221
      %v3275 = vadd.f32 %v3175, %v3221
      %v3276 = vadd.f32 %v3180, %v3221
      %v3277 = vadd.f32 %v3183, %v3221
      %v3278 = vadd.f32 %v3188, %v3221
      %v3279 = vadd.f32 %v3191, %v3221
      %v3280 = vadd.f32 %v3196, %v3221
      %v3281 = vadd.f32 %v3199, %v3221
      %v3282 = vadd.f32 %v3204, %v3221
      %v3283 = vadd.f32 %v3207, %v3221
      %v3284 = vadd.f32 %v3212, %v3221
      %v3285 = vadd.f32 %v3215, %v3221
      %v3286 = vmax.f32 %v3222, 0.0
      %v3287 = vmax.f32 %v3223, 0.0
      %v3288 = vmax.f32 %v3224, 0.0
      %v3289 = vmax.f32 %v3225, 0.0
      %v3290 = vmax.f32 %v3226, 0.0
      %v3291 = vmax.f32 %v3227, 0.0
      %v3292 = vmax.f32 %v3228, 0.0
      %v3293 = vmax.f32 %v3229, 0.0
      %v3294 = vmax.f32 %v3230, 0.0
      %v3295 = vmax.f32 %v3231, 0.0
      %v3296 = vmax.f32 %v3232, 0.0
      %v3297 = vmax.f32 %v3233, 0.0
      %v3298 = vmax.f32 %v3234, 0.0
      %v3299 = vmax.f32 %v3235, 0.0
      %v3300 = vmax.f32 %v3236, 0.0
      %v3301 = vmax.f32 %v3237, 0.0
      %v3302 = vmax.f32 %v3238, 0.0
      %v3303 = vmax.f32 %v3239, 0.0
      %v3304 = vmax.f32 %v3240, 0.0
      %v3305 = vmax.f32 %v3241, 0.0
      %v3306 = vmax.f32 %v3242, 0.0
      %v3307 = vmax.f32 %v3243, 0.0
      %v3308 = vmax.f32 %v3244, 0.0
      %v3309 = vmax.f32 %v3245, 0.0
      %v3310 = vmax.f32 %v3246, 0.0
      %v3311 = vmax.f32 %v3247, 0.0
      %v3312 = vmax.f32 %v3248, 0.0
      %v3313 = vmax.f32 %v3249, 0.0
      %v3314 = vmax.f32 %v3250, 0.0
      %v3315 = vmax.f32 %v3251, 0.0
      %v3316 = vmax.f32 %v3252, 0.0
      %v3317 = vmax.f32 %v3253, 0.0
      %v3318 = vmax.f32 %v3254, 0.0
      %v3319 = vmax.f32 %v3255, 0.0
      %v3320 = vmax.f32 %v3256, 0.0
      %v3321 = vmax.f32 %v3257, 0.0
      %v3322 = vmax.f32 %v3258, 0.0
      %v3323 = vmax.f32 %v3259, 0.0
      %v3324 = vmax.f32 %v3260, 0.0
      %v3325 = vmax.f32 %v3261, 0.0
      %v3326 = vmax.f32 %v3262, 0.0
      %v3327 = vmax.f32 %v3263, 0.0
      %v3328 = vmax.f32 %v3264, 0.0
      %v3329 = vmax.f32 %v3265, 0.0
      %v3330 = vmax.f32 %v3266, 0.0
      %v3331 = vmax.f32 %v3267, 0.0
      %v3332 = vmax.f32 %v3268, 0.0
      %v3333 = vmax.f32 %v3269, 0.0
      %v3334 = vmax.f32 %v3270, 0.0
      %v3335 = vmax.f32 %v3271, 0.0
      %v3336 = vmax.f32 %v3272, 0.0
      %v3337 = vmax.f32 %v3273, 0.0
      %v3338 = vmax.f32 %v3274, 0.0
      %v3339 = vmax.f32 %v3275, 0.0
      %v3340 = vmax.f32 %v3276, 0.0
      %v3341 = vmax.f32 %v3277, 0.0
      %v3342 = vmax.f32 %v3278, 0.0
      %v3343 = vmax.f32 %v3279, 0.0
      %v3344 = vmax.f32 %v3280, 0.0
      %v3345 = vmax.f32 %v3281, 0.0
      %v3346 = vmax.f32 %v3282, 0.0
      %v3347 = vmax.f32 %v3283, 0.0
      %v3348 = vmax.f32 %v3284, 0.0
      %v3349 = vmax.f32 %v3285, 0.0
      %v3350 = vpack.c.bf16 %v3287, %v3286
      %v3351 = vpack.c.bf16 %v3289, %v3288
      %v3352 = vpack.c.bf16 %v3291, %v3290
      %v3353 = vpack.c.bf16 %v3293, %v3292
      %v3354 = vpack.c.bf16 %v3295, %v3294
      %v3355 = vpack.c.bf16 %v3297, %v3296
      %v3356 = vpack.c.bf16 %v3299, %v3298
      %v3357 = vpack.c.bf16 %v3301, %v3300
      %v3358 = vpack.c.bf16 %v3303, %v3302
      %v3359 = vpack.c.bf16 %v3305, %v3304
      %v3360 = vpack.c.bf16 %v3307, %v3306
      %v3361 = vpack.c.bf16 %v3309, %v3308
      %v3362 = vpack.c.bf16 %v3311, %v3310
      %v3363 = vpack.c.bf16 %v3313, %v3312
      %v3364 = vpack.c.bf16 %v3315, %v3314
      %v3365 = vpack.c.bf16 %v3317, %v3316
      %v3366 = vpack.c.bf16 %v3319, %v3318
      %v3367 = vpack.c.bf16 %v3321, %v3320
      %v3368 = vpack.c.bf16 %v3323, %v3322
      %v3369 = vpack.c.bf16 %v3325, %v3324
      %v3370 = vpack.c.bf16 %v3327, %v3326
      %v3371 = vpack.c.bf16 %v3329, %v3328
      %v3372 = vpack.c.bf16 %v3331, %v3330
      %v3373 = vpack.c.bf16 %v3333, %v3332
      %v3374 = vpack.c.bf16 %v3335, %v3334
      %v3375 = vpack.c.bf16 %v3337, %v3336
      %v3376 = vpack.c.bf16 %v3339, %v3338
      %v3377 = vpack.c.bf16 %v3341, %v3340
      %v3378 = vpack.c.bf16 %v3343, %v3342
      %v3379 = vpack.c.bf16 %v3345, %v3344
      %v3380 = vpack.c.bf16 %v3347, %v3346
      %v3381 = vpack.c.bf16 %v3349, %v3348
      %s3382 = scalar_lea.vmem %s2, 256
      %v3383 = vld [vmem:[%s3382] sm:$0xf]
      %v3384 = vld [vmem:[%s3382 + $0x4] sm:$0xf]
      %v3385 = vld [vmem:[%s3382 + $0x8] sm:$0xf]
      %v3386 = vld [vmem:[%s3382 + $0xc] sm:$0xf]
      %v3387 = vld [vmem:[%s3382 + $0x10] sm:$0xf]
      %v3388 = vld [vmem:[%s3382 + $0x14] sm:$0xf]
      %v3389 = vld [vmem:[%s3382 + $0x18] sm:$0xf]
      %v3390 = vld [vmem:[%s3382 + $0x1c] sm:$0xf]
      %v3391 = vld [vmem:[%s3382 + $0x20] sm:$0xf]
      %v3392 = vld [vmem:[%s3382 + $0x24] sm:$0xf]
      %v3393 = vld [vmem:[%s3382 + $0x28] sm:$0xf]
      %v3394 = vld [vmem:[%s3382 + $0x2c] sm:$0xf]
      %v3395 = vld [vmem:[%s3382 + $0x30] sm:$0xf]
      %v3396 = vld [vmem:[%s3382 + $0x34] sm:$0xf]
      %v3397 = vld [vmem:[%s3382 + $0x38] sm:$0xf]
      %v3398 = vld [vmem:[%s3382 + $0x3c] sm:$0xf]
      %v3399 = vlaneseq
      %v3400 = vshrl.u32 %v3399, 7
      %v3401 = vsub.s32 5, %v3400
      %v3402 = vrot.slane %v501, %v3401
      %v3419 = vunpack.c.l.b16 %v3383
      %v3420 = vunpack.c.l.b16 %v3384
      %v3421 = vunpack.c.l.b16 %v3385
      %v3422 = vunpack.c.l.b16 %v3386
      %v3423 = vunpack.c.l.b16 %v3387
      %v3424 = vunpack.c.l.b16 %v3388
      %v3425 = vunpack.c.l.b16 %v3389
      %v3426 = vunpack.c.l.b16 %v3390
      %v3427 = vunpack.c.l.b16 %v3391
      %v3428 = vunpack.c.l.b16 %v3392
      %v3429 = vunpack.c.l.b16 %v3393
      %v3430 = vunpack.c.l.b16 %v3394
      %v3431 = vunpack.c.l.b16 %v3395
      %v3432 = vunpack.c.l.b16 %v3396
      %v3433 = vunpack.c.l.b16 %v3397
      %v3434 = vunpack.c.l.b16 %v3398
      %v3435 = vpack.c.b16 %v3420, %v3419
      %v3436 = vpack.c.b16 %v3422, %v3421
      %v3437 = vpack.c.b16 %v3424, %v3423
      %v3438 = vpack.c.b16 %v3426, %v3425
      %v3439 = vpack.c.b16 %v3428, %v3427
      %v3440 = vpack.c.b16 %v3430, %v3429
      %v3441 = vpack.c.b16 %v3432, %v3431
      %v3442 = vpack.c.b16 %v3434, %v3433
      %3451 = vmatprep.subr.bf16.mxu0 0
      %3452 = vmatpush1.bf16.msra.mxu0 %v3435
      %3453 = vmatprep.subr.bf16.mxu0 0
      %3454 = vmatpush1.bf16.msra.mxu0 %v3436
      %3455 = vmatprep.subr.bf16.mxu0 0
      %3456 = vmatpush1.bf16.msra.mxu0 %v3437
      %3457 = vmatprep.subr.bf16.mxu0 0
      %3458 = vmatpush1.bf16.msra.mxu0 %v3438
      %3459 = vmatprep.subr.bf16.mxu0 0
      %3460 = vmatpush1.bf16.msra.mxu0 %v3439
      %3461 = vmatprep.subr.bf16.mxu0 0
      %3462 = vmatpush1.bf16.msra.mxu0 %v3440
      %3463 = vmatprep.subr.bf16.mxu0 0
      %3464 = vmatpush1.bf16.msra.mxu0 %v3441
      %3465 = vmatprep.subr.bf16.mxu0 0
      %3466 = vmatpush1.bf16.msra.mxu0 %v3442
      %3467 = vmatprep.subr.bf16.mxu0 0
      %3468 = vmatpush1.bf16.msra.mxu0 0
      %3469 = vmatprep.subr.bf16.mxu0 0
      %3470 = vmatpush1.bf16.msra.mxu0 0
      %3471 = vmatprep.subr.bf16.mxu0 0
      %3472 = vmatpush1.bf16.msra.mxu0 0
      %3473 = vmatprep.subr.bf16.mxu0 0
      %3474 = vmatpush1.bf16.msra.mxu0 0
      %3475 = vmatprep.subr.bf16.mxu0 0
      %3476 = vmatpush1.bf16.msra.mxu0 0
      %3477 = vmatprep.subr.bf16.mxu0 0
      %3478 = vmatpush1.bf16.msra.mxu0 0
      %3479 = vmatprep.subr.bf16.mxu0 0
      %3480 = vmatpush1.bf16.msra.mxu0 0
      %3481 = vmatprep.subr.bf16.mxu0 0
      %3482 = vmatpush1.bf16.msra.mxu0 0
      %3483 = vmatprep.mubr.bf16.mxu0 0
      %3484 = vmatmul.mubr.bf16.gmra.mrb[0].mxu0 %v3350
      %v3485 = vpop.f32.mrb[0].mxu0
      %v3486 = vadd.f32 %v3402, %v3485
      %v3487 = vpop.f32.mrb[0].mxu0
      %v3488 = vpop.f32.mrb[0].mxu0
      %v3489 = vadd.f32 %v3402, %v3488
      %v3490 = vpop.f32.mrb[0].mxu0
      %3491 = vmatprep.mubr.bf16.mxu0 0
      %3492 = vmatmul.mubr.bf16.gmra.mrb[0].mxu0 %v3351
      %v3493 = vpop.f32.mrb[0].mxu0
      %v3494 = vadd.f32 %v3402, %v3493
      %v3495 = vpop.f32.mrb[0].mxu0
      %v3496 = vpop.f32.mrb[0].mxu0
      %v3497 = vadd.f32 %v3402, %v3496
      %v3498 = vpop.f32.mrb[0].mxu0
      %3499 = vmatprep.mubr.bf16.mxu0 0
      %3500 = vmatmul.mubr.bf16.gmra.mrb[0].mxu0 %v3352
      %v3501 = vpop.f32.mrb[0].mxu0
      %v3502 = vadd.f32 %v3402, %v3501
      %v3503 = vpop.f32.mrb[0].mxu0
      %v3504 = vpop.f32.mrb[0].mxu0
      %v3505 = vadd.f32 %v3402, %v3504
      %v3506 = vpop.f32.mrb[0].mxu0
      %3507 = vmatprep.mubr.bf16.mxu0 0
      %3508 = vmatmul.mubr.bf16.gmra.mrb[0].mxu0 %v3353
      %v3509 = vpop.f32.mrb[0].mxu0
      %v3510 = vadd.f32 %v3402, %v3509
      %v3511 = vpop.f32.mrb[0].mxu0
      %v3512 = vpop.f32.mrb[0].mxu0
      %v3513 = vadd.f32 %v3402, %v3512
      %v3514 = vpop.f32.mrb[0].mxu0
      %3515 = vmatprep.mubr.bf16.mxu0 0
      %3516 = vmatmul.mubr.bf16.gmra.mrb[0].mxu0 %v3354
      %v3517 = vpop.f32.mrb[0].mxu0
      %v3518 = vadd.f32 %v3402, %v3517
      %v3519 = vpop.f32.mrb[0].mxu0
      %v3520 = vpop.f32.mrb[0].mxu0
      %v3521 = vadd.f32 %v3402, %v3520
      %v3522 = vpop.f32.mrb[0].mxu0
      %3523 = vmatprep.mubr.bf16.mxu0 0
      %3524 = vmatmul.mubr.bf16.gmra.mrb[0].mxu0 %v3355
      %v3525 = vpop.f32.mrb[0].mxu0
      %v3526 = vadd.f32 %v3402, %v3525
      %v3527 = vpop.f32.mrb[0].mxu0
      %v3528 = vpop.f32.mrb[0].mxu0
      %v3529 = vadd.f32 %v3402, %v3528
      %v3530 = vpop.f32.mrb[0].mxu0
      %3531 = vmatprep.mubr.bf16.mxu0 0
      %3532 = vmatmul.mubr.bf16.gmra.mrb[0].mxu0 %v3356
      %v3533 = vpop.f32.mrb[0].mxu0
      %v3534 = vadd.f32 %v3402, %v3533
      %v3535 = vpop.f32.mrb[0].mxu0
      %v3536 = vpop.f32.mrb[0].mxu0
      %v3537 = vadd.f32 %v3402, %v3536
      %v3538 = vpop.f32.mrb[0].mxu0
      %3539 = vmatprep.mubr.bf16.mxu0 0
      %3540 = vmatmul.mubr.bf16.gmra.mrb[0].mxu0 %v3357
      %v3541 = vpop.f32.mrb[0].mxu0
      %v3542 = vadd.f32 %v3402, %v3541
      %v3543 = vpop.f32.mrb[0].mxu0
      %v3544 = vpop.f32.mrb[0].mxu0
      %v3545 = vadd.f32 %v3402, %v3544
      %v3546 = vpop.f32.mrb[0].mxu0
      %3547 = vmatprep.mubr.bf16.mxu0 0
      %3548 = vmatmul.mubr.bf16.gmra.mrb[0].mxu0 %v3358
      %v3549 = vpop.f32.mrb[0].mxu0
      %v3550 = vadd.f32 %v3402, %v3549
      %v3551 = vpop.f32.mrb[0].mxu0
      %v3552 = vpop.f32.mrb[0].mxu0
      %v3553 = vadd.f32 %v3402, %v3552
      %v3554 = vpop.f32.mrb[0].mxu0
      %3555 = vmatprep.mubr.bf16.mxu0 0
      %3556 = vmatmul.mubr.bf16.gmra.mrb[0].mxu0 %v3359
      %v3557 = vpop.f32.mrb[0].mxu0
      %v3558 = vadd.f32 %v3402, %v3557
      %v3559 = vpop.f32.mrb[0].mxu0
      %v3560 = vpop.f32.mrb[0].mxu0
      %v3561 = vadd.f32 %v3402, %v3560
      %v3562 = vpop.f32.mrb[0].mxu0
      %3563 = vmatprep.mubr.bf16.mxu0 0
      %3564 = vmatmul.mubr.bf16.gmra.mrb[0].mxu0 %v3360
      %v3565 = vpop.f32.mrb[0].mxu0
      %v3566 = vadd.f32 %v3402, %v3565
      %v3567 = vpop.f32.mrb[0].mxu0
      %v3568 = vpop.f32.mrb[0].mxu0
      %v3569 = vadd.f32 %v3402, %v3568
      %v3570 = vpop.f32.mrb[0].mxu0
      %3571 = vmatprep.mubr.bf16.mxu0 0
      %3572 = vmatmul.mubr.bf16.gmra.mrb[0].mxu0 %v3361
      %v3573 = vpop.f32.mrb[0].mxu0
      %v3574 = vadd.f32 %v3402, %v3573
      %v3575 = vpop.f32.mrb[0].mxu0
      %v3576 = vpop.f32.mrb[0].mxu0
      %v3577 = vadd.f32 %v3402, %v3576
      %v3578 = vpop.f32.mrb[0].mxu0
      %3579 = vmatprep.mubr.bf16.mxu0 0
      %3580 = vmatmul.mubr.bf16.gmra.mrb[0].mxu0 %v3362
      %v3581 = vpop.f32.mrb[0].mxu0
      %v3582 = vadd.f32 %v3402, %v3581
      %v3583 = vpop.f32.mrb[0].mxu0
      %v3584 = vpop.f32.mrb[0].mxu0
      %v3585 = vadd.f32 %v3402, %v3584
      %v3586 = vpop.f32.mrb[0].mxu0
      %3587 = vmatprep.mubr.bf16.mxu0 0
      %3588 = vmatmul.mubr.bf16.gmra.mrb[0].mxu0 %v3363
      %v3589 = vpop.f32.mrb[0].mxu0
      %v3590 = vadd.f32 %v3402, %v3589
      %v3591 = vpop.f32.mrb[0].mxu0
      %v3592 = vpop.f32.mrb[0].mxu0
      %v3593 = vadd.f32 %v3402, %v3592
      %v3594 = vpop.f32.mrb[0].mxu0
      %3595 = vmatprep.mubr.bf16.mxu0 0
      %3596 = vmatmul.mubr.bf16.gmra.mrb[0].mxu0 %v3364
      %v3597 = vpop.f32.mrb[0].mxu0
      %v3598 = vadd.f32 %v3402, %v3597
      %v3599 = vpop.f32.mrb[0].mxu0
      %v3600 = vpop.f32.mrb[0].mxu0
      %v3601 = vadd.f32 %v3402, %v3600
      %v3602 = vpop.f32.mrb[0].mxu0
      %3603 = vmatprep.mubr.bf16.mxu0 0
      %3604 = vmatmul.mubr.bf16.gmra.mrb[0].mxu0 %v3365
      %v3605 = vpop.f32.mrb[0].mxu0
      %v3606 = vadd.f32 %v3402, %v3605
      %v3607 = vpop.f32.mrb[0].mxu0
      %v3608 = vpop.f32.mrb[0].mxu0
      %v3609 = vadd.f32 %v3402, %v3608
      %v3610 = vpop.f32.mrb[0].mxu0
      %3611 = vmatprep.mubr.bf16.mxu0 0
      %3612 = vmatmul.mubr.bf16.gmra.mrb[0].mxu0 %v3366
      %v3613 = vpop.f32.mrb[0].mxu0
      %v3614 = vadd.f32 %v3402, %v3613
      %v3615 = vpop.f32.mrb[0].mxu0
      %v3616 = vpop.f32.mrb[0].mxu0
      %v3617 = vadd.f32 %v3402, %v3616
      %v3618 = vpop.f32.mrb[0].mxu0
      %3619 = vmatprep.mubr.bf16.mxu0 0
      %3620 = vmatmul.mubr.bf16.gmra.mrb[0].mxu0 %v3367
      %v3621 = vpop.f32.mrb[0].mxu0
      %v3622 = vadd.f32 %v3402, %v3621
      %v3623 = vpop.f32.mrb[0].mxu0
      %v3624 = vpop.f32.mrb[0].mxu0
      %v3625 = vadd.f32 %v3402, %v3624
      %v3626 = vpop.f32.mrb[0].mxu0
      %3627 = vmatprep.mubr.bf16.mxu0 0
      %3628 = vmatmul.mubr.bf16.gmra.mrb[0].mxu0 %v3368
      %v3629 = vpop.f32.mrb[0].mxu0
      %v3630 = vadd.f32 %v3402, %v3629
      %v3631 = vpop.f32.mrb[0].mxu0
      %v3632 = vpop.f32.mrb[0].mxu0
      %v3633 = vadd.f32 %v3402, %v3632
      %v3634 = vpop.f32.mrb[0].mxu0
      %3635 = vmatprep.mubr.bf16.mxu0 0
      %3636 = vmatmul.mubr.bf16.gmra.mrb[0].mxu0 %v3369
      %v3637 = vpop.f32.mrb[0].mxu0
      %v3638 = vadd.f32 %v3402, %v3637
      %v3639 = vpop.f32.mrb[0].mxu0
      %v3640 = vpop.f32.mrb[0].mxu0
      %v3641 = vadd.f32 %v3402, %v3640
      %v3642 = vpop.f32.mrb[0].mxu0
      %3643 = vmatprep.mubr.bf16.mxu0 0
      %3644 = vmatmul.mubr.bf16.gmra.mrb[0].mxu0 %v3370
      %v3645 = vpop.f32.mrb[0].mxu0
      %v3646 = vadd.f32 %v3402, %v3645
      %v3647 = vpop.f32.mrb[0].mxu0
      %v3648 = vpop.f32.mrb[0].mxu0
      %v3649 = vadd.f32 %v3402, %v3648
      %v3650 = vpop.f32.mrb[0].mxu0
      %3651 = vmatprep.mubr.bf16.mxu0 0
      %3652 = vmatmul.mubr.bf16.gmra.mrb[0].mxu0 %v3371
      %v3653 = vpop.f32.mrb[0].mxu0
      %v3654 = vadd.f32 %v3402, %v3653
      %v3655 = vpop.f32.mrb[0].mxu0
      %v3656 = vpop.f32.mrb[0].mxu0
      %v3657 = vadd.f32 %v3402, %v3656
      %v3658 = vpop.f32.mrb[0].mxu0
      %3659 = vmatprep.mubr.bf16.mxu0 0
      %3660 = vmatmul.mubr.bf16.gmra.mrb[0].mxu0 %v3372
      %v3661 = vpop.f32.mrb[0].mxu0
      %v3662 = vadd.f32 %v3402, %v3661
      %v3663 = vpop.f32.mrb[0].mxu0
      %v3664 = vpop.f32.mrb[0].mxu0
      %v3665 = vadd.f32 %v3402, %v3664
      %v3666 = vpop.f32.mrb[0].mxu0
      %3667 = vmatprep.mubr.bf16.mxu0 0
      %3668 = vmatmul.mubr.bf16.gmra.mrb[0].mxu0 %v3373
      %v3669 = vpop.f32.mrb[0].mxu0
      %v3670 = vadd.f32 %v3402, %v3669
      %v3671 = vpop.f32.mrb[0].mxu0
      %v3672 = vpop.f32.mrb[0].mxu0
      %v3673 = vadd.f32 %v3402, %v3672
      %v3674 = vpop.f32.mrb[0].mxu0
      %3675 = vmatprep.mubr.bf16.mxu0 0
      %3676 = vmatmul.mubr.bf16.gmra.mrb[0].mxu0 %v3374
      %v3677 = vpop.f32.mrb[0].mxu0
      %v3678 = vadd.f32 %v3402, %v3677
      %v3679 = vpop.f32.mrb[0].mxu0
      %v3680 = vpop.f32.mrb[0].mxu0
      %v3681 = vadd.f32 %v3402, %v3680
      %v3682 = vpop.f32.mrb[0].mxu0
      %3683 = vmatprep.mubr.bf16.mxu0 0
      %3684 = vmatmul.mubr.bf16.gmra.mrb[0].mxu0 %v3375
      %v3685 = vpop.f32.mrb[0].mxu0
      %v3686 = vadd.f32 %v3402, %v3685
      %v3687 = vpop.f32.mrb[0].mxu0
      %v3688 = vpop.f32.mrb[0].mxu0
      %v3689 = vadd.f32 %v3402, %v3688
      %v3690 = vpop.f32.mrb[0].mxu0
      %3691 = vmatprep.mubr.bf16.mxu0 0
      %3692 = vmatmul.mubr.bf16.gmra.mrb[0].mxu0 %v3376
      %v3693 = vpop.f32.mrb[0].mxu0
      %v3694 = vadd.f32 %v3402, %v3693
      %v3695 = vpop.f32.mrb[0].mxu0
      %v3696 = vpop.f32.mrb[0].mxu0
      %v3697 = vadd.f32 %v3402, %v3696
      %v3698 = vpop.f32.mrb[0].mxu0
      %3699 = vmatprep.mubr.bf16.mxu0 0
      %3700 = vmatmul.mubr.bf16.gmra.mrb[0].mxu0 %v3377
      %v3701 = vpop.f32.mrb[0].mxu0
      %v3702 = vadd.f32 %v3402, %v3701
      %v3703 = vpop.f32.mrb[0].mxu0
      %v3704 = vpop.f32.mrb[0].mxu0
      %v3705 = vadd.f32 %v3402, %v3704
      %v3706 = vpop.f32.mrb[0].mxu0
      %3707 = vmatprep.mubr.bf16.mxu0 0
      %3708 = vmatmul.mubr.bf16.gmra.mrb[0].mxu0 %v3378
      %v3709 = vpop.f32.mrb[0].mxu0
      %v3710 = vadd.f32 %v3402, %v3709
      %v3711 = vpop.f32.mrb[0].mxu0
      %v3712 = vpop.f32.mrb[0].mxu0
      %v3713 = vadd.f32 %v3402, %v3712
      %v3714 = vpop.f32.mrb[0].mxu0
      %3715 = vmatprep.mubr.bf16.mxu0 0
      %3716 = vmatmul.mubr.bf16.gmra.mrb[0].mxu0 %v3379
      %v3717 = vpop.f32.mrb[0].mxu0
      %v3718 = vadd.f32 %v3402, %v3717
      %v3719 = vpop.f32.mrb[0].mxu0
      %v3720 = vpop.f32.mrb[0].mxu0
      %v3721 = vadd.f32 %v3402, %v3720
      %v3722 = vpop.f32.mrb[0].mxu0
      %3723 = vmatprep.mubr.bf16.mxu0 0
      %3724 = vmatmul.mubr.bf16.gmra.mrb[0].mxu0 %v3380
      %v3725 = vpop.f32.mrb[0].mxu0
      %v3726 = vadd.f32 %v3402, %v3725
      %v3727 = vpop.f32.mrb[0].mxu0
      %v3728 = vpop.f32.mrb[0].mxu0
      %v3729 = vadd.f32 %v3402, %v3728
      %v3730 = vpop.f32.mrb[0].mxu0
      %3731 = vmatprep.mubr.bf16.mxu0 0
      %3732 = vmatmul.mubr.bf16.gmra.mrb[0].mxu0 %v3381
      %v3733 = vpop.f32.mrb[0].mxu0
      %v3734 = vadd.f32 %v3402, %v3733
      %v3735 = vpop.f32.mrb[0].mxu0
      %v3736 = vpop.f32.mrb[0].mxu0
      %v3737 = vadd.f32 %v3402, %v3736
      %v3738 = vpop.f32.mrb[0].mxu0
      %3739 = vdwg.mxu0
      %v3740 = vmax.f32 %v3486, 0.0
      %v3741 = vmax.f32 %v3489, 0.0
      %v3742 = vmax.f32 %v3494, 0.0
      %v3743 = vmax.f32 %v3497, 0.0
      %v3744 = vmax.f32 %v3502, 0.0
      %v3745 = vmax.f32 %v3505, 0.0
      %v3746 = vmax.f32 %v3510, 0.0
      %v3747 = vmax.f32 %v3513, 0.0
      %v3748 = vmax.f32 %v3518, 0.0
      %v3749 = vmax.f32 %v3521, 0.0
      %v3750 = vmax.f32 %v3526, 0.0
      %v3751 = vmax.f32 %v3529, 0.0
      %v3752 = vmax.f32 %v3534, 0.0
      %v3753 = vmax.f32 %v3537, 0.0
      %v3754 = vmax.f32 %v3542, 0.0
      %v3755 = vmax.f32 %v3545, 0.0
      %v3756 = vmax.f32 %v3550, 0.0
      %v3757 = vmax.f32 %v3553, 0.0
      %v3758 = vmax.f32 %v3558, 0.0
      %v3759 = vmax.f32 %v3561, 0.0
      %v3760 = vmax.f32 %v3566, 0.0
      %v3761 = vmax.f32 %v3569, 0.0
      %v3762 = vmax.f32 %v3574, 0.0
      %v3763 = vmax.f32 %v3577, 0.0
      %v3764 = vmax.f32 %v3582, 0.0
      %v3765 = vmax.f32 %v3585, 0.0
      %v3766 = vmax.f32 %v3590, 0.0
      %v3767 = vmax.f32 %v3593, 0.0
      %v3768 = vmax.f32 %v3598, 0.0
      %v3769 = vmax.f32 %v3601, 0.0
      %v3770 = vmax.f32 %v3606, 0.0
      %v3771 = vmax.f32 %v3609, 0.0
      %v3772 = vmax.f32 %v3614, 0.0
      %v3773 = vmax.f32 %v3617, 0.0
      %v3774 = vmax.f32 %v3622, 0.0
      %v3775 = vmax.f32 %v3625, 0.0
      %v3776 = vmax.f32 %v3630, 0.0
      %v3777 = vmax.f32 %v3633, 0.0
      %v3778 = vmax.f32 %v3638, 0.0
      %v3779 = vmax.f32 %v3641, 0.0
      %v3780 = vmax.f32 %v3646, 0.0
      %v3781 = vmax.f32 %v3649, 0.0
      %v3782 = vmax.f32 %v3654, 0.0
      %v3783 = vmax.f32 %v3657, 0.0
      %v3784 = vmax.f32 %v3662, 0.0
      %v3785 = vmax.f32 %v3665, 0.0
      %v3786 = vmax.f32 %v3670, 0.0
      %v3787 = vmax.f32 %v3673, 0.0
      %v3788 = vmax.f32 %v3678, 0.0
      %v3789 = vmax.f32 %v3681, 0.0
      %v3790 = vmax.f32 %v3686, 0.0
      %v3791 = vmax.f32 %v3689, 0.0
      %v3792 = vmax.f32 %v3694, 0.0
      %v3793 = vmax.f32 %v3697, 0.0
      %v3794 = vmax.f32 %v3702, 0.0
      %v3795 = vmax.f32 %v3705, 0.0
      %v3796 = vmax.f32 %v3710, 0.0
      %v3797 = vmax.f32 %v3713, 0.0
      %v3798 = vmax.f32 %v3718, 0.0
      %v3799 = vmax.f32 %v3721, 0.0
      %v3800 = vmax.f32 %v3726, 0.0
      %v3801 = vmax.f32 %v3729, 0.0
      %v3802 = vmax.f32 %v3734, 0.0
      %v3803 = vmax.f32 %v3737, 0.0
      %v3804 = vpack.c.bf16 %v3741, %v3740
      %v3805 = vpack.c.bf16 %v3743, %v3742
      %v3806 = vpack.c.bf16 %v3745, %v3744
      %v3807 = vpack.c.bf16 %v3747, %v3746
      %v3808 = vpack.c.bf16 %v3749, %v3748
      %v3809 = vpack.c.bf16 %v3751, %v3750
      %v3810 = vpack.c.bf16 %v3753, %v3752
      %v3811 = vpack.c.bf16 %v3755, %v3754
      %v3812 = vpack.c.bf16 %v3757, %v3756
      %v3813 = vpack.c.bf16 %v3759, %v3758
      %v3814 = vpack.c.bf16 %v3761, %v3760
      %v3815 = vpack.c.bf16 %v3763, %v3762
      %v3816 = vpack.c.bf16 %v3765, %v3764
      %v3817 = vpack.c.bf16 %v3767, %v3766
      %v3818 = vpack.c.bf16 %v3769, %v3768
      %v3819 = vpack.c.bf16 %v3771, %v3770
      %v3820 = vpack.c.bf16 %v3773, %v3772
      %v3821 = vpack.c.bf16 %v3775, %v3774
      %v3822 = vpack.c.bf16 %v3777, %v3776
      %v3823 = vpack.c.bf16 %v3779, %v3778
      %v3824 = vpack.c.bf16 %v3781, %v3780
      %v3825 = vpack.c.bf16 %v3783, %v3782
      %v3826 = vpack.c.bf16 %v3785, %v3784
      %v3827 = vpack.c.bf16 %v3787, %v3786
      %v3828 = vpack.c.bf16 %v3789, %v3788
      %v3829 = vpack.c.bf16 %v3791, %v3790
      %v3830 = vpack.c.bf16 %v3793, %v3792
      %v3831 = vpack.c.bf16 %v3795, %v3794
      %v3832 = vpack.c.bf16 %v3797, %v3796
      %v3833 = vpack.c.bf16 %v3799, %v3798
      %v3834 = vpack.c.bf16 %v3801, %v3800
      %v3835 = vpack.c.bf16 %v3803, %v3802
      %s3836 = scalar_lea.vmem %s2, 320
      %v3837 = vld [vmem:[%s3836] sm:$0xf]
      %v3838 = vld [vmem:[%s3836 + $0x4] sm:$0xf]
      %v3839 = vld [vmem:[%s3836 + $0x8] sm:$0xf]
      %v3840 = vld [vmem:[%s3836 + $0xc] sm:$0xf]
      %v3841 = vld [vmem:[%s3836 + $0x10] sm:$0xf]
      %v3842 = vld [vmem:[%s3836 + $0x14] sm:$0xf]
      %v3843 = vld [vmem:[%s3836 + $0x18] sm:$0xf]
      %v3844 = vld [vmem:[%s3836 + $0x1c] sm:$0xf]
      %v3845 = vld [vmem:[%s3836 + $0x20] sm:$0xf]
      %v3846 = vld [vmem:[%s3836 + $0x24] sm:$0xf]
      %v3847 = vld [vmem:[%s3836 + $0x28] sm:$0xf]
      %v3848 = vld [vmem:[%s3836 + $0x2c] sm:$0xf]
      %v3849 = vld [vmem:[%s3836 + $0x30] sm:$0xf]
      %v3850 = vld [vmem:[%s3836 + $0x34] sm:$0xf]
      %v3851 = vld [vmem:[%s3836 + $0x38] sm:$0xf]
      %v3852 = vld [vmem:[%s3836 + $0x3c] sm:$0xf]
      %v3853 = vlaneseq
      %v3854 = vshrl.u32 %v3853, 7
      %v3855 = vsub.s32 6, %v3854
      %v3856 = vrot.slane %v501, %v3855
      %v3873 = vunpack.c.l.b16 %v3837
      %v3874 = vunpack.c.l.b16 %v3838
      %v3875 = vunpack.c.l.b16 %v3839
      %v3876 = vunpack.c.l.b16 %v3840
      %v3877 = vunpack.c.l.b16 %v3841
      %v3878 = vunpack.c.l.b16 %v3842
      %v3879 = vunpack.c.l.b16 %v3843
      %v3880 = vunpack.c.l.b16 %v3844
      %v3881 = vunpack.c.l.b16 %v3845
      %v3882 = vunpack.c.l.b16 %v3846
      %v3883 = vunpack.c.l.b16 %v3847
      %v3884 = vunpack.c.l.b16 %v3848
      %v3885 = vunpack.c.l.b16 %v3849
      %v3886 = vunpack.c.l.b16 %v3850
      %v3887 = vunpack.c.l.b16 %v3851
      %v3888 = vunpack.c.l.b16 %v3852
      %v3889 = vpack.c.b16 %v3874, %v3873
      %v3890 = vpack.c.b16 %v3876, %v3875
      %v3891 = vpack.c.b16 %v3878, %v3877
      %v3892 = vpack.c.b16 %v3880, %v3879
      %v3893 = vpack.c.b16 %v3882, %v3881
      %v3894 = vpack.c.b16 %v3884, %v3883
      %v3895 = vpack.c.b16 %v3886, %v3885
      %v3896 = vpack.c.b16 %v3888, %v3887
      %3905 = vmatprep.subr.bf16.mxu0 0
      %3906 = vmatpush1.bf16.msra.mxu0 %v3889
      %3907 = vmatprep.subr.bf16.mxu0 0
      %3908 = vmatpush1.bf16.msra.mxu0 %v3890
      %3909 = vmatprep.subr.bf16.mxu0 0
      %3910 = vmatpush1.bf16.msra.mxu0 %v3891
      %3911 = vmatprep.subr.bf16.mxu0 0
      %3912 = vmatpush1.bf16.msra.mxu0 %v3892
      %3913 = vmatprep.subr.bf16.mxu0 0
      %3914 = vmatpush1.bf16.msra.mxu0 %v3893
      %3915 = vmatprep.subr.bf16.mxu0 0
      %3916 = vmatpush1.bf16.msra.mxu0 %v3894
      %3917 = vmatprep.subr.bf16.mxu0 0
      %3918 = vmatpush1.bf16.msra.mxu0 %v3895
      %3919 = vmatprep.subr.bf16.mxu0 0
      %3920 = vmatpush1.bf16.msra.mxu0 %v3896
      %3921 = vmatprep.subr.bf16.mxu0 0
      %3922 = vmatpush1.bf16.msra.mxu0 0
      %3923 = vmatprep.subr.bf16.mxu0 0
      %3924 = vmatpush1.bf16.msra.mxu0 0
      %3925 = vmatprep.subr.bf16.mxu0 0
      %3926 = vmatpush1.bf16.msra.mxu0 0
      %3927 = vmatprep.subr.bf16.mxu0 0
      %3928 = vmatpush1.bf16.msra.mxu0 0
      %3929 = vmatprep.subr.bf16.mxu0 0
      %3930 = vmatpush1.bf16.msra.mxu0 0
      %3931 = vmatprep.subr.bf16.mxu0 0
      %3932 = vmatpush1.bf16.msra.mxu0 0
      %3933 = vmatprep.subr.bf16.mxu0 0
      %3934 = vmatpush1.bf16.msra.mxu0 0
      %3935 = vmatprep.subr.bf16.mxu0 0
      %3936 = vmatpush1.bf16.msra.mxu0 0
      %3937 = vmatprep.mubr.bf16.mxu0 0
      %3938 = vmatmul.mubr.bf16.gmra.mrb[0].mxu0 %v3804
      %v3939 = vpop.f32.mrb[0].mxu0
      %v3940 = vadd.f32 %v3856, %v3939
      %v3941 = vpop.f32.mrb[0].mxu0
      %v3942 = vpop.f32.mrb[0].mxu0
      %v3943 = vadd.f32 %v3856, %v3942
      %v3944 = vpop.f32.mrb[0].mxu0
      %3945 = vmatprep.mubr.bf16.mxu0 0
      %3946 = vmatmul.mubr.bf16.gmra.mrb[0].mxu0 %v3805
      %v3947 = vpop.f32.mrb[0].mxu0
      %v3948 = vadd.f32 %v3856, %v3947
      %v3949 = vpop.f32.mrb[0].mxu0
      %v3950 = vpop.f32.mrb[0].mxu0
      %v3951 = vadd.f32 %v3856, %v3950
      %v3952 = vpop.f32.mrb[0].mxu0
      %3953 = vmatprep.mubr.bf16.mxu0 0
      %3954 = vmatmul.mubr.bf16.gmra.mrb[0].mxu0 %v3806
      %v3955 = vpop.f32.mrb[0].mxu0
      %v3956 = vadd.f32 %v3856, %v3955
      %v3957 = vpop.f32.mrb[0].mxu0
      %v3958 = vpop.f32.mrb[0].mxu0
      %v3959 = vadd.f32 %v3856, %v3958
      %v3960 = vpop.f32.mrb[0].mxu0
      %3961 = vmatprep.mubr.bf16.mxu0 0
      %3962 = vmatmul.mubr.bf16.gmra.mrb[0].mxu0 %v3807
      %v3963 = vpop.f32.mrb[0].mxu0
      %v3964 = vadd.f32 %v3856, %v3963
      %v3965 = vpop.f32.mrb[0].mxu0
      %v3966 = vpop.f32.mrb[0].mxu0
      %v3967 = vadd.f32 %v3856, %v3966
      %v3968 = vpop.f32.mrb[0].mxu0
      %3969 = vmatprep.mubr.bf16.mxu0 0
      %3970 = vmatmul.mubr.bf16.gmra.mrb[0].mxu0 %v3808
      %v3971 = vpop.f32.mrb[0].mxu0
      %v3972 = vadd.f32 %v3856, %v3971
      %v3973 = vpop.f32.mrb[0].mxu0
      %v3974 = vpop.f32.mrb[0].mxu0
      %v3975 = vadd.f32 %v3856, %v3974
      %v3976 = vpop.f32.mrb[0].mxu0
      %3977 = vmatprep.mubr.bf16.mxu0 0
      %3978 = vmatmul.mubr.bf16.gmra.mrb[0].mxu0 %v3809
      %v3979 = vpop.f32.mrb[0].mxu0
      %v3980 = vadd.f32 %v3856, %v3979
      %v3981 = vpop.f32.mrb[0].mxu0
      %v3982 = vpop.f32.mrb[0].mxu0
      %v3983 = vadd.f32 %v3856, %v3982
      %v3984 = vpop.f32.mrb[0].mxu0
      %3985 = vmatprep.mubr.bf16.mxu0 0
      %3986 = vmatmul.mubr.bf16.gmra.mrb[0].mxu0 %v3810
      %v3987 = vpop.f32.mrb[0].mxu0
      %v3988 = vadd.f32 %v3856, %v3987
      %v3989 = vpop.f32.mrb[0].mxu0
      %v3990 = vpop.f32.mrb[0].mxu0
      %v3991 = vadd.f32 %v3856, %v3990
      %v3992 = vpop.f32.mrb[0].mxu0
      %3993 = vmatprep.mubr.bf16.mxu0 0
      %3994 = vmatmul.mubr.bf16.gmra.mrb[0].mxu0 %v3811
      %v3995 = vpop.f32.mrb[0].mxu0
      %v3996 = vadd.f32 %v3856, %v3995
      %v3997 = vpop.f32.mrb[0].mxu0
      %v3998 = vpop.f32.mrb[0].mxu0
      %v3999 = vadd.f32 %v3856, %v3998
      %v4000 = vpop.f32.mrb[0].mxu0
      %4001 = vmatprep.mubr.bf16.mxu0 0
      %4002 = vmatmul.mubr.bf16.gmra.mrb[0].mxu0 %v3812
      %v4003 = vpop.f32.mrb[0].mxu0
      %v4004 = vadd.f32 %v3856, %v4003
      %v4005 = vpop.f32.mrb[0].mxu0
      %v4006 = vpop.f32.mrb[0].mxu0
      %v4007 = vadd.f32 %v3856, %v4006
      %v4008 = vpop.f32.mrb[0].mxu0
      %4009 = vmatprep.mubr.bf16.mxu0 0
      %4010 = vmatmul.mubr.bf16.gmra.mrb[0].mxu0 %v3813
      %v4011 = vpop.f32.mrb[0].mxu0
      %v4012 = vadd.f32 %v3856, %v4011
      %v4013 = vpop.f32.mrb[0].mxu0
      %v4014 = vpop.f32.mrb[0].mxu0
      %v4015 = vadd.f32 %v3856, %v4014
      %v4016 = vpop.f32.mrb[0].mxu0
      %4017 = vmatprep.mubr.bf16.mxu0 0
      %4018 = vmatmul.mubr.bf16.gmra.mrb[0].mxu0 %v3814
      %v4019 = vpop.f32.mrb[0].mxu0
      %v4020 = vadd.f32 %v3856, %v4019
      %v4021 = vpop.f32.mrb[0].mxu0
      %v4022 = vpop.f32.mrb[0].mxu0
      %v4023 = vadd.f32 %v3856, %v4022
      %v4024 = vpop.f32.mrb[0].mxu0
      %4025 = vmatprep.mubr.bf16.mxu0 0
      %4026 = vmatmul.mubr.bf16.gmra.mrb[0].mxu0 %v3815
      %v4027 = vpop.f32.mrb[0].mxu0
      %v4028 = vadd.f32 %v3856, %v4027
      %v4029 = vpop.f32.mrb[0].mxu0
      %v4030 = vpop.f32.mrb[0].mxu0
      %v4031 = vadd.f32 %v3856, %v4030
      %v4032 = vpop.f32.mrb[0].mxu0
      %4033 = vmatprep.mubr.bf16.mxu0 0
      %4034 = vmatmul.mubr.bf16.gmra.mrb[0].mxu0 %v3816
      %v4035 = vpop.f32.mrb[0].mxu0
      %v4036 = vadd.f32 %v3856, %v4035
      %v4037 = vpop.f32.mrb[0].mxu0
      %v4038 = vpop.f32.mrb[0].mxu0
      %v4039 = vadd.f32 %v3856, %v4038
      %v4040 = vpop.f32.mrb[0].mxu0
      %4041 = vmatprep.mubr.bf16.mxu0 0
      %4042 = vmatmul.mubr.bf16.gmra.mrb[0].mxu0 %v3817
      %v4043 = vpop.f32.mrb[0].mxu0
      %v4044 = vadd.f32 %v3856, %v4043
      %v4045 = vpop.f32.mrb[0].mxu0
      %v4046 = vpop.f32.mrb[0].mxu0
      %v4047 = vadd.f32 %v3856, %v4046
      %v4048 = vpop.f32.mrb[0].mxu0
      %4049 = vmatprep.mubr.bf16.mxu0 0
      %4050 = vmatmul.mubr.bf16.gmra.mrb[0].mxu0 %v3818
      %v4051 = vpop.f32.mrb[0].mxu0
      %v4052 = vadd.f32 %v3856, %v4051
      %v4053 = vpop.f32.mrb[0].mxu0
      %v4054 = vpop.f32.mrb[0].mxu0
      %v4055 = vadd.f32 %v3856, %v4054
      %v4056 = vpop.f32.mrb[0].mxu0
      %4057 = vmatprep.mubr.bf16.mxu0 0
      %4058 = vmatmul.mubr.bf16.gmra.mrb[0].mxu0 %v3819
      %v4059 = vpop.f32.mrb[0].mxu0
      %v4060 = vadd.f32 %v3856, %v4059
      %v4061 = vpop.f32.mrb[0].mxu0
      %v4062 = vpop.f32.mrb[0].mxu0
      %v4063 = vadd.f32 %v3856, %v4062
      %v4064 = vpop.f32.mrb[0].mxu0
      %4065 = vmatprep.mubr.bf16.mxu0 0
      %4066 = vmatmul.mubr.bf16.gmra.mrb[0].mxu0 %v3820
      %v4067 = vpop.f32.mrb[0].mxu0
      %v4068 = vadd.f32 %v3856, %v4067
      %v4069 = vpop.f32.mrb[0].mxu0
      %v4070 = vpop.f32.mrb[0].mxu0
      %v4071 = vadd.f32 %v3856, %v4070
      %v4072 = vpop.f32.mrb[0].mxu0
      %4073 = vmatprep.mubr.bf16.mxu0 0
      %4074 = vmatmul.mubr.bf16.gmra.mrb[0].mxu0 %v3821
      %v4075 = vpop.f32.mrb[0].mxu0
      %v4076 = vadd.f32 %v3856, %v4075
      %v4077 = vpop.f32.mrb[0].mxu0
      %v4078 = vpop.f32.mrb[0].mxu0
      %v4079 = vadd.f32 %v3856, %v4078
      %v4080 = vpop.f32.mrb[0].mxu0
      %4081 = vmatprep.mubr.bf16.mxu0 0
      %4082 = vmatmul.mubr.bf16.gmra.mrb[0].mxu0 %v3822
      %v4083 = vpop.f32.mrb[0].mxu0
      %v4084 = vadd.f32 %v3856, %v4083
      %v4085 = vpop.f32.mrb[0].mxu0
      %v4086 = vpop.f32.mrb[0].mxu0
      %v4087 = vadd.f32 %v3856, %v4086
      %v4088 = vpop.f32.mrb[0].mxu0
      %4089 = vmatprep.mubr.bf16.mxu0 0
      %4090 = vmatmul.mubr.bf16.gmra.mrb[0].mxu0 %v3823
      %v4091 = vpop.f32.mrb[0].mxu0
      %v4092 = vadd.f32 %v3856, %v4091
      %v4093 = vpop.f32.mrb[0].mxu0
      %v4094 = vpop.f32.mrb[0].mxu0
      %v4095 = vadd.f32 %v3856, %v4094
      %v4096 = vpop.f32.mrb[0].mxu0
      %4097 = vmatprep.mubr.bf16.mxu0 0
      %4098 = vmatmul.mubr.bf16.gmra.mrb[0].mxu0 %v3824
      %v4099 = vpop.f32.mrb[0].mxu0
      %v4100 = vadd.f32 %v3856, %v4099
      %v4101 = vpop.f32.mrb[0].mxu0
      %v4102 = vpop.f32.mrb[0].mxu0
      %v4103 = vadd.f32 %v3856, %v4102
      %v4104 = vpop.f32.mrb[0].mxu0
      %4105 = vmatprep.mubr.bf16.mxu0 0
      %4106 = vmatmul.mubr.bf16.gmra.mrb[0].mxu0 %v3825
      %v4107 = vpop.f32.mrb[0].mxu0
      %v4108 = vadd.f32 %v3856, %v4107
      %v4109 = vpop.f32.mrb[0].mxu0
      %v4110 = vpop.f32.mrb[0].mxu0
      %v4111 = vadd.f32 %v3856, %v4110
      %v4112 = vpop.f32.mrb[0].mxu0
      %4113 = vmatprep.mubr.bf16.mxu0 0
      %4114 = vmatmul.mubr.bf16.gmra.mrb[0].mxu0 %v3826
      %v4115 = vpop.f32.mrb[0].mxu0
      %v4116 = vadd.f32 %v3856, %v4115
      %v4117 = vpop.f32.mrb[0].mxu0
      %v4118 = vpop.f32.mrb[0].mxu0
      %v4119 = vadd.f32 %v3856, %v4118
      %v4120 = vpop.f32.mrb[0].mxu0
      %4121 = vmatprep.mubr.bf16.mxu0 0
      %4122 = vmatmul.mubr.bf16.gmra.mrb[0].mxu0 %v3827
      %v4123 = vpop.f32.mrb[0].mxu0
      %v4124 = vadd.f32 %v3856, %v4123
      %v4125 = vpop.f32.mrb[0].mxu0
      %v4126 = vpop.f32.mrb[0].mxu0
      %v4127 = vadd.f32 %v3856, %v4126
      %v4128 = vpop.f32.mrb[0].mxu0
      %4129 = vmatprep.mubr.bf16.mxu0 0
      %4130 = vmatmul.mubr.bf16.gmra.mrb[0].mxu0 %v3828
      %v4131 = vpop.f32.mrb[0].mxu0
      %v4132 = vadd.f32 %v3856, %v4131
      %v4133 = vpop.f32.mrb[0].mxu0
      %v4134 = vpop.f32.mrb[0].mxu0
      %v4135 = vadd.f32 %v3856, %v4134
      %v4136 = vpop.f32.mrb[0].mxu0
      %4137 = vmatprep.mubr.bf16.mxu0 0
      %4138 = vmatmul.mubr.bf16.gmra.mrb[0].mxu0 %v3829
      %v4139 = vpop.f32.mrb[0].mxu0
      %v4140 = vadd.f32 %v3856, %v4139
      %v4141 = vpop.f32.mrb[0].mxu0
      %v4142 = vpop.f32.mrb[0].mxu0
      %v4143 = vadd.f32 %v3856, %v4142
      %v4144 = vpop.f32.mrb[0].mxu0
      %4145 = vmatprep.mubr.bf16.mxu0 0
      %4146 = vmatmul.mubr.bf16.gmra.mrb[0].mxu0 %v3830
      %v4147 = vpop.f32.mrb[0].mxu0
      %v4148 = vadd.f32 %v3856, %v4147
      %v4149 = vpop.f32.mrb[0].mxu0
      %v4150 = vpop.f32.mrb[0].mxu0
      %v4151 = vadd.f32 %v3856, %v4150
      %v4152 = vpop.f32.mrb[0].mxu0
      %4153 = vmatprep.mubr.bf16.mxu0 0
      %4154 = vmatmul.mubr.bf16.gmra.mrb[0].mxu0 %v3831
      %v4155 = vpop.f32.mrb[0].mxu0
      %v4156 = vadd.f32 %v3856, %v4155
      %v4157 = vpop.f32.mrb[0].mxu0
      %v4158 = vpop.f32.mrb[0].mxu0
      %v4159 = vadd.f32 %v3856, %v4158
      %v4160 = vpop.f32.mrb[0].mxu0
      %4161 = vmatprep.mubr.bf16.mxu0 0
      %4162 = vmatmul.mubr.bf16.gmra.mrb[0].mxu0 %v3832
      %v4163 = vpop.f32.mrb[0].mxu0
      %v4164 = vadd.f32 %v3856, %v4163
      %v4165 = vpop.f32.mrb[0].mxu0
      %v4166 = vpop.f32.mrb[0].mxu0
      %v4167 = vadd.f32 %v3856, %v4166
      %v4168 = vpop.f32.mrb[0].mxu0
      %4169 = vmatprep.mubr.bf16.mxu0 0
      %4170 = vmatmul.mubr.bf16.gmra.mrb[0].mxu0 %v3833
      %v4171 = vpop.f32.mrb[0].mxu0
      %v4172 = vadd.f32 %v3856, %v4171
      %v4173 = vpop.f32.mrb[0].mxu0
      %v4174 = vpop.f32.mrb[0].mxu0
      %v4175 = vadd.f32 %v3856, %v4174
      %v4176 = vpop.f32.mrb[0].mxu0
      %4177 = vmatprep.mubr.bf16.mxu0 0
      %4178 = vmatmul.mubr.bf16.gmra.mrb[0].mxu0 %v3834
      %v4179 = vpop.f32.mrb[0].mxu0
      %v4180 = vadd.f32 %v3856, %v4179
      %v4181 = vpop.f32.mrb[0].mxu0
      %v4182 = vpop.f32.mrb[0].mxu0
      %v4183 = vadd.f32 %v3856, %v4182
      %v4184 = vpop.f32.mrb[0].mxu0
      %4185 = vmatprep.mubr.bf16.mxu0 0
      %4186 = vmatmul.mubr.bf16.gmra.mrb[0].mxu0 %v3835
      %v4187 = vpop.f32.mrb[0].mxu0
      %v4188 = vadd.f32 %v3856, %v4187
      %v4189 = vpop.f32.mrb[0].mxu0
      %v4190 = vpop.f32.mrb[0].mxu0
      %v4191 = vadd.f32 %v3856, %v4190
      %v4192 = vpop.f32.mrb[0].mxu0
      %4193 = vdwg.mxu0
      %v4194 = vmax.f32 %v3940, 0.0
      %v4195 = vmax.f32 %v3943, 0.0
      %v4196 = vmax.f32 %v3948, 0.0
      %v4197 = vmax.f32 %v3951, 0.0
      %v4198 = vmax.f32 %v3956, 0.0
      %v4199 = vmax.f32 %v3959, 0.0
      %v4200 = vmax.f32 %v3964, 0.0
      %v4201 = vmax.f32 %v3967, 0.0
      %v4202 = vmax.f32 %v3972, 0.0
      %v4203 = vmax.f32 %v3975, 0.0
      %v4204 = vmax.f32 %v3980, 0.0
      %v4205 = vmax.f32 %v3983, 0.0
      %v4206 = vmax.f32 %v3988, 0.0
      %v4207 = vmax.f32 %v3991, 0.0
      %v4208 = vmax.f32 %v3996, 0.0
      %v4209 = vmax.f32 %v3999, 0.0
      %v4210 = vmax.f32 %v4004, 0.0
      %v4211 = vmax.f32 %v4007, 0.0
      %v4212 = vmax.f32 %v4012, 0.0
      %v4213 = vmax.f32 %v4015, 0.0
      %v4214 = vmax.f32 %v4020, 0.0
      %v4215 = vmax.f32 %v4023, 0.0
      %v4216 = vmax.f32 %v4028, 0.0
      %v4217 = vmax.f32 %v4031, 0.0
      %v4218 = vmax.f32 %v4036, 0.0
      %v4219 = vmax.f32 %v4039, 0.0
      %v4220 = vmax.f32 %v4044, 0.0
      %v4221 = vmax.f32 %v4047, 0.0
      %v4222 = vmax.f32 %v4052, 0.0
      %v4223 = vmax.f32 %v4055, 0.0
      %v4224 = vmax.f32 %v4060, 0.0
      %v4225 = vmax.f32 %v4063, 0.0
      %v4226 = vmax.f32 %v4068, 0.0
      %v4227 = vmax.f32 %v4071, 0.0
      %v4228 = vmax.f32 %v4076, 0.0
      %v4229 = vmax.f32 %v4079, 0.0
      %v4230 = vmax.f32 %v4084, 0.0
      %v4231 = vmax.f32 %v4087, 0.0
      %v4232 = vmax.f32 %v4092, 0.0
      %v4233 = vmax.f32 %v4095, 0.0
      %v4234 = vmax.f32 %v4100, 0.0
      %v4235 = vmax.f32 %v4103, 0.0
      %v4236 = vmax.f32 %v4108, 0.0
      %v4237 = vmax.f32 %v4111, 0.0
      %v4238 = vmax.f32 %v4116, 0.0
      %v4239 = vmax.f32 %v4119, 0.0
      %v4240 = vmax.f32 %v4124, 0.0
      %v4241 = vmax.f32 %v4127, 0.0
      %v4242 = vmax.f32 %v4132, 0.0
      %v4243 = vmax.f32 %v4135, 0.0
      %v4244 = vmax.f32 %v4140, 0.0
      %v4245 = vmax.f32 %v4143, 0.0
      %v4246 = vmax.f32 %v4148, 0.0
      %v4247 = vmax.f32 %v4151, 0.0
      %v4248 = vmax.f32 %v4156, 0.0
      %v4249 = vmax.f32 %v4159, 0.0
      %v4250 = vmax.f32 %v4164, 0.0
      %v4251 = vmax.f32 %v4167, 0.0
      %v4252 = vmax.f32 %v4172, 0.0
      %v4253 = vmax.f32 %v4175, 0.0
      %v4254 = vmax.f32 %v4180, 0.0
      %v4255 = vmax.f32 %v4183, 0.0
      %v4256 = vmax.f32 %v4188, 0.0
      %v4257 = vmax.f32 %v4191, 0.0
      %v4258 = vpack.c.bf16 %v4195, %v4194
      %v4259 = vpack.c.bf16 %v4197, %v4196
      %v4260 = vpack.c.bf16 %v4199, %v4198
      %v4261 = vpack.c.bf16 %v4201, %v4200
      %v4262 = vpack.c.bf16 %v4203, %v4202
      %v4263 = vpack.c.bf16 %v4205, %v4204
      %v4264 = vpack.c.bf16 %v4207, %v4206
      %v4265 = vpack.c.bf16 %v4209, %v4208
      %v4266 = vpack.c.bf16 %v4211, %v4210
      %v4267 = vpack.c.bf16 %v4213, %v4212
      %v4268 = vpack.c.bf16 %v4215, %v4214
      %v4269 = vpack.c.bf16 %v4217, %v4216
      %v4270 = vpack.c.bf16 %v4219, %v4218
      %v4271 = vpack.c.bf16 %v4221, %v4220
      %v4272 = vpack.c.bf16 %v4223, %v4222
      %v4273 = vpack.c.bf16 %v4225, %v4224
      %v4274 = vpack.c.bf16 %v4227, %v4226
      %v4275 = vpack.c.bf16 %v4229, %v4228
      %v4276 = vpack.c.bf16 %v4231, %v4230
      %v4277 = vpack.c.bf16 %v4233, %v4232
      %v4278 = vpack.c.bf16 %v4235, %v4234
      %v4279 = vpack.c.bf16 %v4237, %v4236
      %v4280 = vpack.c.bf16 %v4239, %v4238
      %v4281 = vpack.c.bf16 %v4241, %v4240
      %v4282 = vpack.c.bf16 %v4243, %v4242
      %v4283 = vpack.c.bf16 %v4245, %v4244
      %v4284 = vpack.c.bf16 %v4247, %v4246
      %v4285 = vpack.c.bf16 %v4249, %v4248
      %v4286 = vpack.c.bf16 %v4251, %v4250
      %v4287 = vpack.c.bf16 %v4253, %v4252
      %v4288 = vpack.c.bf16 %v4255, %v4254
      %v4289 = vpack.c.bf16 %v4257, %v4256
      %v4290 = vld [vmem:[%s4] sm:$0xff]
      %v4291 = vld [vmem:[%s4 + $0x8] sm:$0xff]
      %v4292 = vld [vmem:[%s4 + $0x10] sm:$0xff]
      %v4293 = vld [vmem:[%s4 + $0x18] sm:$0xff]
      %v4294 = vld [vmem:[%s4 + $0x20] sm:$0xff]
      %v4295 = vld [vmem:[%s4 + $0x28] sm:$0xff]
      %v4296 = vld [vmem:[%s4 + $0x30] sm:$0xff]
      %v4297 = vld [vmem:[%s4 + $0x38] sm:$0xff]
      %v4298 = vld [vmem:[%s4 + $0x40] sm:$0xff]
      %v4299 = vld [vmem:[%s4 + $0x48] sm:$0xff]
      %v4300 = vld [vmem:[%s4 + $0x50] sm:$0xff]
      %v4301 = vld [vmem:[%s4 + $0x58] sm:$0xff]
      %v4302 = vld [vmem:[%s4 + $0x60] sm:$0xff]
      %v4303 = vld [vmem:[%s4 + $0x68] sm:$0xff]
      %v4304 = vld [vmem:[%s4 + $0x70] sm:$0xff]
      %v4305 = vld [vmem:[%s4 + $0x78] sm:$0xff]
      %v4322 = vunpack.c.l.b16 %v4290
      %v4323 = vunpack.c.h.b16 %v4290
      %v4324 = vunpack.c.l.b16 %v4291
      %v4325 = vunpack.c.h.b16 %v4291
      %v4326 = vunpack.c.l.b16 %v4292
      %v4327 = vunpack.c.h.b16 %v4292
      %v4328 = vunpack.c.l.b16 %v4293
      %v4329 = vunpack.c.h.b16 %v4293
      %v4330 = vunpack.c.l.b16 %v4294
      %v4331 = vunpack.c.h.b16 %v4294
      %v4332 = vunpack.c.l.b16 %v4295
      %v4333 = vunpack.c.h.b16 %v4295
      %v4334 = vunpack.c.l.b16 %v4296
      %v4335 = vunpack.c.h.b16 %v4296
      %v4336 = vunpack.c.l.b16 %v4297
      %v4337 = vunpack.c.h.b16 %v4297
      %v4338 = vunpack.c.l.b16 %v4298
      %v4339 = vunpack.c.h.b16 %v4298
      %v4340 = vunpack.c.l.b16 %v4299
      %v4341 = vunpack.c.h.b16 %v4299
      %v4342 = vunpack.c.l.b16 %v4300
      %v4343 = vunpack.c.h.b16 %v4300
      %v4344 = vunpack.c.l.b16 %v4301
      %v4345 = vunpack.c.h.b16 %v4301
      %v4346 = vunpack.c.l.b16 %v4302
      %v4347 = vunpack.c.h.b16 %v4302
      %v4348 = vunpack.c.l.b16 %v4303
      %v4349 = vunpack.c.h.b16 %v4303
      %v4350 = vunpack.c.l.b16 %v4304
      %v4351 = vunpack.c.h.b16 %v4304
      %v4352 = vunpack.c.l.b16 %v4305
      %v4353 = vunpack.c.h.b16 %v4305
      %v4354 = vpack.c.b16 %v4324, %v4322
      %v4355 = vpack.c.b16 %v4325, %v4323
      %v4356 = vpack.c.b16 %v4328, %v4326
      %v4357 = vpack.c.b16 %v4329, %v4327
      %v4358 = vpack.c.b16 %v4332, %v4330
      %v4359 = vpack.c.b16 %v4333, %v4331
      %v4360 = vpack.c.b16 %v4336, %v4334
      %v4361 = vpack.c.b16 %v4337, %v4335
      %v4362 = vpack.c.b16 %v4340, %v4338
      %v4363 = vpack.c.b16 %v4341, %v4339
      %v4364 = vpack.c.b16 %v4344, %v4342
      %v4365 = vpack.c.b16 %v4345, %v4343
      %v4366 = vpack.c.b16 %v4348, %v4346
      %v4367 = vpack.c.b16 %v4349, %v4347
      %v4368 = vpack.c.b16 %v4352, %v4350
      %v4369 = vpack.c.b16 %v4353, %v4351
      %4386 = vmatprep.subr.bf16.mxu0 %v4355
      %4387 = vmatpush1.bf16.msra.mxu0 %v4354
      %4388 = vmatprep.subr.bf16.mxu0 %v4357
      %4389 = vmatpush1.bf16.msra.mxu0 %v4356
      %4390 = vmatprep.subr.bf16.mxu0 %v4359
      %4391 = vmatpush1.bf16.msra.mxu0 %v4358
      %4392 = vmatprep.subr.bf16.mxu0 %v4361
      %4393 = vmatpush1.bf16.msra.mxu0 %v4360
      %4394 = vmatprep.subr.bf16.mxu0 %v4363
      %4395 = vmatpush1.bf16.msra.mxu0 %v4362
      %4396 = vmatprep.subr.bf16.mxu0 %v4365
      %4397 = vmatpush1.bf16.msra.mxu0 %v4364
      %4398 = vmatprep.subr.bf16.mxu0 %v4367
      %4399 = vmatpush1.bf16.msra.mxu0 %v4366
      %4400 = vmatprep.subr.bf16.mxu0 %v4369
      %4401 = vmatpush1.bf16.msra.mxu0 %v4368
      %4402 = vmatprep.subr.bf16.mxu0 0
      %4403 = vmatpush1.bf16.msra.mxu0 0
      %4404 = vmatprep.subr.bf16.mxu0 0
      %4405 = vmatpush1.bf16.msra.mxu0 0
      %4406 = vmatprep.subr.bf16.mxu0 0
      %4407 = vmatpush1.bf16.msra.mxu0 0
      %4408 = vmatprep.subr.bf16.mxu0 0
      %4409 = vmatpush1.bf16.msra.mxu0 0
      %4410 = vmatprep.subr.bf16.mxu0 0
      %4411 = vmatpush1.bf16.msra.mxu0 0
      %4412 = vmatprep.subr.bf16.mxu0 0
      %4413 = vmatpush1.bf16.msra.mxu0 0
      %4414 = vmatprep.subr.bf16.mxu0 0
      %4415 = vmatpush1.bf16.msra.mxu0 0
      %4416 = vmatprep.subr.bf16.mxu0 0
      %4417 = vmatpush1.bf16.msra.mxu0 0
      %4418 = vmatprep.mubr.bf16.mxu0 0
      %4419 = vmatmul.mubr.bf16.gmra.mrb[0].mxu0 %v4258
      %v4420 = vpop.f32.mrb[0].mxu0
      %v4421 = vadd.f32 0.0, %v4420
      %v4422 = vpop.f32.mrb[0].mxu0
      %v4423 = vadd.f32 0.0, %v4422
      %v4424 = vpop.f32.mrb[0].mxu0
      %v4425 = vadd.f32 0.0, %v4424
      %v4426 = vpop.f32.mrb[0].mxu0
      %v4427 = vadd.f32 0.0, %v4426
      %4428 = vmatprep.mubr.bf16.mxu0 0
      %4429 = vmatmul.mubr.bf16.gmra.mrb[0].mxu0 %v4259
      %v4430 = vpop.f32.mrb[0].mxu0
      %v4431 = vadd.f32 0.0, %v4430
      %v4432 = vpop.f32.mrb[0].mxu0
      %v4433 = vadd.f32 0.0, %v4432
      %v4434 = vpop.f32.mrb[0].mxu0
      %v4435 = vadd.f32 0.0, %v4434
      %v4436 = vpop.f32.mrb[0].mxu0
      %v4437 = vadd.f32 0.0, %v4436
      %4438 = vmatprep.mubr.bf16.mxu0 0
      %4439 = vmatmul.mubr.bf16.gmra.mrb[0].mxu0 %v4260
      %v4440 = vpop.f32.mrb[0].mxu0
      %v4441 = vadd.f32 0.0, %v4440
      %v4442 = vpop.f32.mrb[0].mxu0
      %v4443 = vadd.f32 0.0, %v4442
      %v4444 = vpop.f32.mrb[0].mxu0
      %v4445 = vadd.f32 0.0, %v4444
      %v4446 = vpop.f32.mrb[0].mxu0
      %v4447 = vadd.f32 0.0, %v4446
      %4448 = vmatprep.mubr.bf16.mxu0 0
      %4449 = vmatmul.mubr.bf16.gmra.mrb[0].mxu0 %v4261
      %v4450 = vpop.f32.mrb[0].mxu0
      %v4451 = vadd.f32 0.0, %v4450
      %v4452 = vpop.f32.mrb[0].mxu0
      %v4453 = vadd.f32 0.0, %v4452
      %v4454 = vpop.f32.mrb[0].mxu0
      %v4455 = vadd.f32 0.0, %v4454
      %v4456 = vpop.f32.mrb[0].mxu0
      %v4457 = vadd.f32 0.0, %v4456
      %4458 = vmatprep.mubr.bf16.mxu0 0
      %4459 = vmatmul.mubr.bf16.gmra.mrb[0].mxu0 %v4262
      %v4460 = vpop.f32.mrb[0].mxu0
      %v4461 = vadd.f32 0.0, %v4460
      %v4462 = vpop.f32.mrb[0].mxu0
      %v4463 = vadd.f32 0.0, %v4462
      %v4464 = vpop.f32.mrb[0].mxu0
      %v4465 = vadd.f32 0.0, %v4464
      %v4466 = vpop.f32.mrb[0].mxu0
      %v4467 = vadd.f32 0.0, %v4466
      %4468 = vmatprep.mubr.bf16.mxu0 0
      %4469 = vmatmul.mubr.bf16.gmra.mrb[0].mxu0 %v4263
      %v4470 = vpop.f32.mrb[0].mxu0
      %v4471 = vadd.f32 0.0, %v4470
      %v4472 = vpop.f32.mrb[0].mxu0
      %v4473 = vadd.f32 0.0, %v4472
      %v4474 = vpop.f32.mrb[0].mxu0
      %v4475 = vadd.f32 0.0, %v4474
      %v4476 = vpop.f32.mrb[0].mxu0
      %v4477 = vadd.f32 0.0, %v4476
      %4478 = vmatprep.mubr.bf16.mxu0 0
      %4479 = vmatmul.mubr.bf16.gmra.mrb[0].mxu0 %v4264
      %v4480 = vpop.f32.mrb[0].mxu0
      %v4481 = vadd.f32 0.0, %v4480
      %v4482 = vpop.f32.mrb[0].mxu0
      %v4483 = vadd.f32 0.0, %v4482
      %v4484 = vpop.f32.mrb[0].mxu0
      %v4485 = vadd.f32 0.0, %v4484
      %v4486 = vpop.f32.mrb[0].mxu0
      %v4487 = vadd.f32 0.0, %v4486
      %4488 = vmatprep.mubr.bf16.mxu0 0
      %4489 = vmatmul.mubr.bf16.gmra.mrb[0].mxu0 %v4265
      %v4490 = vpop.f32.mrb[0].mxu0
      %v4491 = vadd.f32 0.0, %v4490
      %v4492 = vpop.f32.mrb[0].mxu0
      %v4493 = vadd.f32 0.0, %v4492
      %v4494 = vpop.f32.mrb[0].mxu0
      %v4495 = vadd.f32 0.0, %v4494
      %v4496 = vpop.f32.mrb[0].mxu0
      %v4497 = vadd.f32 0.0, %v4496
      %4498 = vmatprep.mubr.bf16.mxu0 0
      %4499 = vmatmul.mubr.bf16.gmra.mrb[0].mxu0 %v4266
      %v4500 = vpop.f32.mrb[0].mxu0
      %v4501 = vadd.f32 0.0, %v4500
      %v4502 = vpop.f32.mrb[0].mxu0
      %v4503 = vadd.f32 0.0, %v4502
      %v4504 = vpop.f32.mrb[0].mxu0
      %v4505 = vadd.f32 0.0, %v4504
      %v4506 = vpop.f32.mrb[0].mxu0
      %v4507 = vadd.f32 0.0, %v4506
      %4508 = vmatprep.mubr.bf16.mxu0 0
      %4509 = vmatmul.mubr.bf16.gmra.mrb[0].mxu0 %v4267
      %v4510 = vpop.f32.mrb[0].mxu0
      %v4511 = vadd.f32 0.0, %v4510
      %v4512 = vpop.f32.mrb[0].mxu0
      %v4513 = vadd.f32 0.0, %v4512
      %v4514 = vpop.f32.mrb[0].mxu0
      %v4515 = vadd.f32 0.0, %v4514
      %v4516 = vpop.f32.mrb[0].mxu0
      %v4517 = vadd.f32 0.0, %v4516
      %4518 = vmatprep.mubr.bf16.mxu0 0
      %4519 = vmatmul.mubr.bf16.gmra.mrb[0].mxu0 %v4268
      %v4520 = vpop.f32.mrb[0].mxu0
      %v4521 = vadd.f32 0.0, %v4520
      %v4522 = vpop.f32.mrb[0].mxu0
      %v4523 = vadd.f32 0.0, %v4522
      %v4524 = vpop.f32.mrb[0].mxu0
      %v4525 = vadd.f32 0.0, %v4524
      %v4526 = vpop.f32.mrb[0].mxu0
      %v4527 = vadd.f32 0.0, %v4526
      %4528 = vmatprep.mubr.bf16.mxu0 0
      %4529 = vmatmul.mubr.bf16.gmra.mrb[0].mxu0 %v4269
      %v4530 = vpop.f32.mrb[0].mxu0
      %v4531 = vadd.f32 0.0, %v4530
      %v4532 = vpop.f32.mrb[0].mxu0
      %v4533 = vadd.f32 0.0, %v4532
      %v4534 = vpop.f32.mrb[0].mxu0
      %v4535 = vadd.f32 0.0, %v4534
      %v4536 = vpop.f32.mrb[0].mxu0
      %v4537 = vadd.f32 0.0, %v4536
      %4538 = vmatprep.mubr.bf16.mxu0 0
      %4539 = vmatmul.mubr.bf16.gmra.mrb[0].mxu0 %v4270
      %v4540 = vpop.f32.mrb[0].mxu0
      %v4541 = vadd.f32 0.0, %v4540
      %v4542 = vpop.f32.mrb[0].mxu0
      %v4543 = vadd.f32 0.0, %v4542
      %v4544 = vpop.f32.mrb[0].mxu0
      %v4545 = vadd.f32 0.0, %v4544
      %v4546 = vpop.f32.mrb[0].mxu0
      %v4547 = vadd.f32 0.0, %v4546
      %4548 = vmatprep.mubr.bf16.mxu0 0
      %4549 = vmatmul.mubr.bf16.gmra.mrb[0].mxu0 %v4271
      %v4550 = vpop.f32.mrb[0].mxu0
      %v4551 = vadd.f32 0.0, %v4550
      %v4552 = vpop.f32.mrb[0].mxu0
      %v4553 = vadd.f32 0.0, %v4552
      %v4554 = vpop.f32.mrb[0].mxu0
      %v4555 = vadd.f32 0.0, %v4554
      %v4556 = vpop.f32.mrb[0].mxu0
      %v4557 = vadd.f32 0.0, %v4556
      %4558 = vmatprep.mubr.bf16.mxu0 0
      %4559 = vmatmul.mubr.bf16.gmra.mrb[0].mxu0 %v4272
      %v4560 = vpop.f32.mrb[0].mxu0
      %v4561 = vadd.f32 0.0, %v4560
      %v4562 = vpop.f32.mrb[0].mxu0
      %v4563 = vadd.f32 0.0, %v4562
      %v4564 = vpop.f32.mrb[0].mxu0
      %v4565 = vadd.f32 0.0, %v4564
      %v4566 = vpop.f32.mrb[0].mxu0
      %v4567 = vadd.f32 0.0, %v4566
      %4568 = vmatprep.mubr.bf16.mxu0 0
      %4569 = vmatmul.mubr.bf16.gmra.mrb[0].mxu0 %v4273
      %v4570 = vpop.f32.mrb[0].mxu0
      %v4571 = vadd.f32 0.0, %v4570
      %v4572 = vpop.f32.mrb[0].mxu0
      %v4573 = vadd.f32 0.0, %v4572
      %v4574 = vpop.f32.mrb[0].mxu0
      %v4575 = vadd.f32 0.0, %v4574
      %v4576 = vpop.f32.mrb[0].mxu0
      %v4577 = vadd.f32 0.0, %v4576
      %4578 = vmatprep.mubr.bf16.mxu0 0
      %4579 = vmatmul.mubr.bf16.gmra.mrb[0].mxu0 %v4274
      %v4580 = vpop.f32.mrb[0].mxu0
      %v4581 = vadd.f32 0.0, %v4580
      %v4582 = vpop.f32.mrb[0].mxu0
      %v4583 = vadd.f32 0.0, %v4582
      %v4584 = vpop.f32.mrb[0].mxu0
      %v4585 = vadd.f32 0.0, %v4584
      %v4586 = vpop.f32.mrb[0].mxu0
      %v4587 = vadd.f32 0.0, %v4586
      %4588 = vmatprep.mubr.bf16.mxu0 0
      %4589 = vmatmul.mubr.bf16.gmra.mrb[0].mxu0 %v4275
      %v4590 = vpop.f32.mrb[0].mxu0
      %v4591 = vadd.f32 0.0, %v4590
      %v4592 = vpop.f32.mrb[0].mxu0
      %v4593 = vadd.f32 0.0, %v4592
      %v4594 = vpop.f32.mrb[0].mxu0
      %v4595 = vadd.f32 0.0, %v4594
      %v4596 = vpop.f32.mrb[0].mxu0
      %v4597 = vadd.f32 0.0, %v4596
      %4598 = vmatprep.mubr.bf16.mxu0 0
      %4599 = vmatmul.mubr.bf16.gmra.mrb[0].mxu0 %v4276
      %v4600 = vpop.f32.mrb[0].mxu0
      %v4601 = vadd.f32 0.0, %v4600
      %v4602 = vpop.f32.mrb[0].mxu0
      %v4603 = vadd.f32 0.0, %v4602
      %v4604 = vpop.f32.mrb[0].mxu0
      %v4605 = vadd.f32 0.0, %v4604
      %v4606 = vpop.f32.mrb[0].mxu0
      %v4607 = vadd.f32 0.0, %v4606
      %4608 = vmatprep.mubr.bf16.mxu0 0
      %4609 = vmatmul.mubr.bf16.gmra.mrb[0].mxu0 %v4277
      %v4610 = vpop.f32.mrb[0].mxu0
      %v4611 = vadd.f32 0.0, %v4610
      %v4612 = vpop.f32.mrb[0].mxu0
      %v4613 = vadd.f32 0.0, %v4612
      %v4614 = vpop.f32.mrb[0].mxu0
      %v4615 = vadd.f32 0.0, %v4614
      %v4616 = vpop.f32.mrb[0].mxu0
      %v4617 = vadd.f32 0.0, %v4616
      %4618 = vmatprep.mubr.bf16.mxu0 0
      %4619 = vmatmul.mubr.bf16.gmra.mrb[0].mxu0 %v4278
      %v4620 = vpop.f32.mrb[0].mxu0
      %v4621 = vadd.f32 0.0, %v4620
      %v4622 = vpop.f32.mrb[0].mxu0
      %v4623 = vadd.f32 0.0, %v4622
      %v4624 = vpop.f32.mrb[0].mxu0
      %v4625 = vadd.f32 0.0, %v4624
      %v4626 = vpop.f32.mrb[0].mxu0
      %v4627 = vadd.f32 0.0, %v4626
      %4628 = vmatprep.mubr.bf16.mxu0 0
      %4629 = vmatmul.mubr.bf16.gmra.mrb[0].mxu0 %v4279
      %v4630 = vpop.f32.mrb[0].mxu0
      %v4631 = vadd.f32 0.0, %v4630
      %v4632 = vpop.f32.mrb[0].mxu0
      %v4633 = vadd.f32 0.0, %v4632
      %v4634 = vpop.f32.mrb[0].mxu0
      %v4635 = vadd.f32 0.0, %v4634
      %v4636 = vpop.f32.mrb[0].mxu0
      %v4637 = vadd.f32 0.0, %v4636
      %4638 = vmatprep.mubr.bf16.mxu0 0
      %4639 = vmatmul.mubr.bf16.gmra.mrb[0].mxu0 %v4280
      %v4640 = vpop.f32.mrb[0].mxu0
      %v4641 = vadd.f32 0.0, %v4640
      %v4642 = vpop.f32.mrb[0].mxu0
      %v4643 = vadd.f32 0.0, %v4642
      %v4644 = vpop.f32.mrb[0].mxu0
      %v4645 = vadd.f32 0.0, %v4644
      %v4646 = vpop.f32.mrb[0].mxu0
      %v4647 = vadd.f32 0.0, %v4646
      %4648 = vmatprep.mubr.bf16.mxu0 0
      %4649 = vmatmul.mubr.bf16.gmra.mrb[0].mxu0 %v4281
      %v4650 = vpop.f32.mrb[0].mxu0
      %v4651 = vadd.f32 0.0, %v4650
      %v4652 = vpop.f32.mrb[0].mxu0
      %v4653 = vadd.f32 0.0, %v4652
      %v4654 = vpop.f32.mrb[0].mxu0
      %v4655 = vadd.f32 0.0, %v4654
      %v4656 = vpop.f32.mrb[0].mxu0
      %v4657 = vadd.f32 0.0, %v4656
      %4658 = vmatprep.mubr.bf16.mxu0 0
      %4659 = vmatmul.mubr.bf16.gmra.mrb[0].mxu0 %v4282
      %v4660 = vpop.f32.mrb[0].mxu0
      %v4661 = vadd.f32 0.0, %v4660
      %v4662 = vpop.f32.mrb[0].mxu0
      %v4663 = vadd.f32 0.0, %v4662
      %v4664 = vpop.f32.mrb[0].mxu0
      %v4665 = vadd.f32 0.0, %v4664
      %v4666 = vpop.f32.mrb[0].mxu0
      %v4667 = vadd.f32 0.0, %v4666
      %4668 = vmatprep.mubr.bf16.mxu0 0
      %4669 = vmatmul.mubr.bf16.gmra.mrb[0].mxu0 %v4283
      %v4670 = vpop.f32.mrb[0].mxu0
      %v4671 = vadd.f32 0.0, %v4670
      %v4672 = vpop.f32.mrb[0].mxu0
      %v4673 = vadd.f32 0.0, %v4672
      %v4674 = vpop.f32.mrb[0].mxu0
      %v4675 = vadd.f32 0.0, %v4674
      %v4676 = vpop.f32.mrb[0].mxu0
      %v4677 = vadd.f32 0.0, %v4676
      %4678 = vmatprep.mubr.bf16.mxu0 0
      %4679 = vmatmul.mubr.bf16.gmra.mrb[0].mxu0 %v4284
      %v4680 = vpop.f32.mrb[0].mxu0
      %v4681 = vadd.f32 0.0, %v4680
      %v4682 = vpop.f32.mrb[0].mxu0
      %v4683 = vadd.f32 0.0, %v4682
      %v4684 = vpop.f32.mrb[0].mxu0
      %v4685 = vadd.f32 0.0, %v4684
      %v4686 = vpop.f32.mrb[0].mxu0
      %v4687 = vadd.f32 0.0, %v4686
      %4688 = vmatprep.mubr.bf16.mxu0 0
      %4689 = vmatmul.mubr.bf16.gmra.mrb[0].mxu0 %v4285
      %v4690 = vpop.f32.mrb[0].mxu0
      %v4691 = vadd.f32 0.0, %v4690
      %v4692 = vpop.f32.mrb[0].mxu0
      %v4693 = vadd.f32 0.0, %v4692
      %v4694 = vpop.f32.mrb[0].mxu0
      %v4695 = vadd.f32 0.0, %v4694
      %v4696 = vpop.f32.mrb[0].mxu0
      %v4697 = vadd.f32 0.0, %v4696
      %4698 = vmatprep.mubr.bf16.mxu0 0
      %4699 = vmatmul.mubr.bf16.gmra.mrb[0].mxu0 %v4286
      %v4700 = vpop.f32.mrb[0].mxu0
      %v4701 = vadd.f32 0.0, %v4700
      %v4702 = vpop.f32.mrb[0].mxu0
      %v4703 = vadd.f32 0.0, %v4702
      %v4704 = vpop.f32.mrb[0].mxu0
      %v4705 = vadd.f32 0.0, %v4704
      %v4706 = vpop.f32.mrb[0].mxu0
      %v4707 = vadd.f32 0.0, %v4706
      %4708 = vmatprep.mubr.bf16.mxu0 0
      %4709 = vmatmul.mubr.bf16.gmra.mrb[0].mxu0 %v4287
      %v4710 = vpop.f32.mrb[0].mxu0
      %v4711 = vadd.f32 0.0, %v4710
      %v4712 = vpop.f32.mrb[0].mxu0
      %v4713 = vadd.f32 0.0, %v4712
      %v4714 = vpop.f32.mrb[0].mxu0
      %v4715 = vadd.f32 0.0, %v4714
      %v4716 = vpop.f32.mrb[0].mxu0
      %v4717 = vadd.f32 0.0, %v4716
      %4718 = vmatprep.mubr.bf16.mxu0 0
      %4719 = vmatmul.mubr.bf16.gmra.mrb[0].mxu0 %v4288
      %v4720 = vpop.f32.mrb[0].mxu0
      %v4721 = vadd.f32 0.0, %v4720
      %v4722 = vpop.f32.mrb[0].mxu0
      %v4723 = vadd.f32 0.0, %v4722
      %v4724 = vpop.f32.mrb[0].mxu0
      %v4725 = vadd.f32 0.0, %v4724
      %v4726 = vpop.f32.mrb[0].mxu0
      %v4727 = vadd.f32 0.0, %v4726
      %4728 = vmatprep.mubr.bf16.mxu0 0
      %4729 = vmatmul.mubr.bf16.gmra.mrb[0].mxu0 %v4289
      %v4730 = vpop.f32.mrb[0].mxu0
      %v4731 = vadd.f32 0.0, %v4730
      %v4732 = vpop.f32.mrb[0].mxu0
      %v4733 = vadd.f32 0.0, %v4732
      %v4734 = vpop.f32.mrb[0].mxu0
      %v4735 = vadd.f32 0.0, %v4734
      %v4736 = vpop.f32.mrb[0].mxu0
      %v4737 = vadd.f32 0.0, %v4736
      %4738 = vdwg.mxu0
      %v4739 = vlaneseq
      %v4740 = vshrl.u32 %v4739, 7
      %v4741 = vsub.s32 7, %v4740
      %v4742 = vrot.slane %v501, %v4741
      %v4743 = vadd.f32 %v4421, %v4742
      %v4744 = vadd.f32 %v4425, %v4742
      %v4745 = vadd.f32 %v4431, %v4742
      %v4746 = vadd.f32 %v4435, %v4742
      %v4747 = vadd.f32 %v4441, %v4742
      %v4748 = vadd.f32 %v4445, %v4742
      %v4749 = vadd.f32 %v4451, %v4742
      %v4750 = vadd.f32 %v4455, %v4742
      %v4751 = vadd.f32 %v4461, %v4742
      %v4752 = vadd.f32 %v4465, %v4742
      %v4753 = vadd.f32 %v4471, %v4742
      %v4754 = vadd.f32 %v4475, %v4742
      %v4755 = vadd.f32 %v4481, %v4742
      %v4756 = vadd.f32 %v4485, %v4742
      %v4757 = vadd.f32 %v4491, %v4742
      %v4758 = vadd.f32 %v4495, %v4742
      %v4759 = vadd.f32 %v4501, %v4742
      %v4760 = vadd.f32 %v4505, %v4742
      %v4761 = vadd.f32 %v4511, %v4742
      %v4762 = vadd.f32 %v4515, %v4742
      %v4763 = vadd.f32 %v4521, %v4742
      %v4764 = vadd.f32 %v4525, %v4742
      %v4765 = vadd.f32 %v4531, %v4742
      %v4766 = vadd.f32 %v4535, %v4742
      %v4767 = vadd.f32 %v4541, %v4742
      %v4768 = vadd.f32 %v4545, %v4742
      %v4769 = vadd.f32 %v4551, %v4742
      %v4770 = vadd.f32 %v4555, %v4742
      %v4771 = vadd.f32 %v4561, %v4742
      %v4772 = vadd.f32 %v4565, %v4742
      %v4773 = vadd.f32 %v4571, %v4742
      %v4774 = vadd.f32 %v4575, %v4742
      %v4775 = vadd.f32 %v4581, %v4742
      %v4776 = vadd.f32 %v4585, %v4742
      %v4777 = vadd.f32 %v4591, %v4742
      %v4778 = vadd.f32 %v4595, %v4742
      %v4779 = vadd.f32 %v4601, %v4742
      %v4780 = vadd.f32 %v4605, %v4742
      %v4781 = vadd.f32 %v4611, %v4742
      %v4782 = vadd.f32 %v4615, %v4742
      %v4783 = vadd.f32 %v4621, %v4742
      %v4784 = vadd.f32 %v4625, %v4742
      %v4785 = vadd.f32 %v4631, %v4742
      %v4786 = vadd.f32 %v4635, %v4742
      %v4787 = vadd.f32 %v4641, %v4742
      %v4788 = vadd.f32 %v4645, %v4742
      %v4789 = vadd.f32 %v4651, %v4742
      %v4790 = vadd.f32 %v4655, %v4742
      %v4791 = vadd.f32 %v4661, %v4742
      %v4792 = vadd.f32 %v4665, %v4742
      %v4793 = vadd.f32 %v4671, %v4742
      %v4794 = vadd.f32 %v4675, %v4742
      %v4795 = vadd.f32 %v4681, %v4742
      %v4796 = vadd.f32 %v4685, %v4742
      %v4797 = vadd.f32 %v4691, %v4742
      %v4798 = vadd.f32 %v4695, %v4742
      %v4799 = vadd.f32 %v4701, %v4742
      %v4800 = vadd.f32 %v4705, %v4742
      %v4801 = vadd.f32 %v4711, %v4742
      %v4802 = vadd.f32 %v4715, %v4742
      %v4803 = vadd.f32 %v4721, %v4742
      %v4804 = vadd.f32 %v4725, %v4742
      %v4805 = vadd.f32 %v4731, %v4742
      %v4806 = vadd.f32 %v4735, %v4742
      %v4807 = vpack.c.bf16 %v4744, %v4743
      %v4808 = vpack.c.bf16 %v4746, %v4745
      %v4809 = vpack.c.bf16 %v4748, %v4747
      %v4810 = vpack.c.bf16 %v4750, %v4749
      %v4811 = vpack.c.bf16 %v4752, %v4751
      %v4812 = vpack.c.bf16 %v4754, %v4753
      %v4813 = vpack.c.bf16 %v4756, %v4755
      %v4814 = vpack.c.bf16 %v4758, %v4757
      %v4815 = vpack.c.bf16 %v4760, %v4759
      %v4816 = vpack.c.bf16 %v4762, %v4761
      %v4817 = vpack.c.bf16 %v4764, %v4763
      %v4818 = vpack.c.bf16 %v4766, %v4765
      %v4819 = vpack.c.bf16 %v4768, %v4767
      %v4820 = vpack.c.bf16 %v4770, %v4769
      %v4821 = vpack.c.bf16 %v4772, %v4771
      %v4822 = vpack.c.bf16 %v4774, %v4773
      %v4823 = vpack.c.bf16 %v4776, %v4775
      %v4824 = vpack.c.bf16 %v4778, %v4777
      %v4825 = vpack.c.bf16 %v4780, %v4779
      %v4826 = vpack.c.bf16 %v4782, %v4781
      %v4827 = vpack.c.bf16 %v4784, %v4783
      %v4828 = vpack.c.bf16 %v4786, %v4785
      %v4829 = vpack.c.bf16 %v4788, %v4787
      %v4830 = vpack.c.bf16 %v4790, %v4789
      %v4831 = vpack.c.bf16 %v4792, %v4791
      %v4832 = vpack.c.bf16 %v4794, %v4793
      %v4833 = vpack.c.bf16 %v4796, %v4795
      %v4834 = vpack.c.bf16 %v4798, %v4797
      %v4835 = vpack.c.bf16 %v4800, %v4799
      %v4836 = vpack.c.bf16 %v4802, %v4801
      %v4837 = vpack.c.bf16 %v4804, %v4803
      %v4838 = vpack.c.bf16 %v4806, %v4805
      %v4839 = vlaneseq
      %v4840 = vshrl.u32 %v4839, 7
      %v4841 = vsub.s32 1, %v4840
      %v4842 = vrot.slane %v502, %v4841
      %4844 = vrot.lane.b32.xlu0 %v4842, 124
      %v4845 = vpop.permute.xlu0 %4844
      %v4847 = vadd.f32 %v4423, %v4845
      %v4848 = vadd.f32 %v4427, %v4845
      %v4849 = vadd.f32 %v4433, %v4845
      %v4850 = vadd.f32 %v4437, %v4845
      %v4851 = vadd.f32 %v4443, %v4845
      %v4852 = vadd.f32 %v4447, %v4845
      %v4853 = vadd.f32 %v4453, %v4845
      %v4854 = vadd.f32 %v4457, %v4845
      %v4855 = vadd.f32 %v4463, %v4845
      %v4856 = vadd.f32 %v4467, %v4845
      %v4857 = vadd.f32 %v4473, %v4845
      %v4858 = vadd.f32 %v4477, %v4845
      %v4859 = vadd.f32 %v4483, %v4845
      %v4860 = vadd.f32 %v4487, %v4845
      %v4861 = vadd.f32 %v4493, %v4845
      %v4862 = vadd.f32 %v4497, %v4845
      %v4863 = vadd.f32 %v4503, %v4845
      %v4864 = vadd.f32 %v4507, %v4845
      %v4865 = vadd.f32 %v4513, %v4845
      %v4866 = vadd.f32 %v4517, %v4845
      %v4867 = vadd.f32 %v4523, %v4845
      %v4868 = vadd.f32 %v4527, %v4845
      %v4869 = vadd.f32 %v4533, %v4845
      %v4870 = vadd.f32 %v4537, %v4845
      %v4871 = vadd.f32 %v4543, %v4845
      %v4872 = vadd.f32 %v4547, %v4845
      %v4873 = vadd.f32 %v4553, %v4845
      %v4874 = vadd.f32 %v4557, %v4845
      %v4875 = vadd.f32 %v4563, %v4845
      %v4876 = vadd.f32 %v4567, %v4845
      %v4877 = vadd.f32 %v4573, %v4845
      %v4878 = vadd.f32 %v4577, %v4845
      %v4879 = vadd.f32 %v4583, %v4845
      %v4880 = vadd.f32 %v4587, %v4845
      %v4881 = vadd.f32 %v4593, %v4845
      %v4882 = vadd.f32 %v4597, %v4845
      %v4883 = vadd.f32 %v4603, %v4845
      %v4884 = vadd.f32 %v4607, %v4845
      %v4885 = vadd.f32 %v4613, %v4845
      %v4886 = vadd.f32 %v4617, %v4845
      %v4887 = vadd.f32 %v4623, %v4845
      %v4888 = vadd.f32 %v4627, %v4845
      %v4889 = vadd.f32 %v4633, %v4845
      %v4890 = vadd.f32 %v4637, %v4845
      %v4891 = vadd.f32 %v4643, %v4845
      %v4892 = vadd.f32 %v4647, %v4845
      %v4893 = vadd.f32 %v4653, %v4845
      %v4894 = vadd.f32 %v4657, %v4845
      %v4895 = vadd.f32 %v4663, %v4845
      %v4896 = vadd.f32 %v4667, %v4845
      %v4897 = vadd.f32 %v4673, %v4845
      %v4898 = vadd.f32 %v4677, %v4845
      %v4899 = vadd.f32 %v4683, %v4845
      %v4900 = vadd.f32 %v4687, %v4845
      %v4901 = vadd.f32 %v4693, %v4845
      %v4902 = vadd.f32 %v4697, %v4845
      %v4903 = vadd.f32 %v4703, %v4845
      %v4904 = vadd.f32 %v4707, %v4845
      %v4905 = vadd.f32 %v4713, %v4845
      %v4906 = vadd.f32 %v4717, %v4845
      %v4907 = vadd.f32 %v4723, %v4845
      %v4908 = vadd.f32 %v4727, %v4845
      %v4909 = vadd.f32 %v4733, %v4845
      %v4910 = vadd.f32 %v4737, %v4845
      %v4911 = vmax.f32 %v4847, 0.0
      %v4912 = vmax.f32 %v4848, 0.0
      %v4913 = vmax.f32 %v4849, 0.0
      %v4914 = vmax.f32 %v4850, 0.0
      %v4915 = vmax.f32 %v4851, 0.0
      %v4916 = vmax.f32 %v4852, 0.0
      %v4917 = vmax.f32 %v4853, 0.0
      %v4918 = vmax.f32 %v4854, 0.0
      %v4919 = vmax.f32 %v4855, 0.0
      %v4920 = vmax.f32 %v4856, 0.0
      %v4921 = vmax.f32 %v4857, 0.0
      %v4922 = vmax.f32 %v4858, 0.0
      %v4923 = vmax.f32 %v4859, 0.0
      %v4924 = vmax.f32 %v4860, 0.0
      %v4925 = vmax.f32 %v4861, 0.0
      %v4926 = vmax.f32 %v4862, 0.0
      %v4927 = vmax.f32 %v4863, 0.0
      %v4928 = vmax.f32 %v4864, 0.0
      %v4929 = vmax.f32 %v4865, 0.0
      %v4930 = vmax.f32 %v4866, 0.0
      %v4931 = vmax.f32 %v4867, 0.0
      %v4932 = vmax.f32 %v4868, 0.0
      %v4933 = vmax.f32 %v4869, 0.0
      %v4934 = vmax.f32 %v4870, 0.0
      %v4935 = vmax.f32 %v4871, 0.0
      %v4936 = vmax.f32 %v4872, 0.0
      %v4937 = vmax.f32 %v4873, 0.0
      %v4938 = vmax.f32 %v4874, 0.0
      %v4939 = vmax.f32 %v4875, 0.0
      %v4940 = vmax.f32 %v4876, 0.0
      %v4941 = vmax.f32 %v4877, 0.0
      %v4942 = vmax.f32 %v4878, 0.0
      %v4943 = vmax.f32 %v4879, 0.0
      %v4944 = vmax.f32 %v4880, 0.0
      %v4945 = vmax.f32 %v4881, 0.0
      %v4946 = vmax.f32 %v4882, 0.0
      %v4947 = vmax.f32 %v4883, 0.0
      %v4948 = vmax.f32 %v4884, 0.0
      %v4949 = vmax.f32 %v4885, 0.0
      %v4950 = vmax.f32 %v4886, 0.0
      %v4951 = vmax.f32 %v4887, 0.0
      %v4952 = vmax.f32 %v4888, 0.0
      %v4953 = vmax.f32 %v4889, 0.0
      %v4954 = vmax.f32 %v4890, 0.0
      %v4955 = vmax.f32 %v4891, 0.0
      %v4956 = vmax.f32 %v4892, 0.0
      %v4957 = vmax.f32 %v4893, 0.0
      %v4958 = vmax.f32 %v4894, 0.0
      %v4959 = vmax.f32 %v4895, 0.0
      %v4960 = vmax.f32 %v4896, 0.0
      %v4961 = vmax.f32 %v4897, 0.0
      %v4962 = vmax.f32 %v4898, 0.0
      %v4963 = vmax.f32 %v4899, 0.0
      %v4964 = vmax.f32 %v4900, 0.0
      %v4965 = vmax.f32 %v4901, 0.0
      %v4966 = vmax.f32 %v4902, 0.0
      %v4967 = vmax.f32 %v4903, 0.0
      %v4968 = vmax.f32 %v4904, 0.0
      %v4969 = vmax.f32 %v4905, 0.0
      %v4970 = vmax.f32 %v4906, 0.0
      %v4971 = vmax.f32 %v4907, 0.0
      %v4972 = vmax.f32 %v4908, 0.0
      %v4973 = vmax.f32 %v4909, 0.0
      %v4974 = vmax.f32 %v4910, 0.0
      %s4975 = scalar_lea.vmem %s2, 384
      %v4976 = vld [vmem:[%s4975] sm:$0xf]
      %v4977 = vld [vmem:[%s4975 + $0x4] sm:$0xf]
      %v4978 = vld [vmem:[%s4975 + $0x8] sm:$0xf]
      %v4979 = vld [vmem:[%s4975 + $0xc] sm:$0xf]
      %v4980 = vld [vmem:[%s4975 + $0x10] sm:$0xf]
      %v4981 = vld [vmem:[%s4975 + $0x14] sm:$0xf]
      %v4982 = vld [vmem:[%s4975 + $0x18] sm:$0xf]
      %v4983 = vld [vmem:[%s4975 + $0x1c] sm:$0xf]
      %v4984 = vld [vmem:[%s4975 + $0x20] sm:$0xf]
      %v4985 = vld [vmem:[%s4975 + $0x24] sm:$0xf]
      %v4986 = vld [vmem:[%s4975 + $0x28] sm:$0xf]
      %v4987 = vld [vmem:[%s4975 + $0x2c] sm:$0xf]
      %v4988 = vld [vmem:[%s4975 + $0x30] sm:$0xf]
      %v4989 = vld [vmem:[%s4975 + $0x34] sm:$0xf]
      %v4990 = vld [vmem:[%s4975 + $0x38] sm:$0xf]
      %v4991 = vld [vmem:[%s4975 + $0x3c] sm:$0xf]
      %v4992 = vld [vmem:[%s5] sm:$0xf]
      %v4993 = vld [vmem:[%s5 + $0x4] sm:$0xf]
      %v4994 = vld [vmem:[%s5 + $0x8] sm:$0xf]
      %v4995 = vld [vmem:[%s5 + $0xc] sm:$0xf]
      %v5060 = vunpack.c.l.b16 %v437
      %v5061 = vunpack.c.l.b16 %v438
      %v5062 = vunpack.c.l.b16 %v439
      %v5063 = vunpack.c.l.b16 %v440
      %v5064 = vunpack.c.l.b16 %v441
      %v5065 = vunpack.c.l.b16 %v442
      %v5066 = vunpack.c.l.b16 %v443
      %v5067 = vunpack.c.l.b16 %v444
      %v5068 = vunpack.c.l.b16 %v445
      %v5069 = vunpack.c.l.b16 %v446
      %v5070 = vunpack.c.l.b16 %v447
      %v5071 = vunpack.c.l.b16 %v448
      %v5072 = vunpack.c.l.b16 %v449
      %v5073 = vunpack.c.l.b16 %v450
      %v5074 = vunpack.c.l.b16 %v451
      %v5075 = vunpack.c.l.b16 %v452
      %v5076 = vunpack.c.l.b16 %v453
      %v5077 = vunpack.c.l.b16 %v454
      %v5078 = vunpack.c.l.b16 %v455
      %v5079 = vunpack.c.l.b16 %v456
      %v5080 = vunpack.c.l.b16 %v457
      %v5081 = vunpack.c.l.b16 %v458
      %v5082 = vunpack.c.l.b16 %v459
      %v5083 = vunpack.c.l.b16 %v460
      %v5084 = vunpack.c.l.b16 %v461
      %v5085 = vunpack.c.l.b16 %v462
      %v5086 = vunpack.c.l.b16 %v463
      %v5087 = vunpack.c.l.b16 %v464
      %v5088 = vunpack.c.l.b16 %v465
      %v5089 = vunpack.c.l.b16 %v466
      %v5090 = vunpack.c.l.b16 %v467
      %v5091 = vunpack.c.l.b16 %v468
      %v5092 = vunpack.c.l.b16 %v469
      %v5093 = vunpack.c.l.b16 %v470
      %v5094 = vunpack.c.l.b16 %v471
      %v5095 = vunpack.c.l.b16 %v472
      %v5096 = vunpack.c.l.b16 %v473
      %v5097 = vunpack.c.l.b16 %v474
      %v5098 = vunpack.c.l.b16 %v475
      %v5099 = vunpack.c.l.b16 %v476
      %v5100 = vunpack.c.l.b16 %v477
      %v5101 = vunpack.c.l.b16 %v478
      %v5102 = vunpack.c.l.b16 %v479
      %v5103 = vunpack.c.l.b16 %v480
      %v5104 = vunpack.c.l.b16 %v481
      %v5105 = vunpack.c.l.b16 %v482
      %v5106 = vunpack.c.l.b16 %v483
      %v5107 = vunpack.c.l.b16 %v484
      %v5108 = vunpack.c.l.b16 %v485
      %v5109 = vunpack.c.l.b16 %v486
      %v5110 = vunpack.c.l.b16 %v487
      %v5111 = vunpack.c.l.b16 %v488
      %v5112 = vunpack.c.l.b16 %v489
      %v5113 = vunpack.c.l.b16 %v490
      %v5114 = vunpack.c.l.b16 %v491
      %v5115 = vunpack.c.l.b16 %v492
      %v5116 = vunpack.c.l.b16 %v493
      %v5117 = vunpack.c.l.b16 %v494
      %v5118 = vunpack.c.l.b16 %v495
      %v5119 = vunpack.c.l.b16 %v496
      %v5120 = vunpack.c.l.b16 %v497
      %v5121 = vunpack.c.l.b16 %v498
      %v5122 = vunpack.c.l.b16 %v499
      %v5123 = vunpack.c.l.b16 %v500
      %v5124 = vpack.c.b16 %v5061, %v5060
      %v5125 = vpack.c.b16 %v5063, %v5062
      %v5126 = vpack.c.b16 %v5065, %v5064
      %v5127 = vpack.c.b16 %v5067, %v5066
      %v5128 = vpack.c.b16 %v5069, %v5068
      %v5129 = vpack.c.b16 %v5071, %v5070
      %v5130 = vpack.c.b16 %v5073, %v5072
      %v5131 = vpack.c.b16 %v5075, %v5074
      %v5132 = vpack.c.b16 %v5077, %v5076
      %v5133 = vpack.c.b16 %v5079, %v5078
      %v5134 = vpack.c.b16 %v5081, %v5080
      %v5135 = vpack.c.b16 %v5083, %v5082
      %v5136 = vpack.c.b16 %v5085, %v5084
      %v5137 = vpack.c.b16 %v5087, %v5086
      %v5138 = vpack.c.b16 %v5089, %v5088
      %v5139 = vpack.c.b16 %v5091, %v5090
      %v5140 = vpack.c.b16 %v5093, %v5092
      %v5141 = vpack.c.b16 %v5095, %v5094
      %v5142 = vpack.c.b16 %v5097, %v5096
      %v5143 = vpack.c.b16 %v5099, %v5098
      %v5144 = vpack.c.b16 %v5101, %v5100
      %v5145 = vpack.c.b16 %v5103, %v5102
      %v5146 = vpack.c.b16 %v5105, %v5104
      %v5147 = vpack.c.b16 %v5107, %v5106
      %v5148 = vpack.c.b16 %v5109, %v5108
      %v5149 = vpack.c.b16 %v5111, %v5110
      %v5150 = vpack.c.b16 %v5113, %v5112
      %v5151 = vpack.c.b16 %v5115, %v5114
      %v5152 = vpack.c.b16 %v5117, %v5116
      %v5153 = vpack.c.b16 %v5119, %v5118
      %v5154 = vpack.c.b16 %v5121, %v5120
      %v5155 = vpack.c.b16 %v5123, %v5122
      %v5160 = vunpack.c.l.b16 %v4992
      %v5161 = vunpack.c.l.b16 %v4993
      %v5162 = vunpack.c.l.b16 %v4994
      %v5163 = vunpack.c.l.b16 %v4995
      %v5164 = vpack.c.b16 %v5161, %v5160
      %v5165 = vpack.c.b16 %v5163, %v5162
      %vm5168 = vcmask 261120
      %v5170 = vsel %vm5168, %v5124, 0
      %v5173 = vsel %vm5168, %v5125, 0
      %v5176 = vsel %vm5168, %v5126, 0
      %v5179 = vsel %vm5168, %v5127, 0
      %v5182 = vsel %vm5168, %v5128, 0
      %v5185 = vsel %vm5168, %v5129, 0
      %v5188 = vsel %vm5168, %v5130, 0
      %v5191 = vsel %vm5168, %v5131, 0
      %v5194 = vsel %vm5168, %v5132, 0
      %v5197 = vsel %vm5168, %v5133, 0
      %v5200 = vsel %vm5168, %v5134, 0
      %v5203 = vsel %vm5168, %v5135, 0
      %v5206 = vsel %vm5168, %v5136, 0
      %v5209 = vsel %vm5168, %v5137, 0
      %v5212 = vsel %vm5168, %v5138, 0
      %v5215 = vsel %vm5168, %v5139, 0
      %v5218 = vsel %vm5168, %v5140, 0
      %v5221 = vsel %vm5168, %v5141, 0
      %v5224 = vsel %vm5168, %v5142, 0
      %v5227 = vsel %vm5168, %v5143, 0
      %v5230 = vsel %vm5168, %v5144, 0
      %v5233 = vsel %vm5168, %v5145, 0
      %v5236 = vsel %vm5168, %v5146, 0
      %v5239 = vsel %vm5168, %v5147, 0
      %v5242 = vsel %vm5168, %v5148, 0
      %v5245 = vsel %vm5168, %v5149, 0
      %v5248 = vsel %vm5168, %v5150, 0
      %v5251 = vsel %vm5168, %v5151, 0
      %v5254 = vsel %vm5168, %v5152, 0
      %v5257 = vsel %vm5168, %v5153, 0
      %v5260 = vsel %vm5168, %v5154, 0
      %v5263 = vsel %vm5168, %v5155, 0
      %5265 = vmatprep.subr.bf16.mxu0 0
      %5266 = vmatpush1.bf16.msra.mxu0 %v5164
      %5267 = vmatprep.subr.bf16.mxu0 0
      %5268 = vmatpush1.bf16.msra.mxu0 %v5165
      %5269 = vmatprep.subr.bf16.mxu0 0
      %5270 = vmatpush1.bf16.msra.mxu0 0
      %5271 = vmatprep.subr.bf16.mxu0 0
      %5272 = vmatpush1.bf16.msra.mxu0 0
      %5273 = vmatprep.subr.bf16.mxu0 0
      %5274 = vmatpush1.bf16.msra.mxu0 0
      %5275 = vmatprep.subr.bf16.mxu0 0
      %5276 = vmatpush1.bf16.msra.mxu0 0
      %5277 = vmatprep.subr.bf16.mxu0 0
      %5278 = vmatpush1.bf16.msra.mxu0 0
      %5279 = vmatprep.subr.bf16.mxu0 0
      %5280 = vmatpush1.bf16.msra.mxu0 0
      %5281 = vmatprep.subr.bf16.mxu0 0
      %5282 = vmatpush1.bf16.msra.mxu0 0
      %5283 = vmatprep.subr.bf16.mxu0 0
      %5284 = vmatpush1.bf16.msra.mxu0 0
      %5285 = vmatprep.subr.bf16.mxu0 0
      %5286 = vmatpush1.bf16.msra.mxu0 0
      %5287 = vmatprep.subr.bf16.mxu0 0
      %5288 = vmatpush1.bf16.msra.mxu0 0
      %5289 = vmatprep.subr.bf16.mxu0 0
      %5290 = vmatpush1.bf16.msra.mxu0 0
      %5291 = vmatprep.subr.bf16.mxu0 0
      %5292 = vmatpush1.bf16.msra.mxu0 0
      %5293 = vmatprep.subr.bf16.mxu0 0
      %5294 = vmatpush1.bf16.msra.mxu0 0
      %5295 = vmatprep.subr.bf16.mxu0 0
      %5296 = vmatpush1.bf16.msra.mxu0 0
      %5297 = vmatprep.mubr.bf16.mxu0 0
      %5298 = vmatmul.mubr.bf16.gmra.mrb[0].mxu0 %v5170
      %v5299 = vpop.f32.mrb[0].mxu0
      %v5300 = vadd.f32 0.0, %v5299
      %v5301 = vpop.f32.mrb[0].mxu0
      %v5302 = vpop.f32.mrb[0].mxu0
      %v5303 = vadd.f32 0.0, %v5302
      %v5304 = vpop.f32.mrb[0].mxu0
      %5305 = vmatprep.mubr.bf16.mxu0 0
      %5306 = vmatmul.mubr.bf16.gmra.mrb[0].mxu0 %v5173
      %v5307 = vpop.f32.mrb[0].mxu0
      %v5308 = vadd.f32 0.0, %v5307
      %v5309 = vpop.f32.mrb[0].mxu0
      %v5310 = vpop.f32.mrb[0].mxu0
      %v5311 = vadd.f32 0.0, %v5310
      %v5312 = vpop.f32.mrb[0].mxu0
      %5313 = vmatprep.mubr.bf16.mxu0 0
      %5314 = vmatmul.mubr.bf16.gmra.mrb[0].mxu0 %v5176
      %v5315 = vpop.f32.mrb[0].mxu0
      %v5316 = vadd.f32 0.0, %v5315
      %v5317 = vpop.f32.mrb[0].mxu0
      %v5318 = vpop.f32.mrb[0].mxu0
      %v5319 = vadd.f32 0.0, %v5318
      %v5320 = vpop.f32.mrb[0].mxu0
      %5321 = vmatprep.mubr.bf16.mxu0 0
      %5322 = vmatmul.mubr.bf16.gmra.mrb[0].mxu0 %v5179
      %v5323 = vpop.f32.mrb[0].mxu0
      %v5324 = vadd.f32 0.0, %v5323
      %v5325 = vpop.f32.mrb[0].mxu0
      %v5326 = vpop.f32.mrb[0].mxu0
      %v5327 = vadd.f32 0.0, %v5326
      %v5328 = vpop.f32.mrb[0].mxu0
      %5329 = vmatprep.mubr.bf16.mxu0 0
      %5330 = vmatmul.mubr.bf16.gmra.mrb[0].mxu0 %v5182
      %v5331 = vpop.f32.mrb[0].mxu0
      %v5332 = vadd.f32 0.0, %v5331
      %v5333 = vpop.f32.mrb[0].mxu0
      %v5334 = vpop.f32.mrb[0].mxu0
      %v5335 = vadd.f32 0.0, %v5334
      %v5336 = vpop.f32.mrb[0].mxu0
      %5337 = vmatprep.mubr.bf16.mxu0 0
      %5338 = vmatmul.mubr.bf16.gmra.mrb[0].mxu0 %v5185
      %v5339 = vpop.f32.mrb[0].mxu0
      %v5340 = vadd.f32 0.0, %v5339
      %v5341 = vpop.f32.mrb[0].mxu0
      %v5342 = vpop.f32.mrb[0].mxu0
      %v5343 = vadd.f32 0.0, %v5342
      %v5344 = vpop.f32.mrb[0].mxu0
      %5345 = vmatprep.mubr.bf16.mxu0 0
      %5346 = vmatmul.mubr.bf16.gmra.mrb[0].mxu0 %v5188
      %v5347 = vpop.f32.mrb[0].mxu0
      %v5348 = vadd.f32 0.0, %v5347
      %v5349 = vpop.f32.mrb[0].mxu0
      %v5350 = vpop.f32.mrb[0].mxu0
      %v5351 = vadd.f32 0.0, %v5350
      %v5352 = vpop.f32.mrb[0].mxu0
      %5353 = vmatprep.mubr.bf16.mxu0 0
      %5354 = vmatmul.mubr.bf16.gmra.mrb[0].mxu0 %v5191
      %v5355 = vpop.f32.mrb[0].mxu0
      %v5356 = vadd.f32 0.0, %v5355
      %v5357 = vpop.f32.mrb[0].mxu0
      %v5358 = vpop.f32.mrb[0].mxu0
      %v5359 = vadd.f32 0.0, %v5358
      %v5360 = vpop.f32.mrb[0].mxu0
      %5361 = vmatprep.mubr.bf16.mxu0 0
      %5362 = vmatmul.mubr.bf16.gmra.mrb[0].mxu0 %v5194
      %v5363 = vpop.f32.mrb[0].mxu0
      %v5364 = vadd.f32 0.0, %v5363
      %v5365 = vpop.f32.mrb[0].mxu0
      %v5366 = vpop.f32.mrb[0].mxu0
      %v5367 = vadd.f32 0.0, %v5366
      %v5368 = vpop.f32.mrb[0].mxu0
      %5369 = vmatprep.mubr.bf16.mxu0 0
      %5370 = vmatmul.mubr.bf16.gmra.mrb[0].mxu0 %v5197
      %v5371 = vpop.f32.mrb[0].mxu0
      %v5372 = vadd.f32 0.0, %v5371
      %v5373 = vpop.f32.mrb[0].mxu0
      %v5374 = vpop.f32.mrb[0].mxu0
      %v5375 = vadd.f32 0.0, %v5374
      %v5376 = vpop.f32.mrb[0].mxu0
      %5377 = vmatprep.mubr.bf16.mxu0 0
      %5378 = vmatmul.mubr.bf16.gmra.mrb[0].mxu0 %v5200
      %v5379 = vpop.f32.mrb[0].mxu0
      %v5380 = vadd.f32 0.0, %v5379
      %v5381 = vpop.f32.mrb[0].mxu0
      %v5382 = vpop.f32.mrb[0].mxu0
      %v5383 = vadd.f32 0.0, %v5382
      %v5384 = vpop.f32.mrb[0].mxu0
      %5385 = vmatprep.mubr.bf16.mxu0 0
      %5386 = vmatmul.mubr.bf16.gmra.mrb[0].mxu0 %v5203
      %v5387 = vpop.f32.mrb[0].mxu0
      %v5388 = vadd.f32 0.0, %v5387
      %v5389 = vpop.f32.mrb[0].mxu0
      %v5390 = vpop.f32.mrb[0].mxu0
      %v5391 = vadd.f32 0.0, %v5390
      %v5392 = vpop.f32.mrb[0].mxu0
      %5393 = vmatprep.mubr.bf16.mxu0 0
      %5394 = vmatmul.mubr.bf16.gmra.mrb[0].mxu0 %v5206
      %v5395 = vpop.f32.mrb[0].mxu0
      %v5396 = vadd.f32 0.0, %v5395
      %v5397 = vpop.f32.mrb[0].mxu0
      %v5398 = vpop.f32.mrb[0].mxu0
      %v5399 = vadd.f32 0.0, %v5398
      %v5400 = vpop.f32.mrb[0].mxu0
      %5401 = vmatprep.mubr.bf16.mxu0 0
      %5402 = vmatmul.mubr.bf16.gmra.mrb[0].mxu0 %v5209
      %v5403 = vpop.f32.mrb[0].mxu0
      %v5404 = vadd.f32 0.0, %v5403
      %v5405 = vpop.f32.mrb[0].mxu0
      %v5406 = vpop.f32.mrb[0].mxu0
      %v5407 = vadd.f32 0.0, %v5406
      %v5408 = vpop.f32.mrb[0].mxu0
      %5409 = vmatprep.mubr.bf16.mxu0 0
      %5410 = vmatmul.mubr.bf16.gmra.mrb[0].mxu0 %v5212
      %v5411 = vpop.f32.mrb[0].mxu0
      %v5412 = vadd.f32 0.0, %v5411
      %v5413 = vpop.f32.mrb[0].mxu0
      %v5414 = vpop.f32.mrb[0].mxu0
      %v5415 = vadd.f32 0.0, %v5414
      %v5416 = vpop.f32.mrb[0].mxu0
      %5417 = vmatprep.mubr.bf16.mxu0 0
      %5418 = vmatmul.mubr.bf16.gmra.mrb[0].mxu0 %v5215
      %v5419 = vpop.f32.mrb[0].mxu0
      %v5420 = vadd.f32 0.0, %v5419
      %v5421 = vpop.f32.mrb[0].mxu0
      %v5422 = vpop.f32.mrb[0].mxu0
      %v5423 = vadd.f32 0.0, %v5422
      %v5424 = vpop.f32.mrb[0].mxu0
      %5425 = vmatprep.mubr.bf16.mxu0 0
      %5426 = vmatmul.mubr.bf16.gmra.mrb[0].mxu0 %v5218
      %v5427 = vpop.f32.mrb[0].mxu0
      %v5428 = vadd.f32 0.0, %v5427
      %v5429 = vpop.f32.mrb[0].mxu0
      %v5430 = vpop.f32.mrb[0].mxu0
      %v5431 = vadd.f32 0.0, %v5430
      %v5432 = vpop.f32.mrb[0].mxu0
      %5433 = vmatprep.mubr.bf16.mxu0 0
      %5434 = vmatmul.mubr.bf16.gmra.mrb[0].mxu0 %v5221
      %v5435 = vpop.f32.mrb[0].mxu0
      %v5436 = vadd.f32 0.0, %v5435
      %v5437 = vpop.f32.mrb[0].mxu0
      %v5438 = vpop.f32.mrb[0].mxu0
      %v5439 = vadd.f32 0.0, %v5438
      %v5440 = vpop.f32.mrb[0].mxu0
      %5441 = vmatprep.mubr.bf16.mxu0 0
      %5442 = vmatmul.mubr.bf16.gmra.mrb[0].mxu0 %v5224
      %v5443 = vpop.f32.mrb[0].mxu0
      %v5444 = vadd.f32 0.0, %v5443
      %v5445 = vpop.f32.mrb[0].mxu0
      %v5446 = vpop.f32.mrb[0].mxu0
      %v5447 = vadd.f32 0.0, %v5446
      %v5448 = vpop.f32.mrb[0].mxu0
      %5449 = vmatprep.mubr.bf16.mxu0 0
      %5450 = vmatmul.mubr.bf16.gmra.mrb[0].mxu0 %v5227
      %v5451 = vpop.f32.mrb[0].mxu0
      %v5452 = vadd.f32 0.0, %v5451
      %v5453 = vpop.f32.mrb[0].mxu0
      %v5454 = vpop.f32.mrb[0].mxu0
      %v5455 = vadd.f32 0.0, %v5454
      %v5456 = vpop.f32.mrb[0].mxu0
      %5457 = vmatprep.mubr.bf16.mxu0 0
      %5458 = vmatmul.mubr.bf16.gmra.mrb[0].mxu0 %v5230
      %v5459 = vpop.f32.mrb[0].mxu0
      %v5460 = vadd.f32 0.0, %v5459
      %v5461 = vpop.f32.mrb[0].mxu0
      %v5462 = vpop.f32.mrb[0].mxu0
      %v5463 = vadd.f32 0.0, %v5462
      %v5464 = vpop.f32.mrb[0].mxu0
      %5465 = vmatprep.mubr.bf16.mxu0 0
      %5466 = vmatmul.mubr.bf16.gmra.mrb[0].mxu0 %v5233
      %v5467 = vpop.f32.mrb[0].mxu0
      %v5468 = vadd.f32 0.0, %v5467
      %v5469 = vpop.f32.mrb[0].mxu0
      %v5470 = vpop.f32.mrb[0].mxu0
      %v5471 = vadd.f32 0.0, %v5470
      %v5472 = vpop.f32.mrb[0].mxu0
      %5473 = vmatprep.mubr.bf16.mxu0 0
      %5474 = vmatmul.mubr.bf16.gmra.mrb[0].mxu0 %v5236
      %v5475 = vpop.f32.mrb[0].mxu0
      %v5476 = vadd.f32 0.0, %v5475
      %v5477 = vpop.f32.mrb[0].mxu0
      %v5478 = vpop.f32.mrb[0].mxu0
      %v5479 = vadd.f32 0.0, %v5478
      %v5480 = vpop.f32.mrb[0].mxu0
      %5481 = vmatprep.mubr.bf16.mxu0 0
      %5482 = vmatmul.mubr.bf16.gmra.mrb[0].mxu0 %v5239
      %v5483 = vpop.f32.mrb[0].mxu0
      %v5484 = vadd.f32 0.0, %v5483
      %v5485 = vpop.f32.mrb[0].mxu0
      %v5486 = vpop.f32.mrb[0].mxu0
      %v5487 = vadd.f32 0.0, %v5486
      %v5488 = vpop.f32.mrb[0].mxu0
      %5489 = vmatprep.mubr.bf16.mxu0 0
      %5490 = vmatmul.mubr.bf16.gmra.mrb[0].mxu0 %v5242
      %v5491 = vpop.f32.mrb[0].mxu0
      %v5492 = vadd.f32 0.0, %v5491
      %v5493 = vpop.f32.mrb[0].mxu0
      %v5494 = vpop.f32.mrb[0].mxu0
      %v5495 = vadd.f32 0.0, %v5494
      %v5496 = vpop.f32.mrb[0].mxu0
      %5497 = vmatprep.mubr.bf16.mxu0 0
      %5498 = vmatmul.mubr.bf16.gmra.mrb[0].mxu0 %v5245
      %v5499 = vpop.f32.mrb[0].mxu0
      %v5500 = vadd.f32 0.0, %v5499
      %v5501 = vpop.f32.mrb[0].mxu0
      %v5502 = vpop.f32.mrb[0].mxu0
      %v5503 = vadd.f32 0.0, %v5502
      %v5504 = vpop.f32.mrb[0].mxu0
      %5505 = vmatprep.mubr.bf16.mxu0 0
      %5506 = vmatmul.mubr.bf16.gmra.mrb[0].mxu0 %v5248
      %v5507 = vpop.f32.mrb[0].mxu0
      %v5508 = vadd.f32 0.0, %v5507
      %v5509 = vpop.f32.mrb[0].mxu0
      %v5510 = vpop.f32.mrb[0].mxu0
      %v5511 = vadd.f32 0.0, %v5510
      %v5512 = vpop.f32.mrb[0].mxu0
      %5513 = vmatprep.mubr.bf16.mxu0 0
      %5514 = vmatmul.mubr.bf16.gmra.mrb[0].mxu0 %v5251
      %v5515 = vpop.f32.mrb[0].mxu0
      %v5516 = vadd.f32 0.0, %v5515
      %v5517 = vpop.f32.mrb[0].mxu0
      %v5518 = vpop.f32.mrb[0].mxu0
      %v5519 = vadd.f32 0.0, %v5518
      %v5520 = vpop.f32.mrb[0].mxu0
      %5521 = vmatprep.mubr.bf16.mxu0 0
      %5522 = vmatmul.mubr.bf16.gmra.mrb[0].mxu0 %v5254
      %v5523 = vpop.f32.mrb[0].mxu0
      %v5524 = vadd.f32 0.0, %v5523
      %v5525 = vpop.f32.mrb[0].mxu0
      %v5526 = vpop.f32.mrb[0].mxu0
      %v5527 = vadd.f32 0.0, %v5526
      %v5528 = vpop.f32.mrb[0].mxu0
      %5529 = vmatprep.mubr.bf16.mxu0 0
      %5530 = vmatmul.mubr.bf16.gmra.mrb[0].mxu0 %v5257
      %v5531 = vpop.f32.mrb[0].mxu0
      %v5532 = vadd.f32 0.0, %v5531
      %v5533 = vpop.f32.mrb[0].mxu0
      %v5534 = vpop.f32.mrb[0].mxu0
      %v5535 = vadd.f32 0.0, %v5534
      %v5536 = vpop.f32.mrb[0].mxu0
      %5537 = vmatprep.mubr.bf16.mxu0 0
      %5538 = vmatmul.mubr.bf16.gmra.mrb[0].mxu0 %v5260
      %v5539 = vpop.f32.mrb[0].mxu0
      %v5540 = vadd.f32 0.0, %v5539
      %v5541 = vpop.f32.mrb[0].mxu0
      %v5542 = vpop.f32.mrb[0].mxu0
      %v5543 = vadd.f32 0.0, %v5542
      %v5544 = vpop.f32.mrb[0].mxu0
      %5545 = vmatprep.mubr.bf16.mxu0 0
      %5546 = vmatmul.mubr.bf16.gmra.mrb[0].mxu0 %v5263
      %v5547 = vpop.f32.mrb[0].mxu0
      %v5548 = vadd.f32 0.0, %v5547
      %v5549 = vpop.f32.mrb[0].mxu0
      %v5550 = vpop.f32.mrb[0].mxu0
      %v5551 = vadd.f32 0.0, %v5550
      %v5552 = vpop.f32.mrb[0].mxu0
      %5553 = vdwg.mxu0
      %v5570 = vunpack.c.l.b16 %v4976
      %v5571 = vunpack.c.l.b16 %v4977
      %v5572 = vunpack.c.l.b16 %v4978
      %v5573 = vunpack.c.l.b16 %v4979
      %v5574 = vunpack.c.l.b16 %v4980
      %v5575 = vunpack.c.l.b16 %v4981
      %v5576 = vunpack.c.l.b16 %v4982
      %v5577 = vunpack.c.l.b16 %v4983
      %v5578 = vunpack.c.l.b16 %v4984
      %v5579 = vunpack.c.l.b16 %v4985
      %v5580 = vunpack.c.l.b16 %v4986
      %v5581 = vunpack.c.l.b16 %v4987
      %v5582 = vunpack.c.l.b16 %v4988
      %v5583 = vunpack.c.l.b16 %v4989
      %v5584 = vunpack.c.l.b16 %v4990
      %v5585 = vunpack.c.l.b16 %v4991
      %v5586 = vpack.c.b16 %v5571, %v5570
      %v5587 = vpack.c.b16 %v5573, %v5572
      %v5588 = vpack.c.b16 %v5575, %v5574
      %v5589 = vpack.c.b16 %v5577, %v5576
      %v5590 = vpack.c.b16 %v5579, %v5578
      %v5591 = vpack.c.b16 %v5581, %v5580
      %v5592 = vpack.c.b16 %v5583, %v5582
      %v5593 = vpack.c.b16 %v5585, %v5584
      %5602 = vmatprep.subr.bf16.mxu0 0
      %5603 = vmatpush1.bf16.msra.mxu0 %v5586
      %5604 = vmatprep.subr.bf16.mxu0 0
      %5605 = vmatpush1.bf16.msra.mxu0 %v5587
      %5606 = vmatprep.subr.bf16.mxu0 0
      %5607 = vmatpush1.bf16.msra.mxu0 %v5588
      %5608 = vmatprep.subr.bf16.mxu0 0
      %5609 = vmatpush1.bf16.msra.mxu0 %v5589
      %5610 = vmatprep.subr.bf16.mxu0 0
      %5611 = vmatpush1.bf16.msra.mxu0 %v5590
      %5612 = vmatprep.subr.bf16.mxu0 0
      %5613 = vmatpush1.bf16.msra.mxu0 %v5591
      %5614 = vmatprep.subr.bf16.mxu0 0
      %5615 = vmatpush1.bf16.msra.mxu0 %v5592
      %5616 = vmatprep.subr.bf16.mxu0 0
      %5617 = vmatpush1.bf16.msra.mxu0 %v5593
      %5618 = vmatprep.subr.bf16.mxu0 0
      %5619 = vmatpush1.bf16.msra.mxu0 0
      %5620 = vmatprep.subr.bf16.mxu0 0
      %5621 = vmatpush1.bf16.msra.mxu0 0
      %5622 = vmatprep.subr.bf16.mxu0 0
      %5623 = vmatpush1.bf16.msra.mxu0 0
      %5624 = vmatprep.subr.bf16.mxu0 0
      %5625 = vmatpush1.bf16.msra.mxu0 0
      %5626 = vmatprep.subr.bf16.mxu0 0
      %5627 = vmatpush1.bf16.msra.mxu0 0
      %5628 = vmatprep.subr.bf16.mxu0 0
      %5629 = vmatpush1.bf16.msra.mxu0 0
      %5630 = vmatprep.subr.bf16.mxu0 0
      %5631 = vmatpush1.bf16.msra.mxu0 0
      %5632 = vmatprep.subr.bf16.mxu0 0
      %5633 = vmatpush1.bf16.msra.mxu0 0
      %5634 = vmatprep.mubr.bf16.mxu0 0
      %5635 = vmatmul.mubr.bf16.gmra.mrb[0].mxu0 %v4807
      %v5636 = vpop.f32.mrb[0].mxu0
      %v5637 = vadd.f32 %v5300, %v5636
      %v5638 = vpop.f32.mrb[0].mxu0
      %v5639 = vpop.f32.mrb[0].mxu0
      %v5640 = vadd.f32 %v5303, %v5639
      %v5641 = vpop.f32.mrb[0].mxu0
      %5642 = vmatprep.mubr.bf16.mxu0 0
      %5643 = vmatmul.mubr.bf16.gmra.mrb[0].mxu0 %v4808
      %v5644 = vpop.f32.mrb[0].mxu0
      %v5645 = vadd.f32 %v5308, %v5644
      %v5646 = vpop.f32.mrb[0].mxu0
      %v5647 = vpop.f32.mrb[0].mxu0
      %v5648 = vadd.f32 %v5311, %v5647
      %v5649 = vpop.f32.mrb[0].mxu0
      %5650 = vmatprep.mubr.bf16.mxu0 0
      %5651 = vmatmul.mubr.bf16.gmra.mrb[0].mxu0 %v4809
      %v5652 = vpop.f32.mrb[0].mxu0
      %v5653 = vadd.f32 %v5316, %v5652
      %v5654 = vpop.f32.mrb[0].mxu0
      %v5655 = vpop.f32.mrb[0].mxu0
      %v5656 = vadd.f32 %v5319, %v5655
      %v5657 = vpop.f32.mrb[0].mxu0
      %5658 = vmatprep.mubr.bf16.mxu0 0
      %5659 = vmatmul.mubr.bf16.gmra.mrb[0].mxu0 %v4810
      %v5660 = vpop.f32.mrb[0].mxu0
      %v5661 = vadd.f32 %v5324, %v5660
      %v5662 = vpop.f32.mrb[0].mxu0
      %v5663 = vpop.f32.mrb[0].mxu0
      %v5664 = vadd.f32 %v5327, %v5663
      %v5665 = vpop.f32.mrb[0].mxu0
      %5666 = vmatprep.mubr.bf16.mxu0 0
      %5667 = vmatmul.mubr.bf16.gmra.mrb[0].mxu0 %v4811
      %v5668 = vpop.f32.mrb[0].mxu0
      %v5669 = vadd.f32 %v5332, %v5668
      %v5670 = vpop.f32.mrb[0].mxu0
      %v5671 = vpop.f32.mrb[0].mxu0
      %v5672 = vadd.f32 %v5335, %v5671
      %v5673 = vpop.f32.mrb[0].mxu0
      %5674 = vmatprep.mubr.bf16.mxu0 0
      %5675 = vmatmul.mubr.bf16.gmra.mrb[0].mxu0 %v4812
      %v5676 = vpop.f32.mrb[0].mxu0
      %v5677 = vadd.f32 %v5340, %v5676
      %v5678 = vpop.f32.mrb[0].mxu0
      %v5679 = vpop.f32.mrb[0].mxu0
      %v5680 = vadd.f32 %v5343, %v5679
      %v5681 = vpop.f32.mrb[0].mxu0
      %5682 = vmatprep.mubr.bf16.mxu0 0
      %5683 = vmatmul.mubr.bf16.gmra.mrb[0].mxu0 %v4813
      %v5684 = vpop.f32.mrb[0].mxu0
      %v5685 = vadd.f32 %v5348, %v5684
      %v5686 = vpop.f32.mrb[0].mxu0
      %v5687 = vpop.f32.mrb[0].mxu0
      %v5688 = vadd.f32 %v5351, %v5687
      %v5689 = vpop.f32.mrb[0].mxu0
      %5690 = vmatprep.mubr.bf16.mxu0 0
      %5691 = vmatmul.mubr.bf16.gmra.mrb[0].mxu0 %v4814
      %v5692 = vpop.f32.mrb[0].mxu0
      %v5693 = vadd.f32 %v5356, %v5692
      %v5694 = vpop.f32.mrb[0].mxu0
      %v5695 = vpop.f32.mrb[0].mxu0
      %v5696 = vadd.f32 %v5359, %v5695
      %v5697 = vpop.f32.mrb[0].mxu0
      %5698 = vmatprep.mubr.bf16.mxu0 0
      %5699 = vmatmul.mubr.bf16.gmra.mrb[0].mxu0 %v4815
      %v5700 = vpop.f32.mrb[0].mxu0
      %v5701 = vadd.f32 %v5364, %v5700
      %v5702 = vpop.f32.mrb[0].mxu0
      %v5703 = vpop.f32.mrb[0].mxu0
      %v5704 = vadd.f32 %v5367, %v5703
      %v5705 = vpop.f32.mrb[0].mxu0
      %5706 = vmatprep.mubr.bf16.mxu0 0
      %5707 = vmatmul.mubr.bf16.gmra.mrb[0].mxu0 %v4816
      %v5708 = vpop.f32.mrb[0].mxu0
      %v5709 = vadd.f32 %v5372, %v5708
      %v5710 = vpop.f32.mrb[0].mxu0
      %v5711 = vpop.f32.mrb[0].mxu0
      %v5712 = vadd.f32 %v5375, %v5711
      %v5713 = vpop.f32.mrb[0].mxu0
      %5714 = vmatprep.mubr.bf16.mxu0 0
      %5715 = vmatmul.mubr.bf16.gmra.mrb[0].mxu0 %v4817
      %v5716 = vpop.f32.mrb[0].mxu0
      %v5717 = vadd.f32 %v5380, %v5716
      %v5718 = vpop.f32.mrb[0].mxu0
      %v5719 = vpop.f32.mrb[0].mxu0
      %v5720 = vadd.f32 %v5383, %v5719
      %v5721 = vpop.f32.mrb[0].mxu0
      %5722 = vmatprep.mubr.bf16.mxu0 0
      %5723 = vmatmul.mubr.bf16.gmra.mrb[0].mxu0 %v4818
      %v5724 = vpop.f32.mrb[0].mxu0
      %v5725 = vadd.f32 %v5388, %v5724
      %v5726 = vpop.f32.mrb[0].mxu0
      %v5727 = vpop.f32.mrb[0].mxu0
      %v5728 = vadd.f32 %v5391, %v5727
      %v5729 = vpop.f32.mrb[0].mxu0
      %5730 = vmatprep.mubr.bf16.mxu0 0
      %5731 = vmatmul.mubr.bf16.gmra.mrb[0].mxu0 %v4819
      %v5732 = vpop.f32.mrb[0].mxu0
      %v5733 = vadd.f32 %v5396, %v5732
      %v5734 = vpop.f32.mrb[0].mxu0
      %v5735 = vpop.f32.mrb[0].mxu0
      %v5736 = vadd.f32 %v5399, %v5735
      %v5737 = vpop.f32.mrb[0].mxu0
      %5738 = vmatprep.mubr.bf16.mxu0 0
      %5739 = vmatmul.mubr.bf16.gmra.mrb[0].mxu0 %v4820
      %v5740 = vpop.f32.mrb[0].mxu0
      %v5741 = vadd.f32 %v5404, %v5740
      %v5742 = vpop.f32.mrb[0].mxu0
      %v5743 = vpop.f32.mrb[0].mxu0
      %v5744 = vadd.f32 %v5407, %v5743
      %v5745 = vpop.f32.mrb[0].mxu0
      %5746 = vmatprep.mubr.bf16.mxu0 0
      %5747 = vmatmul.mubr.bf16.gmra.mrb[0].mxu0 %v4821
      %v5748 = vpop.f32.mrb[0].mxu0
      %v5749 = vadd.f32 %v5412, %v5748
      %v5750 = vpop.f32.mrb[0].mxu0
      %v5751 = vpop.f32.mrb[0].mxu0
      %v5752 = vadd.f32 %v5415, %v5751
      %v5753 = vpop.f32.mrb[0].mxu0
      %5754 = vmatprep.mubr.bf16.mxu0 0
      %5755 = vmatmul.mubr.bf16.gmra.mrb[0].mxu0 %v4822
      %v5756 = vpop.f32.mrb[0].mxu0
      %v5757 = vadd.f32 %v5420, %v5756
      %v5758 = vpop.f32.mrb[0].mxu0
      %v5759 = vpop.f32.mrb[0].mxu0
      %v5760 = vadd.f32 %v5423, %v5759
      %v5761 = vpop.f32.mrb[0].mxu0
      %5762 = vmatprep.mubr.bf16.mxu0 0
      %5763 = vmatmul.mubr.bf16.gmra.mrb[0].mxu0 %v4823
      %v5764 = vpop.f32.mrb[0].mxu0
      %v5765 = vadd.f32 %v5428, %v5764
      %v5766 = vpop.f32.mrb[0].mxu0
      %v5767 = vpop.f32.mrb[0].mxu0
      %v5768 = vadd.f32 %v5431, %v5767
      %v5769 = vpop.f32.mrb[0].mxu0
      %5770 = vmatprep.mubr.bf16.mxu0 0
      %5771 = vmatmul.mubr.bf16.gmra.mrb[0].mxu0 %v4824
      %v5772 = vpop.f32.mrb[0].mxu0
      %v5773 = vadd.f32 %v5436, %v5772
      %v5774 = vpop.f32.mrb[0].mxu0
      %v5775 = vpop.f32.mrb[0].mxu0
      %v5776 = vadd.f32 %v5439, %v5775
      %v5777 = vpop.f32.mrb[0].mxu0
      %5778 = vmatprep.mubr.bf16.mxu0 0
      %5779 = vmatmul.mubr.bf16.gmra.mrb[0].mxu0 %v4825
      %v5780 = vpop.f32.mrb[0].mxu0
      %v5781 = vadd.f32 %v5444, %v5780
      %v5782 = vpop.f32.mrb[0].mxu0
      %v5783 = vpop.f32.mrb[0].mxu0
      %v5784 = vadd.f32 %v5447, %v5783
      %v5785 = vpop.f32.mrb[0].mxu0
      %5786 = vmatprep.mubr.bf16.mxu0 0
      %5787 = vmatmul.mubr.bf16.gmra.mrb[0].mxu0 %v4826
      %v5788 = vpop.f32.mrb[0].mxu0
      %v5789 = vadd.f32 %v5452, %v5788
      %v5790 = vpop.f32.mrb[0].mxu0
      %v5791 = vpop.f32.mrb[0].mxu0
      %v5792 = vadd.f32 %v5455, %v5791
      %v5793 = vpop.f32.mrb[0].mxu0
      %5794 = vmatprep.mubr.bf16.mxu0 0
      %5795 = vmatmul.mubr.bf16.gmra.mrb[0].mxu0 %v4827
      %v5796 = vpop.f32.mrb[0].mxu0
      %v5797 = vadd.f32 %v5460, %v5796
      %v5798 = vpop.f32.mrb[0].mxu0
      %v5799 = vpop.f32.mrb[0].mxu0
      %v5800 = vadd.f32 %v5463, %v5799
      %v5801 = vpop.f32.mrb[0].mxu0
      %5802 = vmatprep.mubr.bf16.mxu0 0
      %5803 = vmatmul.mubr.bf16.gmra.mrb[0].mxu0 %v4828
      %v5804 = vpop.f32.mrb[0].mxu0
      %v5805 = vadd.f32 %v5468, %v5804
      %v5806 = vpop.f32.mrb[0].mxu0
      %v5807 = vpop.f32.mrb[0].mxu0
      %v5808 = vadd.f32 %v5471, %v5807
      %v5809 = vpop.f32.mrb[0].mxu0
      %5810 = vmatprep.mubr.bf16.mxu0 0
      %5811 = vmatmul.mubr.bf16.gmra.mrb[0].mxu0 %v4829
      %v5812 = vpop.f32.mrb[0].mxu0
      %v5813 = vadd.f32 %v5476, %v5812
      %v5814 = vpop.f32.mrb[0].mxu0
      %v5815 = vpop.f32.mrb[0].mxu0
      %v5816 = vadd.f32 %v5479, %v5815
      %v5817 = vpop.f32.mrb[0].mxu0
      %5818 = vmatprep.mubr.bf16.mxu0 0
      %5819 = vmatmul.mubr.bf16.gmra.mrb[0].mxu0 %v4830
      %v5820 = vpop.f32.mrb[0].mxu0
      %v5821 = vadd.f32 %v5484, %v5820
      %v5822 = vpop.f32.mrb[0].mxu0
      %v5823 = vpop.f32.mrb[0].mxu0
      %v5824 = vadd.f32 %v5487, %v5823
      %v5825 = vpop.f32.mrb[0].mxu0
      %5826 = vmatprep.mubr.bf16.mxu0 0
      %5827 = vmatmul.mubr.bf16.gmra.mrb[0].mxu0 %v4831
      %v5828 = vpop.f32.mrb[0].mxu0
      %v5829 = vadd.f32 %v5492, %v5828
      %v5830 = vpop.f32.mrb[0].mxu0
      %v5831 = vpop.f32.mrb[0].mxu0
      %v5832 = vadd.f32 %v5495, %v5831
      %v5833 = vpop.f32.mrb[0].mxu0
      %5834 = vmatprep.mubr.bf16.mxu0 0
      %5835 = vmatmul.mubr.bf16.gmra.mrb[0].mxu0 %v4832
      %v5836 = vpop.f32.mrb[0].mxu0
      %v5837 = vadd.f32 %v5500, %v5836
      %v5838 = vpop.f32.mrb[0].mxu0
      %v5839 = vpop.f32.mrb[0].mxu0
      %v5840 = vadd.f32 %v5503, %v5839
      %v5841 = vpop.f32.mrb[0].mxu0
      %5842 = vmatprep.mubr.bf16.mxu0 0
      %5843 = vmatmul.mubr.bf16.gmra.mrb[0].mxu0 %v4833
      %v5844 = vpop.f32.mrb[0].mxu0
      %v5845 = vadd.f32 %v5508, %v5844
      %v5846 = vpop.f32.mrb[0].mxu0
      %v5847 = vpop.f32.mrb[0].mxu0
      %v5848 = vadd.f32 %v5511, %v5847
      %v5849 = vpop.f32.mrb[0].mxu0
      %5850 = vmatprep.mubr.bf16.mxu0 0
      %5851 = vmatmul.mubr.bf16.gmra.mrb[0].mxu0 %v4834
      %v5852 = vpop.f32.mrb[0].mxu0
      %v5853 = vadd.f32 %v5516, %v5852
      %v5854 = vpop.f32.mrb[0].mxu0
      %v5855 = vpop.f32.mrb[0].mxu0
      %v5856 = vadd.f32 %v5519, %v5855
      %v5857 = vpop.f32.mrb[0].mxu0
      %5858 = vmatprep.mubr.bf16.mxu0 0
      %5859 = vmatmul.mubr.bf16.gmra.mrb[0].mxu0 %v4835
      %v5860 = vpop.f32.mrb[0].mxu0
      %v5861 = vadd.f32 %v5524, %v5860
      %v5862 = vpop.f32.mrb[0].mxu0
      %v5863 = vpop.f32.mrb[0].mxu0
      %v5864 = vadd.f32 %v5527, %v5863
      %v5865 = vpop.f32.mrb[0].mxu0
      %5866 = vmatprep.mubr.bf16.mxu0 0
      %5867 = vmatmul.mubr.bf16.gmra.mrb[0].mxu0 %v4836
      %v5868 = vpop.f32.mrb[0].mxu0
      %v5869 = vadd.f32 %v5532, %v5868
      %v5870 = vpop.f32.mrb[0].mxu0
      %v5871 = vpop.f32.mrb[0].mxu0
      %v5872 = vadd.f32 %v5535, %v5871
      %v5873 = vpop.f32.mrb[0].mxu0
      %5874 = vmatprep.mubr.bf16.mxu0 0
      %5875 = vmatmul.mubr.bf16.gmra.mrb[0].mxu0 %v4837
      %v5876 = vpop.f32.mrb[0].mxu0
      %v5877 = vadd.f32 %v5540, %v5876
      %v5878 = vpop.f32.mrb[0].mxu0
      %v5879 = vpop.f32.mrb[0].mxu0
      %v5880 = vadd.f32 %v5543, %v5879
      %v5881 = vpop.f32.mrb[0].mxu0
      %5882 = vmatprep.mubr.bf16.mxu0 0
      %5883 = vmatmul.mubr.bf16.gmra.mrb[0].mxu0 %v4838
      %v5884 = vpop.f32.mrb[0].mxu0
      %v5885 = vadd.f32 %v5548, %v5884
      %v5886 = vpop.f32.mrb[0].mxu0
      %v5887 = vpop.f32.mrb[0].mxu0
      %v5888 = vadd.f32 %v5551, %v5887
      %v5889 = vpop.f32.mrb[0].mxu0
      %5890 = vdwg.mxu0
      %v5891 = vlaneseq
      %v5892 = vshrl.u32 %v5891, 7
      %v5893 = vsub.s32 0, %v5892
      %v5894 = vrot.slane %v502, %v5893
      %v5895 = vadd.f32 %v5637, %v5894
      %v5896 = vadd.f32 %v5640, %v5894
      %v5897 = vadd.f32 %v5645, %v5894
      %v5898 = vadd.f32 %v5648, %v5894
      %v5899 = vadd.f32 %v5653, %v5894
      %v5900 = vadd.f32 %v5656, %v5894
      %v5901 = vadd.f32 %v5661, %v5894
      %v5902 = vadd.f32 %v5664, %v5894
      %v5903 = vadd.f32 %v5669, %v5894
      %v5904 = vadd.f32 %v5672, %v5894
      %v5905 = vadd.f32 %v5677, %v5894
      %v5906 = vadd.f32 %v5680, %v5894
      %v5907 = vadd.f32 %v5685, %v5894
      %v5908 = vadd.f32 %v5688, %v5894
      %v5909 = vadd.f32 %v5693, %v5894
      %v5910 = vadd.f32 %v5696, %v5894
      %v5911 = vadd.f32 %v5701, %v5894
      %v5912 = vadd.f32 %v5704, %v5894
      %v5913 = vadd.f32 %v5709, %v5894
      %v5914 = vadd.f32 %v5712, %v5894
      %v5915 = vadd.f32 %v5717, %v5894
      %v5916 = vadd.f32 %v5720, %v5894
      %v5917 = vadd.f32 %v5725, %v5894
      %v5918 = vadd.f32 %v5728, %v5894
      %v5919 = vadd.f32 %v5733, %v5894
      %v5920 = vadd.f32 %v5736, %v5894
      %v5921 = vadd.f32 %v5741, %v5894
      %v5922 = vadd.f32 %v5744, %v5894
      %v5923 = vadd.f32 %v5749, %v5894
      %v5924 = vadd.f32 %v5752, %v5894
      %v5925 = vadd.f32 %v5757, %v5894
      %v5926 = vadd.f32 %v5760, %v5894
      %v5927 = vadd.f32 %v5765, %v5894
      %v5928 = vadd.f32 %v5768, %v5894
      %v5929 = vadd.f32 %v5773, %v5894
      %v5930 = vadd.f32 %v5776, %v5894
      %v5931 = vadd.f32 %v5781, %v5894
      %v5932 = vadd.f32 %v5784, %v5894
      %v5933 = vadd.f32 %v5789, %v5894
      %v5934 = vadd.f32 %v5792, %v5894
      %v5935 = vadd.f32 %v5797, %v5894
      %v5936 = vadd.f32 %v5800, %v5894
      %v5937 = vadd.f32 %v5805, %v5894
      %v5938 = vadd.f32 %v5808, %v5894
      %v5939 = vadd.f32 %v5813, %v5894
      %v5940 = vadd.f32 %v5816, %v5894
      %v5941 = vadd.f32 %v5821, %v5894
      %v5942 = vadd.f32 %v5824, %v5894
      %v5943 = vadd.f32 %v5829, %v5894
      %v5944 = vadd.f32 %v5832, %v5894
      %v5945 = vadd.f32 %v5837, %v5894
      %v5946 = vadd.f32 %v5840, %v5894
      %v5947 = vadd.f32 %v5845, %v5894
      %v5948 = vadd.f32 %v5848, %v5894
      %v5949 = vadd.f32 %v5853, %v5894
      %v5950 = vadd.f32 %v5856, %v5894
      %v5951 = vadd.f32 %v5861, %v5894
      %v5952 = vadd.f32 %v5864, %v5894
      %v5953 = vadd.f32 %v5869, %v5894
      %v5954 = vadd.f32 %v5872, %v5894
      %v5955 = vadd.f32 %v5877, %v5894
      %v5956 = vadd.f32 %v5880, %v5894
      %v5957 = vadd.f32 %v5885, %v5894
      %v5958 = vadd.f32 %v5888, %v5894
      %v5959 = vmax.f32 %v5895, 0.0
      %v5960 = vmax.f32 %v5896, 0.0
      %v5961 = vmax.f32 %v5897, 0.0
      %v5962 = vmax.f32 %v5898, 0.0
      %v5963 = vmax.f32 %v5899, 0.0
      %v5964 = vmax.f32 %v5900, 0.0
      %v5965 = vmax.f32 %v5901, 0.0
      %v5966 = vmax.f32 %v5902, 0.0
      %v5967 = vmax.f32 %v5903, 0.0
      %v5968 = vmax.f32 %v5904, 0.0
      %v5969 = vmax.f32 %v5905, 0.0
      %v5970 = vmax.f32 %v5906, 0.0
      %v5971 = vmax.f32 %v5907, 0.0
      %v5972 = vmax.f32 %v5908, 0.0
      %v5973 = vmax.f32 %v5909, 0.0
      %v5974 = vmax.f32 %v5910, 0.0
      %v5975 = vmax.f32 %v5911, 0.0
      %v5976 = vmax.f32 %v5912, 0.0
      %v5977 = vmax.f32 %v5913, 0.0
      %v5978 = vmax.f32 %v5914, 0.0
      %v5979 = vmax.f32 %v5915, 0.0
      %v5980 = vmax.f32 %v5916, 0.0
      %v5981 = vmax.f32 %v5917, 0.0
      %v5982 = vmax.f32 %v5918, 0.0
      %v5983 = vmax.f32 %v5919, 0.0
      %v5984 = vmax.f32 %v5920, 0.0
      %v5985 = vmax.f32 %v5921, 0.0
      %v5986 = vmax.f32 %v5922, 0.0
      %v5987 = vmax.f32 %v5923, 0.0
      %v5988 = vmax.f32 %v5924, 0.0
      %v5989 = vmax.f32 %v5925, 0.0
      %v5990 = vmax.f32 %v5926, 0.0
      %v5991 = vmax.f32 %v5927, 0.0
      %v5992 = vmax.f32 %v5928, 0.0
      %v5993 = vmax.f32 %v5929, 0.0
      %v5994 = vmax.f32 %v5930, 0.0
      %v5995 = vmax.f32 %v5931, 0.0
      %v5996 = vmax.f32 %v5932, 0.0
      %v5997 = vmax.f32 %v5933, 0.0
      %v5998 = vmax.f32 %v5934, 0.0
      %v5999 = vmax.f32 %v5935, 0.0
      %v6000 = vmax.f32 %v5936, 0.0
      %v6001 = vmax.f32 %v5937, 0.0
      %v6002 = vmax.f32 %v5938, 0.0
      %v6003 = vmax.f32 %v5939, 0.0
      %v6004 = vmax.f32 %v5940, 0.0
      %v6005 = vmax.f32 %v5941, 0.0
      %v6006 = vmax.f32 %v5942, 0.0
      %v6007 = vmax.f32 %v5943, 0.0
      %v6008 = vmax.f32 %v5944, 0.0
      %v6009 = vmax.f32 %v5945, 0.0
      %v6010 = vmax.f32 %v5946, 0.0
      %v6011 = vmax.f32 %v5947, 0.0
      %v6012 = vmax.f32 %v5948, 0.0
      %v6013 = vmax.f32 %v5949, 0.0
      %v6014 = vmax.f32 %v5950, 0.0
      %v6015 = vmax.f32 %v5951, 0.0
      %v6016 = vmax.f32 %v5952, 0.0
      %v6017 = vmax.f32 %v5953, 0.0
      %v6018 = vmax.f32 %v5954, 0.0
      %v6019 = vmax.f32 %v5955, 0.0
      %v6020 = vmax.f32 %v5956, 0.0
      %v6021 = vmax.f32 %v5957, 0.0
      %v6022 = vmax.f32 %v5958, 0.0
      %v6023 = vpack.c.bf16 %v5960, %v5959
      %v6024 = vpack.c.bf16 %v5962, %v5961
      %v6025 = vpack.c.bf16 %v5964, %v5963
      %v6026 = vpack.c.bf16 %v5966, %v5965
      %v6027 = vpack.c.bf16 %v5968, %v5967
      %v6028 = vpack.c.bf16 %v5970, %v5969
      %v6029 = vpack.c.bf16 %v5972, %v5971
      %v6030 = vpack.c.bf16 %v5974, %v5973
      %v6031 = vpack.c.bf16 %v5976, %v5975
      %v6032 = vpack.c.bf16 %v5978, %v5977
      %v6033 = vpack.c.bf16 %v5980, %v5979
      %v6034 = vpack.c.bf16 %v5982, %v5981
      %v6035 = vpack.c.bf16 %v5984, %v5983
      %v6036 = vpack.c.bf16 %v5986, %v5985
      %v6037 = vpack.c.bf16 %v5988, %v5987
      %v6038 = vpack.c.bf16 %v5990, %v5989
      %v6039 = vpack.c.bf16 %v5992, %v5991
      %v6040 = vpack.c.bf16 %v5994, %v5993
      %v6041 = vpack.c.bf16 %v5996, %v5995
      %v6042 = vpack.c.bf16 %v5998, %v5997
      %v6043 = vpack.c.bf16 %v6000, %v5999
      %v6044 = vpack.c.bf16 %v6002, %v6001
      %v6045 = vpack.c.bf16 %v6004, %v6003
      %v6046 = vpack.c.bf16 %v6006, %v6005
      %v6047 = vpack.c.bf16 %v6008, %v6007
      %v6048 = vpack.c.bf16 %v6010, %v6009
      %v6049 = vpack.c.bf16 %v6012, %v6011
      %v6050 = vpack.c.bf16 %v6014, %v6013
      %v6051 = vpack.c.bf16 %v6016, %v6015
      %v6052 = vpack.c.bf16 %v6018, %v6017
      %v6053 = vpack.c.bf16 %v6020, %v6019
      %v6054 = vpack.c.bf16 %v6022, %v6021
      %v6055 = vld [vmem:[%s6] sm:$0xf]
      %v6056 = vld [vmem:[%s6 + $0x4] sm:$0xf]
      %v6057 = vld [vmem:[%s6 + $0x8] sm:$0xf]
      %v6058 = vld [vmem:[%s6 + $0xc] sm:$0xf]
      %v6059 = vld [vmem:[%s6 + $0x10] sm:$0xf]
      %v6060 = vld [vmem:[%s6 + $0x14] sm:$0xf]
      %v6061 = vld [vmem:[%s6 + $0x18] sm:$0xf]
      %v6062 = vld [vmem:[%s6 + $0x1c] sm:$0xf]
      %v6063 = vld [vmem:[%s6 + $0x20] sm:$0xf]
      %v6064 = vld [vmem:[%s6 + $0x24] sm:$0xf]
      %v6065 = vld [vmem:[%s6 + $0x28] sm:$0xf]
      %v6066 = vld [vmem:[%s6 + $0x2c] sm:$0xf]
      %v6067 = vld [vmem:[%s6 + $0x30] sm:$0xf]
      %v6068 = vld [vmem:[%s6 + $0x34] sm:$0xf]
      %v6069 = vld [vmem:[%s6 + $0x38] sm:$0xf]
      %v6070 = vld [vmem:[%s6 + $0x3c] sm:$0xf]
      %v6087 = vunpack.c.l.b16 %v6055
      %v6088 = vunpack.c.l.b16 %v6056
      %v6089 = vunpack.c.l.b16 %v6057
      %v6090 = vunpack.c.l.b16 %v6058
      %v6091 = vunpack.c.l.b16 %v6059
      %v6092 = vunpack.c.l.b16 %v6060
      %v6093 = vunpack.c.l.b16 %v6061
      %v6094 = vunpack.c.l.b16 %v6062
      %v6095 = vunpack.c.l.b16 %v6063
      %v6096 = vunpack.c.l.b16 %v6064
      %v6097 = vunpack.c.l.b16 %v6065
      %v6098 = vunpack.c.l.b16 %v6066
      %v6099 = vunpack.c.l.b16 %v6067
      %v6100 = vunpack.c.l.b16 %v6068
      %v6101 = vunpack.c.l.b16 %v6069
      %v6102 = vunpack.c.l.b16 %v6070
      %v6103 = vpack.c.b16 %v6088, %v6087
      %v6104 = vpack.c.b16 %v6090, %v6089
      %v6105 = vpack.c.b16 %v6092, %v6091
      %v6106 = vpack.c.b16 %v6094, %v6093
      %v6107 = vpack.c.b16 %v6096, %v6095
      %v6108 = vpack.c.b16 %v6098, %v6097
      %v6109 = vpack.c.b16 %v6100, %v6099
      %v6110 = vpack.c.b16 %v6102, %v6101
      %6119 = vmatprep.subr.bf16.mxu0 0
      %6120 = vmatpush1.bf16.msra.mxu0 %v6103
      %6121 = vmatprep.subr.bf16.mxu0 0
      %6122 = vmatpush1.bf16.msra.mxu0 %v6104
      %6123 = vmatprep.subr.bf16.mxu0 0
      %6124 = vmatpush1.bf16.msra.mxu0 %v6105
      %6125 = vmatprep.subr.bf16.mxu0 0
      %6126 = vmatpush1.bf16.msra.mxu0 %v6106
      %6127 = vmatprep.subr.bf16.mxu0 0
      %6128 = vmatpush1.bf16.msra.mxu0 %v6107
      %6129 = vmatprep.subr.bf16.mxu0 0
      %6130 = vmatpush1.bf16.msra.mxu0 %v6108
      %6131 = vmatprep.subr.bf16.mxu0 0
      %6132 = vmatpush1.bf16.msra.mxu0 %v6109
      %6133 = vmatprep.subr.bf16.mxu0 0
      %6134 = vmatpush1.bf16.msra.mxu0 %v6110
      %6135 = vmatprep.subr.bf16.mxu0 0
      %6136 = vmatpush1.bf16.msra.mxu0 0
      %6137 = vmatprep.subr.bf16.mxu0 0
      %6138 = vmatpush1.bf16.msra.mxu0 0
      %6139 = vmatprep.subr.bf16.mxu0 0
      %6140 = vmatpush1.bf16.msra.mxu0 0
      %6141 = vmatprep.subr.bf16.mxu0 0
      %6142 = vmatpush1.bf16.msra.mxu0 0
      %6143 = vmatprep.subr.bf16.mxu0 0
      %6144 = vmatpush1.bf16.msra.mxu0 0
      %6145 = vmatprep.subr.bf16.mxu0 0
      %6146 = vmatpush1.bf16.msra.mxu0 0
      %6147 = vmatprep.subr.bf16.mxu0 0
      %6148 = vmatpush1.bf16.msra.mxu0 0
      %6149 = vmatprep.subr.bf16.mxu0 0
      %6150 = vmatpush1.bf16.msra.mxu0 0
      %6151 = vmatprep.mubr.bf16.mxu0 0
      %6152 = vmatmul.mubr.bf16.gmra.mrb[0].mxu0 %v6023
      %v6153 = vpop.f32.mrb[0].mxu0
      %v6154 = vadd.f32 %v4842, %v6153
      %v6155 = vpop.f32.mrb[0].mxu0
      %v6156 = vpop.f32.mrb[0].mxu0
      %v6157 = vadd.f32 %v4842, %v6156
      %v6158 = vpop.f32.mrb[0].mxu0
      %6159 = vmatprep.mubr.bf16.mxu0 0
      %6160 = vmatmul.mubr.bf16.gmra.mrb[0].mxu0 %v6024
      %v6161 = vpop.f32.mrb[0].mxu0
      %v6162 = vadd.f32 %v4842, %v6161
      %v6163 = vpop.f32.mrb[0].mxu0
      %v6164 = vpop.f32.mrb[0].mxu0
      %v6165 = vadd.f32 %v4842, %v6164
      %v6166 = vpop.f32.mrb[0].mxu0
      %6167 = vmatprep.mubr.bf16.mxu0 0
      %6168 = vmatmul.mubr.bf16.gmra.mrb[0].mxu0 %v6025
      %v6169 = vpop.f32.mrb[0].mxu0
      %v6170 = vadd.f32 %v4842, %v6169
      %v6171 = vpop.f32.mrb[0].mxu0
      %v6172 = vpop.f32.mrb[0].mxu0
      %v6173 = vadd.f32 %v4842, %v6172
      %v6174 = vpop.f32.mrb[0].mxu0
      %6175 = vmatprep.mubr.bf16.mxu0 0
      %6176 = vmatmul.mubr.bf16.gmra.mrb[0].mxu0 %v6026
      %v6177 = vpop.f32.mrb[0].mxu0
      %v6178 = vadd.f32 %v4842, %v6177
      %v6179 = vpop.f32.mrb[0].mxu0
      %v6180 = vpop.f32.mrb[0].mxu0
      %v6181 = vadd.f32 %v4842, %v6180
      %v6182 = vpop.f32.mrb[0].mxu0
      %6183 = vmatprep.mubr.bf16.mxu0 0
      %6184 = vmatmul.mubr.bf16.gmra.mrb[0].mxu0 %v6027
      %v6185 = vpop.f32.mrb[0].mxu0
      %v6186 = vadd.f32 %v4842, %v6185
      %v6187 = vpop.f32.mrb[0].mxu0
      %v6188 = vpop.f32.mrb[0].mxu0
      %v6189 = vadd.f32 %v4842, %v6188
      %v6190 = vpop.f32.mrb[0].mxu0
      %6191 = vmatprep.mubr.bf16.mxu0 0
      %6192 = vmatmul.mubr.bf16.gmra.mrb[0].mxu0 %v6028
      %v6193 = vpop.f32.mrb[0].mxu0
      %v6194 = vadd.f32 %v4842, %v6193
      %v6195 = vpop.f32.mrb[0].mxu0
      %v6196 = vpop.f32.mrb[0].mxu0
      %v6197 = vadd.f32 %v4842, %v6196
      %v6198 = vpop.f32.mrb[0].mxu0
      %6199 = vmatprep.mubr.bf16.mxu0 0
      %6200 = vmatmul.mubr.bf16.gmra.mrb[0].mxu0 %v6029
      %v6201 = vpop.f32.mrb[0].mxu0
      %v6202 = vadd.f32 %v4842, %v6201
      %v6203 = vpop.f32.mrb[0].mxu0
      %v6204 = vpop.f32.mrb[0].mxu0
      %v6205 = vadd.f32 %v4842, %v6204
      %v6206 = vpop.f32.mrb[0].mxu0
      %6207 = vmatprep.mubr.bf16.mxu0 0
      %6208 = vmatmul.mubr.bf16.gmra.mrb[0].mxu0 %v6030
      %v6209 = vpop.f32.mrb[0].mxu0
      %v6210 = vadd.f32 %v4842, %v6209
      %v6211 = vpop.f32.mrb[0].mxu0
      %v6212 = vpop.f32.mrb[0].mxu0
      %v6213 = vadd.f32 %v4842, %v6212
      %v6214 = vpop.f32.mrb[0].mxu0
      %6215 = vmatprep.mubr.bf16.mxu0 0
      %6216 = vmatmul.mubr.bf16.gmra.mrb[0].mxu0 %v6031
      %v6217 = vpop.f32.mrb[0].mxu0
      %v6218 = vadd.f32 %v4842, %v6217
      %v6219 = vpop.f32.mrb[0].mxu0
      %v6220 = vpop.f32.mrb[0].mxu0
      %v6221 = vadd.f32 %v4842, %v6220
      %v6222 = vpop.f32.mrb[0].mxu0
      %6223 = vmatprep.mubr.bf16.mxu0 0
      %6224 = vmatmul.mubr.bf16.gmra.mrb[0].mxu0 %v6032
      %v6225 = vpop.f32.mrb[0].mxu0
      %v6226 = vadd.f32 %v4842, %v6225
      %v6227 = vpop.f32.mrb[0].mxu0
      %v6228 = vpop.f32.mrb[0].mxu0
      %v6229 = vadd.f32 %v4842, %v6228
      %v6230 = vpop.f32.mrb[0].mxu0
      %6231 = vmatprep.mubr.bf16.mxu0 0
      %6232 = vmatmul.mubr.bf16.gmra.mrb[0].mxu0 %v6033
      %v6233 = vpop.f32.mrb[0].mxu0
      %v6234 = vadd.f32 %v4842, %v6233
      %v6235 = vpop.f32.mrb[0].mxu0
      %v6236 = vpop.f32.mrb[0].mxu0
      %v6237 = vadd.f32 %v4842, %v6236
      %v6238 = vpop.f32.mrb[0].mxu0
      %6239 = vmatprep.mubr.bf16.mxu0 0
      %6240 = vmatmul.mubr.bf16.gmra.mrb[0].mxu0 %v6034
      %v6241 = vpop.f32.mrb[0].mxu0
      %v6242 = vadd.f32 %v4842, %v6241
      %v6243 = vpop.f32.mrb[0].mxu0
      %v6244 = vpop.f32.mrb[0].mxu0
      %v6245 = vadd.f32 %v4842, %v6244
      %v6246 = vpop.f32.mrb[0].mxu0
      %6247 = vmatprep.mubr.bf16.mxu0 0
      %6248 = vmatmul.mubr.bf16.gmra.mrb[0].mxu0 %v6035
      %v6249 = vpop.f32.mrb[0].mxu0
      %v6250 = vadd.f32 %v4842, %v6249
      %v6251 = vpop.f32.mrb[0].mxu0
      %v6252 = vpop.f32.mrb[0].mxu0
      %v6253 = vadd.f32 %v4842, %v6252
      %v6254 = vpop.f32.mrb[0].mxu0
      %6255 = vmatprep.mubr.bf16.mxu0 0
      %6256 = vmatmul.mubr.bf16.gmra.mrb[0].mxu0 %v6036
      %v6257 = vpop.f32.mrb[0].mxu0
      %v6258 = vadd.f32 %v4842, %v6257
      %v6259 = vpop.f32.mrb[0].mxu0
      %v6260 = vpop.f32.mrb[0].mxu0
      %v6261 = vadd.f32 %v4842, %v6260
      %v6262 = vpop.f32.mrb[0].mxu0
      %6263 = vmatprep.mubr.bf16.mxu0 0
      %6264 = vmatmul.mubr.bf16.gmra.mrb[0].mxu0 %v6037
      %v6265 = vpop.f32.mrb[0].mxu0
      %v6266 = vadd.f32 %v4842, %v6265
      %v6267 = vpop.f32.mrb[0].mxu0
      %v6268 = vpop.f32.mrb[0].mxu0
      %v6269 = vadd.f32 %v4842, %v6268
      %v6270 = vpop.f32.mrb[0].mxu0
      %6271 = vmatprep.mubr.bf16.mxu0 0
      %6272 = vmatmul.mubr.bf16.gmra.mrb[0].mxu0 %v6038
      %v6273 = vpop.f32.mrb[0].mxu0
      %v6274 = vadd.f32 %v4842, %v6273
      %v6275 = vpop.f32.mrb[0].mxu0
      %v6276 = vpop.f32.mrb[0].mxu0
      %v6277 = vadd.f32 %v4842, %v6276
      %v6278 = vpop.f32.mrb[0].mxu0
      %6279 = vmatprep.mubr.bf16.mxu0 0
      %6280 = vmatmul.mubr.bf16.gmra.mrb[0].mxu0 %v6039
      %v6281 = vpop.f32.mrb[0].mxu0
      %v6282 = vadd.f32 %v4842, %v6281
      %v6283 = vpop.f32.mrb[0].mxu0
      %v6284 = vpop.f32.mrb[0].mxu0
      %v6285 = vadd.f32 %v4842, %v6284
      %v6286 = vpop.f32.mrb[0].mxu0
      %6287 = vmatprep.mubr.bf16.mxu0 0
      %6288 = vmatmul.mubr.bf16.gmra.mrb[0].mxu0 %v6040
      %v6289 = vpop.f32.mrb[0].mxu0
      %v6290 = vadd.f32 %v4842, %v6289
      %v6291 = vpop.f32.mrb[0].mxu0
      %v6292 = vpop.f32.mrb[0].mxu0
      %v6293 = vadd.f32 %v4842, %v6292
      %v6294 = vpop.f32.mrb[0].mxu0
      %6295 = vmatprep.mubr.bf16.mxu0 0
      %6296 = vmatmul.mubr.bf16.gmra.mrb[0].mxu0 %v6041
      %v6297 = vpop.f32.mrb[0].mxu0
      %v6298 = vadd.f32 %v4842, %v6297
      %v6299 = vpop.f32.mrb[0].mxu0
      %v6300 = vpop.f32.mrb[0].mxu0
      %v6301 = vadd.f32 %v4842, %v6300
      %v6302 = vpop.f32.mrb[0].mxu0
      %6303 = vmatprep.mubr.bf16.mxu0 0
      %6304 = vmatmul.mubr.bf16.gmra.mrb[0].mxu0 %v6042
      %v6305 = vpop.f32.mrb[0].mxu0
      %v6306 = vadd.f32 %v4842, %v6305
      %v6307 = vpop.f32.mrb[0].mxu0
      %v6308 = vpop.f32.mrb[0].mxu0
      %v6309 = vadd.f32 %v4842, %v6308
      %v6310 = vpop.f32.mrb[0].mxu0
      %6311 = vmatprep.mubr.bf16.mxu0 0
      %6312 = vmatmul.mubr.bf16.gmra.mrb[0].mxu0 %v6043
      %v6313 = vpop.f32.mrb[0].mxu0
      %v6314 = vadd.f32 %v4842, %v6313
      %v6315 = vpop.f32.mrb[0].mxu0
      %v6316 = vpop.f32.mrb[0].mxu0
      %v6317 = vadd.f32 %v4842, %v6316
      %v6318 = vpop.f32.mrb[0].mxu0
      %6319 = vmatprep.mubr.bf16.mxu0 0
      %6320 = vmatmul.mubr.bf16.gmra.mrb[0].mxu0 %v6044
      %v6321 = vpop.f32.mrb[0].mxu0
      %v6322 = vadd.f32 %v4842, %v6321
      %v6323 = vpop.f32.mrb[0].mxu0
      %v6324 = vpop.f32.mrb[0].mxu0
      %v6325 = vadd.f32 %v4842, %v6324
      %v6326 = vpop.f32.mrb[0].mxu0
      %6327 = vmatprep.mubr.bf16.mxu0 0
      %6328 = vmatmul.mubr.bf16.gmra.mrb[0].mxu0 %v6045
      %v6329 = vpop.f32.mrb[0].mxu0
      %v6330 = vadd.f32 %v4842, %v6329
      %v6331 = vpop.f32.mrb[0].mxu0
      %v6332 = vpop.f32.mrb[0].mxu0
      %v6333 = vadd.f32 %v4842, %v6332
      %v6334 = vpop.f32.mrb[0].mxu0
      %6335 = vmatprep.mubr.bf16.mxu0 0
      %6336 = vmatmul.mubr.bf16.gmra.mrb[0].mxu0 %v6046
      %v6337 = vpop.f32.mrb[0].mxu0
      %v6338 = vadd.f32 %v4842, %v6337
      %v6339 = vpop.f32.mrb[0].mxu0
      %v6340 = vpop.f32.mrb[0].mxu0
      %v6341 = vadd.f32 %v4842, %v6340
      %v6342 = vpop.f32.mrb[0].mxu0
      %6343 = vmatprep.mubr.bf16.mxu0 0
      %6344 = vmatmul.mubr.bf16.gmra.mrb[0].mxu0 %v6047
      %v6345 = vpop.f32.mrb[0].mxu0
      %v6346 = vadd.f32 %v4842, %v6345
      %v6347 = vpop.f32.mrb[0].mxu0
      %v6348 = vpop.f32.mrb[0].mxu0
      %v6349 = vadd.f32 %v4842, %v6348
      %v6350 = vpop.f32.mrb[0].mxu0
      %6351 = vmatprep.mubr.bf16.mxu0 0
      %6352 = vmatmul.mubr.bf16.gmra.mrb[0].mxu0 %v6048
      %v6353 = vpop.f32.mrb[0].mxu0
      %v6354 = vadd.f32 %v4842, %v6353
      %v6355 = vpop.f32.mrb[0].mxu0
      %v6356 = vpop.f32.mrb[0].mxu0
      %v6357 = vadd.f32 %v4842, %v6356
      %v6358 = vpop.f32.mrb[0].mxu0
      %6359 = vmatprep.mubr.bf16.mxu0 0
      %6360 = vmatmul.mubr.bf16.gmra.mrb[0].mxu0 %v6049
      %v6361 = vpop.f32.mrb[0].mxu0
      %v6362 = vadd.f32 %v4842, %v6361
      %v6363 = vpop.f32.mrb[0].mxu0
      %v6364 = vpop.f32.mrb[0].mxu0
      %v6365 = vadd.f32 %v4842, %v6364
      %v6366 = vpop.f32.mrb[0].mxu0
      %6367 = vmatprep.mubr.bf16.mxu0 0
      %6368 = vmatmul.mubr.bf16.gmra.mrb[0].mxu0 %v6050
      %v6369 = vpop.f32.mrb[0].mxu0
      %v6370 = vadd.f32 %v4842, %v6369
      %v6371 = vpop.f32.mrb[0].mxu0
      %v6372 = vpop.f32.mrb[0].mxu0
      %v6373 = vadd.f32 %v4842, %v6372
      %v6374 = vpop.f32.mrb[0].mxu0
      %6375 = vmatprep.mubr.bf16.mxu0 0
      %6376 = vmatmul.mubr.bf16.gmra.mrb[0].mxu0 %v6051
      %v6377 = vpop.f32.mrb[0].mxu0
      %v6378 = vadd.f32 %v4842, %v6377
      %v6379 = vpop.f32.mrb[0].mxu0
      %v6380 = vpop.f32.mrb[0].mxu0
      %v6381 = vadd.f32 %v4842, %v6380
      %v6382 = vpop.f32.mrb[0].mxu0
      %6383 = vmatprep.mubr.bf16.mxu0 0
      %6384 = vmatmul.mubr.bf16.gmra.mrb[0].mxu0 %v6052
      %v6385 = vpop.f32.mrb[0].mxu0
      %v6386 = vadd.f32 %v4842, %v6385
      %v6387 = vpop.f32.mrb[0].mxu0
      %v6388 = vpop.f32.mrb[0].mxu0
      %v6389 = vadd.f32 %v4842, %v6388
      %v6390 = vpop.f32.mrb[0].mxu0
      %6391 = vmatprep.mubr.bf16.mxu0 0
      %6392 = vmatmul.mubr.bf16.gmra.mrb[0].mxu0 %v6053
      %v6393 = vpop.f32.mrb[0].mxu0
      %v6394 = vadd.f32 %v4842, %v6393
      %v6395 = vpop.f32.mrb[0].mxu0
      %v6396 = vpop.f32.mrb[0].mxu0
      %v6397 = vadd.f32 %v4842, %v6396
      %v6398 = vpop.f32.mrb[0].mxu0
      %6399 = vmatprep.mubr.bf16.mxu0 0
      %6400 = vmatmul.mubr.bf16.gmra.mrb[0].mxu0 %v6054
      %v6401 = vpop.f32.mrb[0].mxu0
      %v6402 = vadd.f32 %v4842, %v6401
      %v6403 = vpop.f32.mrb[0].mxu0
      %v6404 = vpop.f32.mrb[0].mxu0
      %v6405 = vadd.f32 %v4842, %v6404
      %v6406 = vpop.f32.mrb[0].mxu0
      %6407 = vdwg.mxu0
      %v6408 = vsub.f32 0.0, %v6154
      %v6409 = vsub.f32 0.0, %v6157
      %v6410 = vsub.f32 0.0, %v6162
      %v6411 = vsub.f32 0.0, %v6165
      %v6412 = vsub.f32 0.0, %v6170
      %v6413 = vsub.f32 0.0, %v6173
      %v6414 = vsub.f32 0.0, %v6178
      %v6415 = vsub.f32 0.0, %v6181
      %v6416 = vsub.f32 0.0, %v6186
      %v6417 = vsub.f32 0.0, %v6189
      %v6418 = vsub.f32 0.0, %v6194
      %v6419 = vsub.f32 0.0, %v6197
      %v6420 = vsub.f32 0.0, %v6202
      %v6421 = vsub.f32 0.0, %v6205
      %v6422 = vsub.f32 0.0, %v6210
      %v6423 = vsub.f32 0.0, %v6213
      %v6424 = vsub.f32 0.0, %v6218
      %v6425 = vsub.f32 0.0, %v6221
      %v6426 = vsub.f32 0.0, %v6226
      %v6427 = vsub.f32 0.0, %v6229
      %v6428 = vsub.f32 0.0, %v6234
      %v6429 = vsub.f32 0.0, %v6237
      %v6430 = vsub.f32 0.0, %v6242
      %v6431 = vsub.f32 0.0, %v6245
      %v6432 = vsub.f32 0.0, %v6250
      %v6433 = vsub.f32 0.0, %v6253
      %v6434 = vsub.f32 0.0, %v6258
      %v6435 = vsub.f32 0.0, %v6261
      %v6436 = vsub.f32 0.0, %v6266
      %v6437 = vsub.f32 0.0, %v6269
      %v6438 = vsub.f32 0.0, %v6274
      %v6439 = vsub.f32 0.0, %v6277
      %v6440 = vsub.f32 0.0, %v6282
      %v6441 = vsub.f32 0.0, %v6285
      %v6442 = vsub.f32 0.0, %v6290
      %v6443 = vsub.f32 0.0, %v6293
      %v6444 = vsub.f32 0.0, %v6298
      %v6445 = vsub.f32 0.0, %v6301
      %v6446 = vsub.f32 0.0, %v6306
      %v6447 = vsub.f32 0.0, %v6309
      %v6448 = vsub.f32 0.0, %v6314
      %v6449 = vsub.f32 0.0, %v6317
      %v6450 = vsub.f32 0.0, %v6322
      %v6451 = vsub.f32 0.0, %v6325
      %v6452 = vsub.f32 0.0, %v6330
      %v6453 = vsub.f32 0.0, %v6333
      %v6454 = vsub.f32 0.0, %v6338
      %v6455 = vsub.f32 0.0, %v6341
      %v6456 = vsub.f32 0.0, %v6346
      %v6457 = vsub.f32 0.0, %v6349
      %v6458 = vsub.f32 0.0, %v6354
      %v6459 = vsub.f32 0.0, %v6357
      %v6460 = vsub.f32 0.0, %v6362
      %v6461 = vsub.f32 0.0, %v6365
      %v6462 = vsub.f32 0.0, %v6370
      %v6463 = vsub.f32 0.0, %v6373
      %v6464 = vsub.f32 0.0, %v6378
      %v6465 = vsub.f32 0.0, %v6381
      %v6466 = vsub.f32 0.0, %v6386
      %v6467 = vsub.f32 0.0, %v6389
      %v6468 = vsub.f32 0.0, %v6394
      %v6469 = vsub.f32 0.0, %v6397
      %v6470 = vsub.f32 0.0, %v6402
      %v6471 = vsub.f32 0.0, %v6405
      %v6472 = vmul.f32 %v6408, 1.442695
      %v6473 = vpow.pop %v6472
      %v6474 = vmul.f32 %v6409, 1.442695
      %v6475 = vpow.pop %v6474
      %v6476 = vmul.f32 %v6410, 1.442695
      %v6477 = vpow.pop %v6476
      %v6478 = vmul.f32 %v6411, 1.442695
      %v6479 = vpow.pop %v6478
      %v6480 = vmul.f32 %v6412, 1.442695
      %v6481 = vpow.pop %v6480
      %v6482 = vmul.f32 %v6413, 1.442695
      %v6483 = vpow.pop %v6482
      %v6484 = vmul.f32 %v6414, 1.442695
      %v6485 = vpow.pop %v6484
      %v6486 = vmul.f32 %v6415, 1.442695
      %v6487 = vpow.pop %v6486
      %v6488 = vmul.f32 %v6416, 1.442695
      %v6489 = vpow.pop %v6488
      %v6490 = vmul.f32 %v6417, 1.442695
      %v6491 = vpow.pop %v6490
      %v6492 = vmul.f32 %v6418, 1.442695
      %v6493 = vpow.pop %v6492
      %v6494 = vmul.f32 %v6419, 1.442695
      %v6495 = vpow.pop %v6494
      %v6496 = vmul.f32 %v6420, 1.442695
      %v6497 = vpow.pop %v6496
      %v6498 = vmul.f32 %v6421, 1.442695
      %v6499 = vpow.pop %v6498
      %v6500 = vmul.f32 %v6422, 1.442695
      %v6501 = vpow.pop %v6500
      %v6502 = vmul.f32 %v6423, 1.442695
      %v6503 = vpow.pop %v6502
      %v6504 = vmul.f32 %v6424, 1.442695
      %v6505 = vpow.pop %v6504
      %v6506 = vmul.f32 %v6425, 1.442695
      %v6507 = vpow.pop %v6506
      %v6508 = vmul.f32 %v6426, 1.442695
      %v6509 = vpow.pop %v6508
      %v6510 = vmul.f32 %v6427, 1.442695
      %v6511 = vpow.pop %v6510
      %v6512 = vmul.f32 %v6428, 1.442695
      %v6513 = vpow.pop %v6512
      %v6514 = vmul.f32 %v6429, 1.442695
      %v6515 = vpow.pop %v6514
      %v6516 = vmul.f32 %v6430, 1.442695
      %v6517 = vpow.pop %v6516
      %v6518 = vmul.f32 %v6431, 1.442695
      %v6519 = vpow.pop %v6518
      %v6520 = vmul.f32 %v6432, 1.442695
      %v6521 = vpow.pop %v6520
      %v6522 = vmul.f32 %v6433, 1.442695
      %v6523 = vpow.pop %v6522
      %v6524 = vmul.f32 %v6434, 1.442695
      %v6525 = vpow.pop %v6524
      %v6526 = vmul.f32 %v6435, 1.442695
      %v6527 = vpow.pop %v6526
      %v6528 = vmul.f32 %v6436, 1.442695
      %v6529 = vpow.pop %v6528
      %v6530 = vmul.f32 %v6437, 1.442695
      %v6531 = vpow.pop %v6530
      %v6532 = vmul.f32 %v6438, 1.442695
      %v6533 = vpow.pop %v6532
      %v6534 = vmul.f32 %v6439, 1.442695
      %v6535 = vpow.pop %v6534
      %v6536 = vmul.f32 %v6440, 1.442695
      %v6537 = vpow.pop %v6536
      %v6538 = vmul.f32 %v6441, 1.442695
      %v6539 = vpow.pop %v6538
      %v6540 = vmul.f32 %v6442, 1.442695
      %v6541 = vpow.pop %v6540
      %v6542 = vmul.f32 %v6443, 1.442695
      %v6543 = vpow.pop %v6542
      %v6544 = vmul.f32 %v6444, 1.442695
      %v6545 = vpow.pop %v6544
      %v6546 = vmul.f32 %v6445, 1.442695
      %v6547 = vpow.pop %v6546
      %v6548 = vmul.f32 %v6446, 1.442695
      %v6549 = vpow.pop %v6548
      %v6550 = vmul.f32 %v6447, 1.442695
      %v6551 = vpow.pop %v6550
      %v6552 = vmul.f32 %v6448, 1.442695
      %v6553 = vpow.pop %v6552
      %v6554 = vmul.f32 %v6449, 1.442695
      %v6555 = vpow.pop %v6554
      %v6556 = vmul.f32 %v6450, 1.442695
      %v6557 = vpow.pop %v6556
      %v6558 = vmul.f32 %v6451, 1.442695
      %v6559 = vpow.pop %v6558
      %v6560 = vmul.f32 %v6452, 1.442695
      %v6561 = vpow.pop %v6560
      %v6562 = vmul.f32 %v6453, 1.442695
      %v6563 = vpow.pop %v6562
      %v6564 = vmul.f32 %v6454, 1.442695
      %v6565 = vpow.pop %v6564
      %v6566 = vmul.f32 %v6455, 1.442695
      %v6567 = vpow.pop %v6566
      %v6568 = vmul.f32 %v6456, 1.442695
      %v6569 = vpow.pop %v6568
      %v6570 = vmul.f32 %v6457, 1.442695
      %v6571 = vpow.pop %v6570
      %v6572 = vmul.f32 %v6458, 1.442695
      %v6573 = vpow.pop %v6572
      %v6574 = vmul.f32 %v6459, 1.442695
      %v6575 = vpow.pop %v6574
      %v6576 = vmul.f32 %v6460, 1.442695
      %v6577 = vpow.pop %v6576
      %v6578 = vmul.f32 %v6461, 1.442695
      %v6579 = vpow.pop %v6578
      %v6580 = vmul.f32 %v6462, 1.442695
      %v6581 = vpow.pop %v6580
      %v6582 = vmul.f32 %v6463, 1.442695
      %v6583 = vpow.pop %v6582
      %v6584 = vmul.f32 %v6464, 1.442695
      %v6585 = vpow.pop %v6584
      %v6586 = vmul.f32 %v6465, 1.442695
      %v6587 = vpow.pop %v6586
      %v6588 = vmul.f32 %v6466, 1.442695
      %v6589 = vpow.pop %v6588
      %v6590 = vmul.f32 %v6467, 1.442695
      %v6591 = vpow.pop %v6590
      %v6592 = vmul.f32 %v6468, 1.442695
      %v6593 = vpow.pop %v6592
      %v6594 = vmul.f32 %v6469, 1.442695
      %v6595 = vpow.pop %v6594
      %v6596 = vmul.f32 %v6470, 1.442695
      %v6597 = vpow.pop %v6596
      %v6598 = vmul.f32 %v6471, 1.442695
      %v6599 = vpow.pop %v6598
      %v6600 = vadd.f32 %v6473, 1.0
      %v6601 = vadd.f32 %v6475, 1.0
      %v6602 = vadd.f32 %v6477, 1.0
      %v6603 = vadd.f32 %v6479, 1.0
      %v6604 = vadd.f32 %v6481, 1.0
      %v6605 = vadd.f32 %v6483, 1.0
      %v6606 = vadd.f32 %v6485, 1.0
      %v6607 = vadd.f32 %v6487, 1.0
      %v6608 = vadd.f32 %v6489, 1.0
      %v6609 = vadd.f32 %v6491, 1.0
      %v6610 = vadd.f32 %v6493, 1.0
      %v6611 = vadd.f32 %v6495, 1.0
      %v6612 = vadd.f32 %v6497, 1.0
      %v6613 = vadd.f32 %v6499, 1.0
      %v6614 = vadd.f32 %v6501, 1.0
      %v6615 = vadd.f32 %v6503, 1.0
      %v6616 = vadd.f32 %v6505, 1.0
      %v6617 = vadd.f32 %v6507, 1.0
      %v6618 = vadd.f32 %v6509, 1.0
      %v6619 = vadd.f32 %v6511, 1.0
      %v6620 = vadd.f32 %v6513, 1.0
      %v6621 = vadd.f32 %v6515, 1.0
      %v6622 = vadd.f32 %v6517, 1.0
      %v6623 = vadd.f32 %v6519, 1.0
      %v6624 = vadd.f32 %v6521, 1.0
      %v6625 = vadd.f32 %v6523, 1.0
      %v6626 = vadd.f32 %v6525, 1.0
      %v6627 = vadd.f32 %v6527, 1.0
      %v6628 = vadd.f32 %v6529, 1.0
      %v6629 = vadd.f32 %v6531, 1.0
      %v6630 = vadd.f32 %v6533, 1.0
      %v6631 = vadd.f32 %v6535, 1.0
      %v6632 = vadd.f32 %v6537, 1.0
      %v6633 = vadd.f32 %v6539, 1.0
      %v6634 = vadd.f32 %v6541, 1.0
      %v6635 = vadd.f32 %v6543, 1.0
      %v6636 = vadd.f32 %v6545, 1.0
      %v6637 = vadd.f32 %v6547, 1.0
      %v6638 = vadd.f32 %v6549, 1.0
      %v6639 = vadd.f32 %v6551, 1.0
      %v6640 = vadd.f32 %v6553, 1.0
      %v6641 = vadd.f32 %v6555, 1.0
      %v6642 = vadd.f32 %v6557, 1.0
      %v6643 = vadd.f32 %v6559, 1.0
      %v6644 = vadd.f32 %v6561, 1.0
      %v6645 = vadd.f32 %v6563, 1.0
      %v6646 = vadd.f32 %v6565, 1.0
      %v6647 = vadd.f32 %v6567, 1.0
      %v6648 = vadd.f32 %v6569, 1.0
      %v6649 = vadd.f32 %v6571, 1.0
      %v6650 = vadd.f32 %v6573, 1.0
      %v6651 = vadd.f32 %v6575, 1.0
      %v6652 = vadd.f32 %v6577, 1.0
      %v6653 = vadd.f32 %v6579, 1.0
      %v6654 = vadd.f32 %v6581, 1.0
      %v6655 = vadd.f32 %v6583, 1.0
      %v6656 = vadd.f32 %v6585, 1.0
      %v6657 = vadd.f32 %v6587, 1.0
      %v6658 = vadd.f32 %v6589, 1.0
      %v6659 = vadd.f32 %v6591, 1.0
      %v6660 = vadd.f32 %v6593, 1.0
      %v6661 = vadd.f32 %v6595, 1.0
      %v6662 = vadd.f32 %v6597, 1.0
      %v6663 = vadd.f32 %v6599, 1.0
      %v6664 = vrcp.pop %v6600
      %v6665 = vrcp.pop %v6601
      %v6666 = vrcp.pop %v6602
      %v6667 = vrcp.pop %v6603
      %v6668 = vrcp.pop %v6604
      %v6669 = vrcp.pop %v6605
      %v6670 = vrcp.pop %v6606
      %v6671 = vrcp.pop %v6607
      %v6672 = vrcp.pop %v6608
      %v6673 = vrcp.pop %v6609
      %v6674 = vrcp.pop %v6610
      %v6675 = vrcp.pop %v6611
      %v6676 = vrcp.pop %v6612
      %v6677 = vrcp.pop %v6613
      %v6678 = vrcp.pop %v6614
      %v6679 = vrcp.pop %v6615
      %v6680 = vrcp.pop %v6616
      %v6681 = vrcp.pop %v6617
      %v6682 = vrcp.pop %v6618
      %v6683 = vrcp.pop %v6619
      %v6684 = vrcp.pop %v6620
      %v6685 = vrcp.pop %v6621
      %v6686 = vrcp.pop %v6622
      %v6687 = vrcp.pop %v6623
      %v6688 = vrcp.pop %v6624
      %v6689 = vrcp.pop %v6625
      %v6690 = vrcp.pop %v6626
      %v6691 = vrcp.pop %v6627
      %v6692 = vrcp.pop %v6628
      %v6693 = vrcp.pop %v6629
      %v6694 = vrcp.pop %v6630
      %v6695 = vrcp.pop %v6631
      %v6696 = vrcp.pop %v6632
      %v6697 = vrcp.pop %v6633
      %v6698 = vrcp.pop %v6634
      %v6699 = vrcp.pop %v6635
      %v6700 = vrcp.pop %v6636
      %v6701 = vrcp.pop %v6637
      %v6702 = vrcp.pop %v6638
      %v6703 = vrcp.pop %v6639
      %v6704 = vrcp.pop %v6640
      %v6705 = vrcp.pop %v6641
      %v6706 = vrcp.pop %v6642
      %v6707 = vrcp.pop %v6643
      %v6708 = vrcp.pop %v6644
      %v6709 = vrcp.pop %v6645
      %v6710 = vrcp.pop %v6646
      %v6711 = vrcp.pop %v6647
      %v6712 = vrcp.pop %v6648
      %v6713 = vrcp.pop %v6649
      %v6714 = vrcp.pop %v6650
      %v6715 = vrcp.pop %v6651
      %v6716 = vrcp.pop %v6652
      %v6717 = vrcp.pop %v6653
      %v6718 = vrcp.pop %v6654
      %v6719 = vrcp.pop %v6655
      %v6720 = vrcp.pop %v6656
      %v6721 = vrcp.pop %v6657
      %v6722 = vrcp.pop %v6658
      %v6723 = vrcp.pop %v6659
      %v6724 = vrcp.pop %v6660
      %v6725 = vrcp.pop %v6661
      %v6726 = vrcp.pop %v6662
      %v6727 = vrcp.pop %v6663
      %vm6728 = vcmask 31744
      %6729 = vst.msk [vmem:[%s364] sm:$0xff] %vm6728, %v6664
      %6730 = vst.msk [vmem:[%s364 + $0x8] sm:$0xff] %vm6728, %v6665
      %6731 = vst.msk [vmem:[%s364 + $0x10] sm:$0xff] %vm6728, %v6666
      %6732 = vst.msk [vmem:[%s364 + $0x18] sm:$0xff] %vm6728, %v6667
      %6733 = vst.msk [vmem:[%s364 + $0x20] sm:$0xff] %vm6728, %v6668
      %6734 = vst.msk [vmem:[%s364 + $0x28] sm:$0xff] %vm6728, %v6669
      %6735 = vst.msk [vmem:[%s364 + $0x30] sm:$0xff] %vm6728, %v6670
      %6736 = vst.msk [vmem:[%s364 + $0x38] sm:$0xff] %vm6728, %v6671
      %6737 = vst.msk [vmem:[%s364 + $0x40] sm:$0xff] %vm6728, %v6672
      %6738 = vst.msk [vmem:[%s364 + $0x48] sm:$0xff] %vm6728, %v6673
      %6739 = vst.msk [vmem:[%s364 + $0x50] sm:$0xff] %vm6728, %v6674
      %6740 = vst.msk [vmem:[%s364 + $0x58] sm:$0xff] %vm6728, %v6675
      %6741 = vst.msk [vmem:[%s364 + $0x60] sm:$0xff] %vm6728, %v6676
      %6742 = vst.msk [vmem:[%s364 + $0x68] sm:$0xff] %vm6728, %v6677
      %6743 = vst.msk [vmem:[%s364 + $0x70] sm:$0xff] %vm6728, %v6678
      %6744 = vst.msk [vmem:[%s364 + $0x78] sm:$0xff] %vm6728, %v6679
      %6745 = vst.msk [vmem:[%s364 + $0x80] sm:$0xff] %vm6728, %v6680
      %6746 = vst.msk [vmem:[%s364 + $0x88] sm:$0xff] %vm6728, %v6681
      %6747 = vst.msk [vmem:[%s364 + $0x90] sm:$0xff] %vm6728, %v6682
      %6748 = vst.msk [vmem:[%s364 + $0x98] sm:$0xff] %vm6728, %v6683
      %6749 = vst.msk [vmem:[%s364 + $0xa0] sm:$0xff] %vm6728, %v6684
      %6750 = vst.msk [vmem:[%s364 + $0xa8] sm:$0xff] %vm6728, %v6685
      %6751 = vst.msk [vmem:[%s364 + $0xb0] sm:$0xff] %vm6728, %v6686
      %6752 = vst.msk [vmem:[%s364 + $0xb8] sm:$0xff] %vm6728, %v6687
      %6753 = vst.msk [vmem:[%s364 + $0xc0] sm:$0xff] %vm6728, %v6688
      %6754 = vst.msk [vmem:[%s364 + $0xc8] sm:$0xff] %vm6728, %v6689
      %6755 = vst.msk [vmem:[%s364 + $0xd0] sm:$0xff] %vm6728, %v6690
      %6756 = vst.msk [vmem:[%s364 + $0xd8] sm:$0xff] %vm6728, %v6691
      %6757 = vst.msk [vmem:[%s364 + $0xe0] sm:$0xff] %vm6728, %v6692
      %6758 = vst.msk [vmem:[%s364 + $0xe8] sm:$0xff] %vm6728, %v6693
      %6759 = vst.msk [vmem:[%s364 + $0xf0] sm:$0xff] %vm6728, %v6694
      %6760 = vst.msk [vmem:[%s364 + $0xf8] sm:$0xff] %vm6728, %v6695
      %6761 = vst.msk [vmem:[%s364 + $0x100] sm:$0xff] %vm6728, %v6696
      %6762 = vst.msk [vmem:[%s364 + $0x108] sm:$0xff] %vm6728, %v6697
      %6763 = vst.msk [vmem:[%s364 + $0x110] sm:$0xff] %vm6728, %v6698
      %6764 = vst.msk [vmem:[%s364 + $0x118] sm:$0xff] %vm6728, %v6699
      %6765 = vst.msk [vmem:[%s364 + $0x120] sm:$0xff] %vm6728, %v6700
      %6766 = vst.msk [vmem:[%s364 + $0x128] sm:$0xff] %vm6728, %v6701
      %6767 = vst.msk [vmem:[%s364 + $0x130] sm:$0xff] %vm6728, %v6702
      %6768 = vst.msk [vmem:[%s364 + $0x138] sm:$0xff] %vm6728, %v6703
      %6769 = vst.msk [vmem:[%s364 + $0x140] sm:$0xff] %vm6728, %v6704
      %6770 = vst.msk [vmem:[%s364 + $0x148] sm:$0xff] %vm6728, %v6705
      %6771 = vst.msk [vmem:[%s364 + $0x150] sm:$0xff] %vm6728, %v6706
      %6772 = vst.msk [vmem:[%s364 + $0x158] sm:$0xff] %vm6728, %v6707
      %6773 = vst.msk [vmem:[%s364 + $0x160] sm:$0xff] %vm6728, %v6708
      %6774 = vst.msk [vmem:[%s364 + $0x168] sm:$0xff] %vm6728, %v6709
      %6775 = vst.msk [vmem:[%s364 + $0x170] sm:$0xff] %vm6728, %v6710
      %6776 = vst.msk [vmem:[%s364 + $0x178] sm:$0xff] %vm6728, %v6711
      %6777 = vst.msk [vmem:[%s364 + $0x180] sm:$0xff] %vm6728, %v6712
      %6778 = vst.msk [vmem:[%s364 + $0x188] sm:$0xff] %vm6728, %v6713
      %6779 = vst.msk [vmem:[%s364 + $0x190] sm:$0xff] %vm6728, %v6714
      %6780 = vst.msk [vmem:[%s364 + $0x198] sm:$0xff] %vm6728, %v6715
      %6781 = vst.msk [vmem:[%s364 + $0x1a0] sm:$0xff] %vm6728, %v6716
      %6782 = vst.msk [vmem:[%s364 + $0x1a8] sm:$0xff] %vm6728, %v6717
      %6783 = vst.msk [vmem:[%s364 + $0x1b0] sm:$0xff] %vm6728, %v6718
      %6784 = vst.msk [vmem:[%s364 + $0x1b8] sm:$0xff] %vm6728, %v6719
      %6785 = vst.msk [vmem:[%s364 + $0x1c0] sm:$0xff] %vm6728, %v6720
      %6786 = vst.msk [vmem:[%s364 + $0x1c8] sm:$0xff] %vm6728, %v6721
      %6787 = vst.msk [vmem:[%s364 + $0x1d0] sm:$0xff] %vm6728, %v6722
      %6788 = vst.msk [vmem:[%s364 + $0x1d8] sm:$0xff] %vm6728, %v6723
      %6789 = vst.msk [vmem:[%s364 + $0x1e0] sm:$0xff] %vm6728, %v6724
      %6790 = vst.msk [vmem:[%s364 + $0x1e8] sm:$0xff] %vm6728, %v6725
      %6791 = vst.msk [vmem:[%s364 + $0x1f0] sm:$0xff] %vm6728, %v6726
      %6792 = vst.msk [vmem:[%s364 + $0x1f8] sm:$0xff] %vm6728, %v6727
      %vm6793 = vcmask 7168
      %6794 = vst.msk [vmem:[%s370] sm:$0xff] %vm6793, %v4911
      %6795 = vst.msk [vmem:[%s370 + $0x8] sm:$0xff] %vm6793, %v4912
      %6796 = vst.msk [vmem:[%s370 + $0x10] sm:$0xff] %vm6793, %v4913
      %6797 = vst.msk [vmem:[%s370 + $0x18] sm:$0xff] %vm6793, %v4914
      %6798 = vst.msk [vmem:[%s370 + $0x20] sm:$0xff] %vm6793, %v4915
      %6799 = vst.msk [vmem:[%s370 + $0x28] sm:$0xff] %vm6793, %v4916
      %6800 = vst.msk [vmem:[%s370 + $0x30] sm:$0xff] %vm6793, %v4917
      %6801 = vst.msk [vmem:[%s370 + $0x38] sm:$0xff] %vm6793, %v4918
      %6802 = vst.msk [vmem:[%s370 + $0x40] sm:$0xff] %vm6793, %v4919
      %6803 = vst.msk [vmem:[%s370 + $0x48] sm:$0xff] %vm6793, %v4920
      %6804 = vst.msk [vmem:[%s370 + $0x50] sm:$0xff] %vm6793, %v4921
      %6805 = vst.msk [vmem:[%s370 + $0x58] sm:$0xff] %vm6793, %v4922
      %6806 = vst.msk [vmem:[%s370 + $0x60] sm:$0xff] %vm6793, %v4923
      %6807 = vst.msk [vmem:[%s370 + $0x68] sm:$0xff] %vm6793, %v4924
      %6808 = vst.msk [vmem:[%s370 + $0x70] sm:$0xff] %vm6793, %v4925
      %6809 = vst.msk [vmem:[%s370 + $0x78] sm:$0xff] %vm6793, %v4926
      %6810 = vst.msk [vmem:[%s370 + $0x80] sm:$0xff] %vm6793, %v4927
      %6811 = vst.msk [vmem:[%s370 + $0x88] sm:$0xff] %vm6793, %v4928
      %6812 = vst.msk [vmem:[%s370 + $0x90] sm:$0xff] %vm6793, %v4929
      %6813 = vst.msk [vmem:[%s370 + $0x98] sm:$0xff] %vm6793, %v4930
      %6814 = vst.msk [vmem:[%s370 + $0xa0] sm:$0xff] %vm6793, %v4931
      %6815 = vst.msk [vmem:[%s370 + $0xa8] sm:$0xff] %vm6793, %v4932
      %6816 = vst.msk [vmem:[%s370 + $0xb0] sm:$0xff] %vm6793, %v4933
      %6817 = vst.msk [vmem:[%s370 + $0xb8] sm:$0xff] %vm6793, %v4934
      %6818 = vst.msk [vmem:[%s370 + $0xc0] sm:$0xff] %vm6793, %v4935
      %6819 = vst.msk [vmem:[%s370 + $0xc8] sm:$0xff] %vm6793, %v4936
      %6820 = vst.msk [vmem:[%s370 + $0xd0] sm:$0xff] %vm6793, %v4937
      %6821 = vst.msk [vmem:[%s370 + $0xd8] sm:$0xff] %vm6793, %v4938
      %6822 = vst.msk [vmem:[%s370 + $0xe0] sm:$0xff] %vm6793, %v4939
      %6823 = vst.msk [vmem:[%s370 + $0xe8] sm:$0xff] %vm6793, %v4940
      %6824 = vst.msk [vmem:[%s370 + $0xf0] sm:$0xff] %vm6793, %v4941
      %6825 = vst.msk [vmem:[%s370 + $0xf8] sm:$0xff] %vm6793, %v4942
      %6826 = vst.msk [vmem:[%s370 + $0x100] sm:$0xff] %vm6793, %v4943
      %6827 = vst.msk [vmem:[%s370 + $0x108] sm:$0xff] %vm6793, %v4944
      %6828 = vst.msk [vmem:[%s370 + $0x110] sm:$0xff] %vm6793, %v4945
      %6829 = vst.msk [vmem:[%s370 + $0x118] sm:$0xff] %vm6793, %v4946
      %6830 = vst.msk [vmem:[%s370 + $0x120] sm:$0xff] %vm6793, %v4947
      %6831 = vst.msk [vmem:[%s370 + $0x128] sm:$0xff] %vm6793, %v4948
      %6832 = vst.msk [vmem:[%s370 + $0x130] sm:$0xff] %vm6793, %v4949
      %6833 = vst.msk [vmem:[%s370 + $0x138] sm:$0xff] %vm6793, %v4950
      %6834 = vst.msk [vmem:[%s370 + $0x140] sm:$0xff] %vm6793, %v4951
      %6835 = vst.msk [vmem:[%s370 + $0x148] sm:$0xff] %vm6793, %v4952
      %6836 = vst.msk [vmem:[%s370 + $0x150] sm:$0xff] %vm6793, %v4953
      %6837 = vst.msk [vmem:[%s370 + $0x158] sm:$0xff] %vm6793, %v4954
      %6838 = vst.msk [vmem:[%s370 + $0x160] sm:$0xff] %vm6793, %v4955
      %6839 = vst.msk [vmem:[%s370 + $0x168] sm:$0xff] %vm6793, %v4956
      %6840 = vst.msk [vmem:[%s370 + $0x170] sm:$0xff] %vm6793, %v4957
      %6841 = vst.msk [vmem:[%s370 + $0x178] sm:$0xff] %vm6793, %v4958
      %6842 = vst.msk [vmem:[%s370 + $0x180] sm:$0xff] %vm6793, %v4959
      %6843 = vst.msk [vmem:[%s370 + $0x188] sm:$0xff] %vm6793, %v4960
      %6844 = vst.msk [vmem:[%s370 + $0x190] sm:$0xff] %vm6793, %v4961
      %6845 = vst.msk [vmem:[%s370 + $0x198] sm:$0xff] %vm6793, %v4962
      %6846 = vst.msk [vmem:[%s370 + $0x1a0] sm:$0xff] %vm6793, %v4963
      %6847 = vst.msk [vmem:[%s370 + $0x1a8] sm:$0xff] %vm6793, %v4964
      %6848 = vst.msk [vmem:[%s370 + $0x1b0] sm:$0xff] %vm6793, %v4965
      %6849 = vst.msk [vmem:[%s370 + $0x1b8] sm:$0xff] %vm6793, %v4966
      %6850 = vst.msk [vmem:[%s370 + $0x1c0] sm:$0xff] %vm6793, %v4967
      %6851 = vst.msk [vmem:[%s370 + $0x1c8] sm:$0xff] %vm6793, %v4968
      %6852 = vst.msk [vmem:[%s370 + $0x1d0] sm:$0xff] %vm6793, %v4969
      %6853 = vst.msk [vmem:[%s370 + $0x1d8] sm:$0xff] %vm6793, %v4970
      %6854 = vst.msk [vmem:[%s370 + $0x1e0] sm:$0xff] %vm6793, %v4971
      %6855 = vst.msk [vmem:[%s370 + $0x1e8] sm:$0xff] %vm6793, %v4972
      %6856 = vst.msk [vmem:[%s370 + $0x1f0] sm:$0xff] %vm6793, %v4973
      %6857 = vst.msk [vmem:[%s370 + $0x1f8] sm:$0xff] %vm6793, %v4974
      %s6858 = smul.u32 64, %s21
      %p6859 = scmp.lt.s32.totalorder %s6858, 127
      %s6860 = scalar_select %p6859, %s6858, 127
      %s6861 = smul.addr %s6860, 8
      %s6862 = scalar_lea.vmem %s8, %s6861
      %s6863 = smul.u32 64, %s21
      %p6864 = scmp.lt.s32.totalorder %s6863, 127
      %s6865 = scalar_select %p6864, %s6863, 127
      %s6866 = smul.addr %s6865, 8
      %s6867 = scalar_lea.vmem %s9, %s6866
      // Predicated region
      $region53: #{nerf_forward.1} parent=51 // pred_check
        %p6868 = pneg %p217
      $region54: #{nerf_forward.1} parent=51 // pred_check_branch
        %6870 = sbr.rel (%p6868) target = $region56
      $region55: #{nerf_forward.1} parent=51 // pred_region
        %s6871 = smul.u32 64, %s21
      $region56: #{nerf_forward.1} parent=51 // pred_fallthru
        _
      // Predicated region
      $region57: #{nerf_forward.1} parent=51 // pred_check
        %p6872 = pneg %p243
      $region58: #{nerf_forward.1} parent=51 // pred_check_branch
        %6874 = sbr.rel (%p6872) target = $region60
      $region59: #{nerf_forward.1} parent=51 // pred_region
        %s6875 = smul.u32 64, %s21
      $region60: #{nerf_forward.1} parent=51 // pred_fallthru
        _
    $region52: #{nerf_forward.1} parent=5 // pred_fallthru
      _
    %p6876 = scmp.le.s32.totalorder 2, %s16
    // Predicated region
    $region61: #{nerf_forward.1} parent=5 // pred_check
      %p6877 = pneg %p6876
    $region62: #{nerf_forward.1} parent=5 // pred_check_branch
      %6879 = sbr.rel (%p6877) target = $region64
    $region63: #{nerf_forward.1} parent=5 // pred_region
      %s6880 = ssub.s32 %s16, 2
      // Predicated region
      $region65: #{nerf_forward.1} parent=63 // pred_check
        %p6881 = pneg %p223
      $region66: #{nerf_forward.1} parent=63 // pred_check_branch
        %6883 = sbr.rel (%p6881) target = $region68
      $region67: #{nerf_forward.1} parent=63 // pred_region
        %s6884 = smul.u32 64, %s22
        %p6885 = scmp.lt.s32.totalorder %s6884, 127
        %s6886 = scalar_select %p6885, %s6884, 127
        %s6887 = smul.addr %s6886, 8
        %s6888 = scalar_lea.vmem %s8, %s6887
      $region68: #{nerf_forward.1} parent=63 // pred_fallthru
        _
      // Predicated region
      $region69: #{nerf_forward.1} parent=63 // pred_check
        %p6889 = pneg %p249
      $region70: #{nerf_forward.1} parent=63 // pred_check_branch
        %6891 = sbr.rel (%p6889) target = $region72
      $region71: #{nerf_forward.1} parent=63 // pred_region
        %s6892 = smul.u32 64, %s22
        %p6893 = scmp.lt.s32.totalorder %s6892, 127
        %s6894 = scalar_select %p6893, %s6892, 127
        %s6895 = smul.addr %s6894, 8
        %s6896 = scalar_lea.vmem %s9, %s6895
      $region72: #{nerf_forward.1} parent=63 // pred_fallthru
        _
    $region64: #{nerf_forward.1} parent=5 // pred_fallthru
      _
  $region6: #{nerf_forward.1} parent=0 // loop_footer
    %s20 = sadd.s32 1, %s16
  $region7: #{nerf_forward.1} parent=0 // loop_footer_branch
    %15 = sbr.rel target = $region3
  $region8: #{nerf_forward.1} parent=0 // loop_exit
    _

</llo_original>
